<compile_context>
chip_gen: v7x
topology: tpu7x:2x2x1
jax: 0.10.0
libtpu: 0.0.40
codegen_flags: <defaults>
</compile_context>

<pallas_src>
import math

import jax
import jax.numpy as jnp
from jax import lax
from jax.experimental import pallas as pl
from jax.experimental.pallas import tpu as pltpu


# Contract the last dim of x with the last dim of w (i.e. x @ w.T, torch nn.Linear layout).
_DN_NT = (((1,), (1,)), ((), ()))


def make_mha_kernel(B, Lq, Lk, H, D, E, scale, with_weights):
    """Fused MHA kernel: projections + per-head attention + out_proj, one launch."""

    def kernel(xq_ref, xk_ref, xv_ref, w_ref, b_ref, o_ref, *rest):
        if with_weights:
            attnw_ref, ctx_ref = rest
        else:
            (ctx_ref,) = rest
            attnw_ref = None

        # Packed weights [4, E, E] / biases [4, E]: 2 DMAs instead of 8.
        wq = w_ref[0]
        wk = w_ref[1]
        wv = w_ref[2]
        wo = w_ref[3]
        bq = b_ref[0:1, :]
        bk = b_ref[1:2, :]
        bv = b_ref[2:3, :]
        bo = b_ref[3:4, :]

        # One lane-dense [B*L, E] x [E, E] projection per weight (batch fused).
        # The 1/sqrt(head_dim) scale is folded into q.
        q = (lax.dot_general(xq_ref[...], wq, _DN_NT,
                             preferred_element_type=jnp.float32) + bq) * scale
        k = lax.dot_general(xk_ref[...], wk, _DN_NT,
                            preferred_element_type=jnp.float32) + bk
        v = lax.dot_general(xv_ref[...], wv, _DN_NT,
                            preferred_element_type=jnp.float32) + bv

        # Per-(batch, head) attention; B and H are small trace-time constants,
        # everything stays in vregs / VMEM.
        for b in range(B):
            qb = q[b * Lq:(b + 1) * Lq, :]   # [Lq, E]  (contiguous sublane slice)
            kb = k[b * Lk:(b + 1) * Lk, :]   # [Lk, E]
            vb = v[b * Lk:(b + 1) * Lk, :]   # [Lk, E]
            for h in range(H):
                qh = qb[:, h * D:(h + 1) * D]          # [Lq, D]
                kh = kb[:, h * D:(h + 1) * D]          # [Lk, D]
                vh = vb[:, h * D:(h + 1) * D]          # [Lk, D]

                s = lax.dot_general(qh, kh, _DN_NT,
                                    preferred_element_type=jnp.float32)  # [Lq, Lk]
                m = jnp.max(s, axis=-1, keepdims=True)
                e = jnp.exp(s - m)
                denom = jnp.sum(e, axis=-1, keepdims=True)
                p = e / denom  # exact divide: returned weights sum to 1 (torch parity)

                if with_weights:
                    attnw_ref[b * H + h] = p.astype(attnw_ref.dtype)

                # Head output goes straight into its lane slice of the context slab.
                ctx_ref[b * Lq:(b + 1) * Lq, h * D:(h + 1) * D] = jnp.dot(
                    p, vh, preferred_element_type=jnp.float32)

        # Single out_proj matmul over the whole [B*Lq, E] context slab,
        # full-row (unmasked) store to the lane-dense 2D output.
        o = lax.dot_general(ctx_ref[...], wo, _DN_NT,
                            preferred_element_type=jnp.float32) + bo
        o_ref[...] = o.astype(o_ref.dtype)

    return kernel


def pack_params(params):
    """Pack the 4 weight matrices / 4 bias vectors into 2 arrays (do once at init)."""
    w = jnp.stack([params["wq"], params["wk"], params["wv"], params["wo"]])  # [4, E, E]
    b = jnp.stack([params["bq"], params["bk"], params["bv"], params["bo"]])  # [4, E]
    return w, b


def multihead_attention(query, key, value, w_packed, b_packed, num_heads,
                        return_weights=True):
    """
    query: [Lq, B, E], key: [Lk, B, E], value: [Lv, B, E]   (batch_first=False)
    w_packed: [4, E, E] (wq, wk, wv, wo in torch [out, in] layout), b_packed: [4, E].
    Returns (attn_output [Lq, B, E], attn_weights [B*H, Lq, Lk] or None).
    """
    Lq, B, E = query.shape
    Lk = key.shape[0]
    Lv = value.shape[0]
    assert Lk == Lv, "key/value sequence lengths must match (torch.bmm requirement)"
    H = num_heads
    D = E // H
    assert D * H == E
    scale = 1.0 / math.sqrt(D)

    # Wrapper-side layout plumbing (a few KB, essentially free): present
    # lane/sublane-dense 2D [B*L, E] slabs instead of the padded [L, B, E] layout.
    xq2 = query.transpose(1, 0, 2).reshape(B * Lq, E)
    xk2 = key.transpose(1, 0, 2).reshape(B * Lk, E)
    xv2 = value.transpose(1, 0, 2).reshape(B * Lk, E)

    kernel = make_mha_kernel(B, Lq, Lk, H, D, E, scale, return_weights)

    out_shapes = [jax.ShapeDtypeStruct((B * Lq, E), query.dtype)]
    if return_weights:
        out_shapes.append(jax.ShapeDtypeStruct((B * H, Lq, Lk), jnp.float32))

    vmem = pl.BlockSpec(memory_space=pltpu.MemorySpace.VMEM)

    outs = pl.pallas_call(
        kernel,
        out_shape=tuple(out_shapes),
        in_specs=[vmem] * 5,
        out_specs=tuple([vmem] * len(out_shapes)),
        scratch_shapes=[pltpu.VMEM((B * Lq, E), jnp.float32)],
    )(xq2, xk2, xv2, w_packed, b_packed)

    attn_out = outs[0].reshape(B, Lq, E).transpose(1, 0, 2)   # back to [Lq, B, E]
    if return_weights:
        return attn_out, outs[1]
    return attn_out, None


# ----------------------------------------------------------------------------
# Pure-JAX reference for verification
# ----------------------------------------------------------------------------
def reference(query, key, value, params, num_heads):
    Lq, B, E = query.shape
    Lk = key.shape[0]
    H = num_heads
    D = E // H
    q = query @ params["wq"].T + params["bq"]
    k = key @ params["wk"].T + params["bk"]
    v = value @ params["wv"].T + params["bv"]
    qh = q.reshape(Lq, B * H, D).transpose(1, 0, 2)
    kh = k.reshape(Lk, B * H, D).transpose(1, 0, 2)
    vh = v.reshape(Lk, B * H, D).transpose(1, 0, 2)
    scores = jnp.einsum("bqd,bkd->bqk", qh, kh) / math.sqrt(D)
    w = jax.nn.softmax(scores, axis=-1)
    o = jnp.einsum("bqk,bkd->bqd", w, vh)
    o = o.transpose(1, 0, 2).reshape(Lq, B, E)
    o = o @ params["wo"].T + params["bo"]
    return o, w


if __name__ == "__main__":
    # Full-precision f32 matmuls everywhere (kernel + reference) so the parity
    # check is tight; the scaled-up path would switch operands to bf16 instead.
    jax.config.update("jax_default_matmul_precision", "highest")

    # Small shapes consistent with the module: seq=8, batch=2, embed=32, heads=4
    Lq, Lk, B, E, H = 8, 8, 2, 32, 4

    key0 = jax.random.PRNGKey(0)
    ks = jax.random.split(key0, 11)
    query = jax.random.normal(ks[0], (Lq, B, E), dtype=jnp.float32)
    key_ = jax.random.normal(ks[1], (Lk, B, E), dtype=jnp.float32)
    value = jax.random.normal(ks[2], (Lk, B, E), dtype=jnp.float32)

    bound = 1.0 / math.sqrt(E)
    params = {
        "wq": jax.random.uniform(ks[3], (E, E), minval=-bound, maxval=bound),
        "wk": jax.random.uniform(ks[4], (E, E), minval=-bound, maxval=bound),
        "wv": jax.random.uniform(ks[5], (E, E), minval=-bound, maxval=bound),
        "wo": jax.random.uniform(ks[6], (E, E), minval=-bound, maxval=bound),
        "bq": jax.random.uniform(ks[7], (E,), minval=-bound, maxval=bound),
        "bk": jax.random.uniform(ks[8], (E,), minval=-bound, maxval=bound),
        "bv": jax.random.uniform(ks[9], (E,), minval=-bound, maxval=bound),
        "bo": jax.random.uniform(ks[10], (E,), minval=-bound, maxval=bound),
    }
    w_packed, b_packed = pack_params(params)

    # Full path (matches the module: returns per-head weights).
    out, weights = multihead_attention(query, key_, value, w_packed, b_packed, H,
                                       return_weights=True)
    out = jax.block_until_ready(out)
    weights = jax.block_until_ready(weights)

    # Fast path without the attention-weights HBM writeback.
    out_nw, _ = multihead_attention(query, key_, value, w_packed, b_packed, H,
                                    return_weights=False)
    out_nw = jax.block_until_ready(out_nw)

    ref_out, ref_w = reference(query, key_, value, params, H)

    assert out.shape == (Lq, B, E)
    assert weights.shape == (B * H, Lq, Lk)
    assert jnp.allclose(out, ref_out, atol=2e-3, rtol=2e-3)
    assert jnp.allclose(weights, ref_w, atol=2e-3, rtol=2e-3)
    assert jnp.allclose(out_nw, out, atol=1e-5, rtol=1e-5)

    print("KERNEL_OK")
</pallas_src>

<mosaic_0001>
module attributes {stable_mosaic.version = 11 : i64} {
  func.func @kernel(%arg0: memref<16x32xf32, #tpu.memory_space<vmem>>, %arg1: memref<16x32xf32, #tpu.memory_space<vmem>>, %arg2: memref<16x32xf32, #tpu.memory_space<vmem>>, %arg3: memref<4x32x32xf32, #tpu.memory_space<vmem>>, %arg4: memref<4x32xf32, #tpu.memory_space<vmem>>, %arg5: memref<16x32xf32, #tpu.memory_space<vmem>>, %arg6: memref<8x8x8xf32, #tpu.memory_space<vmem>>, %arg7: memref<16x32xf32, #tpu.memory_space<vmem>>) attributes {dimension_semantics = [], scalar_prefetch = 0 : i64, scratch_operands = 1 : i64, tpu.core_type = #tpu.core_type<tc>} {
    %c0 = arith.constant 0 : index
    %c0_0 = arith.constant 0 : index
    %c0_1 = arith.constant 0 : index
    %0 = vector.load %arg3[%c0, %c0_0, %c0_1] : memref<4x32x32xf32, #tpu.memory_space<vmem>>, vector<1x32x32xf32>
    %1 = vector.shape_cast %0 : vector<1x32x32xf32> to vector<32x32xf32>
    %c1 = arith.constant 1 : index
    %c0_2 = arith.constant 0 : index
    %c0_3 = arith.constant 0 : index
    %2 = vector.load %arg3[%c1, %c0_2, %c0_3] : memref<4x32x32xf32, #tpu.memory_space<vmem>>, vector<1x32x32xf32>
    %3 = vector.shape_cast %2 : vector<1x32x32xf32> to vector<32x32xf32>
    %c2 = arith.constant 2 : index
    %c0_4 = arith.constant 0 : index
    %c0_5 = arith.constant 0 : index
    %4 = vector.load %arg3[%c2, %c0_4, %c0_5] : memref<4x32x32xf32, #tpu.memory_space<vmem>>, vector<1x32x32xf32>
    %5 = vector.shape_cast %4 : vector<1x32x32xf32> to vector<32x32xf32>
    %c3 = arith.constant 3 : index
    %c0_6 = arith.constant 0 : index
    %c0_7 = arith.constant 0 : index
    %6 = vector.load %arg3[%c3, %c0_6, %c0_7] : memref<4x32x32xf32, #tpu.memory_space<vmem>>, vector<1x32x32xf32>
    %7 = vector.shape_cast %6 : vector<1x32x32xf32> to vector<32x32xf32>
    %c0_8 = arith.constant 0 : index
    %c0_9 = arith.constant 0 : index
    %8 = vector.load %arg4[%c0_8, %c0_9] : memref<4x32xf32, #tpu.memory_space<vmem>>, vector<1x32xf32>
    %c1_10 = arith.constant 1 : index
    %c0_11 = arith.constant 0 : index
    %9 = vector.load %arg4[%c1_10, %c0_11] : memref<4x32xf32, #tpu.memory_space<vmem>>, vector<1x32xf32>
    %c2_12 = arith.constant 2 : index
    %c0_13 = arith.constant 0 : index
    %10 = vector.load %arg4[%c2_12, %c0_13] : memref<4x32xf32, #tpu.memory_space<vmem>>, vector<1x32xf32>
    %c3_14 = arith.constant 3 : index
    %c0_15 = arith.constant 0 : index
    %11 = vector.load %arg4[%c3_14, %c0_15] : memref<4x32xf32, #tpu.memory_space<vmem>>, vector<1x32xf32>
    %c0_16 = arith.constant 0 : index
    %c0_17 = arith.constant 0 : index
    %12 = vector.load %arg0[%c0_16, %c0_17] : memref<16x32xf32, #tpu.memory_space<vmem>>, vector<16x32xf32>
    %cst = arith.constant dense<0.000000e+00> : vector<16x32xf32>
    %13 = tpu.matmul %12, %1, %cst {dimension_numbers = #tpu.dot_dimension_numbers<[1], [1], [0], [0], [0, 0, 1, 0], [], []>, precision = #tpu.contract_precision<fp32>} : vector<16x32xf32>, vector<32x32xf32>, vector<16x32xf32> -> vector<16x32xf32>
    %14 = vector.broadcast %8 : vector<1x32xf32> to vector<16x32xf32>
    %15 = arith.addf %13, %14 : vector<16x32xf32>
    %cst_18 = arith.constant 0.353553385 : f32
    %16 = vector.broadcast %cst_18 : f32 to vector<16x32xf32>
    %17 = arith.mulf %15, %16 : vector<16x32xf32>
    %c0_19 = arith.constant 0 : index
    %c0_20 = arith.constant 0 : index
    %18 = vector.load %arg1[%c0_19, %c0_20] : memref<16x32xf32, #tpu.memory_space<vmem>>, vector<16x32xf32>
    %cst_21 = arith.constant dense<0.000000e+00> : vector<16x32xf32>
    %19 = tpu.matmul %18, %3, %cst_21 {dimension_numbers = #tpu.dot_dimension_numbers<[1], [1], [0], [0], [0, 0, 1, 0], [], []>, precision = #tpu.contract_precision<fp32>} : vector<16x32xf32>, vector<32x32xf32>, vector<16x32xf32> -> vector<16x32xf32>
    %20 = vector.broadcast %9 : vector<1x32xf32> to vector<16x32xf32>
    %21 = arith.addf %19, %20 : vector<16x32xf32>
    %c0_22 = arith.constant 0 : index
    %c0_23 = arith.constant 0 : index
    %22 = vector.load %arg2[%c0_22, %c0_23] : memref<16x32xf32, #tpu.memory_space<vmem>>, vector<16x32xf32>
    %cst_24 = arith.constant dense<0.000000e+00> : vector<16x32xf32>
    %23 = tpu.matmul %22, %5, %cst_24 {dimension_numbers = #tpu.dot_dimension_numbers<[1], [1], [0], [0], [0, 0, 1, 0], [], []>, precision = #tpu.contract_precision<fp32>} : vector<16x32xf32>, vector<32x32xf32>, vector<16x32xf32> -> vector<16x32xf32>
    %24 = vector.broadcast %10 : vector<1x32xf32> to vector<16x32xf32>
    %25 = arith.addf %23, %24 : vector<16x32xf32>
    %26 = vector.extract_strided_slice %17 {offsets = [0, 0], sizes = [8, 32], strides = [1, 1]} : vector<16x32xf32> to vector<8x32xf32>
    %27 = vector.extract_strided_slice %21 {offsets = [0, 0], sizes = [8, 32], strides = [1, 1]} : vector<16x32xf32> to vector<8x32xf32>
    %28 = vector.extract_strided_slice %25 {offsets = [0, 0], sizes = [8, 32], strides = [1, 1]} : vector<16x32xf32> to vector<8x32xf32>
    %29 = vector.extract_strided_slice %26 {offsets = [0, 0], sizes = [8, 8], strides = [1, 1]} : vector<8x32xf32> to vector<8x8xf32>
    %30 = vector.extract_strided_slice %27 {offsets = [0, 0], sizes = [8, 8], strides = [1, 1]} : vector<8x32xf32> to vector<8x8xf32>
    %31 = vector.extract_strided_slice %28 {offsets = [0, 0], sizes = [8, 8], strides = [1, 1]} : vector<8x32xf32> to vector<8x8xf32>
    %cst_25 = arith.constant dense<0.000000e+00> : vector<8x8xf32>
    %32 = tpu.matmul %29, %30, %cst_25 {dimension_numbers = #tpu.dot_dimension_numbers<[1], [1], [0], [0], [0, 0, 1, 0], [], []>, precision = #tpu.contract_precision<fp32>} : vector<8x8xf32>, vector<8x8xf32>, vector<8x8xf32> -> vector<8x8xf32>
    %cst_26 = arith.constant dense<0xFF800000> : vector<8xf32>
    %33 = vector.multi_reduction <maximumf>, %32, %cst_26 [1] : vector<8x8xf32> to vector<8xf32>
    %34 = vector.shape_cast %33 : vector<8xf32> to vector<8x1xf32>
    %35 = vector.broadcast %34 : vector<8x1xf32> to vector<8x8xf32>
    %36 = arith.subf %32, %35 : vector<8x8xf32>
    %37 = math.exp %36 : vector<8x8xf32>
    %cst_27 = arith.constant dense<0.000000e+00> : vector<8xf32>
    %38 = vector.multi_reduction <add>, %37, %cst_27 [1] : vector<8x8xf32> to vector<8xf32>
    %39 = vector.shape_cast %38 : vector<8xf32> to vector<8x1xf32>
    %40 = vector.broadcast %39 : vector<8x1xf32> to vector<8x8xf32>
    %41 = arith.divf %37, %40 : vector<8x8xf32>
    %c0_28 = arith.constant 0 : index
    %c0_29 = arith.constant 0 : index
    %c0_30 = arith.constant 0 : index
    %42 = vector.load %arg6[%c0_28, %c0_29, %c0_30] : memref<8x8x8xf32, #tpu.memory_space<vmem>>, vector<1x8x8xf32>
    %43 = vector.shape_cast %42 : vector<1x8x8xf32> to vector<8x8xf32>
    %44 = vector.shape_cast %41 : vector<8x8xf32> to vector<1x8x8xf32>
    tpu.vector_store %arg6[%c0_28, %c0_29, %c0_30], %44 {strides = array<i32>} : memref<8x8x8xf32, #tpu.memory_space<vmem>>, vector<1x8x8xf32>,
    %cst_31 = arith.constant dense<0.000000e+00> : vector<8x8xf32>
    %45 = tpu.matmul %41, %31, %cst_31 {dimension_numbers = #tpu.dot_dimension_numbers<[1], [0], [0], [1], [0, 0, 1, 1], [], []>, precision = #tpu.contract_precision<fp32>} : vector<8x8xf32>, vector<8x8xf32>, vector<8x8xf32> -> vector<8x8xf32>
    %c0_32 = arith.constant 0 : index
    %c0_33 = arith.constant 0 : index
    %46 = vector.load %arg7[%c0_32, %c0_33] : memref<16x32xf32, #tpu.memory_space<vmem>>, vector<8x8xf32>
    tpu.vector_store %arg7[%c0_32, %c0_33], %45 {strides = array<i32>} : memref<16x32xf32, #tpu.memory_space<vmem>>, vector<8x8xf32>,
    %47 = vector.extract_strided_slice %26 {offsets = [0, 8], sizes = [8, 8], strides = [1, 1]} : vector<8x32xf32> to vector<8x8xf32>
    %48 = vector.extract_strided_slice %27 {offsets = [0, 8], sizes = [8, 8], strides = [1, 1]} : vector<8x32xf32> to vector<8x8xf32>
    %49 = vector.extract_strided_slice %28 {offsets = [0, 8], sizes = [8, 8], strides = [1, 1]} : vector<8x32xf32> to vector<8x8xf32>
    %cst_34 = arith.constant dense<0.000000e+00> : vector<8x8xf32>
    %50 = tpu.matmul %47, %48, %cst_34 {dimension_numbers = #tpu.dot_dimension_numbers<[1], [1], [0], [0], [0, 0, 1, 0], [], []>, precision = #tpu.contract_precision<fp32>} : vector<8x8xf32>, vector<8x8xf32>, vector<8x8xf32> -> vector<8x8xf32>
    %cst_35 = arith.constant dense<0xFF800000> : vector<8xf32>
    %51 = vector.multi_reduction <maximumf>, %50, %cst_35 [1] : vector<8x8xf32> to vector<8xf32>
    %52 = vector.shape_cast %51 : vector<8xf32> to vector<8x1xf32>
    %53 = vector.broadcast %52 : vector<8x1xf32> to vector<8x8xf32>
    %54 = arith.subf %50, %53 : vector<8x8xf32>
    %55 = math.exp %54 : vector<8x8xf32>
    %cst_36 = arith.constant dense<0.000000e+00> : vector<8xf32>
    %56 = vector.multi_reduction <add>, %55, %cst_36 [1] : vector<8x8xf32> to vector<8xf32>
    %57 = vector.shape_cast %56 : vector<8xf32> to vector<8x1xf32>
    %58 = vector.broadcast %57 : vector<8x1xf32> to vector<8x8xf32>
    %59 = arith.divf %55, %58 : vector<8x8xf32>
    %c1_37 = arith.constant 1 : index
    %c0_38 = arith.constant 0 : index
    %c0_39 = arith.constant 0 : index
    %60 = vector.load %arg6[%c1_37, %c0_38, %c0_39] : memref<8x8x8xf32, #tpu.memory_space<vmem>>, vector<1x8x8xf32>
    %61 = vector.shape_cast %60 : vector<1x8x8xf32> to vector<8x8xf32>
    %62 = vector.shape_cast %59 : vector<8x8xf32> to vector<1x8x8xf32>
    tpu.vector_store %arg6[%c1_37, %c0_38, %c0_39], %62 {strides = array<i32>} : memref<8x8x8xf32, #tpu.memory_space<vmem>>, vector<1x8x8xf32>,
    %cst_40 = arith.constant dense<0.000000e+00> : vector<8x8xf32>
    %63 = tpu.matmul %59, %49, %cst_40 {dimension_numbers = #tpu.dot_dimension_numbers<[1], [0], [0], [1], [0, 0, 1, 1], [], []>, precision = #tpu.contract_precision<fp32>} : vector<8x8xf32>, vector<8x8xf32>, vector<8x8xf32> -> vector<8x8xf32>
    %c0_41 = arith.constant 0 : index
    %c8 = arith.constant 8 : index
    %64 = vector.load %arg7[%c0_41, %c8] : memref<16x32xf32, #tpu.memory_space<vmem>>, vector<8x8xf32>
    tpu.vector_store %arg7[%c0_41, %c8], %63 {strides = array<i32>} : memref<16x32xf32, #tpu.memory_space<vmem>>, vector<8x8xf32>,
    %65 = vector.extract_strided_slice %26 {offsets = [0, 16], sizes = [8, 8], strides = [1, 1]} : vector<8x32xf32> to vector<8x8xf32>
    %66 = vector.extract_strided_slice %27 {offsets = [0, 16], sizes = [8, 8], strides = [1, 1]} : vector<8x32xf32> to vector<8x8xf32>
    %67 = vector.extract_strided_slice %28 {offsets = [0, 16], sizes = [8, 8], strides = [1, 1]} : vector<8x32xf32> to vector<8x8xf32>
    %cst_42 = arith.constant dense<0.000000e+00> : vector<8x8xf32>
    %68 = tpu.matmul %65, %66, %cst_42 {dimension_numbers = #tpu.dot_dimension_numbers<[1], [1], [0], [0], [0, 0, 1, 0], [], []>, precision = #tpu.contract_precision<fp32>} : vector<8x8xf32>, vector<8x8xf32>, vector<8x8xf32> -> vector<8x8xf32>
    %cst_43 = arith.constant dense<0xFF800000> : vector<8xf32>
    %69 = vector.multi_reduction <maximumf>, %68, %cst_43 [1] : vector<8x8xf32> to vector<8xf32>
    %70 = vector.shape_cast %69 : vector<8xf32> to vector<8x1xf32>
    %71 = vector.broadcast %70 : vector<8x1xf32> to vector<8x8xf32>
    %72 = arith.subf %68, %71 : vector<8x8xf32>
    %73 = math.exp %72 : vector<8x8xf32>
    %cst_44 = arith.constant dense<0.000000e+00> : vector<8xf32>
    %74 = vector.multi_reduction <add>, %73, %cst_44 [1] : vector<8x8xf32> to vector<8xf32>
    %75 = vector.shape_cast %74 : vector<8xf32> to vector<8x1xf32>
    %76 = vector.broadcast %75 : vector<8x1xf32> to vector<8x8xf32>
    %77 = arith.divf %73, %76 : vector<8x8xf32>
    %c2_45 = arith.constant 2 : index
    %c0_46 = arith.constant 0 : index
    %c0_47 = arith.constant 0 : index
    %78 = vector.load %arg6[%c2_45, %c0_46, %c0_47] : memref<8x8x8xf32, #tpu.memory_space<vmem>>, vector<1x8x8xf32>
    %79 = vector.shape_cast %78 : vector<1x8x8xf32> to vector<8x8xf32>
    %80 = vector.shape_cast %77 : vector<8x8xf32> to vector<1x8x8xf32>
    tpu.vector_store %arg6[%c2_45, %c0_46, %c0_47], %80 {strides = array<i32>} : memref<8x8x8xf32, #tpu.memory_space<vmem>>, vector<1x8x8xf32>,
    %cst_48 = arith.constant dense<0.000000e+00> : vector<8x8xf32>
    %81 = tpu.matmul %77, %67, %cst_48 {dimension_numbers = #tpu.dot_dimension_numbers<[1], [0], [0], [1], [0, 0, 1, 1], [], []>, precision = #tpu.contract_precision<fp32>} : vector<8x8xf32>, vector<8x8xf32>, vector<8x8xf32> -> vector<8x8xf32>
    %c0_49 = arith.constant 0 : index
    %c16 = arith.constant 16 : index
    %82 = vector.load %arg7[%c0_49, %c16] : memref<16x32xf32, #tpu.memory_space<vmem>>, vector<8x8xf32>
    tpu.vector_store %arg7[%c0_49, %c16], %81 {strides = array<i32>} : memref<16x32xf32, #tpu.memory_space<vmem>>, vector<8x8xf32>,
    %83 = vector.extract_strided_slice %26 {offsets = [0, 24], sizes = [8, 8], strides = [1, 1]} : vector<8x32xf32> to vector<8x8xf32>
    %84 = vector.extract_strided_slice %27 {offsets = [0, 24], sizes = [8, 8], strides = [1, 1]} : vector<8x32xf32> to vector<8x8xf32>
    %85 = vector.extract_strided_slice %28 {offsets = [0, 24], sizes = [8, 8], strides = [1, 1]} : vector<8x32xf32> to vector<8x8xf32>
    %cst_50 = arith.constant dense<0.000000e+00> : vector<8x8xf32>
    %86 = tpu.matmul %83, %84, %cst_50 {dimension_numbers = #tpu.dot_dimension_numbers<[1], [1], [0], [0], [0, 0, 1, 0], [], []>, precision = #tpu.contract_precision<fp32>} : vector<8x8xf32>, vector<8x8xf32>, vector<8x8xf32> -> vector<8x8xf32>
    %cst_51 = arith.constant dense<0xFF800000> : vector<8xf32>
    %87 = vector.multi_reduction <maximumf>, %86, %cst_51 [1] : vector<8x8xf32> to vector<8xf32>
    %88 = vector.shape_cast %87 : vector<8xf32> to vector<8x1xf32>
    %89 = vector.broadcast %88 : vector<8x1xf32> to vector<8x8xf32>
    %90 = arith.subf %86, %89 : vector<8x8xf32>
    %91 = math.exp %90 : vector<8x8xf32>
    %cst_52 = arith.constant dense<0.000000e+00> : vector<8xf32>
    %92 = vector.multi_reduction <add>, %91, %cst_52 [1] : vector<8x8xf32> to vector<8xf32>
    %93 = vector.shape_cast %92 : vector<8xf32> to vector<8x1xf32>
    %94 = vector.broadcast %93 : vector<8x1xf32> to vector<8x8xf32>
    %95 = arith.divf %91, %94 : vector<8x8xf32>
    %c3_53 = arith.constant 3 : index
    %c0_54 = arith.constant 0 : index
    %c0_55 = arith.constant 0 : index
    %96 = vector.load %arg6[%c3_53, %c0_54, %c0_55] : memref<8x8x8xf32, #tpu.memory_space<vmem>>, vector<1x8x8xf32>
    %97 = vector.shape_cast %96 : vector<1x8x8xf32> to vector<8x8xf32>
    %98 = vector.shape_cast %95 : vector<8x8xf32> to vector<1x8x8xf32>
    tpu.vector_store %arg6[%c3_53, %c0_54, %c0_55], %98 {strides = array<i32>} : memref<8x8x8xf32, #tpu.memory_space<vmem>>, vector<1x8x8xf32>,
    %cst_56 = arith.constant dense<0.000000e+00> : vector<8x8xf32>
    %99 = tpu.matmul %95, %85, %cst_56 {dimension_numbers = #tpu.dot_dimension_numbers<[1], [0], [0], [1], [0, 0, 1, 1], [], []>, precision = #tpu.contract_precision<fp32>} : vector<8x8xf32>, vector<8x8xf32>, vector<8x8xf32> -> vector<8x8xf32>
    %c0_57 = arith.constant 0 : index
    %c24 = arith.constant 24 : index
    %100 = vector.load %arg7[%c0_57, %c24] : memref<16x32xf32, #tpu.memory_space<vmem>>, vector<8x8xf32>
    tpu.vector_store %arg7[%c0_57, %c24], %99 {strides = array<i32>} : memref<16x32xf32, #tpu.memory_space<vmem>>, vector<8x8xf32>,
    %101 = vector.extract_strided_slice %17 {offsets = [8, 0], sizes = [8, 32], strides = [1, 1]} : vector<16x32xf32> to vector<8x32xf32>
    %102 = vector.extract_strided_slice %21 {offsets = [8, 0], sizes = [8, 32], strides = [1, 1]} : vector<16x32xf32> to vector<8x32xf32>
    %103 = vector.extract_strided_slice %25 {offsets = [8, 0], sizes = [8, 32], strides = [1, 1]} : vector<16x32xf32> to vector<8x32xf32>
    %104 = vector.extract_strided_slice %101 {offsets = [0, 0], sizes = [8, 8], strides = [1, 1]} : vector<8x32xf32> to vector<8x8xf32>
    %105 = vector.extract_strided_slice %102 {offsets = [0, 0], sizes = [8, 8], strides = [1, 1]} : vector<8x32xf32> to vector<8x8xf32>
    %106 = vector.extract_strided_slice %103 {offsets = [0, 0], sizes = [8, 8], strides = [1, 1]} : vector<8x32xf32> to vector<8x8xf32>
    %cst_58 = arith.constant dense<0.000000e+00> : vector<8x8xf32>
    %107 = tpu.matmul %104, %105, %cst_58 {dimension_numbers = #tpu.dot_dimension_numbers<[1], [1], [0], [0], [0, 0, 1, 0], [], []>, precision = #tpu.contract_precision<fp32>} : vector<8x8xf32>, vector<8x8xf32>, vector<8x8xf32> -> vector<8x8xf32>
    %cst_59 = arith.constant dense<0xFF800000> : vector<8xf32>
    %108 = vector.multi_reduction <maximumf>, %107, %cst_59 [1] : vector<8x8xf32> to vector<8xf32>
    %109 = vector.shape_cast %108 : vector<8xf32> to vector<8x1xf32>
    %110 = vector.broadcast %109 : vector<8x1xf32> to vector<8x8xf32>
    %111 = arith.subf %107, %110 : vector<8x8xf32>
    %112 = math.exp %111 : vector<8x8xf32>
    %cst_60 = arith.constant dense<0.000000e+00> : vector<8xf32>
    %113 = vector.multi_reduction <add>, %112, %cst_60 [1] : vector<8x8xf32> to vector<8xf32>
    %114 = vector.shape_cast %113 : vector<8xf32> to vector<8x1xf32>
    %115 = vector.broadcast %114 : vector<8x1xf32> to vector<8x8xf32>
    %116 = arith.divf %112, %115 : vector<8x8xf32>
    %c4 = arith.constant 4 : index
    %c0_61 = arith.constant 0 : index
    %c0_62 = arith.constant 0 : index
    %117 = vector.load %arg6[%c4, %c0_61, %c0_62] : memref<8x8x8xf32, #tpu.memory_space<vmem>>, vector<1x8x8xf32>
    %118 = vector.shape_cast %117 : vector<1x8x8xf32> to vector<8x8xf32>
    %119 = vector.shape_cast %116 : vector<8x8xf32> to vector<1x8x8xf32>
    tpu.vector_store %arg6[%c4, %c0_61, %c0_62], %119 {strides = array<i32>} : memref<8x8x8xf32, #tpu.memory_space<vmem>>, vector<1x8x8xf32>,
    %cst_63 = arith.constant dense<0.000000e+00> : vector<8x8xf32>
    %120 = tpu.matmul %116, %106, %cst_63 {dimension_numbers = #tpu.dot_dimension_numbers<[1], [0], [0], [1], [0, 0, 1, 1], [], []>, precision = #tpu.contract_precision<fp32>} : vector<8x8xf32>, vector<8x8xf32>, vector<8x8xf32> -> vector<8x8xf32>
    %c8_64 = arith.constant 8 : index
    %c0_65 = arith.constant 0 : index
    %121 = vector.load %arg7[%c8_64, %c0_65] : memref<16x32xf32, #tpu.memory_space<vmem>>, vector<8x8xf32>
    tpu.vector_store %arg7[%c8_64, %c0_65], %120 {strides = array<i32>} : memref<16x32xf32, #tpu.memory_space<vmem>>, vector<8x8xf32>,
    %122 = vector.extract_strided_slice %101 {offsets = [0, 8], sizes = [8, 8], strides = [1, 1]} : vector<8x32xf32> to vector<8x8xf32>
    %123 = vector.extract_strided_slice %102 {offsets = [0, 8], sizes = [8, 8], strides = [1, 1]} : vector<8x32xf32> to vector<8x8xf32>
    %124 = vector.extract_strided_slice %103 {offsets = [0, 8], sizes = [8, 8], strides = [1, 1]} : vector<8x32xf32> to vector<8x8xf32>
    %cst_66 = arith.constant dense<0.000000e+00> : vector<8x8xf32>
    %125 = tpu.matmul %122, %123, %cst_66 {dimension_numbers = #tpu.dot_dimension_numbers<[1], [1], [0], [0], [0, 0, 1, 0], [], []>, precision = #tpu.contract_precision<fp32>} : vector<8x8xf32>, vector<8x8xf32>, vector<8x8xf32> -> vector<8x8xf32>
    %cst_67 = arith.constant dense<0xFF800000> : vector<8xf32>
    %126 = vector.multi_reduction <maximumf>, %125, %cst_67 [1] : vector<8x8xf32> to vector<8xf32>
    %127 = vector.shape_cast %126 : vector<8xf32> to vector<8x1xf32>
    %128 = vector.broadcast %127 : vector<8x1xf32> to vector<8x8xf32>
    %129 = arith.subf %125, %128 : vector<8x8xf32>
    %130 = math.exp %129 : vector<8x8xf32>
    %cst_68 = arith.constant dense<0.000000e+00> : vector<8xf32>
    %131 = vector.multi_reduction <add>, %130, %cst_68 [1] : vector<8x8xf32> to vector<8xf32>
    %132 = vector.shape_cast %131 : vector<8xf32> to vector<8x1xf32>
    %133 = vector.broadcast %132 : vector<8x1xf32> to vector<8x8xf32>
    %134 = arith.divf %130, %133 : vector<8x8xf32>
    %c5 = arith.constant 5 : index
    %c0_69 = arith.constant 0 : index
    %c0_70 = arith.constant 0 : index
    %135 = vector.load %arg6[%c5, %c0_69, %c0_70] : memref<8x8x8xf32, #tpu.memory_space<vmem>>, vector<1x8x8xf32>
    %136 = vector.shape_cast %135 : vector<1x8x8xf32> to vector<8x8xf32>
    %137 = vector.shape_cast %134 : vector<8x8xf32> to vector<1x8x8xf32>
    tpu.vector_store %arg6[%c5, %c0_69, %c0_70], %137 {strides = array<i32>} : memref<8x8x8xf32, #tpu.memory_space<vmem>>, vector<1x8x8xf32>,
    %cst_71 = arith.constant dense<0.000000e+00> : vector<8x8xf32>
    %138 = tpu.matmul %134, %124, %cst_71 {dimension_numbers = #tpu.dot_dimension_numbers<[1], [0], [0], [1], [0, 0, 1, 1], [], []>, precision = #tpu.contract_precision<fp32>} : vector<8x8xf32>, vector<8x8xf32>, vector<8x8xf32> -> vector<8x8xf32>
    %c8_72 = arith.constant 8 : index
    %c8_73 = arith.constant 8 : index
    %139 = vector.load %arg7[%c8_72, %c8_73] : memref<16x32xf32, #tpu.memory_space<vmem>>, vector<8x8xf32>
    tpu.vector_store %arg7[%c8_72, %c8_73], %138 {strides = array<i32>} : memref<16x32xf32, #tpu.memory_space<vmem>>, vector<8x8xf32>,
    %140 = vector.extract_strided_slice %101 {offsets = [0, 16], sizes = [8, 8], strides = [1, 1]} : vector<8x32xf32> to vector<8x8xf32>
    %141 = vector.extract_strided_slice %102 {offsets = [0, 16], sizes = [8, 8], strides = [1, 1]} : vector<8x32xf32> to vector<8x8xf32>
    %142 = vector.extract_strided_slice %103 {offsets = [0, 16], sizes = [8, 8], strides = [1, 1]} : vector<8x32xf32> to vector<8x8xf32>
    %cst_74 = arith.constant dense<0.000000e+00> : vector<8x8xf32>
    %143 = tpu.matmul %140, %141, %cst_74 {dimension_numbers = #tpu.dot_dimension_numbers<[1], [1], [0], [0], [0, 0, 1, 0], [], []>, precision = #tpu.contract_precision<fp32>} : vector<8x8xf32>, vector<8x8xf32>, vector<8x8xf32> -> vector<8x8xf32>
    %cst_75 = arith.constant dense<0xFF800000> : vector<8xf32>
    %144 = vector.multi_reduction <maximumf>, %143, %cst_75 [1] : vector<8x8xf32> to vector<8xf32>
    %145 = vector.shape_cast %144 : vector<8xf32> to vector<8x1xf32>
    %146 = vector.broadcast %145 : vector<8x1xf32> to vector<8x8xf32>
    %147 = arith.subf %143, %146 : vector<8x8xf32>
    %148 = math.exp %147 : vector<8x8xf32>
    %cst_76 = arith.constant dense<0.000000e+00> : vector<8xf32>
    %149 = vector.multi_reduction <add>, %148, %cst_76 [1] : vector<8x8xf32> to vector<8xf32>
    %150 = vector.shape_cast %149 : vector<8xf32> to vector<8x1xf32>
    %151 = vector.broadcast %150 : vector<8x1xf32> to vector<8x8xf32>
    %152 = arith.divf %148, %151 : vector<8x8xf32>
    %c6 = arith.constant 6 : index
    %c0_77 = arith.constant 0 : index
    %c0_78 = arith.constant 0 : index
    %153 = vector.load %arg6[%c6, %c0_77, %c0_78] : memref<8x8x8xf32, #tpu.memory_space<vmem>>, vector<1x8x8xf32>
    %154 = vector.shape_cast %153 : vector<1x8x8xf32> to vector<8x8xf32>
    %155 = vector.shape_cast %152 : vector<8x8xf32> to vector<1x8x8xf32>
    tpu.vector_store %arg6[%c6, %c0_77, %c0_78], %155 {strides = array<i32>} : memref<8x8x8xf32, #tpu.memory_space<vmem>>, vector<1x8x8xf32>,
    %cst_79 = arith.constant dense<0.000000e+00> : vector<8x8xf32>
    %156 = tpu.matmul %152, %142, %cst_79 {dimension_numbers = #tpu.dot_dimension_numbers<[1], [0], [0], [1], [0, 0, 1, 1], [], []>, precision = #tpu.contract_precision<fp32>} : vector<8x8xf32>, vector<8x8xf32>, vector<8x8xf32> -> vector<8x8xf32>
    %c8_80 = arith.constant 8 : index
    %c16_81 = arith.constant 16 : index
    %157 = vector.load %arg7[%c8_80, %c16_81] : memref<16x32xf32, #tpu.memory_space<vmem>>, vector<8x8xf32>
    tpu.vector_store %arg7[%c8_80, %c16_81], %156 {strides = array<i32>} : memref<16x32xf32, #tpu.memory_space<vmem>>, vector<8x8xf32>,
    %158 = vector.extract_strided_slice %101 {offsets = [0, 24], sizes = [8, 8], strides = [1, 1]} : vector<8x32xf32> to vector<8x8xf32>
    %159 = vector.extract_strided_slice %102 {offsets = [0, 24], sizes = [8, 8], strides = [1, 1]} : vector<8x32xf32> to vector<8x8xf32>
    %160 = vector.extract_strided_slice %103 {offsets = [0, 24], sizes = [8, 8], strides = [1, 1]} : vector<8x32xf32> to vector<8x8xf32>
    %cst_82 = arith.constant dense<0.000000e+00> : vector<8x8xf32>
    %161 = tpu.matmul %158, %159, %cst_82 {dimension_numbers = #tpu.dot_dimension_numbers<[1], [1], [0], [0], [0, 0, 1, 0], [], []>, precision = #tpu.contract_precision<fp32>} : vector<8x8xf32>, vector<8x8xf32>, vector<8x8xf32> -> vector<8x8xf32>
    %cst_83 = arith.constant dense<0xFF800000> : vector<8xf32>
    %162 = vector.multi_reduction <maximumf>, %161, %cst_83 [1] : vector<8x8xf32> to vector<8xf32>
    %163 = vector.shape_cast %162 : vector<8xf32> to vector<8x1xf32>
    %164 = vector.broadcast %163 : vector<8x1xf32> to vector<8x8xf32>
    %165 = arith.subf %161, %164 : vector<8x8xf32>
    %166 = math.exp %165 : vector<8x8xf32>
    %cst_84 = arith.constant dense<0.000000e+00> : vector<8xf32>
    %167 = vector.multi_reduction <add>, %166, %cst_84 [1] : vector<8x8xf32> to vector<8xf32>
    %168 = vector.shape_cast %167 : vector<8xf32> to vector<8x1xf32>
    %169 = vector.broadcast %168 : vector<8x1xf32> to vector<8x8xf32>
    %170 = arith.divf %166, %169 : vector<8x8xf32>
    %c7 = arith.constant 7 : index
    %c0_85 = arith.constant 0 : index
    %c0_86 = arith.constant 0 : index
    %171 = vector.load %arg6[%c7, %c0_85, %c0_86] : memref<8x8x8xf32, #tpu.memory_space<vmem>>, vector<1x8x8xf32>
    %172 = vector.shape_cast %171 : vector<1x8x8xf32> to vector<8x8xf32>
    %173 = vector.shape_cast %170 : vector<8x8xf32> to vector<1x8x8xf32>
    tpu.vector_store %arg6[%c7, %c0_85, %c0_86], %173 {strides = array<i32>} : memref<8x8x8xf32, #tpu.memory_space<vmem>>, vector<1x8x8xf32>,
    %cst_87 = arith.constant dense<0.000000e+00> : vector<8x8xf32>
    %174 = tpu.matmul %170, %160, %cst_87 {dimension_numbers = #tpu.dot_dimension_numbers<[1], [0], [0], [1], [0, 0, 1, 1], [], []>, precision = #tpu.contract_precision<fp32>} : vector<8x8xf32>, vector<8x8xf32>, vector<8x8xf32> -> vector<8x8xf32>
    %c8_88 = arith.constant 8 : index
    %c24_89 = arith.constant 24 : index
    %175 = vector.load %arg7[%c8_88, %c24_89] : memref<16x32xf32, #tpu.memory_space<vmem>>, vector<8x8xf32>
    tpu.vector_store %arg7[%c8_88, %c24_89], %174 {strides = array<i32>} : memref<16x32xf32, #tpu.memory_space<vmem>>, vector<8x8xf32>,
    %c0_90 = arith.constant 0 : index
    %c0_91 = arith.constant 0 : index
    %176 = vector.load %arg7[%c0_90, %c0_91] : memref<16x32xf32, #tpu.memory_space<vmem>>, vector<16x32xf32>
    %cst_92 = arith.constant dense<0.000000e+00> : vector<16x32xf32>
    %177 = tpu.matmul %176, %7, %cst_92 {dimension_numbers = #tpu.dot_dimension_numbers<[1], [1], [0], [0], [0, 0, 1, 0], [], []>, precision = #tpu.contract_precision<fp32>} : vector<16x32xf32>, vector<32x32xf32>, vector<16x32xf32> -> vector<16x32xf32>
    %178 = vector.broadcast %11 : vector<1x32xf32> to vector<16x32xf32>
    %179 = arith.addf %177, %178 : vector<16x32xf32>
    %c0_93 = arith.constant 0 : index
    %c0_94 = arith.constant 0 : index
    %180 = vector.load %arg5[%c0_93, %c0_94] : memref<16x32xf32, #tpu.memory_space<vmem>>, vector<16x32xf32>
    tpu.vector_store %arg5[%c0_93, %c0_94], %179 {strides = array<i32>} : memref<16x32xf32, #tpu.memory_space<vmem>>, vector<16x32xf32>,
    return
  }
}

</mosaic_0001>

<llo_original>
// kernel: tpu_custom_call.1
$region0: #{tpu_custom_call.1}
  #allocation0 [shape = 'u32[]', space=smem, size = 0x4, offset = 0x4, fixed_abs, tag = 'smem constant byte address 0x4 - core index']
  #allocation1 [shape = 'u32[144,128]{1,0:T(1,128)}', space=vmem, size = 0x12000, scoped, tag = 'internal scratch']
  #allocation2 [shape = 'f32[16,32]{1,0:T(8,128)}', space=vmem, size = 0x2000, scoped, tag = 'scratch operand']
  %s0 = inlined_call_operand.hbm [shape: f32[16,32], index: 0, kind: input, shape index: {}]
  %s1 = inlined_call_operand.hbm [shape: f32[16,32], index: 1, kind: input, shape index: {}]
  %s2 = inlined_call_operand.hbm [shape: f32[16,32], index: 2, kind: input, shape index: {}]
  %s3 = inlined_call_operand.hbm [shape: f32[4,32,32], index: 3, kind: input, shape index: {}]
  %s4 = inlined_call_operand.vmem [shape: f32[4,32], index: 4, kind: input, shape index: {}]
  %s5 = inlined_call_operand.hbm [shape: f32[16,32], index: 5, kind: output, shape index: {0}]
  %s6 = inlined_call_operand.hbm [shape: f32[8,8,8], index: 6, kind: output, shape index: {1}]
  %7 = xla_tuple %s5, %s6
  %s8 = sld [smem:[#allocation0]]
  $region54: #{tpu_custom_call.1} parent=0
    _
  %s10 = ssub.s32 1, %s8
  %s11 = scalar_select 0, %s10, %s8
  $region1: #{tpu_custom_call.1} parent=0
    #allocation3 [shape = 'u8[8192]{0}', space=vmem, size = 0x2000, scoped, tag = 'input window, operand 0, single buffered']
    #allocation4 [shape = 's32[1]{0}', space=sflag, size = 0x4, scoped, tag = 'scoped memory for tpu_custom_call.1']
    #allocation5 [shape = 's32[1]{0}', space=sflag, size = 0x4, scoped, tag = 'scoped memory for tpu_custom_call.1']
    #allocation6 [shape = 'u8[8192]{0}', space=vmem, size = 0x2000, scoped, tag = 'input window, operand 1, single buffered']
    #allocation7 [shape = 's32[1]{0}', space=sflag, size = 0x4, scoped, tag = 'scoped memory for tpu_custom_call.1']
    #allocation8 [shape = 'u8[8192]{0}', space=vmem, size = 0x2000, scoped, tag = 'input window, operand 2, single buffered']
    #allocation9 [shape = 'u8[65536]{0}', space=vmem, size = 0x10000, scoped, tag = 'input window, operand 3, single buffered']
    #allocation10 [shape = 's32[1]{0}', space=sflag, size = 0x4, scoped, tag = 'scoped memory for tpu_custom_call.1']
    #allocation11 [shape = 'u8[8192]{0}', space=vmem, size = 0x2000, scoped, tag = 'output window, operand 0, single buffered']
    #allocation12 [shape = 'u8[32768]{0}', space=vmem, size = 0x8000, scoped, tag = 'output window, operand 1, single buffered']
    #allocation13 [shape = 's32[1]{0}', space=sflag, size = 0x4, scoped, tag = 'scoped memory for tpu_custom_call.1']
    %12 = vsyncpa [#allocation4], 0
    %13 = vsyncpa [#allocation7], 0
    %14 = vsyncpa [#allocation10], 0
    %15 = vsyncpa [#allocation5], 0
    %16 = vsyncpa [#allocation13], 0
    // Predicated region
    $region2: #{tpu_custom_call.1} parent=1 // pred_check
      _
    $region3: #{tpu_custom_call.1} parent=1 // pred_check_branch
      %18 = sbr.rel (0) target = $region5
    $region4: #{tpu_custom_call.1} parent=1 // pred_region
      %s20 = ssub.s32 256, 256
      %21 = vsyncadd [#allocation4], %s20
      %s22 = sshll.u32 [#allocation3], 4
      %s23 = int_to_ptr.vmem [resolvable:$true] %s22
      %28 = dma.hbm_to_vmem [thread:$0]  %s0, 256, %s23, [#allocation4], 128, 128, 8
    $region5: #{tpu_custom_call.1} parent=1 // pred_fallthru
      _
    // Predicated region
    $region6: #{tpu_custom_call.1} parent=1 // pred_check
      _
    $region7: #{tpu_custom_call.1} parent=1 // pred_check_branch
      %30 = sbr.rel (0) target = $region9
    $region8: #{tpu_custom_call.1} parent=1 // pred_region
      %s32 = ssub.s32 256, 256
      %33 = vsyncadd [#allocation7], %s32
      %s34 = sshll.u32 [#allocation6], 4
      %s35 = int_to_ptr.vmem [resolvable:$true] %s34
      %40 = dma.hbm_to_vmem [thread:$0]  %s1, 256, %s35, [#allocation7], 128, 128, 8
    $region9: #{tpu_custom_call.1} parent=1 // pred_fallthru
      _
    // Predicated region
    $region10: #{tpu_custom_call.1} parent=1 // pred_check
      _
    $region11: #{tpu_custom_call.1} parent=1 // pred_check_branch
      %42 = sbr.rel (0) target = $region13
    $region12: #{tpu_custom_call.1} parent=1 // pred_region
      %s44 = ssub.s32 256, 256
      %45 = vsyncadd [#allocation7], %s44
      %s46 = sshll.u32 [#allocation8], 4
      %s47 = int_to_ptr.vmem [resolvable:$true] %s46
      %52 = dma.hbm_to_vmem [thread:$0]  %s2, 256, %s47, [#allocation7], 128, 128, 8
    $region13: #{tpu_custom_call.1} parent=1 // pred_fallthru
      _
    // Predicated region
    $region14: #{tpu_custom_call.1} parent=1 // pred_check
      _
    $region15: #{tpu_custom_call.1} parent=1 // pred_check_branch
      %54 = sbr.rel (0) target = $region17
    $region16: #{tpu_custom_call.1} parent=1 // pred_region
      %s56 = ssub.s32 2048, 2048
      %57 = vsyncadd [#allocation10], %s56
      %s58 = sshll.u32 [#allocation9], 4
      %s59 = int_to_ptr.vmem [resolvable:$true] %s58
      %64 = dma.hbm_to_vmem [thread:$0]  %s3, 2048, %s59, [#allocation10], 128, 128, 8
    $region17: #{tpu_custom_call.1} parent=1 // pred_fallthru
      _
    // Predicated region
    $region18: #{tpu_custom_call.1} parent=1 // pred_check
      _
    $region19: #{tpu_custom_call.1} parent=1 // pred_check_branch
      %66 = sbr.rel (0) target = $region21
    $region20: #{tpu_custom_call.1} parent=1 // pred_region
      _
    $region21: #{tpu_custom_call.1} parent=1 // pred_fallthru
      _
    // Predicated region
    $region22: #{tpu_custom_call.1} parent=1 // pred_check
      _
    $region23: #{tpu_custom_call.1} parent=1 // pred_check_branch
      %68 = sbr.rel (0) target = $region25
    $region24: #{tpu_custom_call.1} parent=1 // pred_region
      %69 = dma.done [#allocation4], 256
    $region25: #{tpu_custom_call.1} parent=1 // pred_fallthru
      _
    // Predicated region
    $region26: #{tpu_custom_call.1} parent=1 // pred_check
      _
    $region27: #{tpu_custom_call.1} parent=1 // pred_check_branch
      %71 = sbr.rel (0) target = $region29
    $region28: #{tpu_custom_call.1} parent=1 // pred_region
      %72 = dma.done [#allocation7], 256
    $region29: #{tpu_custom_call.1} parent=1 // pred_fallthru
      _
    // Predicated region
    $region30: #{tpu_custom_call.1} parent=1 // pred_check
      _
    $region31: #{tpu_custom_call.1} parent=1 // pred_check_branch
      %74 = sbr.rel (0) target = $region33
    $region32: #{tpu_custom_call.1} parent=1 // pred_region
      %75 = dma.done [#allocation7], 256
    $region33: #{tpu_custom_call.1} parent=1 // pred_fallthru
      _
    // Predicated region
    $region34: #{tpu_custom_call.1} parent=1 // pred_check
      _
    $region35: #{tpu_custom_call.1} parent=1 // pred_check_branch
      %77 = sbr.rel (0) target = $region37
    $region36: #{tpu_custom_call.1} parent=1 // pred_region
      %78 = dma.done [#allocation10], 2048
    $region37: #{tpu_custom_call.1} parent=1 // pred_fallthru
      _
    %v79 = vld [vmem:[#allocation9] sm:$0xff]
    %v80 = vld [vmem:[#allocation9 + $0x8] sm:$0xff]
    %v81 = vld [vmem:[#allocation9 + $0x10] sm:$0xff]
    %v82 = vld [vmem:[#allocation9 + $0x18] sm:$0xff]
    %s83 = scalar_lea.vmem [#allocation9], 32
    %v84 = vld [vmem:[%s83] sm:$0xff]
    %v85 = vld [vmem:[%s83 + $0x8] sm:$0xff]
    %v86 = vld [vmem:[%s83 + $0x10] sm:$0xff]
    %v87 = vld [vmem:[%s83 + $0x18] sm:$0xff]
    %s88 = scalar_lea.vmem [#allocation9], 64
    %v89 = vld [vmem:[%s88] sm:$0xff]
    %v90 = vld [vmem:[%s88 + $0x8] sm:$0xff]
    %v91 = vld [vmem:[%s88 + $0x10] sm:$0xff]
    %v92 = vld [vmem:[%s88 + $0x18] sm:$0xff]
    %s93 = scalar_lea.vmem [#allocation9], 96
    %v94 = vld [vmem:[%s93] sm:$0xff]
    %v95 = vld [vmem:[%s93 + $0x8] sm:$0xff]
    %v96 = vld [vmem:[%s93 + $0x10] sm:$0xff]
    %v97 = vld [vmem:[%s93 + $0x18] sm:$0xff]
    %v98 = vld [vmem:[%s4] sm:$0x1]
    %v99 = vld [vmem:[%s4 + $0x1] sm:$0x1]
    %v100 = vld [vmem:[%s4 + $0x2] sm:$0x1]
    %v101 = vld [vmem:[%s4 + $0x3] sm:$0x1]
    %v102 = vld [vmem:[#allocation3] sm:$0xff]
    %v103 = vld [vmem:[#allocation3 + $0x8] sm:$0xff]
    %v104 = vlaneseq
    %v105 = vshrl.u32 %v104, 7
    %v106 = vsub.s32 0, %v105
    %v107 = vrot.slane %v98, %v106
    %vm108 = vcmask 261120
    %v110 = vsel %vm108, %v102, 0
    %v113 = vsel %vm108, %v103, 0
    %v116 = vsel %vm108, %v79, 0
    %v119 = vsel %vm108, %v80, 0
    %v122 = vsel %vm108, %v81, 0
    %v125 = vsel %vm108, %v82, 0
    %127 = vmatprep.subr.mxu0 0.0
    %v128 = vand.u32 %v116, 4294901760
    %129 = vmatpush1.xpose.msra.mxu0 %v128
    %130 = vmatprep.subr.mxu0 0.0
    %v131 = vand.u32 %v119, 4294901760
    %132 = vmatpush1.xpose.msra.mxu0 %v131
    %133 = vmatprep.subr.mxu0 0.0
    %v134 = vand.u32 %v122, 4294901760
    %135 = vmatpush1.xpose.msra.mxu0 %v134
    %136 = vmatprep.subr.mxu0 0.0
    %v137 = vand.u32 %v125, 4294901760
    %138 = vmatpush1.xpose.msra.mxu0 %v137
    %139 = vmatprep.subr.mxu0 0.0
    %140 = vmatpush1.xpose.msra.mxu0 0.0
    %141 = vmatprep.subr.mxu0 0.0
    %142 = vmatpush1.xpose.msra.mxu0 0.0
    %143 = vmatprep.subr.mxu0 0.0
    %144 = vmatpush1.xpose.msra.mxu0 0.0
    %145 = vmatprep.subr.mxu0 0.0
    %146 = vmatpush1.xpose.msra.mxu0 0.0
    %147 = vmatprep.subr.mxu0 0.0
    %148 = vmatpush1.xpose.msra.mxu0 0.0
    %149 = vmatprep.subr.mxu0 0.0
    %150 = vmatpush1.xpose.msra.mxu0 0.0
    %151 = vmatprep.subr.mxu0 0.0
    %152 = vmatpush1.xpose.msra.mxu0 0.0
    %153 = vmatprep.subr.mxu0 0.0
    %154 = vmatpush1.xpose.msra.mxu0 0.0
    %155 = vmatprep.subr.mxu0 0.0
    %156 = vmatpush1.xpose.msra.mxu0 0.0
    %157 = vmatprep.subr.mxu0 0.0
    %158 = vmatpush1.xpose.msra.mxu0 0.0
    %159 = vmatprep.subr.mxu0 0.0
    %160 = vmatpush1.xpose.msra.mxu0 0.0
    %161 = vmatprep.subr.mxu0 0.0
    %162 = vmatpush1.xpose.msra.mxu0 0.0
    %163 = vmatprep.subr.mxu0 0.0
    %164 = vmatpush1.xpose.msra.mxu0 0.0
    %165 = vmatprep.subr.mxu0 0.0
    %166 = vmatpush1.xpose.msra.mxu0 0.0
    %167 = vmatprep.subr.mxu0 0.0
    %168 = vmatpush1.xpose.msra.mxu0 0.0
    %169 = vmatprep.subr.mxu0 0.0
    %170 = vmatpush1.xpose.msra.mxu0 0.0
    %171 = vmatprep.subr.mxu0 0.0
    %172 = vmatpush1.xpose.msra.mxu0 0.0
    %173 = vmatprep.subr.mxu0 0.0
    %174 = vmatpush1.xpose.msra.mxu0 0.0
    %175 = vmatprep.subr.mxu0 0.0
    %176 = vmatpush1.xpose.msra.mxu0 0.0
    %177 = vmatprep.subr.mxu0 0.0
    %178 = vmatpush1.xpose.msra.mxu0 0.0
    %179 = vmatprep.subr.mxu0 0.0
    %180 = vmatpush1.xpose.msra.mxu0 0.0
    %181 = vmatprep.subr.mxu0 0.0
    %182 = vmatpush1.xpose.msra.mxu0 0.0
    %183 = vmatprep.subr.mxu0 0.0
    %184 = vmatpush1.xpose.msra.mxu0 0.0
    %185 = vmatprep.subr.mxu0 0.0
    %186 = vmatpush1.xpose.msra.mxu0 0.0
    %187 = vmatprep.subr.mxu0 0.0
    %188 = vmatpush1.xpose.msra.mxu0 0.0
    %189 = vmatprep.subr.mxu0 0.0
    %190 = vmatpush1.xpose.msra.mxu0 0.0
    %191 = vmatprep.subr.mxu0 0.0
    %192 = vmatpush1.xpose.msra.mxu0 0.0
    %193 = vmatprep.subr.mxu0 0.0
    %194 = vmatpush1.xpose.msra.mxu0 0.0
    %195 = vmatprep.mubr.f32.mxu0 0.0
    %v196 = vand.u32 %v110, 4294901760
    %v197 = vsub.f32 %v110, %v196
    %v198 = vand.u32 %v197, 4294901760
    %v199 = vsub.f32 %v197, %v198
    %v200 = vand.u32 %v199, 4294901760
    %201 = vmatmul.mubr.f32.gmra.mrb[0].mxu0 %v200
    %v202 = vpop.f32.mrb[0].mxu0
    %v203 = vadd.f32 %v107, %v202
    %v204 = vpop.f32.mrb[0].mxu0
    %205 = vmatprep.mubr.f32.mxu0 0.0
    %v206 = vand.u32 %v113, 4294901760
    %v207 = vsub.f32 %v113, %v206
    %v208 = vand.u32 %v207, 4294901760
    %v209 = vsub.f32 %v207, %v208
    %v210 = vand.u32 %v209, 4294901760
    %211 = vmatmul.mubr.f32.gmra.mrb[0].mxu0 %v210
    %v212 = vpop.f32.mrb[0].mxu0
    %v213 = vadd.f32 %v107, %v212
    %v214 = vpop.f32.mrb[0].mxu0
    %215 = vdwg.mxu0
    %216 = vmatprep.subr.mxu0 0.0
    %v217 = vand.u32 %v116, 4294901760
    %v218 = vsub.f32 %v116, %v217
    %v219 = vand.u32 %v218, 4294901760
    %v220 = vsub.f32 %v218, %v219
    %v221 = vand.u32 %v220, 4294901760
    %222 = vmatpush1.xpose.msra.mxu0 %v221
    %223 = vmatprep.subr.mxu0 0.0
    %v224 = vand.u32 %v119, 4294901760
    %v225 = vsub.f32 %v119, %v224
    %v226 = vand.u32 %v225, 4294901760
    %v227 = vsub.f32 %v225, %v226
    %v228 = vand.u32 %v227, 4294901760
    %229 = vmatpush1.xpose.msra.mxu0 %v228
    %230 = vmatprep.subr.mxu0 0.0
    %v231 = vand.u32 %v122, 4294901760
    %v232 = vsub.f32 %v122, %v231
    %v233 = vand.u32 %v232, 4294901760
    %v234 = vsub.f32 %v232, %v233
    %v235 = vand.u32 %v234, 4294901760
    %236 = vmatpush1.xpose.msra.mxu0 %v235
    %237 = vmatprep.subr.mxu0 0.0
    %v238 = vand.u32 %v125, 4294901760
    %v239 = vsub.f32 %v125, %v238
    %v240 = vand.u32 %v239, 4294901760
    %v241 = vsub.f32 %v239, %v240
    %v242 = vand.u32 %v241, 4294901760
    %243 = vmatpush1.xpose.msra.mxu0 %v242
    %244 = vmatprep.subr.mxu0 0.0
    %245 = vmatpush1.xpose.msra.mxu0 0.0
    %246 = vmatprep.subr.mxu0 0.0
    %247 = vmatpush1.xpose.msra.mxu0 0.0
    %248 = vmatprep.subr.mxu0 0.0
    %249 = vmatpush1.xpose.msra.mxu0 0.0
    %250 = vmatprep.subr.mxu0 0.0
    %251 = vmatpush1.xpose.msra.mxu0 0.0
    %252 = vmatprep.subr.mxu0 0.0
    %253 = vmatpush1.xpose.msra.mxu0 0.0
    %254 = vmatprep.subr.mxu0 0.0
    %255 = vmatpush1.xpose.msra.mxu0 0.0
    %256 = vmatprep.subr.mxu0 0.0
    %257 = vmatpush1.xpose.msra.mxu0 0.0
    %258 = vmatprep.subr.mxu0 0.0
    %259 = vmatpush1.xpose.msra.mxu0 0.0
    %260 = vmatprep.subr.mxu0 0.0
    %261 = vmatpush1.xpose.msra.mxu0 0.0
    %262 = vmatprep.subr.mxu0 0.0
    %263 = vmatpush1.xpose.msra.mxu0 0.0
    %264 = vmatprep.subr.mxu0 0.0
    %265 = vmatpush1.xpose.msra.mxu0 0.0
    %266 = vmatprep.subr.mxu0 0.0
    %267 = vmatpush1.xpose.msra.mxu0 0.0
    %268 = vmatprep.subr.mxu0 0.0
    %269 = vmatpush1.xpose.msra.mxu0 0.0
    %270 = vmatprep.subr.mxu0 0.0
    %271 = vmatpush1.xpose.msra.mxu0 0.0
    %272 = vmatprep.subr.mxu0 0.0
    %273 = vmatpush1.xpose.msra.mxu0 0.0
    %274 = vmatprep.subr.mxu0 0.0
    %275 = vmatpush1.xpose.msra.mxu0 0.0
    %276 = vmatprep.subr.mxu0 0.0
    %277 = vmatpush1.xpose.msra.mxu0 0.0
    %278 = vmatprep.subr.mxu0 0.0
    %279 = vmatpush1.xpose.msra.mxu0 0.0
    %280 = vmatprep.subr.mxu0 0.0
    %281 = vmatpush1.xpose.msra.mxu0 0.0
    %282 = vmatprep.subr.mxu0 0.0
    %283 = vmatpush1.xpose.msra.mxu0 0.0
    %284 = vmatprep.subr.mxu0 0.0
    %285 = vmatpush1.xpose.msra.mxu0 0.0
    %286 = vmatprep.subr.mxu0 0.0
    %287 = vmatpush1.xpose.msra.mxu0 0.0
    %288 = vmatprep.subr.mxu0 0.0
    %289 = vmatpush1.xpose.msra.mxu0 0.0
    %290 = vmatprep.subr.mxu0 0.0
    %291 = vmatpush1.xpose.msra.mxu0 0.0
    %292 = vmatprep.subr.mxu0 0.0
    %293 = vmatpush1.xpose.msra.mxu0 0.0
    %294 = vmatprep.subr.mxu0 0.0
    %295 = vmatpush1.xpose.msra.mxu0 0.0
    %296 = vmatprep.subr.mxu0 0.0
    %297 = vmatpush1.xpose.msra.mxu0 0.0
    %298 = vmatprep.subr.mxu0 0.0
    %299 = vmatpush1.xpose.msra.mxu0 0.0
    %300 = vmatprep.mubr.f32.mxu0 0.0
    %v301 = vand.u32 %v110, 4294901760
    %302 = vmatmul.mubr.f32.gmra.mrb[0].mxu0 %v301
    %v303 = vpop.f32.mrb[0].mxu0
    %v304 = vadd.f32 %v203, %v303
    %v305 = vpop.f32.mrb[0].mxu0
    %306 = vmatprep.mubr.f32.mxu0 0.0
    %v307 = vand.u32 %v113, 4294901760
    %308 = vmatmul.mubr.f32.gmra.mrb[0].mxu0 %v307
    %v309 = vpop.f32.mrb[0].mxu0
    %v310 = vadd.f32 %v213, %v309
    %v311 = vpop.f32.mrb[0].mxu0
    %312 = vdwg.mxu0
    %313 = vmatprep.subr.mxu0 0.0
    %v314 = vand.u32 %v116, 4294901760
    %v315 = vsub.f32 %v116, %v314
    %316 = vmatpush1.xpose.msra.mxu0 %v315
    %317 = vmatprep.subr.mxu0 0.0
    %v318 = vand.u32 %v119, 4294901760
    %v319 = vsub.f32 %v119, %v318
    %320 = vmatpush1.xpose.msra.mxu0 %v319
    %321 = vmatprep.subr.mxu0 0.0
    %v322 = vand.u32 %v122, 4294901760
    %v323 = vsub.f32 %v122, %v322
    %324 = vmatpush1.xpose.msra.mxu0 %v323
    %325 = vmatprep.subr.mxu0 0.0
    %v326 = vand.u32 %v125, 4294901760
    %v327 = vsub.f32 %v125, %v326
    %328 = vmatpush1.xpose.msra.mxu0 %v327
    %329 = vmatprep.subr.mxu0 0.0
    %330 = vmatpush1.xpose.msra.mxu0 0.0
    %331 = vmatprep.subr.mxu0 0.0
    %332 = vmatpush1.xpose.msra.mxu0 0.0
    %333 = vmatprep.subr.mxu0 0.0
    %334 = vmatpush1.xpose.msra.mxu0 0.0
    %335 = vmatprep.subr.mxu0 0.0
    %336 = vmatpush1.xpose.msra.mxu0 0.0
    %337 = vmatprep.subr.mxu0 0.0
    %338 = vmatpush1.xpose.msra.mxu0 0.0
    %339 = vmatprep.subr.mxu0 0.0
    %340 = vmatpush1.xpose.msra.mxu0 0.0
    %341 = vmatprep.subr.mxu0 0.0
    %342 = vmatpush1.xpose.msra.mxu0 0.0
    %343 = vmatprep.subr.mxu0 0.0
    %344 = vmatpush1.xpose.msra.mxu0 0.0
    %345 = vmatprep.subr.mxu0 0.0
    %346 = vmatpush1.xpose.msra.mxu0 0.0
    %347 = vmatprep.subr.mxu0 0.0
    %348 = vmatpush1.xpose.msra.mxu0 0.0
    %349 = vmatprep.subr.mxu0 0.0
    %350 = vmatpush1.xpose.msra.mxu0 0.0
    %351 = vmatprep.subr.mxu0 0.0
    %352 = vmatpush1.xpose.msra.mxu0 0.0
    %353 = vmatprep.subr.mxu0 0.0
    %354 = vmatpush1.xpose.msra.mxu0 0.0
    %355 = vmatprep.subr.mxu0 0.0
    %356 = vmatpush1.xpose.msra.mxu0 0.0
    %357 = vmatprep.subr.mxu0 0.0
    %358 = vmatpush1.xpose.msra.mxu0 0.0
    %359 = vmatprep.subr.mxu0 0.0
    %360 = vmatpush1.xpose.msra.mxu0 0.0
    %361 = vmatprep.subr.mxu0 0.0
    %362 = vmatpush1.xpose.msra.mxu0 0.0
    %363 = vmatprep.subr.mxu0 0.0
    %364 = vmatpush1.xpose.msra.mxu0 0.0
    %365 = vmatprep.subr.mxu0 0.0
    %366 = vmatpush1.xpose.msra.mxu0 0.0
    %367 = vmatprep.subr.mxu0 0.0
    %368 = vmatpush1.xpose.msra.mxu0 0.0
    %369 = vmatprep.subr.mxu0 0.0
    %370 = vmatpush1.xpose.msra.mxu0 0.0
    %371 = vmatprep.subr.mxu0 0.0
    %372 = vmatpush1.xpose.msra.mxu0 0.0
    %373 = vmatprep.subr.mxu0 0.0
    %374 = vmatpush1.xpose.msra.mxu0 0.0
    %375 = vmatprep.subr.mxu0 0.0
    %376 = vmatpush1.xpose.msra.mxu0 0.0
    %377 = vmatprep.subr.mxu0 0.0
    %378 = vmatpush1.xpose.msra.mxu0 0.0
    %379 = vmatprep.subr.mxu0 0.0
    %380 = vmatpush1.xpose.msra.mxu0 0.0
    %381 = vmatprep.subr.mxu0 0.0
    %382 = vmatpush1.xpose.msra.mxu0 0.0
    %383 = vmatprep.subr.mxu0 0.0
    %384 = vmatpush1.xpose.msra.mxu0 0.0
    %385 = vmatprep.mubr.f32.mxu0 0.0
    %v386 = vand.u32 %v110, 4294901760
    %v387 = vsub.f32 %v110, %v386
    %388 = vmatmul.mubr.f32.gmra.mrb[0].mxu0 %v387
    %v389 = vpop.f32.mrb[0].mxu0
    %v390 = vadd.f32 %v304, %v389
    %v391 = vpop.f32.mrb[0].mxu0
    %392 = vmatprep.mubr.f32.mxu0 0.0
    %v393 = vand.u32 %v113, 4294901760
    %v394 = vsub.f32 %v113, %v393
    %395 = vmatmul.mubr.f32.gmra.mrb[0].mxu0 %v394
    %v396 = vpop.f32.mrb[0].mxu0
    %v397 = vadd.f32 %v310, %v396
    %v398 = vpop.f32.mrb[0].mxu0
    %399 = vdwg.mxu0
    %400 = vmatprep.subr.mxu0 0.0
    %v401 = vand.u32 %v116, 4294901760
    %402 = vmatpush1.xpose.msra.mxu0 %v401
    %403 = vmatprep.subr.mxu0 0.0
    %v404 = vand.u32 %v119, 4294901760
    %405 = vmatpush1.xpose.msra.mxu0 %v404
    %406 = vmatprep.subr.mxu0 0.0
    %v407 = vand.u32 %v122, 4294901760
    %408 = vmatpush1.xpose.msra.mxu0 %v407
    %409 = vmatprep.subr.mxu0 0.0
    %v410 = vand.u32 %v125, 4294901760
    %411 = vmatpush1.xpose.msra.mxu0 %v410
    %412 = vmatprep.subr.mxu0 0.0
    %413 = vmatpush1.xpose.msra.mxu0 0.0
    %414 = vmatprep.subr.mxu0 0.0
    %415 = vmatpush1.xpose.msra.mxu0 0.0
    %416 = vmatprep.subr.mxu0 0.0
    %417 = vmatpush1.xpose.msra.mxu0 0.0
    %418 = vmatprep.subr.mxu0 0.0
    %419 = vmatpush1.xpose.msra.mxu0 0.0
    %420 = vmatprep.subr.mxu0 0.0
    %421 = vmatpush1.xpose.msra.mxu0 0.0
    %422 = vmatprep.subr.mxu0 0.0
    %423 = vmatpush1.xpose.msra.mxu0 0.0
    %424 = vmatprep.subr.mxu0 0.0
    %425 = vmatpush1.xpose.msra.mxu0 0.0
    %426 = vmatprep.subr.mxu0 0.0
    %427 = vmatpush1.xpose.msra.mxu0 0.0
    %428 = vmatprep.subr.mxu0 0.0
    %429 = vmatpush1.xpose.msra.mxu0 0.0
    %430 = vmatprep.subr.mxu0 0.0
    %431 = vmatpush1.xpose.msra.mxu0 0.0
    %432 = vmatprep.subr.mxu0 0.0
    %433 = vmatpush1.xpose.msra.mxu0 0.0
    %434 = vmatprep.subr.mxu0 0.0
    %435 = vmatpush1.xpose.msra.mxu0 0.0
    %436 = vmatprep.subr.mxu0 0.0
    %437 = vmatpush1.xpose.msra.mxu0 0.0
    %438 = vmatprep.subr.mxu0 0.0
    %439 = vmatpush1.xpose.msra.mxu0 0.0
    %440 = vmatprep.subr.mxu0 0.0
    %441 = vmatpush1.xpose.msra.mxu0 0.0
    %442 = vmatprep.subr.mxu0 0.0
    %443 = vmatpush1.xpose.msra.mxu0 0.0
    %444 = vmatprep.subr.mxu0 0.0
    %445 = vmatpush1.xpose.msra.mxu0 0.0
    %446 = vmatprep.subr.mxu0 0.0
    %447 = vmatpush1.xpose.msra.mxu0 0.0
    %448 = vmatprep.subr.mxu0 0.0
    %449 = vmatpush1.xpose.msra.mxu0 0.0
    %450 = vmatprep.subr.mxu0 0.0
    %451 = vmatpush1.xpose.msra.mxu0 0.0
    %452 = vmatprep.subr.mxu0 0.0
    %453 = vmatpush1.xpose.msra.mxu0 0.0
    %454 = vmatprep.subr.mxu0 0.0
    %455 = vmatpush1.xpose.msra.mxu0 0.0
    %456 = vmatprep.subr.mxu0 0.0
    %457 = vmatpush1.xpose.msra.mxu0 0.0
    %458 = vmatprep.subr.mxu0 0.0
    %459 = vmatpush1.xpose.msra.mxu0 0.0
    %460 = vmatprep.subr.mxu0 0.0
    %461 = vmatpush1.xpose.msra.mxu0 0.0
    %462 = vmatprep.subr.mxu0 0.0
    %463 = vmatpush1.xpose.msra.mxu0 0.0
    %464 = vmatprep.subr.mxu0 0.0
    %465 = vmatpush1.xpose.msra.mxu0 0.0
    %466 = vmatprep.subr.mxu0 0.0
    %467 = vmatpush1.xpose.msra.mxu0 0.0
    %468 = vmatprep.mubr.f32.mxu0 0.0
    %v469 = vand.u32 %v110, 4294901760
    %v470 = vsub.f32 %v110, %v469
    %v471 = vand.u32 %v470, 4294901760
    %472 = vmatmul.mubr.f32.gmra.mrb[0].mxu0 %v471
    %v473 = vpop.f32.mrb[0].mxu0
    %v474 = vadd.f32 %v390, %v473
    %v475 = vpop.f32.mrb[0].mxu0
    %476 = vmatprep.mubr.f32.mxu0 0.0
    %v477 = vand.u32 %v113, 4294901760
    %v478 = vsub.f32 %v113, %v477
    %v479 = vand.u32 %v478, 4294901760
    %480 = vmatmul.mubr.f32.gmra.mrb[0].mxu0 %v479
    %v481 = vpop.f32.mrb[0].mxu0
    %v482 = vadd.f32 %v397, %v481
    %v483 = vpop.f32.mrb[0].mxu0
    %484 = vdwg.mxu0
    %485 = vmatprep.subr.mxu0 0.0
    %v486 = vand.u32 %v116, 4294901760
    %v487 = vsub.f32 %v116, %v486
    %v488 = vand.u32 %v487, 4294901760
    %489 = vmatpush1.xpose.msra.mxu0 %v488
    %490 = vmatprep.subr.mxu0 0.0
    %v491 = vand.u32 %v119, 4294901760
    %v492 = vsub.f32 %v119, %v491
    %v493 = vand.u32 %v492, 4294901760
    %494 = vmatpush1.xpose.msra.mxu0 %v493
    %495 = vmatprep.subr.mxu0 0.0
    %v496 = vand.u32 %v122, 4294901760
    %v497 = vsub.f32 %v122, %v496
    %v498 = vand.u32 %v497, 4294901760
    %499 = vmatpush1.xpose.msra.mxu0 %v498
    %500 = vmatprep.subr.mxu0 0.0
    %v501 = vand.u32 %v125, 4294901760
    %v502 = vsub.f32 %v125, %v501
    %v503 = vand.u32 %v502, 4294901760
    %504 = vmatpush1.xpose.msra.mxu0 %v503
    %505 = vmatprep.subr.mxu0 0.0
    %506 = vmatpush1.xpose.msra.mxu0 0.0
    %507 = vmatprep.subr.mxu0 0.0
    %508 = vmatpush1.xpose.msra.mxu0 0.0
    %509 = vmatprep.subr.mxu0 0.0
    %510 = vmatpush1.xpose.msra.mxu0 0.0
    %511 = vmatprep.subr.mxu0 0.0
    %512 = vmatpush1.xpose.msra.mxu0 0.0
    %513 = vmatprep.subr.mxu0 0.0
    %514 = vmatpush1.xpose.msra.mxu0 0.0
    %515 = vmatprep.subr.mxu0 0.0
    %516 = vmatpush1.xpose.msra.mxu0 0.0
    %517 = vmatprep.subr.mxu0 0.0
    %518 = vmatpush1.xpose.msra.mxu0 0.0
    %519 = vmatprep.subr.mxu0 0.0
    %520 = vmatpush1.xpose.msra.mxu0 0.0
    %521 = vmatprep.subr.mxu0 0.0
    %522 = vmatpush1.xpose.msra.mxu0 0.0
    %523 = vmatprep.subr.mxu0 0.0
    %524 = vmatpush1.xpose.msra.mxu0 0.0
    %525 = vmatprep.subr.mxu0 0.0
    %526 = vmatpush1.xpose.msra.mxu0 0.0
    %527 = vmatprep.subr.mxu0 0.0
    %528 = vmatpush1.xpose.msra.mxu0 0.0
    %529 = vmatprep.subr.mxu0 0.0
    %530 = vmatpush1.xpose.msra.mxu0 0.0
    %531 = vmatprep.subr.mxu0 0.0
    %532 = vmatpush1.xpose.msra.mxu0 0.0
    %533 = vmatprep.subr.mxu0 0.0
    %534 = vmatpush1.xpose.msra.mxu0 0.0
    %535 = vmatprep.subr.mxu0 0.0
    %536 = vmatpush1.xpose.msra.mxu0 0.0
    %537 = vmatprep.subr.mxu0 0.0
    %538 = vmatpush1.xpose.msra.mxu0 0.0
    %539 = vmatprep.subr.mxu0 0.0
    %540 = vmatpush1.xpose.msra.mxu0 0.0
    %541 = vmatprep.subr.mxu0 0.0
    %542 = vmatpush1.xpose.msra.mxu0 0.0
    %543 = vmatprep.subr.mxu0 0.0
    %544 = vmatpush1.xpose.msra.mxu0 0.0
    %545 = vmatprep.subr.mxu0 0.0
    %546 = vmatpush1.xpose.msra.mxu0 0.0
    %547 = vmatprep.subr.mxu0 0.0
    %548 = vmatpush1.xpose.msra.mxu0 0.0
    %549 = vmatprep.subr.mxu0 0.0
    %550 = vmatpush1.xpose.msra.mxu0 0.0
    %551 = vmatprep.subr.mxu0 0.0
    %552 = vmatpush1.xpose.msra.mxu0 0.0
    %553 = vmatprep.subr.mxu0 0.0
    %554 = vmatpush1.xpose.msra.mxu0 0.0
    %555 = vmatprep.subr.mxu0 0.0
    %556 = vmatpush1.xpose.msra.mxu0 0.0
    %557 = vmatprep.subr.mxu0 0.0
    %558 = vmatpush1.xpose.msra.mxu0 0.0
    %559 = vmatprep.subr.mxu0 0.0
    %560 = vmatpush1.xpose.msra.mxu0 0.0
    %561 = vmatprep.mubr.f32.mxu0 0.0
    %v562 = vand.u32 %v110, 4294901760
    %563 = vmatmul.mubr.f32.gmra.mrb[0].mxu0 %v562
    %v564 = vpop.f32.mrb[0].mxu0
    %v565 = vadd.f32 %v474, %v564
    %v566 = vpop.f32.mrb[0].mxu0
    %567 = vmatprep.mubr.f32.mxu0 0.0
    %v568 = vand.u32 %v113, 4294901760
    %569 = vmatmul.mubr.f32.gmra.mrb[0].mxu0 %v568
    %v570 = vpop.f32.mrb[0].mxu0
    %v571 = vadd.f32 %v482, %v570
    %v572 = vpop.f32.mrb[0].mxu0
    %573 = vdwg.mxu0
    %574 = vmatprep.subr.mxu0 0.0
    %v575 = vand.u32 %v116, 4294901760
    %576 = vmatpush1.xpose.msra.mxu0 %v575
    %577 = vmatprep.subr.mxu0 0.0
    %v578 = vand.u32 %v119, 4294901760
    %579 = vmatpush1.xpose.msra.mxu0 %v578
    %580 = vmatprep.subr.mxu0 0.0
    %v581 = vand.u32 %v122, 4294901760
    %582 = vmatpush1.xpose.msra.mxu0 %v581
    %583 = vmatprep.subr.mxu0 0.0
    %v584 = vand.u32 %v125, 4294901760
    %585 = vmatpush1.xpose.msra.mxu0 %v584
    %586 = vmatprep.subr.mxu0 0.0
    %587 = vmatpush1.xpose.msra.mxu0 0.0
    %588 = vmatprep.subr.mxu0 0.0
    %589 = vmatpush1.xpose.msra.mxu0 0.0
    %590 = vmatprep.subr.mxu0 0.0
    %591 = vmatpush1.xpose.msra.mxu0 0.0
    %592 = vmatprep.subr.mxu0 0.0
    %593 = vmatpush1.xpose.msra.mxu0 0.0
    %594 = vmatprep.subr.mxu0 0.0
    %595 = vmatpush1.xpose.msra.mxu0 0.0
    %596 = vmatprep.subr.mxu0 0.0
    %597 = vmatpush1.xpose.msra.mxu0 0.0
    %598 = vmatprep.subr.mxu0 0.0
    %599 = vmatpush1.xpose.msra.mxu0 0.0
    %600 = vmatprep.subr.mxu0 0.0
    %601 = vmatpush1.xpose.msra.mxu0 0.0
    %602 = vmatprep.subr.mxu0 0.0
    %603 = vmatpush1.xpose.msra.mxu0 0.0
    %604 = vmatprep.subr.mxu0 0.0
    %605 = vmatpush1.xpose.msra.mxu0 0.0
    %606 = vmatprep.subr.mxu0 0.0
    %607 = vmatpush1.xpose.msra.mxu0 0.0
    %608 = vmatprep.subr.mxu0 0.0
    %609 = vmatpush1.xpose.msra.mxu0 0.0
    %610 = vmatprep.subr.mxu0 0.0
    %611 = vmatpush1.xpose.msra.mxu0 0.0
    %612 = vmatprep.subr.mxu0 0.0
    %613 = vmatpush1.xpose.msra.mxu0 0.0
    %614 = vmatprep.subr.mxu0 0.0
    %615 = vmatpush1.xpose.msra.mxu0 0.0
    %616 = vmatprep.subr.mxu0 0.0
    %617 = vmatpush1.xpose.msra.mxu0 0.0
    %618 = vmatprep.subr.mxu0 0.0
    %619 = vmatpush1.xpose.msra.mxu0 0.0
    %620 = vmatprep.subr.mxu0 0.0
    %621 = vmatpush1.xpose.msra.mxu0 0.0
    %622 = vmatprep.subr.mxu0 0.0
    %623 = vmatpush1.xpose.msra.mxu0 0.0
    %624 = vmatprep.subr.mxu0 0.0
    %625 = vmatpush1.xpose.msra.mxu0 0.0
    %626 = vmatprep.subr.mxu0 0.0
    %627 = vmatpush1.xpose.msra.mxu0 0.0
    %628 = vmatprep.subr.mxu0 0.0
    %629 = vmatpush1.xpose.msra.mxu0 0.0
    %630 = vmatprep.subr.mxu0 0.0
    %631 = vmatpush1.xpose.msra.mxu0 0.0
    %632 = vmatprep.subr.mxu0 0.0
    %633 = vmatpush1.xpose.msra.mxu0 0.0
    %634 = vmatprep.subr.mxu0 0.0
    %635 = vmatpush1.xpose.msra.mxu0 0.0
    %636 = vmatprep.subr.mxu0 0.0
    %637 = vmatpush1.xpose.msra.mxu0 0.0
    %638 = vmatprep.subr.mxu0 0.0
    %639 = vmatpush1.xpose.msra.mxu0 0.0
    %640 = vmatprep.subr.mxu0 0.0
    %641 = vmatpush1.xpose.msra.mxu0 0.0
    %642 = vmatprep.mubr.f32.mxu0 0.0
    %v643 = vand.u32 %v110, 4294901760
    %644 = vmatmul.mubr.f32.gmra.mrb[0].mxu0 %v643
    %v645 = vpop.f32.mrb[0].mxu0
    %v646 = vadd.f32 %v565, %v645
    %v647 = vpop.f32.mrb[0].mxu0
    %648 = vmatprep.mubr.f32.mxu0 0.0
    %v649 = vand.u32 %v113, 4294901760
    %650 = vmatmul.mubr.f32.gmra.mrb[0].mxu0 %v649
    %v651 = vpop.f32.mrb[0].mxu0
    %v652 = vadd.f32 %v571, %v651
    %v653 = vpop.f32.mrb[0].mxu0
    %654 = vdwg.mxu0
    %v655 = vmul.f32 %v646, 0.35355338
    %v656 = vmul.f32 %v652, 0.35355338
    %v657 = vld [vmem:[#allocation6] sm:$0xff]
    %v658 = vld [vmem:[#allocation6 + $0x8] sm:$0xff]
    %v659 = vlaneseq
    %v660 = vshrl.u32 %v659, 7
    %v661 = vsub.s32 0, %v660
    %v662 = vrot.slane %v99, %v661
    %v664 = vsel %vm108, %v657, 0
    %v667 = vsel %vm108, %v658, 0
    %v670 = vsel %vm108, %v84, 0
    %v673 = vsel %vm108, %v85, 0
    %v676 = vsel %vm108, %v86, 0
    %v679 = vsel %vm108, %v87, 0
    %681 = vmatprep.subr.mxu0 0.0
    %v682 = vand.u32 %v670, 4294901760
    %683 = vmatpush1.xpose.msra.mxu0 %v682
    %684 = vmatprep.subr.mxu0 0.0
    %v685 = vand.u32 %v673, 4294901760
    %686 = vmatpush1.xpose.msra.mxu0 %v685
    %687 = vmatprep.subr.mxu0 0.0
    %v688 = vand.u32 %v676, 4294901760
    %689 = vmatpush1.xpose.msra.mxu0 %v688
    %690 = vmatprep.subr.mxu0 0.0
    %v691 = vand.u32 %v679, 4294901760
    %692 = vmatpush1.xpose.msra.mxu0 %v691
    %693 = vmatprep.subr.mxu0 0.0
    %694 = vmatpush1.xpose.msra.mxu0 0.0
    %695 = vmatprep.subr.mxu0 0.0
    %696 = vmatpush1.xpose.msra.mxu0 0.0
    %697 = vmatprep.subr.mxu0 0.0
    %698 = vmatpush1.xpose.msra.mxu0 0.0
    %699 = vmatprep.subr.mxu0 0.0
    %700 = vmatpush1.xpose.msra.mxu0 0.0
    %701 = vmatprep.subr.mxu0 0.0
    %702 = vmatpush1.xpose.msra.mxu0 0.0
    %703 = vmatprep.subr.mxu0 0.0
    %704 = vmatpush1.xpose.msra.mxu0 0.0
    %705 = vmatprep.subr.mxu0 0.0
    %706 = vmatpush1.xpose.msra.mxu0 0.0
    %707 = vmatprep.subr.mxu0 0.0
    %708 = vmatpush1.xpose.msra.mxu0 0.0
    %709 = vmatprep.subr.mxu0 0.0
    %710 = vmatpush1.xpose.msra.mxu0 0.0
    %711 = vmatprep.subr.mxu0 0.0
    %712 = vmatpush1.xpose.msra.mxu0 0.0
    %713 = vmatprep.subr.mxu0 0.0
    %714 = vmatpush1.xpose.msra.mxu0 0.0
    %715 = vmatprep.subr.mxu0 0.0
    %716 = vmatpush1.xpose.msra.mxu0 0.0
    %717 = vmatprep.subr.mxu0 0.0
    %718 = vmatpush1.xpose.msra.mxu0 0.0
    %719 = vmatprep.subr.mxu0 0.0
    %720 = vmatpush1.xpose.msra.mxu0 0.0
    %721 = vmatprep.subr.mxu0 0.0
    %722 = vmatpush1.xpose.msra.mxu0 0.0
    %723 = vmatprep.subr.mxu0 0.0
    %724 = vmatpush1.xpose.msra.mxu0 0.0
    %725 = vmatprep.subr.mxu0 0.0
    %726 = vmatpush1.xpose.msra.mxu0 0.0
    %727 = vmatprep.subr.mxu0 0.0
    %728 = vmatpush1.xpose.msra.mxu0 0.0
    %729 = vmatprep.subr.mxu0 0.0
    %730 = vmatpush1.xpose.msra.mxu0 0.0
    %731 = vmatprep.subr.mxu0 0.0
    %732 = vmatpush1.xpose.msra.mxu0 0.0
    %733 = vmatprep.subr.mxu0 0.0
    %734 = vmatpush1.xpose.msra.mxu0 0.0
    %735 = vmatprep.subr.mxu0 0.0
    %736 = vmatpush1.xpose.msra.mxu0 0.0
    %737 = vmatprep.subr.mxu0 0.0
    %738 = vmatpush1.xpose.msra.mxu0 0.0
    %739 = vmatprep.subr.mxu0 0.0
    %740 = vmatpush1.xpose.msra.mxu0 0.0
    %741 = vmatprep.subr.mxu0 0.0
    %742 = vmatpush1.xpose.msra.mxu0 0.0
    %743 = vmatprep.subr.mxu0 0.0
    %744 = vmatpush1.xpose.msra.mxu0 0.0
    %745 = vmatprep.subr.mxu0 0.0
    %746 = vmatpush1.xpose.msra.mxu0 0.0
    %747 = vmatprep.subr.mxu0 0.0
    %748 = vmatpush1.xpose.msra.mxu0 0.0
    %749 = vmatprep.mubr.f32.mxu0 0.0
    %v750 = vand.u32 %v664, 4294901760
    %v751 = vsub.f32 %v664, %v750
    %v752 = vand.u32 %v751, 4294901760
    %v753 = vsub.f32 %v751, %v752
    %v754 = vand.u32 %v753, 4294901760
    %755 = vmatmul.mubr.f32.gmra.mrb[0].mxu0 %v754
    %v756 = vpop.f32.mrb[0].mxu0
    %v757 = vadd.f32 %v662, %v756
    %v758 = vpop.f32.mrb[0].mxu0
    %759 = vmatprep.mubr.f32.mxu0 0.0
    %v760 = vand.u32 %v667, 4294901760
    %v761 = vsub.f32 %v667, %v760
    %v762 = vand.u32 %v761, 4294901760
    %v763 = vsub.f32 %v761, %v762
    %v764 = vand.u32 %v763, 4294901760
    %765 = vmatmul.mubr.f32.gmra.mrb[0].mxu0 %v764
    %v766 = vpop.f32.mrb[0].mxu0
    %v767 = vadd.f32 %v662, %v766
    %v768 = vpop.f32.mrb[0].mxu0
    %769 = vdwg.mxu0
    %770 = vmatprep.subr.mxu0 0.0
    %v771 = vand.u32 %v670, 4294901760
    %v772 = vsub.f32 %v670, %v771
    %v773 = vand.u32 %v772, 4294901760
    %v774 = vsub.f32 %v772, %v773
    %v775 = vand.u32 %v774, 4294901760
    %776 = vmatpush1.xpose.msra.mxu0 %v775
    %777 = vmatprep.subr.mxu0 0.0
    %v778 = vand.u32 %v673, 4294901760
    %v779 = vsub.f32 %v673, %v778
    %v780 = vand.u32 %v779, 4294901760
    %v781 = vsub.f32 %v779, %v780
    %v782 = vand.u32 %v781, 4294901760
    %783 = vmatpush1.xpose.msra.mxu0 %v782
    %784 = vmatprep.subr.mxu0 0.0
    %v785 = vand.u32 %v676, 4294901760
    %v786 = vsub.f32 %v676, %v785
    %v787 = vand.u32 %v786, 4294901760
    %v788 = vsub.f32 %v786, %v787
    %v789 = vand.u32 %v788, 4294901760
    %790 = vmatpush1.xpose.msra.mxu0 %v789
    %791 = vmatprep.subr.mxu0 0.0
    %v792 = vand.u32 %v679, 4294901760
    %v793 = vsub.f32 %v679, %v792
    %v794 = vand.u32 %v793, 4294901760
    %v795 = vsub.f32 %v793, %v794
    %v796 = vand.u32 %v795, 4294901760
    %797 = vmatpush1.xpose.msra.mxu0 %v796
    %798 = vmatprep.subr.mxu0 0.0
    %799 = vmatpush1.xpose.msra.mxu0 0.0
    %800 = vmatprep.subr.mxu0 0.0
    %801 = vmatpush1.xpose.msra.mxu0 0.0
    %802 = vmatprep.subr.mxu0 0.0
    %803 = vmatpush1.xpose.msra.mxu0 0.0
    %804 = vmatprep.subr.mxu0 0.0
    %805 = vmatpush1.xpose.msra.mxu0 0.0
    %806 = vmatprep.subr.mxu0 0.0
    %807 = vmatpush1.xpose.msra.mxu0 0.0
    %808 = vmatprep.subr.mxu0 0.0
    %809 = vmatpush1.xpose.msra.mxu0 0.0
    %810 = vmatprep.subr.mxu0 0.0
    %811 = vmatpush1.xpose.msra.mxu0 0.0
    %812 = vmatprep.subr.mxu0 0.0
    %813 = vmatpush1.xpose.msra.mxu0 0.0
    %814 = vmatprep.subr.mxu0 0.0
    %815 = vmatpush1.xpose.msra.mxu0 0.0
    %816 = vmatprep.subr.mxu0 0.0
    %817 = vmatpush1.xpose.msra.mxu0 0.0
    %818 = vmatprep.subr.mxu0 0.0
    %819 = vmatpush1.xpose.msra.mxu0 0.0
    %820 = vmatprep.subr.mxu0 0.0
    %821 = vmatpush1.xpose.msra.mxu0 0.0
    %822 = vmatprep.subr.mxu0 0.0
    %823 = vmatpush1.xpose.msra.mxu0 0.0
    %824 = vmatprep.subr.mxu0 0.0
    %825 = vmatpush1.xpose.msra.mxu0 0.0
    %826 = vmatprep.subr.mxu0 0.0
    %827 = vmatpush1.xpose.msra.mxu0 0.0
    %828 = vmatprep.subr.mxu0 0.0
    %829 = vmatpush1.xpose.msra.mxu0 0.0
    %830 = vmatprep.subr.mxu0 0.0
    %831 = vmatpush1.xpose.msra.mxu0 0.0
    %832 = vmatprep.subr.mxu0 0.0
    %833 = vmatpush1.xpose.msra.mxu0 0.0
    %834 = vmatprep.subr.mxu0 0.0
    %835 = vmatpush1.xpose.msra.mxu0 0.0
    %836 = vmatprep.subr.mxu0 0.0
    %837 = vmatpush1.xpose.msra.mxu0 0.0
    %838 = vmatprep.subr.mxu0 0.0
    %839 = vmatpush1.xpose.msra.mxu0 0.0
    %840 = vmatprep.subr.mxu0 0.0
    %841 = vmatpush1.xpose.msra.mxu0 0.0
    %842 = vmatprep.subr.mxu0 0.0
    %843 = vmatpush1.xpose.msra.mxu0 0.0
    %844 = vmatprep.subr.mxu0 0.0
    %845 = vmatpush1.xpose.msra.mxu0 0.0
    %846 = vmatprep.subr.mxu0 0.0
    %847 = vmatpush1.xpose.msra.mxu0 0.0
    %848 = vmatprep.subr.mxu0 0.0
    %849 = vmatpush1.xpose.msra.mxu0 0.0
    %850 = vmatprep.subr.mxu0 0.0
    %851 = vmatpush1.xpose.msra.mxu0 0.0
    %852 = vmatprep.subr.mxu0 0.0
    %853 = vmatpush1.xpose.msra.mxu0 0.0
    %854 = vmatprep.mubr.f32.mxu0 0.0
    %v855 = vand.u32 %v664, 4294901760
    %856 = vmatmul.mubr.f32.gmra.mrb[0].mxu0 %v855
    %v857 = vpop.f32.mrb[0].mxu0
    %v858 = vadd.f32 %v757, %v857
    %v859 = vpop.f32.mrb[0].mxu0
    %860 = vmatprep.mubr.f32.mxu0 0.0
    %v861 = vand.u32 %v667, 4294901760
    %862 = vmatmul.mubr.f32.gmra.mrb[0].mxu0 %v861
    %v863 = vpop.f32.mrb[0].mxu0
    %v864 = vadd.f32 %v767, %v863
    %v865 = vpop.f32.mrb[0].mxu0
    %866 = vdwg.mxu0
    %867 = vmatprep.subr.mxu0 0.0
    %v868 = vand.u32 %v670, 4294901760
    %v869 = vsub.f32 %v670, %v868
    %870 = vmatpush1.xpose.msra.mxu0 %v869
    %871 = vmatprep.subr.mxu0 0.0
    %v872 = vand.u32 %v673, 4294901760
    %v873 = vsub.f32 %v673, %v872
    %874 = vmatpush1.xpose.msra.mxu0 %v873
    %875 = vmatprep.subr.mxu0 0.0
    %v876 = vand.u32 %v676, 4294901760
    %v877 = vsub.f32 %v676, %v876
    %878 = vmatpush1.xpose.msra.mxu0 %v877
    %879 = vmatprep.subr.mxu0 0.0
    %v880 = vand.u32 %v679, 4294901760
    %v881 = vsub.f32 %v679, %v880
    %882 = vmatpush1.xpose.msra.mxu0 %v881
    %883 = vmatprep.subr.mxu0 0.0
    %884 = vmatpush1.xpose.msra.mxu0 0.0
    %885 = vmatprep.subr.mxu0 0.0
    %886 = vmatpush1.xpose.msra.mxu0 0.0
    %887 = vmatprep.subr.mxu0 0.0
    %888 = vmatpush1.xpose.msra.mxu0 0.0
    %889 = vmatprep.subr.mxu0 0.0
    %890 = vmatpush1.xpose.msra.mxu0 0.0
    %891 = vmatprep.subr.mxu0 0.0
    %892 = vmatpush1.xpose.msra.mxu0 0.0
    %893 = vmatprep.subr.mxu0 0.0
    %894 = vmatpush1.xpose.msra.mxu0 0.0
    %895 = vmatprep.subr.mxu0 0.0
    %896 = vmatpush1.xpose.msra.mxu0 0.0
    %897 = vmatprep.subr.mxu0 0.0
    %898 = vmatpush1.xpose.msra.mxu0 0.0
    %899 = vmatprep.subr.mxu0 0.0
    %900 = vmatpush1.xpose.msra.mxu0 0.0
    %901 = vmatprep.subr.mxu0 0.0
    %902 = vmatpush1.xpose.msra.mxu0 0.0
    %903 = vmatprep.subr.mxu0 0.0
    %904 = vmatpush1.xpose.msra.mxu0 0.0
    %905 = vmatprep.subr.mxu0 0.0
    %906 = vmatpush1.xpose.msra.mxu0 0.0
    %907 = vmatprep.subr.mxu0 0.0
    %908 = vmatpush1.xpose.msra.mxu0 0.0
    %909 = vmatprep.subr.mxu0 0.0
    %910 = vmatpush1.xpose.msra.mxu0 0.0
    %911 = vmatprep.subr.mxu0 0.0
    %912 = vmatpush1.xpose.msra.mxu0 0.0
    %913 = vmatprep.subr.mxu0 0.0
    %914 = vmatpush1.xpose.msra.mxu0 0.0
    %915 = vmatprep.subr.mxu0 0.0
    %916 = vmatpush1.xpose.msra.mxu0 0.0
    %917 = vmatprep.subr.mxu0 0.0
    %918 = vmatpush1.xpose.msra.mxu0 0.0
    %919 = vmatprep.subr.mxu0 0.0
    %920 = vmatpush1.xpose.msra.mxu0 0.0
    %921 = vmatprep.subr.mxu0 0.0
    %922 = vmatpush1.xpose.msra.mxu0 0.0
    %923 = vmatprep.subr.mxu0 0.0
    %924 = vmatpush1.xpose.msra.mxu0 0.0
    %925 = vmatprep.subr.mxu0 0.0
    %926 = vmatpush1.xpose.msra.mxu0 0.0
    %927 = vmatprep.subr.mxu0 0.0
    %928 = vmatpush1.xpose.msra.mxu0 0.0
    %929 = vmatprep.subr.mxu0 0.0
    %930 = vmatpush1.xpose.msra.mxu0 0.0
    %931 = vmatprep.subr.mxu0 0.0
    %932 = vmatpush1.xpose.msra.mxu0 0.0
    %933 = vmatprep.subr.mxu0 0.0
    %934 = vmatpush1.xpose.msra.mxu0 0.0
    %935 = vmatprep.subr.mxu0 0.0
    %936 = vmatpush1.xpose.msra.mxu0 0.0
    %937 = vmatprep.subr.mxu0 0.0
    %938 = vmatpush1.xpose.msra.mxu0 0.0
    %939 = vmatprep.mubr.f32.mxu0 0.0
    %v940 = vand.u32 %v664, 4294901760
    %v941 = vsub.f32 %v664, %v940
    %942 = vmatmul.mubr.f32.gmra.mrb[0].mxu0 %v941
    %v943 = vpop.f32.mrb[0].mxu0
    %v944 = vadd.f32 %v858, %v943
    %v945 = vpop.f32.mrb[0].mxu0
    %946 = vmatprep.mubr.f32.mxu0 0.0
    %v947 = vand.u32 %v667, 4294901760
    %v948 = vsub.f32 %v667, %v947
    %949 = vmatmul.mubr.f32.gmra.mrb[0].mxu0 %v948
    %v950 = vpop.f32.mrb[0].mxu0
    %v951 = vadd.f32 %v864, %v950
    %v952 = vpop.f32.mrb[0].mxu0
    %953 = vdwg.mxu0
    %954 = vmatprep.subr.mxu0 0.0
    %v955 = vand.u32 %v670, 4294901760
    %956 = vmatpush1.xpose.msra.mxu0 %v955
    %957 = vmatprep.subr.mxu0 0.0
    %v958 = vand.u32 %v673, 4294901760
    %959 = vmatpush1.xpose.msra.mxu0 %v958
    %960 = vmatprep.subr.mxu0 0.0
    %v961 = vand.u32 %v676, 4294901760
    %962 = vmatpush1.xpose.msra.mxu0 %v961
    %963 = vmatprep.subr.mxu0 0.0
    %v964 = vand.u32 %v679, 4294901760
    %965 = vmatpush1.xpose.msra.mxu0 %v964
    %966 = vmatprep.subr.mxu0 0.0
    %967 = vmatpush1.xpose.msra.mxu0 0.0
    %968 = vmatprep.subr.mxu0 0.0
    %969 = vmatpush1.xpose.msra.mxu0 0.0
    %970 = vmatprep.subr.mxu0 0.0
    %971 = vmatpush1.xpose.msra.mxu0 0.0
    %972 = vmatprep.subr.mxu0 0.0
    %973 = vmatpush1.xpose.msra.mxu0 0.0
    %974 = vmatprep.subr.mxu0 0.0
    %975 = vmatpush1.xpose.msra.mxu0 0.0
    %976 = vmatprep.subr.mxu0 0.0
    %977 = vmatpush1.xpose.msra.mxu0 0.0
    %978 = vmatprep.subr.mxu0 0.0
    %979 = vmatpush1.xpose.msra.mxu0 0.0
    %980 = vmatprep.subr.mxu0 0.0
    %981 = vmatpush1.xpose.msra.mxu0 0.0
    %982 = vmatprep.subr.mxu0 0.0
    %983 = vmatpush1.xpose.msra.mxu0 0.0
    %984 = vmatprep.subr.mxu0 0.0
    %985 = vmatpush1.xpose.msra.mxu0 0.0
    %986 = vmatprep.subr.mxu0 0.0
    %987 = vmatpush1.xpose.msra.mxu0 0.0
    %988 = vmatprep.subr.mxu0 0.0
    %989 = vmatpush1.xpose.msra.mxu0 0.0
    %990 = vmatprep.subr.mxu0 0.0
    %991 = vmatpush1.xpose.msra.mxu0 0.0
    %992 = vmatprep.subr.mxu0 0.0
    %993 = vmatpush1.xpose.msra.mxu0 0.0
    %994 = vmatprep.subr.mxu0 0.0
    %995 = vmatpush1.xpose.msra.mxu0 0.0
    %996 = vmatprep.subr.mxu0 0.0
    %997 = vmatpush1.xpose.msra.mxu0 0.0
    %998 = vmatprep.subr.mxu0 0.0
    %999 = vmatpush1.xpose.msra.mxu0 0.0
    %1000 = vmatprep.subr.mxu0 0.0
    %1001 = vmatpush1.xpose.msra.mxu0 0.0
    %1002 = vmatprep.subr.mxu0 0.0
    %1003 = vmatpush1.xpose.msra.mxu0 0.0
    %1004 = vmatprep.subr.mxu0 0.0
    %1005 = vmatpush1.xpose.msra.mxu0 0.0
    %1006 = vmatprep.subr.mxu0 0.0
    %1007 = vmatpush1.xpose.msra.mxu0 0.0
    %1008 = vmatprep.subr.mxu0 0.0
    %1009 = vmatpush1.xpose.msra.mxu0 0.0
    %1010 = vmatprep.subr.mxu0 0.0
    %1011 = vmatpush1.xpose.msra.mxu0 0.0
    %1012 = vmatprep.subr.mxu0 0.0
    %1013 = vmatpush1.xpose.msra.mxu0 0.0
    %1014 = vmatprep.subr.mxu0 0.0
    %1015 = vmatpush1.xpose.msra.mxu0 0.0
    %1016 = vmatprep.subr.mxu0 0.0
    %1017 = vmatpush1.xpose.msra.mxu0 0.0
    %1018 = vmatprep.subr.mxu0 0.0
    %1019 = vmatpush1.xpose.msra.mxu0 0.0
    %1020 = vmatprep.subr.mxu0 0.0
    %1021 = vmatpush1.xpose.msra.mxu0 0.0
    %1022 = vmatprep.mubr.f32.mxu0 0.0
    %v1023 = vand.u32 %v664, 4294901760
    %v1024 = vsub.f32 %v664, %v1023
    %v1025 = vand.u32 %v1024, 4294901760
    %1026 = vmatmul.mubr.f32.gmra.mrb[0].mxu0 %v1025
    %v1027 = vpop.f32.mrb[0].mxu0
    %v1028 = vadd.f32 %v944, %v1027
    %v1029 = vpop.f32.mrb[0].mxu0
    %1030 = vmatprep.mubr.f32.mxu0 0.0
    %v1031 = vand.u32 %v667, 4294901760
    %v1032 = vsub.f32 %v667, %v1031
    %v1033 = vand.u32 %v1032, 4294901760
    %1034 = vmatmul.mubr.f32.gmra.mrb[0].mxu0 %v1033
    %v1035 = vpop.f32.mrb[0].mxu0
    %v1036 = vadd.f32 %v951, %v1035
    %v1037 = vpop.f32.mrb[0].mxu0
    %1038 = vdwg.mxu0
    %1039 = vmatprep.subr.mxu0 0.0
    %v1040 = vand.u32 %v670, 4294901760
    %v1041 = vsub.f32 %v670, %v1040
    %v1042 = vand.u32 %v1041, 4294901760
    %1043 = vmatpush1.xpose.msra.mxu0 %v1042
    %1044 = vmatprep.subr.mxu0 0.0
    %v1045 = vand.u32 %v673, 4294901760
    %v1046 = vsub.f32 %v673, %v1045
    %v1047 = vand.u32 %v1046, 4294901760
    %1048 = vmatpush1.xpose.msra.mxu0 %v1047
    %1049 = vmatprep.subr.mxu0 0.0
    %v1050 = vand.u32 %v676, 4294901760
    %v1051 = vsub.f32 %v676, %v1050
    %v1052 = vand.u32 %v1051, 4294901760
    %1053 = vmatpush1.xpose.msra.mxu0 %v1052
    %1054 = vmatprep.subr.mxu0 0.0
    %v1055 = vand.u32 %v679, 4294901760
    %v1056 = vsub.f32 %v679, %v1055
    %v1057 = vand.u32 %v1056, 4294901760
    %1058 = vmatpush1.xpose.msra.mxu0 %v1057
    %1059 = vmatprep.subr.mxu0 0.0
    %1060 = vmatpush1.xpose.msra.mxu0 0.0
    %1061 = vmatprep.subr.mxu0 0.0
    %1062 = vmatpush1.xpose.msra.mxu0 0.0
    %1063 = vmatprep.subr.mxu0 0.0
    %1064 = vmatpush1.xpose.msra.mxu0 0.0
    %1065 = vmatprep.subr.mxu0 0.0
    %1066 = vmatpush1.xpose.msra.mxu0 0.0
    %1067 = vmatprep.subr.mxu0 0.0
    %1068 = vmatpush1.xpose.msra.mxu0 0.0
    %1069 = vmatprep.subr.mxu0 0.0
    %1070 = vmatpush1.xpose.msra.mxu0 0.0
    %1071 = vmatprep.subr.mxu0 0.0
    %1072 = vmatpush1.xpose.msra.mxu0 0.0
    %1073 = vmatprep.subr.mxu0 0.0
    %1074 = vmatpush1.xpose.msra.mxu0 0.0
    %1075 = vmatprep.subr.mxu0 0.0
    %1076 = vmatpush1.xpose.msra.mxu0 0.0
    %1077 = vmatprep.subr.mxu0 0.0
    %1078 = vmatpush1.xpose.msra.mxu0 0.0
    %1079 = vmatprep.subr.mxu0 0.0
    %1080 = vmatpush1.xpose.msra.mxu0 0.0
    %1081 = vmatprep.subr.mxu0 0.0
    %1082 = vmatpush1.xpose.msra.mxu0 0.0
    %1083 = vmatprep.subr.mxu0 0.0
    %1084 = vmatpush1.xpose.msra.mxu0 0.0
    %1085 = vmatprep.subr.mxu0 0.0
    %1086 = vmatpush1.xpose.msra.mxu0 0.0
    %1087 = vmatprep.subr.mxu0 0.0
    %1088 = vmatpush1.xpose.msra.mxu0 0.0
    %1089 = vmatprep.subr.mxu0 0.0
    %1090 = vmatpush1.xpose.msra.mxu0 0.0
    %1091 = vmatprep.subr.mxu0 0.0
    %1092 = vmatpush1.xpose.msra.mxu0 0.0
    %1093 = vmatprep.subr.mxu0 0.0
    %1094 = vmatpush1.xpose.msra.mxu0 0.0
    %1095 = vmatprep.subr.mxu0 0.0
    %1096 = vmatpush1.xpose.msra.mxu0 0.0
    %1097 = vmatprep.subr.mxu0 0.0
    %1098 = vmatpush1.xpose.msra.mxu0 0.0
    %1099 = vmatprep.subr.mxu0 0.0
    %1100 = vmatpush1.xpose.msra.mxu0 0.0
    %1101 = vmatprep.subr.mxu0 0.0
    %1102 = vmatpush1.xpose.msra.mxu0 0.0
    %1103 = vmatprep.subr.mxu0 0.0
    %1104 = vmatpush1.xpose.msra.mxu0 0.0
    %1105 = vmatprep.subr.mxu0 0.0
    %1106 = vmatpush1.xpose.msra.mxu0 0.0
    %1107 = vmatprep.subr.mxu0 0.0
    %1108 = vmatpush1.xpose.msra.mxu0 0.0
    %1109 = vmatprep.subr.mxu0 0.0
    %1110 = vmatpush1.xpose.msra.mxu0 0.0
    %1111 = vmatprep.subr.mxu0 0.0
    %1112 = vmatpush1.xpose.msra.mxu0 0.0
    %1113 = vmatprep.subr.mxu0 0.0
    %1114 = vmatpush1.xpose.msra.mxu0 0.0
    %1115 = vmatprep.mubr.f32.mxu0 0.0
    %v1116 = vand.u32 %v664, 4294901760
    %1117 = vmatmul.mubr.f32.gmra.mrb[0].mxu0 %v1116
    %v1118 = vpop.f32.mrb[0].mxu0
    %v1119 = vadd.f32 %v1028, %v1118
    %v1120 = vpop.f32.mrb[0].mxu0
    %1121 = vmatprep.mubr.f32.mxu0 0.0
    %v1122 = vand.u32 %v667, 4294901760
    %1123 = vmatmul.mubr.f32.gmra.mrb[0].mxu0 %v1122
    %v1124 = vpop.f32.mrb[0].mxu0
    %v1125 = vadd.f32 %v1036, %v1124
    %v1126 = vpop.f32.mrb[0].mxu0
    %1127 = vdwg.mxu0
    %1128 = vmatprep.subr.mxu0 0.0
    %v1129 = vand.u32 %v670, 4294901760
    %1130 = vmatpush1.xpose.msra.mxu0 %v1129
    %1131 = vmatprep.subr.mxu0 0.0
    %v1132 = vand.u32 %v673, 4294901760
    %1133 = vmatpush1.xpose.msra.mxu0 %v1132
    %1134 = vmatprep.subr.mxu0 0.0
    %v1135 = vand.u32 %v676, 4294901760
    %1136 = vmatpush1.xpose.msra.mxu0 %v1135
    %1137 = vmatprep.subr.mxu0 0.0
    %v1138 = vand.u32 %v679, 4294901760
    %1139 = vmatpush1.xpose.msra.mxu0 %v1138
    %1140 = vmatprep.subr.mxu0 0.0
    %1141 = vmatpush1.xpose.msra.mxu0 0.0
    %1142 = vmatprep.subr.mxu0 0.0
    %1143 = vmatpush1.xpose.msra.mxu0 0.0
    %1144 = vmatprep.subr.mxu0 0.0
    %1145 = vmatpush1.xpose.msra.mxu0 0.0
    %1146 = vmatprep.subr.mxu0 0.0
    %1147 = vmatpush1.xpose.msra.mxu0 0.0
    %1148 = vmatprep.subr.mxu0 0.0
    %1149 = vmatpush1.xpose.msra.mxu0 0.0
    %1150 = vmatprep.subr.mxu0 0.0
    %1151 = vmatpush1.xpose.msra.mxu0 0.0
    %1152 = vmatprep.subr.mxu0 0.0
    %1153 = vmatpush1.xpose.msra.mxu0 0.0
    %1154 = vmatprep.subr.mxu0 0.0
    %1155 = vmatpush1.xpose.msra.mxu0 0.0
    %1156 = vmatprep.subr.mxu0 0.0
    %1157 = vmatpush1.xpose.msra.mxu0 0.0
    %1158 = vmatprep.subr.mxu0 0.0
    %1159 = vmatpush1.xpose.msra.mxu0 0.0
    %1160 = vmatprep.subr.mxu0 0.0
    %1161 = vmatpush1.xpose.msra.mxu0 0.0
    %1162 = vmatprep.subr.mxu0 0.0
    %1163 = vmatpush1.xpose.msra.mxu0 0.0
    %1164 = vmatprep.subr.mxu0 0.0
    %1165 = vmatpush1.xpose.msra.mxu0 0.0
    %1166 = vmatprep.subr.mxu0 0.0
    %1167 = vmatpush1.xpose.msra.mxu0 0.0
    %1168 = vmatprep.subr.mxu0 0.0
    %1169 = vmatpush1.xpose.msra.mxu0 0.0
    %1170 = vmatprep.subr.mxu0 0.0
    %1171 = vmatpush1.xpose.msra.mxu0 0.0
    %1172 = vmatprep.subr.mxu0 0.0
    %1173 = vmatpush1.xpose.msra.mxu0 0.0
    %1174 = vmatprep.subr.mxu0 0.0
    %1175 = vmatpush1.xpose.msra.mxu0 0.0
    %1176 = vmatprep.subr.mxu0 0.0
    %1177 = vmatpush1.xpose.msra.mxu0 0.0
    %1178 = vmatprep.subr.mxu0 0.0
    %1179 = vmatpush1.xpose.msra.mxu0 0.0
    %1180 = vmatprep.subr.mxu0 0.0
    %1181 = vmatpush1.xpose.msra.mxu0 0.0
    %1182 = vmatprep.subr.mxu0 0.0
    %1183 = vmatpush1.xpose.msra.mxu0 0.0
    %1184 = vmatprep.subr.mxu0 0.0
    %1185 = vmatpush1.xpose.msra.mxu0 0.0
    %1186 = vmatprep.subr.mxu0 0.0
    %1187 = vmatpush1.xpose.msra.mxu0 0.0
    %1188 = vmatprep.subr.mxu0 0.0
    %1189 = vmatpush1.xpose.msra.mxu0 0.0
    %1190 = vmatprep.subr.mxu0 0.0
    %1191 = vmatpush1.xpose.msra.mxu0 0.0
    %1192 = vmatprep.subr.mxu0 0.0
    %1193 = vmatpush1.xpose.msra.mxu0 0.0
    %1194 = vmatprep.subr.mxu0 0.0
    %1195 = vmatpush1.xpose.msra.mxu0 0.0
    %1196 = vmatprep.mubr.f32.mxu0 0.0
    %v1197 = vand.u32 %v664, 4294901760
    %1198 = vmatmul.mubr.f32.gmra.mrb[0].mxu0 %v1197
    %v1199 = vpop.f32.mrb[0].mxu0
    %v1200 = vadd.f32 %v1119, %v1199
    %v1201 = vpop.f32.mrb[0].mxu0
    %1202 = vmatprep.mubr.f32.mxu0 0.0
    %v1203 = vand.u32 %v667, 4294901760
    %1204 = vmatmul.mubr.f32.gmra.mrb[0].mxu0 %v1203
    %v1205 = vpop.f32.mrb[0].mxu0
    %v1206 = vadd.f32 %v1125, %v1205
    %v1207 = vpop.f32.mrb[0].mxu0
    %1208 = vdwg.mxu0
    %v1209 = vld [vmem:[#allocation8] sm:$0xff]
    %v1210 = vld [vmem:[#allocation8 + $0x8] sm:$0xff]
    %v1211 = vlaneseq
    %v1212 = vshrl.u32 %v1211, 7
    %v1213 = vsub.s32 0, %v1212
    %v1214 = vrot.slane %v100, %v1213
    %v1216 = vsel %vm108, %v1209, 0
    %v1219 = vsel %vm108, %v1210, 0
    %v1222 = vsel %vm108, %v89, 0
    %v1225 = vsel %vm108, %v90, 0
    %v1228 = vsel %vm108, %v91, 0
    %v1231 = vsel %vm108, %v92, 0
    %1233 = vmatprep.subr.mxu0 0.0
    %v1234 = vand.u32 %v1222, 4294901760
    %1235 = vmatpush1.xpose.msra.mxu0 %v1234
    %1236 = vmatprep.subr.mxu0 0.0
    %v1237 = vand.u32 %v1225, 4294901760
    %1238 = vmatpush1.xpose.msra.mxu0 %v1237
    %1239 = vmatprep.subr.mxu0 0.0
    %v1240 = vand.u32 %v1228, 4294901760
    %1241 = vmatpush1.xpose.msra.mxu0 %v1240
    %1242 = vmatprep.subr.mxu0 0.0
    %v1243 = vand.u32 %v1231, 4294901760
    %1244 = vmatpush1.xpose.msra.mxu0 %v1243
    %1245 = vmatprep.subr.mxu0 0.0
    %1246 = vmatpush1.xpose.msra.mxu0 0.0
    %1247 = vmatprep.subr.mxu0 0.0
    %1248 = vmatpush1.xpose.msra.mxu0 0.0
    %1249 = vmatprep.subr.mxu0 0.0
    %1250 = vmatpush1.xpose.msra.mxu0 0.0
    %1251 = vmatprep.subr.mxu0 0.0
    %1252 = vmatpush1.xpose.msra.mxu0 0.0
    %1253 = vmatprep.subr.mxu0 0.0
    %1254 = vmatpush1.xpose.msra.mxu0 0.0
    %1255 = vmatprep.subr.mxu0 0.0
    %1256 = vmatpush1.xpose.msra.mxu0 0.0
    %1257 = vmatprep.subr.mxu0 0.0
    %1258 = vmatpush1.xpose.msra.mxu0 0.0
    %1259 = vmatprep.subr.mxu0 0.0
    %1260 = vmatpush1.xpose.msra.mxu0 0.0
    %1261 = vmatprep.subr.mxu0 0.0
    %1262 = vmatpush1.xpose.msra.mxu0 0.0
    %1263 = vmatprep.subr.mxu0 0.0
    %1264 = vmatpush1.xpose.msra.mxu0 0.0
    %1265 = vmatprep.subr.mxu0 0.0
    %1266 = vmatpush1.xpose.msra.mxu0 0.0
    %1267 = vmatprep.subr.mxu0 0.0
    %1268 = vmatpush1.xpose.msra.mxu0 0.0
    %1269 = vmatprep.subr.mxu0 0.0
    %1270 = vmatpush1.xpose.msra.mxu0 0.0
    %1271 = vmatprep.subr.mxu0 0.0
    %1272 = vmatpush1.xpose.msra.mxu0 0.0
    %1273 = vmatprep.subr.mxu0 0.0
    %1274 = vmatpush1.xpose.msra.mxu0 0.0
    %1275 = vmatprep.subr.mxu0 0.0
    %1276 = vmatpush1.xpose.msra.mxu0 0.0
    %1277 = vmatprep.subr.mxu0 0.0
    %1278 = vmatpush1.xpose.msra.mxu0 0.0
    %1279 = vmatprep.subr.mxu0 0.0
    %1280 = vmatpush1.xpose.msra.mxu0 0.0
    %1281 = vmatprep.subr.mxu0 0.0
    %1282 = vmatpush1.xpose.msra.mxu0 0.0
    %1283 = vmatprep.subr.mxu0 0.0
    %1284 = vmatpush1.xpose.msra.mxu0 0.0
    %1285 = vmatprep.subr.mxu0 0.0
    %1286 = vmatpush1.xpose.msra.mxu0 0.0
    %1287 = vmatprep.subr.mxu0 0.0
    %1288 = vmatpush1.xpose.msra.mxu0 0.0
    %1289 = vmatprep.subr.mxu0 0.0
    %1290 = vmatpush1.xpose.msra.mxu0 0.0
    %1291 = vmatprep.subr.mxu0 0.0
    %1292 = vmatpush1.xpose.msra.mxu0 0.0
    %1293 = vmatprep.subr.mxu0 0.0
    %1294 = vmatpush1.xpose.msra.mxu0 0.0
    %1295 = vmatprep.subr.mxu0 0.0
    %1296 = vmatpush1.xpose.msra.mxu0 0.0
    %1297 = vmatprep.subr.mxu0 0.0
    %1298 = vmatpush1.xpose.msra.mxu0 0.0
    %1299 = vmatprep.subr.mxu0 0.0
    %1300 = vmatpush1.xpose.msra.mxu0 0.0
    %1301 = vmatprep.mubr.f32.mxu0 0.0
    %v1302 = vand.u32 %v1216, 4294901760
    %v1303 = vsub.f32 %v1216, %v1302
    %v1304 = vand.u32 %v1303, 4294901760
    %v1305 = vsub.f32 %v1303, %v1304
    %v1306 = vand.u32 %v1305, 4294901760
    %1307 = vmatmul.mubr.f32.gmra.mrb[0].mxu0 %v1306
    %v1308 = vpop.f32.mrb[0].mxu0
    %v1309 = vadd.f32 %v1214, %v1308
    %v1310 = vpop.f32.mrb[0].mxu0
    %1311 = vmatprep.mubr.f32.mxu0 0.0
    %v1312 = vand.u32 %v1219, 4294901760
    %v1313 = vsub.f32 %v1219, %v1312
    %v1314 = vand.u32 %v1313, 4294901760
    %v1315 = vsub.f32 %v1313, %v1314
    %v1316 = vand.u32 %v1315, 4294901760
    %1317 = vmatmul.mubr.f32.gmra.mrb[0].mxu0 %v1316
    %v1318 = vpop.f32.mrb[0].mxu0
    %v1319 = vadd.f32 %v1214, %v1318
    %v1320 = vpop.f32.mrb[0].mxu0
    %1321 = vdwg.mxu0
    %1322 = vmatprep.subr.mxu0 0.0
    %v1323 = vand.u32 %v1222, 4294901760
    %v1324 = vsub.f32 %v1222, %v1323
    %v1325 = vand.u32 %v1324, 4294901760
    %v1326 = vsub.f32 %v1324, %v1325
    %v1327 = vand.u32 %v1326, 4294901760
    %1328 = vmatpush1.xpose.msra.mxu0 %v1327
    %1329 = vmatprep.subr.mxu0 0.0
    %v1330 = vand.u32 %v1225, 4294901760
    %v1331 = vsub.f32 %v1225, %v1330
    %v1332 = vand.u32 %v1331, 4294901760
    %v1333 = vsub.f32 %v1331, %v1332
    %v1334 = vand.u32 %v1333, 4294901760
    %1335 = vmatpush1.xpose.msra.mxu0 %v1334
    %1336 = vmatprep.subr.mxu0 0.0
    %v1337 = vand.u32 %v1228, 4294901760
    %v1338 = vsub.f32 %v1228, %v1337
    %v1339 = vand.u32 %v1338, 4294901760
    %v1340 = vsub.f32 %v1338, %v1339
    %v1341 = vand.u32 %v1340, 4294901760
    %1342 = vmatpush1.xpose.msra.mxu0 %v1341
    %1343 = vmatprep.subr.mxu0 0.0
    %v1344 = vand.u32 %v1231, 4294901760
    %v1345 = vsub.f32 %v1231, %v1344
    %v1346 = vand.u32 %v1345, 4294901760
    %v1347 = vsub.f32 %v1345, %v1346
    %v1348 = vand.u32 %v1347, 4294901760
    %1349 = vmatpush1.xpose.msra.mxu0 %v1348
    %1350 = vmatprep.subr.mxu0 0.0
    %1351 = vmatpush1.xpose.msra.mxu0 0.0
    %1352 = vmatprep.subr.mxu0 0.0
    %1353 = vmatpush1.xpose.msra.mxu0 0.0
    %1354 = vmatprep.subr.mxu0 0.0
    %1355 = vmatpush1.xpose.msra.mxu0 0.0
    %1356 = vmatprep.subr.mxu0 0.0
    %1357 = vmatpush1.xpose.msra.mxu0 0.0
    %1358 = vmatprep.subr.mxu0 0.0
    %1359 = vmatpush1.xpose.msra.mxu0 0.0
    %1360 = vmatprep.subr.mxu0 0.0
    %1361 = vmatpush1.xpose.msra.mxu0 0.0
    %1362 = vmatprep.subr.mxu0 0.0
    %1363 = vmatpush1.xpose.msra.mxu0 0.0
    %1364 = vmatprep.subr.mxu0 0.0
    %1365 = vmatpush1.xpose.msra.mxu0 0.0
    %1366 = vmatprep.subr.mxu0 0.0
    %1367 = vmatpush1.xpose.msra.mxu0 0.0
    %1368 = vmatprep.subr.mxu0 0.0
    %1369 = vmatpush1.xpose.msra.mxu0 0.0
    %1370 = vmatprep.subr.mxu0 0.0
    %1371 = vmatpush1.xpose.msra.mxu0 0.0
    %1372 = vmatprep.subr.mxu0 0.0
    %1373 = vmatpush1.xpose.msra.mxu0 0.0
    %1374 = vmatprep.subr.mxu0 0.0
    %1375 = vmatpush1.xpose.msra.mxu0 0.0
    %1376 = vmatprep.subr.mxu0 0.0
    %1377 = vmatpush1.xpose.msra.mxu0 0.0
    %1378 = vmatprep.subr.mxu0 0.0
    %1379 = vmatpush1.xpose.msra.mxu0 0.0
    %1380 = vmatprep.subr.mxu0 0.0
    %1381 = vmatpush1.xpose.msra.mxu0 0.0
    %1382 = vmatprep.subr.mxu0 0.0
    %1383 = vmatpush1.xpose.msra.mxu0 0.0
    %1384 = vmatprep.subr.mxu0 0.0
    %1385 = vmatpush1.xpose.msra.mxu0 0.0
    %1386 = vmatprep.subr.mxu0 0.0
    %1387 = vmatpush1.xpose.msra.mxu0 0.0
    %1388 = vmatprep.subr.mxu0 0.0
    %1389 = vmatpush1.xpose.msra.mxu0 0.0
    %1390 = vmatprep.subr.mxu0 0.0
    %1391 = vmatpush1.xpose.msra.mxu0 0.0
    %1392 = vmatprep.subr.mxu0 0.0
    %1393 = vmatpush1.xpose.msra.mxu0 0.0
    %1394 = vmatprep.subr.mxu0 0.0
    %1395 = vmatpush1.xpose.msra.mxu0 0.0
    %1396 = vmatprep.subr.mxu0 0.0
    %1397 = vmatpush1.xpose.msra.mxu0 0.0
    %1398 = vmatprep.subr.mxu0 0.0
    %1399 = vmatpush1.xpose.msra.mxu0 0.0
    %1400 = vmatprep.subr.mxu0 0.0
    %1401 = vmatpush1.xpose.msra.mxu0 0.0
    %1402 = vmatprep.subr.mxu0 0.0
    %1403 = vmatpush1.xpose.msra.mxu0 0.0
    %1404 = vmatprep.subr.mxu0 0.0
    %1405 = vmatpush1.xpose.msra.mxu0 0.0
    %1406 = vmatprep.mubr.f32.mxu0 0.0
    %v1407 = vand.u32 %v1216, 4294901760
    %1408 = vmatmul.mubr.f32.gmra.mrb[0].mxu0 %v1407
    %v1409 = vpop.f32.mrb[0].mxu0
    %v1410 = vadd.f32 %v1309, %v1409
    %v1411 = vpop.f32.mrb[0].mxu0
    %1412 = vmatprep.mubr.f32.mxu0 0.0
    %v1413 = vand.u32 %v1219, 4294901760
    %1414 = vmatmul.mubr.f32.gmra.mrb[0].mxu0 %v1413
    %v1415 = vpop.f32.mrb[0].mxu0
    %v1416 = vadd.f32 %v1319, %v1415
    %v1417 = vpop.f32.mrb[0].mxu0
    %1418 = vdwg.mxu0
    %1419 = vmatprep.subr.mxu0 0.0
    %v1420 = vand.u32 %v1222, 4294901760
    %v1421 = vsub.f32 %v1222, %v1420
    %1422 = vmatpush1.xpose.msra.mxu0 %v1421
    %1423 = vmatprep.subr.mxu0 0.0
    %v1424 = vand.u32 %v1225, 4294901760
    %v1425 = vsub.f32 %v1225, %v1424
    %1426 = vmatpush1.xpose.msra.mxu0 %v1425
    %1427 = vmatprep.subr.mxu0 0.0
    %v1428 = vand.u32 %v1228, 4294901760
    %v1429 = vsub.f32 %v1228, %v1428
    %1430 = vmatpush1.xpose.msra.mxu0 %v1429
    %1431 = vmatprep.subr.mxu0 0.0
    %v1432 = vand.u32 %v1231, 4294901760
    %v1433 = vsub.f32 %v1231, %v1432
    %1434 = vmatpush1.xpose.msra.mxu0 %v1433
    %1435 = vmatprep.subr.mxu0 0.0
    %1436 = vmatpush1.xpose.msra.mxu0 0.0
    %1437 = vmatprep.subr.mxu0 0.0
    %1438 = vmatpush1.xpose.msra.mxu0 0.0
    %1439 = vmatprep.subr.mxu0 0.0
    %1440 = vmatpush1.xpose.msra.mxu0 0.0
    %1441 = vmatprep.subr.mxu0 0.0
    %1442 = vmatpush1.xpose.msra.mxu0 0.0
    %1443 = vmatprep.subr.mxu0 0.0
    %1444 = vmatpush1.xpose.msra.mxu0 0.0
    %1445 = vmatprep.subr.mxu0 0.0
    %1446 = vmatpush1.xpose.msra.mxu0 0.0
    %1447 = vmatprep.subr.mxu0 0.0
    %1448 = vmatpush1.xpose.msra.mxu0 0.0
    %1449 = vmatprep.subr.mxu0 0.0
    %1450 = vmatpush1.xpose.msra.mxu0 0.0
    %1451 = vmatprep.subr.mxu0 0.0
    %1452 = vmatpush1.xpose.msra.mxu0 0.0
    %1453 = vmatprep.subr.mxu0 0.0
    %1454 = vmatpush1.xpose.msra.mxu0 0.0
    %1455 = vmatprep.subr.mxu0 0.0
    %1456 = vmatpush1.xpose.msra.mxu0 0.0
    %1457 = vmatprep.subr.mxu0 0.0
    %1458 = vmatpush1.xpose.msra.mxu0 0.0
    %1459 = vmatprep.subr.mxu0 0.0
    %1460 = vmatpush1.xpose.msra.mxu0 0.0
    %1461 = vmatprep.subr.mxu0 0.0
    %1462 = vmatpush1.xpose.msra.mxu0 0.0
    %1463 = vmatprep.subr.mxu0 0.0
    %1464 = vmatpush1.xpose.msra.mxu0 0.0
    %1465 = vmatprep.subr.mxu0 0.0
    %1466 = vmatpush1.xpose.msra.mxu0 0.0
    %1467 = vmatprep.subr.mxu0 0.0
    %1468 = vmatpush1.xpose.msra.mxu0 0.0
    %1469 = vmatprep.subr.mxu0 0.0
    %1470 = vmatpush1.xpose.msra.mxu0 0.0
    %1471 = vmatprep.subr.mxu0 0.0
    %1472 = vmatpush1.xpose.msra.mxu0 0.0
    %1473 = vmatprep.subr.mxu0 0.0
    %1474 = vmatpush1.xpose.msra.mxu0 0.0
    %1475 = vmatprep.subr.mxu0 0.0
    %1476 = vmatpush1.xpose.msra.mxu0 0.0
    %1477 = vmatprep.subr.mxu0 0.0
    %1478 = vmatpush1.xpose.msra.mxu0 0.0
    %1479 = vmatprep.subr.mxu0 0.0
    %1480 = vmatpush1.xpose.msra.mxu0 0.0
    %1481 = vmatprep.subr.mxu0 0.0
    %1482 = vmatpush1.xpose.msra.mxu0 0.0
    %1483 = vmatprep.subr.mxu0 0.0
    %1484 = vmatpush1.xpose.msra.mxu0 0.0
    %1485 = vmatprep.subr.mxu0 0.0
    %1486 = vmatpush1.xpose.msra.mxu0 0.0
    %1487 = vmatprep.subr.mxu0 0.0
    %1488 = vmatpush1.xpose.msra.mxu0 0.0
    %1489 = vmatprep.subr.mxu0 0.0
    %1490 = vmatpush1.xpose.msra.mxu0 0.0
    %1491 = vmatprep.mubr.f32.mxu0 0.0
    %v1492 = vand.u32 %v1216, 4294901760
    %v1493 = vsub.f32 %v1216, %v1492
    %1494 = vmatmul.mubr.f32.gmra.mrb[0].mxu0 %v1493
    %v1495 = vpop.f32.mrb[0].mxu0
    %v1496 = vadd.f32 %v1410, %v1495
    %v1497 = vpop.f32.mrb[0].mxu0
    %1498 = vmatprep.mubr.f32.mxu0 0.0
    %v1499 = vand.u32 %v1219, 4294901760
    %v1500 = vsub.f32 %v1219, %v1499
    %1501 = vmatmul.mubr.f32.gmra.mrb[0].mxu0 %v1500
    %v1502 = vpop.f32.mrb[0].mxu0
    %v1503 = vadd.f32 %v1416, %v1502
    %v1504 = vpop.f32.mrb[0].mxu0
    %1505 = vdwg.mxu0
    %1506 = vmatprep.subr.mxu0 0.0
    %v1507 = vand.u32 %v1222, 4294901760
    %1508 = vmatpush1.xpose.msra.mxu0 %v1507
    %1509 = vmatprep.subr.mxu0 0.0
    %v1510 = vand.u32 %v1225, 4294901760
    %1511 = vmatpush1.xpose.msra.mxu0 %v1510
    %1512 = vmatprep.subr.mxu0 0.0
    %v1513 = vand.u32 %v1228, 4294901760
    %1514 = vmatpush1.xpose.msra.mxu0 %v1513
    %1515 = vmatprep.subr.mxu0 0.0
    %v1516 = vand.u32 %v1231, 4294901760
    %1517 = vmatpush1.xpose.msra.mxu0 %v1516
    %1518 = vmatprep.subr.mxu0 0.0
    %1519 = vmatpush1.xpose.msra.mxu0 0.0
    %1520 = vmatprep.subr.mxu0 0.0
    %1521 = vmatpush1.xpose.msra.mxu0 0.0
    %1522 = vmatprep.subr.mxu0 0.0
    %1523 = vmatpush1.xpose.msra.mxu0 0.0
    %1524 = vmatprep.subr.mxu0 0.0
    %1525 = vmatpush1.xpose.msra.mxu0 0.0
    %1526 = vmatprep.subr.mxu0 0.0
    %1527 = vmatpush1.xpose.msra.mxu0 0.0
    %1528 = vmatprep.subr.mxu0 0.0
    %1529 = vmatpush1.xpose.msra.mxu0 0.0
    %1530 = vmatprep.subr.mxu0 0.0
    %1531 = vmatpush1.xpose.msra.mxu0 0.0
    %1532 = vmatprep.subr.mxu0 0.0
    %1533 = vmatpush1.xpose.msra.mxu0 0.0
    %1534 = vmatprep.subr.mxu0 0.0
    %1535 = vmatpush1.xpose.msra.mxu0 0.0
    %1536 = vmatprep.subr.mxu0 0.0
    %1537 = vmatpush1.xpose.msra.mxu0 0.0
    %1538 = vmatprep.subr.mxu0 0.0
    %1539 = vmatpush1.xpose.msra.mxu0 0.0
    %1540 = vmatprep.subr.mxu0 0.0
    %1541 = vmatpush1.xpose.msra.mxu0 0.0
    %1542 = vmatprep.subr.mxu0 0.0
    %1543 = vmatpush1.xpose.msra.mxu0 0.0
    %1544 = vmatprep.subr.mxu0 0.0
    %1545 = vmatpush1.xpose.msra.mxu0 0.0
    %1546 = vmatprep.subr.mxu0 0.0
    %1547 = vmatpush1.xpose.msra.mxu0 0.0
    %1548 = vmatprep.subr.mxu0 0.0
    %1549 = vmatpush1.xpose.msra.mxu0 0.0
    %1550 = vmatprep.subr.mxu0 0.0
    %1551 = vmatpush1.xpose.msra.mxu0 0.0
    %1552 = vmatprep.subr.mxu0 0.0
    %1553 = vmatpush1.xpose.msra.mxu0 0.0
    %1554 = vmatprep.subr.mxu0 0.0
    %1555 = vmatpush1.xpose.msra.mxu0 0.0
    %1556 = vmatprep.subr.mxu0 0.0
    %1557 = vmatpush1.xpose.msra.mxu0 0.0
    %1558 = vmatprep.subr.mxu0 0.0
    %1559 = vmatpush1.xpose.msra.mxu0 0.0
    %1560 = vmatprep.subr.mxu0 0.0
    %1561 = vmatpush1.xpose.msra.mxu0 0.0
    %1562 = vmatprep.subr.mxu0 0.0
    %1563 = vmatpush1.xpose.msra.mxu0 0.0
    %1564 = vmatprep.subr.mxu0 0.0
    %1565 = vmatpush1.xpose.msra.mxu0 0.0
    %1566 = vmatprep.subr.mxu0 0.0
    %1567 = vmatpush1.xpose.msra.mxu0 0.0
    %1568 = vmatprep.subr.mxu0 0.0
    %1569 = vmatpush1.xpose.msra.mxu0 0.0
    %1570 = vmatprep.subr.mxu0 0.0
    %1571 = vmatpush1.xpose.msra.mxu0 0.0
    %1572 = vmatprep.subr.mxu0 0.0
    %1573 = vmatpush1.xpose.msra.mxu0 0.0
    %1574 = vmatprep.mubr.f32.mxu0 0.0
    %v1575 = vand.u32 %v1216, 4294901760
    %v1576 = vsub.f32 %v1216, %v1575
    %v1577 = vand.u32 %v1576, 4294901760
    %1578 = vmatmul.mubr.f32.gmra.mrb[0].mxu0 %v1577
    %v1579 = vpop.f32.mrb[0].mxu0
    %v1580 = vadd.f32 %v1496, %v1579
    %v1581 = vpop.f32.mrb[0].mxu0
    %1582 = vmatprep.mubr.f32.mxu0 0.0
    %v1583 = vand.u32 %v1219, 4294901760
    %v1584 = vsub.f32 %v1219, %v1583
    %v1585 = vand.u32 %v1584, 4294901760
    %1586 = vmatmul.mubr.f32.gmra.mrb[0].mxu0 %v1585
    %v1587 = vpop.f32.mrb[0].mxu0
    %v1588 = vadd.f32 %v1503, %v1587
    %v1589 = vpop.f32.mrb[0].mxu0
    %1590 = vdwg.mxu0
    %1591 = vmatprep.subr.mxu0 0.0
    %v1592 = vand.u32 %v1222, 4294901760
    %v1593 = vsub.f32 %v1222, %v1592
    %v1594 = vand.u32 %v1593, 4294901760
    %1595 = vmatpush1.xpose.msra.mxu0 %v1594
    %1596 = vmatprep.subr.mxu0 0.0
    %v1597 = vand.u32 %v1225, 4294901760
    %v1598 = vsub.f32 %v1225, %v1597
    %v1599 = vand.u32 %v1598, 4294901760
    %1600 = vmatpush1.xpose.msra.mxu0 %v1599
    %1601 = vmatprep.subr.mxu0 0.0
    %v1602 = vand.u32 %v1228, 4294901760
    %v1603 = vsub.f32 %v1228, %v1602
    %v1604 = vand.u32 %v1603, 4294901760
    %1605 = vmatpush1.xpose.msra.mxu0 %v1604
    %1606 = vmatprep.subr.mxu0 0.0
    %v1607 = vand.u32 %v1231, 4294901760
    %v1608 = vsub.f32 %v1231, %v1607
    %v1609 = vand.u32 %v1608, 4294901760
    %1610 = vmatpush1.xpose.msra.mxu0 %v1609
    %1611 = vmatprep.subr.mxu0 0.0
    %1612 = vmatpush1.xpose.msra.mxu0 0.0
    %1613 = vmatprep.subr.mxu0 0.0
    %1614 = vmatpush1.xpose.msra.mxu0 0.0
    %1615 = vmatprep.subr.mxu0 0.0
    %1616 = vmatpush1.xpose.msra.mxu0 0.0
    %1617 = vmatprep.subr.mxu0 0.0
    %1618 = vmatpush1.xpose.msra.mxu0 0.0
    %1619 = vmatprep.subr.mxu0 0.0
    %1620 = vmatpush1.xpose.msra.mxu0 0.0
    %1621 = vmatprep.subr.mxu0 0.0
    %1622 = vmatpush1.xpose.msra.mxu0 0.0
    %1623 = vmatprep.subr.mxu0 0.0
    %1624 = vmatpush1.xpose.msra.mxu0 0.0
    %1625 = vmatprep.subr.mxu0 0.0
    %1626 = vmatpush1.xpose.msra.mxu0 0.0
    %1627 = vmatprep.subr.mxu0 0.0
    %1628 = vmatpush1.xpose.msra.mxu0 0.0
    %1629 = vmatprep.subr.mxu0 0.0
    %1630 = vmatpush1.xpose.msra.mxu0 0.0
    %1631 = vmatprep.subr.mxu0 0.0
    %1632 = vmatpush1.xpose.msra.mxu0 0.0
    %1633 = vmatprep.subr.mxu0 0.0
    %1634 = vmatpush1.xpose.msra.mxu0 0.0
    %1635 = vmatprep.subr.mxu0 0.0
    %1636 = vmatpush1.xpose.msra.mxu0 0.0
    %1637 = vmatprep.subr.mxu0 0.0
    %1638 = vmatpush1.xpose.msra.mxu0 0.0
    %1639 = vmatprep.subr.mxu0 0.0
    %1640 = vmatpush1.xpose.msra.mxu0 0.0
    %1641 = vmatprep.subr.mxu0 0.0
    %1642 = vmatpush1.xpose.msra.mxu0 0.0
    %1643 = vmatprep.subr.mxu0 0.0
    %1644 = vmatpush1.xpose.msra.mxu0 0.0
    %1645 = vmatprep.subr.mxu0 0.0
    %1646 = vmatpush1.xpose.msra.mxu0 0.0
    %1647 = vmatprep.subr.mxu0 0.0
    %1648 = vmatpush1.xpose.msra.mxu0 0.0
    %1649 = vmatprep.subr.mxu0 0.0
    %1650 = vmatpush1.xpose.msra.mxu0 0.0
    %1651 = vmatprep.subr.mxu0 0.0
    %1652 = vmatpush1.xpose.msra.mxu0 0.0
    %1653 = vmatprep.subr.mxu0 0.0
    %1654 = vmatpush1.xpose.msra.mxu0 0.0
    %1655 = vmatprep.subr.mxu0 0.0
    %1656 = vmatpush1.xpose.msra.mxu0 0.0
    %1657 = vmatprep.subr.mxu0 0.0
    %1658 = vmatpush1.xpose.msra.mxu0 0.0
    %1659 = vmatprep.subr.mxu0 0.0
    %1660 = vmatpush1.xpose.msra.mxu0 0.0
    %1661 = vmatprep.subr.mxu0 0.0
    %1662 = vmatpush1.xpose.msra.mxu0 0.0
    %1663 = vmatprep.subr.mxu0 0.0
    %1664 = vmatpush1.xpose.msra.mxu0 0.0
    %1665 = vmatprep.subr.mxu0 0.0
    %1666 = vmatpush1.xpose.msra.mxu0 0.0
    %1667 = vmatprep.mubr.f32.mxu0 0.0
    %v1668 = vand.u32 %v1216, 4294901760
    %1669 = vmatmul.mubr.f32.gmra.mrb[0].mxu0 %v1668
    %v1670 = vpop.f32.mrb[0].mxu0
    %v1671 = vadd.f32 %v1580, %v1670
    %v1672 = vpop.f32.mrb[0].mxu0
    %1673 = vmatprep.mubr.f32.mxu0 0.0
    %v1674 = vand.u32 %v1219, 4294901760
    %1675 = vmatmul.mubr.f32.gmra.mrb[0].mxu0 %v1674
    %v1676 = vpop.f32.mrb[0].mxu0
    %v1677 = vadd.f32 %v1588, %v1676
    %v1678 = vpop.f32.mrb[0].mxu0
    %1679 = vdwg.mxu0
    %1680 = vmatprep.subr.mxu0 0.0
    %v1681 = vand.u32 %v1222, 4294901760
    %1682 = vmatpush1.xpose.msra.mxu0 %v1681
    %1683 = vmatprep.subr.mxu0 0.0
    %v1684 = vand.u32 %v1225, 4294901760
    %1685 = vmatpush1.xpose.msra.mxu0 %v1684
    %1686 = vmatprep.subr.mxu0 0.0
    %v1687 = vand.u32 %v1228, 4294901760
    %1688 = vmatpush1.xpose.msra.mxu0 %v1687
    %1689 = vmatprep.subr.mxu0 0.0
    %v1690 = vand.u32 %v1231, 4294901760
    %1691 = vmatpush1.xpose.msra.mxu0 %v1690
    %1692 = vmatprep.subr.mxu0 0.0
    %1693 = vmatpush1.xpose.msra.mxu0 0.0
    %1694 = vmatprep.subr.mxu0 0.0
    %1695 = vmatpush1.xpose.msra.mxu0 0.0
    %1696 = vmatprep.subr.mxu0 0.0
    %1697 = vmatpush1.xpose.msra.mxu0 0.0
    %1698 = vmatprep.subr.mxu0 0.0
    %1699 = vmatpush1.xpose.msra.mxu0 0.0
    %1700 = vmatprep.subr.mxu0 0.0
    %1701 = vmatpush1.xpose.msra.mxu0 0.0
    %1702 = vmatprep.subr.mxu0 0.0
    %1703 = vmatpush1.xpose.msra.mxu0 0.0
    %1704 = vmatprep.subr.mxu0 0.0
    %1705 = vmatpush1.xpose.msra.mxu0 0.0
    %1706 = vmatprep.subr.mxu0 0.0
    %1707 = vmatpush1.xpose.msra.mxu0 0.0
    %1708 = vmatprep.subr.mxu0 0.0
    %1709 = vmatpush1.xpose.msra.mxu0 0.0
    %1710 = vmatprep.subr.mxu0 0.0
    %1711 = vmatpush1.xpose.msra.mxu0 0.0
    %1712 = vmatprep.subr.mxu0 0.0
    %1713 = vmatpush1.xpose.msra.mxu0 0.0
    %1714 = vmatprep.subr.mxu0 0.0
    %1715 = vmatpush1.xpose.msra.mxu0 0.0
    %1716 = vmatprep.subr.mxu0 0.0
    %1717 = vmatpush1.xpose.msra.mxu0 0.0
    %1718 = vmatprep.subr.mxu0 0.0
    %1719 = vmatpush1.xpose.msra.mxu0 0.0
    %1720 = vmatprep.subr.mxu0 0.0
    %1721 = vmatpush1.xpose.msra.mxu0 0.0
    %1722 = vmatprep.subr.mxu0 0.0
    %1723 = vmatpush1.xpose.msra.mxu0 0.0
    %1724 = vmatprep.subr.mxu0 0.0
    %1725 = vmatpush1.xpose.msra.mxu0 0.0
    %1726 = vmatprep.subr.mxu0 0.0
    %1727 = vmatpush1.xpose.msra.mxu0 0.0
    %1728 = vmatprep.subr.mxu0 0.0
    %1729 = vmatpush1.xpose.msra.mxu0 0.0
    %1730 = vmatprep.subr.mxu0 0.0
    %1731 = vmatpush1.xpose.msra.mxu0 0.0
    %1732 = vmatprep.subr.mxu0 0.0
    %1733 = vmatpush1.xpose.msra.mxu0 0.0
    %1734 = vmatprep.subr.mxu0 0.0
    %1735 = vmatpush1.xpose.msra.mxu0 0.0
    %1736 = vmatprep.subr.mxu0 0.0
    %1737 = vmatpush1.xpose.msra.mxu0 0.0
    %1738 = vmatprep.subr.mxu0 0.0
    %1739 = vmatpush1.xpose.msra.mxu0 0.0
    %1740 = vmatprep.subr.mxu0 0.0
    %1741 = vmatpush1.xpose.msra.mxu0 0.0
    %1742 = vmatprep.subr.mxu0 0.0
    %1743 = vmatpush1.xpose.msra.mxu0 0.0
    %1744 = vmatprep.subr.mxu0 0.0
    %1745 = vmatpush1.xpose.msra.mxu0 0.0
    %1746 = vmatprep.subr.mxu0 0.0
    %1747 = vmatpush1.xpose.msra.mxu0 0.0
    %1748 = vmatprep.mubr.f32.mxu0 0.0
    %v1749 = vand.u32 %v1216, 4294901760
    %1750 = vmatmul.mubr.f32.gmra.mrb[0].mxu0 %v1749
    %v1751 = vpop.f32.mrb[0].mxu0
    %v1752 = vadd.f32 %v1671, %v1751
    %v1753 = vpop.f32.mrb[0].mxu0
    %1754 = vmatprep.mubr.f32.mxu0 0.0
    %v1755 = vand.u32 %v1219, 4294901760
    %1756 = vmatmul.mubr.f32.gmra.mrb[0].mxu0 %v1755
    %v1757 = vpop.f32.mrb[0].mxu0
    %v1758 = vadd.f32 %v1677, %v1757
    %v1759 = vpop.f32.mrb[0].mxu0
    %1760 = vdwg.mxu0
    %vm1761 = vcmask 64512
    %v1763 = vsel %vm1761, %v655, 0
    %v1766 = vsel %vm1761, %v1200, 0
    %1768 = vmatprep.subr.mxu0 0.0
    %v1769 = vand.u32 %v1766, 4294901760
    %1770 = vmatpush1.xpose.msra.mxu0 %v1769
    %1771 = vmatprep.subr.mxu0 0.0
    %1772 = vmatpush1.xpose.msra.mxu0 0.0
    %1773 = vmatprep.subr.mxu0 0.0
    %1774 = vmatpush1.xpose.msra.mxu0 0.0
    %1775 = vmatprep.subr.mxu0 0.0
    %1776 = vmatpush1.xpose.msra.mxu0 0.0
    %1777 = vmatprep.subr.mxu0 0.0
    %1778 = vmatpush1.xpose.msra.mxu0 0.0
    %1779 = vmatprep.subr.mxu0 0.0
    %1780 = vmatpush1.xpose.msra.mxu0 0.0
    %1781 = vmatprep.subr.mxu0 0.0
    %1782 = vmatpush1.xpose.msra.mxu0 0.0
    %1783 = vmatprep.subr.mxu0 0.0
    %1784 = vmatpush1.xpose.msra.mxu0 0.0
    %1785 = vmatprep.subr.mxu0 0.0
    %1786 = vmatpush1.xpose.msra.mxu0 0.0
    %1787 = vmatprep.subr.mxu0 0.0
    %1788 = vmatpush1.xpose.msra.mxu0 0.0
    %1789 = vmatprep.subr.mxu0 0.0
    %1790 = vmatpush1.xpose.msra.mxu0 0.0
    %1791 = vmatprep.subr.mxu0 0.0
    %1792 = vmatpush1.xpose.msra.mxu0 0.0
    %1793 = vmatprep.subr.mxu0 0.0
    %1794 = vmatpush1.xpose.msra.mxu0 0.0
    %1795 = vmatprep.subr.mxu0 0.0
    %1796 = vmatpush1.xpose.msra.mxu0 0.0
    %1797 = vmatprep.subr.mxu0 0.0
    %1798 = vmatpush1.xpose.msra.mxu0 0.0
    %1799 = vmatprep.subr.mxu0 0.0
    %1800 = vmatpush1.xpose.msra.mxu0 0.0
    %1801 = vmatprep.subr.mxu0 0.0
    %1802 = vmatpush1.xpose.msra.mxu0 0.0
    %1803 = vmatprep.subr.mxu0 0.0
    %1804 = vmatpush1.xpose.msra.mxu0 0.0
    %1805 = vmatprep.subr.mxu0 0.0
    %1806 = vmatpush1.xpose.msra.mxu0 0.0
    %1807 = vmatprep.subr.mxu0 0.0
    %1808 = vmatpush1.xpose.msra.mxu0 0.0
    %1809 = vmatprep.subr.mxu0 0.0
    %1810 = vmatpush1.xpose.msra.mxu0 0.0
    %1811 = vmatprep.subr.mxu0 0.0
    %1812 = vmatpush1.xpose.msra.mxu0 0.0
    %1813 = vmatprep.subr.mxu0 0.0
    %1814 = vmatpush1.xpose.msra.mxu0 0.0
    %1815 = vmatprep.subr.mxu0 0.0
    %1816 = vmatpush1.xpose.msra.mxu0 0.0
    %1817 = vmatprep.subr.mxu0 0.0
    %1818 = vmatpush1.xpose.msra.mxu0 0.0
    %1819 = vmatprep.subr.mxu0 0.0
    %1820 = vmatpush1.xpose.msra.mxu0 0.0
    %1821 = vmatprep.subr.mxu0 0.0
    %1822 = vmatpush1.xpose.msra.mxu0 0.0
    %1823 = vmatprep.subr.mxu0 0.0
    %1824 = vmatpush1.xpose.msra.mxu0 0.0
    %1825 = vmatprep.subr.mxu0 0.0
    %1826 = vmatpush1.xpose.msra.mxu0 0.0
    %1827 = vmatprep.subr.mxu0 0.0
    %1828 = vmatpush1.xpose.msra.mxu0 0.0
    %1829 = vmatprep.subr.mxu0 0.0
    %1830 = vmatpush1.xpose.msra.mxu0 0.0
    %1831 = vmatprep.subr.mxu0 0.0
    %1832 = vmatpush1.xpose.msra.mxu0 0.0
    %1833 = vmatprep.mubr.f32.mxu0 0.0
    %v1834 = vand.u32 %v1763, 4294901760
    %v1835 = vsub.f32 %v1763, %v1834
    %v1836 = vand.u32 %v1835, 4294901760
    %v1837 = vsub.f32 %v1835, %v1836
    %v1838 = vand.u32 %v1837, 4294901760
    %1839 = vmatmul.mubr.f32.gmra.mrb[0].mxu0 %v1838
    %v1840 = vpop.f32.mrb[0].mxu0
    %v1841 = vadd.f32 0.0, %v1840
    %v1842 = vpop.f32.mrb[0].mxu0
    %1843 = vdwg.mxu0
    %1844 = vmatprep.subr.mxu0 0.0
    %v1845 = vand.u32 %v1766, 4294901760
    %v1846 = vsub.f32 %v1766, %v1845
    %v1847 = vand.u32 %v1846, 4294901760
    %v1848 = vsub.f32 %v1846, %v1847
    %v1849 = vand.u32 %v1848, 4294901760
    %1850 = vmatpush1.xpose.msra.mxu0 %v1849
    %1851 = vmatprep.subr.mxu0 0.0
    %1852 = vmatpush1.xpose.msra.mxu0 0.0
    %1853 = vmatprep.subr.mxu0 0.0
    %1854 = vmatpush1.xpose.msra.mxu0 0.0
    %1855 = vmatprep.subr.mxu0 0.0
    %1856 = vmatpush1.xpose.msra.mxu0 0.0
    %1857 = vmatprep.subr.mxu0 0.0
    %1858 = vmatpush1.xpose.msra.mxu0 0.0
    %1859 = vmatprep.subr.mxu0 0.0
    %1860 = vmatpush1.xpose.msra.mxu0 0.0
    %1861 = vmatprep.subr.mxu0 0.0
    %1862 = vmatpush1.xpose.msra.mxu0 0.0
    %1863 = vmatprep.subr.mxu0 0.0
    %1864 = vmatpush1.xpose.msra.mxu0 0.0
    %1865 = vmatprep.subr.mxu0 0.0
    %1866 = vmatpush1.xpose.msra.mxu0 0.0
    %1867 = vmatprep.subr.mxu0 0.0
    %1868 = vmatpush1.xpose.msra.mxu0 0.0
    %1869 = vmatprep.subr.mxu0 0.0
    %1870 = vmatpush1.xpose.msra.mxu0 0.0
    %1871 = vmatprep.subr.mxu0 0.0
    %1872 = vmatpush1.xpose.msra.mxu0 0.0
    %1873 = vmatprep.subr.mxu0 0.0
    %1874 = vmatpush1.xpose.msra.mxu0 0.0
    %1875 = vmatprep.subr.mxu0 0.0
    %1876 = vmatpush1.xpose.msra.mxu0 0.0
    %1877 = vmatprep.subr.mxu0 0.0
    %1878 = vmatpush1.xpose.msra.mxu0 0.0
    %1879 = vmatprep.subr.mxu0 0.0
    %1880 = vmatpush1.xpose.msra.mxu0 0.0
    %1881 = vmatprep.subr.mxu0 0.0
    %1882 = vmatpush1.xpose.msra.mxu0 0.0
    %1883 = vmatprep.subr.mxu0 0.0
    %1884 = vmatpush1.xpose.msra.mxu0 0.0
    %1885 = vmatprep.subr.mxu0 0.0
    %1886 = vmatpush1.xpose.msra.mxu0 0.0
    %1887 = vmatprep.subr.mxu0 0.0
    %1888 = vmatpush1.xpose.msra.mxu0 0.0
    %1889 = vmatprep.subr.mxu0 0.0
    %1890 = vmatpush1.xpose.msra.mxu0 0.0
    %1891 = vmatprep.subr.mxu0 0.0
    %1892 = vmatpush1.xpose.msra.mxu0 0.0
    %1893 = vmatprep.subr.mxu0 0.0
    %1894 = vmatpush1.xpose.msra.mxu0 0.0
    %1895 = vmatprep.subr.mxu0 0.0
    %1896 = vmatpush1.xpose.msra.mxu0 0.0
    %1897 = vmatprep.subr.mxu0 0.0
    %1898 = vmatpush1.xpose.msra.mxu0 0.0
    %1899 = vmatprep.subr.mxu0 0.0
    %1900 = vmatpush1.xpose.msra.mxu0 0.0
    %1901 = vmatprep.subr.mxu0 0.0
    %1902 = vmatpush1.xpose.msra.mxu0 0.0
    %1903 = vmatprep.subr.mxu0 0.0
    %1904 = vmatpush1.xpose.msra.mxu0 0.0
    %1905 = vmatprep.subr.mxu0 0.0
    %1906 = vmatpush1.xpose.msra.mxu0 0.0
    %1907 = vmatprep.subr.mxu0 0.0
    %1908 = vmatpush1.xpose.msra.mxu0 0.0
    %1909 = vmatprep.subr.mxu0 0.0
    %1910 = vmatpush1.xpose.msra.mxu0 0.0
    %1911 = vmatprep.subr.mxu0 0.0
    %1912 = vmatpush1.xpose.msra.mxu0 0.0
    %1913 = vmatprep.mubr.f32.mxu0 0.0
    %v1914 = vand.u32 %v1763, 4294901760
    %1915 = vmatmul.mubr.f32.gmra.mrb[0].mxu0 %v1914
    %v1916 = vpop.f32.mrb[0].mxu0
    %v1917 = vadd.f32 %v1841, %v1916
    %v1918 = vpop.f32.mrb[0].mxu0
    %1919 = vdwg.mxu0
    %1920 = vmatprep.subr.mxu0 0.0
    %v1921 = vand.u32 %v1766, 4294901760
    %v1922 = vsub.f32 %v1766, %v1921
    %1923 = vmatpush1.xpose.msra.mxu0 %v1922
    %1924 = vmatprep.subr.mxu0 0.0
    %1925 = vmatpush1.xpose.msra.mxu0 0.0
    %1926 = vmatprep.subr.mxu0 0.0
    %1927 = vmatpush1.xpose.msra.mxu0 0.0
    %1928 = vmatprep.subr.mxu0 0.0
    %1929 = vmatpush1.xpose.msra.mxu0 0.0
    %1930 = vmatprep.subr.mxu0 0.0
    %1931 = vmatpush1.xpose.msra.mxu0 0.0
    %1932 = vmatprep.subr.mxu0 0.0
    %1933 = vmatpush1.xpose.msra.mxu0 0.0
    %1934 = vmatprep.subr.mxu0 0.0
    %1935 = vmatpush1.xpose.msra.mxu0 0.0
    %1936 = vmatprep.subr.mxu0 0.0
    %1937 = vmatpush1.xpose.msra.mxu0 0.0
    %1938 = vmatprep.subr.mxu0 0.0
    %1939 = vmatpush1.xpose.msra.mxu0 0.0
    %1940 = vmatprep.subr.mxu0 0.0
    %1941 = vmatpush1.xpose.msra.mxu0 0.0
    %1942 = vmatprep.subr.mxu0 0.0
    %1943 = vmatpush1.xpose.msra.mxu0 0.0
    %1944 = vmatprep.subr.mxu0 0.0
    %1945 = vmatpush1.xpose.msra.mxu0 0.0
    %1946 = vmatprep.subr.mxu0 0.0
    %1947 = vmatpush1.xpose.msra.mxu0 0.0
    %1948 = vmatprep.subr.mxu0 0.0
    %1949 = vmatpush1.xpose.msra.mxu0 0.0
    %1950 = vmatprep.subr.mxu0 0.0
    %1951 = vmatpush1.xpose.msra.mxu0 0.0
    %1952 = vmatprep.subr.mxu0 0.0
    %1953 = vmatpush1.xpose.msra.mxu0 0.0
    %1954 = vmatprep.subr.mxu0 0.0
    %1955 = vmatpush1.xpose.msra.mxu0 0.0
    %1956 = vmatprep.subr.mxu0 0.0
    %1957 = vmatpush1.xpose.msra.mxu0 0.0
    %1958 = vmatprep.subr.mxu0 0.0
    %1959 = vmatpush1.xpose.msra.mxu0 0.0
    %1960 = vmatprep.subr.mxu0 0.0
    %1961 = vmatpush1.xpose.msra.mxu0 0.0
    %1962 = vmatprep.subr.mxu0 0.0
    %1963 = vmatpush1.xpose.msra.mxu0 0.0
    %1964 = vmatprep.subr.mxu0 0.0
    %1965 = vmatpush1.xpose.msra.mxu0 0.0
    %1966 = vmatprep.subr.mxu0 0.0
    %1967 = vmatpush1.xpose.msra.mxu0 0.0
    %1968 = vmatprep.subr.mxu0 0.0
    %1969 = vmatpush1.xpose.msra.mxu0 0.0
    %1970 = vmatprep.subr.mxu0 0.0
    %1971 = vmatpush1.xpose.msra.mxu0 0.0
    %1972 = vmatprep.subr.mxu0 0.0
    %1973 = vmatpush1.xpose.msra.mxu0 0.0
    %1974 = vmatprep.subr.mxu0 0.0
    %1975 = vmatpush1.xpose.msra.mxu0 0.0
    %1976 = vmatprep.subr.mxu0 0.0
    %1977 = vmatpush1.xpose.msra.mxu0 0.0
    %1978 = vmatprep.subr.mxu0 0.0
    %1979 = vmatpush1.xpose.msra.mxu0 0.0
    %1980 = vmatprep.subr.mxu0 0.0
    %1981 = vmatpush1.xpose.msra.mxu0 0.0
    %1982 = vmatprep.subr.mxu0 0.0
    %1983 = vmatpush1.xpose.msra.mxu0 0.0
    %1984 = vmatprep.subr.mxu0 0.0
    %1985 = vmatpush1.xpose.msra.mxu0 0.0
    %1986 = vmatprep.mubr.f32.mxu0 0.0
    %v1987 = vand.u32 %v1763, 4294901760
    %v1988 = vsub.f32 %v1763, %v1987
    %1989 = vmatmul.mubr.f32.gmra.mrb[0].mxu0 %v1988
    %v1990 = vpop.f32.mrb[0].mxu0
    %v1991 = vadd.f32 %v1917, %v1990
    %v1992 = vpop.f32.mrb[0].mxu0
    %1993 = vdwg.mxu0
    %1994 = vmatprep.subr.mxu0 0.0
    %v1995 = vand.u32 %v1766, 4294901760
    %1996 = vmatpush1.xpose.msra.mxu0 %v1995
    %1997 = vmatprep.subr.mxu0 0.0
    %1998 = vmatpush1.xpose.msra.mxu0 0.0
    %1999 = vmatprep.subr.mxu0 0.0
    %2000 = vmatpush1.xpose.msra.mxu0 0.0
    %2001 = vmatprep.subr.mxu0 0.0
    %2002 = vmatpush1.xpose.msra.mxu0 0.0
    %2003 = vmatprep.subr.mxu0 0.0
    %2004 = vmatpush1.xpose.msra.mxu0 0.0
    %2005 = vmatprep.subr.mxu0 0.0
    %2006 = vmatpush1.xpose.msra.mxu0 0.0
    %2007 = vmatprep.subr.mxu0 0.0
    %2008 = vmatpush1.xpose.msra.mxu0 0.0
    %2009 = vmatprep.subr.mxu0 0.0
    %2010 = vmatpush1.xpose.msra.mxu0 0.0
    %2011 = vmatprep.subr.mxu0 0.0
    %2012 = vmatpush1.xpose.msra.mxu0 0.0
    %2013 = vmatprep.subr.mxu0 0.0
    %2014 = vmatpush1.xpose.msra.mxu0 0.0
    %2015 = vmatprep.subr.mxu0 0.0
    %2016 = vmatpush1.xpose.msra.mxu0 0.0
    %2017 = vmatprep.subr.mxu0 0.0
    %2018 = vmatpush1.xpose.msra.mxu0 0.0
    %2019 = vmatprep.subr.mxu0 0.0
    %2020 = vmatpush1.xpose.msra.mxu0 0.0
    %2021 = vmatprep.subr.mxu0 0.0
    %2022 = vmatpush1.xpose.msra.mxu0 0.0
    %2023 = vmatprep.subr.mxu0 0.0
    %2024 = vmatpush1.xpose.msra.mxu0 0.0
    %2025 = vmatprep.subr.mxu0 0.0
    %2026 = vmatpush1.xpose.msra.mxu0 0.0
    %2027 = vmatprep.subr.mxu0 0.0
    %2028 = vmatpush1.xpose.msra.mxu0 0.0
    %2029 = vmatprep.subr.mxu0 0.0
    %2030 = vmatpush1.xpose.msra.mxu0 0.0
    %2031 = vmatprep.subr.mxu0 0.0
    %2032 = vmatpush1.xpose.msra.mxu0 0.0
    %2033 = vmatprep.subr.mxu0 0.0
    %2034 = vmatpush1.xpose.msra.mxu0 0.0
    %2035 = vmatprep.subr.mxu0 0.0
    %2036 = vmatpush1.xpose.msra.mxu0 0.0
    %2037 = vmatprep.subr.mxu0 0.0
    %2038 = vmatpush1.xpose.msra.mxu0 0.0
    %2039 = vmatprep.subr.mxu0 0.0
    %2040 = vmatpush1.xpose.msra.mxu0 0.0
    %2041 = vmatprep.subr.mxu0 0.0
    %2042 = vmatpush1.xpose.msra.mxu0 0.0
    %2043 = vmatprep.subr.mxu0 0.0
    %2044 = vmatpush1.xpose.msra.mxu0 0.0
    %2045 = vmatprep.subr.mxu0 0.0
    %2046 = vmatpush1.xpose.msra.mxu0 0.0
    %2047 = vmatprep.subr.mxu0 0.0
    %2048 = vmatpush1.xpose.msra.mxu0 0.0
    %2049 = vmatprep.subr.mxu0 0.0
    %2050 = vmatpush1.xpose.msra.mxu0 0.0
    %2051 = vmatprep.subr.mxu0 0.0
    %2052 = vmatpush1.xpose.msra.mxu0 0.0
    %2053 = vmatprep.subr.mxu0 0.0
    %2054 = vmatpush1.xpose.msra.mxu0 0.0
    %2055 = vmatprep.subr.mxu0 0.0
    %2056 = vmatpush1.xpose.msra.mxu0 0.0
    %2057 = vmatprep.subr.mxu0 0.0
    %2058 = vmatpush1.xpose.msra.mxu0 0.0
    %2059 = vmatprep.mubr.f32.mxu0 0.0
    %v2060 = vand.u32 %v1763, 4294901760
    %v2061 = vsub.f32 %v1763, %v2060
    %v2062 = vand.u32 %v2061, 4294901760
    %2063 = vmatmul.mubr.f32.gmra.mrb[0].mxu0 %v2062
    %v2064 = vpop.f32.mrb[0].mxu0
    %v2065 = vadd.f32 %v1991, %v2064
    %v2066 = vpop.f32.mrb[0].mxu0
    %2067 = vdwg.mxu0
    %2068 = vmatprep.subr.mxu0 0.0
    %v2069 = vand.u32 %v1766, 4294901760
    %v2070 = vsub.f32 %v1766, %v2069
    %v2071 = vand.u32 %v2070, 4294901760
    %2072 = vmatpush1.xpose.msra.mxu0 %v2071
    %2073 = vmatprep.subr.mxu0 0.0
    %2074 = vmatpush1.xpose.msra.mxu0 0.0
    %2075 = vmatprep.subr.mxu0 0.0
    %2076 = vmatpush1.xpose.msra.mxu0 0.0
    %2077 = vmatprep.subr.mxu0 0.0
    %2078 = vmatpush1.xpose.msra.mxu0 0.0
    %2079 = vmatprep.subr.mxu0 0.0
    %2080 = vmatpush1.xpose.msra.mxu0 0.0
    %2081 = vmatprep.subr.mxu0 0.0
    %2082 = vmatpush1.xpose.msra.mxu0 0.0
    %2083 = vmatprep.subr.mxu0 0.0
    %2084 = vmatpush1.xpose.msra.mxu0 0.0
    %2085 = vmatprep.subr.mxu0 0.0
    %2086 = vmatpush1.xpose.msra.mxu0 0.0
    %2087 = vmatprep.subr.mxu0 0.0
    %2088 = vmatpush1.xpose.msra.mxu0 0.0
    %2089 = vmatprep.subr.mxu0 0.0
    %2090 = vmatpush1.xpose.msra.mxu0 0.0
    %2091 = vmatprep.subr.mxu0 0.0
    %2092 = vmatpush1.xpose.msra.mxu0 0.0
    %2093 = vmatprep.subr.mxu0 0.0
    %2094 = vmatpush1.xpose.msra.mxu0 0.0
    %2095 = vmatprep.subr.mxu0 0.0
    %2096 = vmatpush1.xpose.msra.mxu0 0.0
    %2097 = vmatprep.subr.mxu0 0.0
    %2098 = vmatpush1.xpose.msra.mxu0 0.0
    %2099 = vmatprep.subr.mxu0 0.0
    %2100 = vmatpush1.xpose.msra.mxu0 0.0
    %2101 = vmatprep.subr.mxu0 0.0
    %2102 = vmatpush1.xpose.msra.mxu0 0.0
    %2103 = vmatprep.subr.mxu0 0.0
    %2104 = vmatpush1.xpose.msra.mxu0 0.0
    %2105 = vmatprep.subr.mxu0 0.0
    %2106 = vmatpush1.xpose.msra.mxu0 0.0
    %2107 = vmatprep.subr.mxu0 0.0
    %2108 = vmatpush1.xpose.msra.mxu0 0.0
    %2109 = vmatprep.subr.mxu0 0.0
    %2110 = vmatpush1.xpose.msra.mxu0 0.0
    %2111 = vmatprep.subr.mxu0 0.0
    %2112 = vmatpush1.xpose.msra.mxu0 0.0
    %2113 = vmatprep.subr.mxu0 0.0
    %2114 = vmatpush1.xpose.msra.mxu0 0.0
    %2115 = vmatprep.subr.mxu0 0.0
    %2116 = vmatpush1.xpose.msra.mxu0 0.0
    %2117 = vmatprep.subr.mxu0 0.0
    %2118 = vmatpush1.xpose.msra.mxu0 0.0
    %2119 = vmatprep.subr.mxu0 0.0
    %2120 = vmatpush1.xpose.msra.mxu0 0.0
    %2121 = vmatprep.subr.mxu0 0.0
    %2122 = vmatpush1.xpose.msra.mxu0 0.0
    %2123 = vmatprep.subr.mxu0 0.0
    %2124 = vmatpush1.xpose.msra.mxu0 0.0
    %2125 = vmatprep.subr.mxu0 0.0
    %2126 = vmatpush1.xpose.msra.mxu0 0.0
    %2127 = vmatprep.subr.mxu0 0.0
    %2128 = vmatpush1.xpose.msra.mxu0 0.0
    %2129 = vmatprep.subr.mxu0 0.0
    %2130 = vmatpush1.xpose.msra.mxu0 0.0
    %2131 = vmatprep.subr.mxu0 0.0
    %2132 = vmatpush1.xpose.msra.mxu0 0.0
    %2133 = vmatprep.subr.mxu0 0.0
    %2134 = vmatpush1.xpose.msra.mxu0 0.0
    %2135 = vmatprep.mubr.f32.mxu0 0.0
    %v2136 = vand.u32 %v1763, 4294901760
    %2137 = vmatmul.mubr.f32.gmra.mrb[0].mxu0 %v2136
    %v2138 = vpop.f32.mrb[0].mxu0
    %v2139 = vadd.f32 %v2065, %v2138
    %v2140 = vpop.f32.mrb[0].mxu0
    %2141 = vdwg.mxu0
    %2142 = vmatprep.subr.mxu0 0.0
    %v2143 = vand.u32 %v1766, 4294901760
    %2144 = vmatpush1.xpose.msra.mxu0 %v2143
    %2145 = vmatprep.subr.mxu0 0.0
    %2146 = vmatpush1.xpose.msra.mxu0 0.0
    %2147 = vmatprep.subr.mxu0 0.0
    %2148 = vmatpush1.xpose.msra.mxu0 0.0
    %2149 = vmatprep.subr.mxu0 0.0
    %2150 = vmatpush1.xpose.msra.mxu0 0.0
    %2151 = vmatprep.subr.mxu0 0.0
    %2152 = vmatpush1.xpose.msra.mxu0 0.0
    %2153 = vmatprep.subr.mxu0 0.0
    %2154 = vmatpush1.xpose.msra.mxu0 0.0
    %2155 = vmatprep.subr.mxu0 0.0
    %2156 = vmatpush1.xpose.msra.mxu0 0.0
    %2157 = vmatprep.subr.mxu0 0.0
    %2158 = vmatpush1.xpose.msra.mxu0 0.0
    %2159 = vmatprep.subr.mxu0 0.0
    %2160 = vmatpush1.xpose.msra.mxu0 0.0
    %2161 = vmatprep.subr.mxu0 0.0
    %2162 = vmatpush1.xpose.msra.mxu0 0.0
    %2163 = vmatprep.subr.mxu0 0.0
    %2164 = vmatpush1.xpose.msra.mxu0 0.0
    %2165 = vmatprep.subr.mxu0 0.0
    %2166 = vmatpush1.xpose.msra.mxu0 0.0
    %2167 = vmatprep.subr.mxu0 0.0
    %2168 = vmatpush1.xpose.msra.mxu0 0.0
    %2169 = vmatprep.subr.mxu0 0.0
    %2170 = vmatpush1.xpose.msra.mxu0 0.0
    %2171 = vmatprep.subr.mxu0 0.0
    %2172 = vmatpush1.xpose.msra.mxu0 0.0
    %2173 = vmatprep.subr.mxu0 0.0
    %2174 = vmatpush1.xpose.msra.mxu0 0.0
    %2175 = vmatprep.subr.mxu0 0.0
    %2176 = vmatpush1.xpose.msra.mxu0 0.0
    %2177 = vmatprep.subr.mxu0 0.0
    %2178 = vmatpush1.xpose.msra.mxu0 0.0
    %2179 = vmatprep.subr.mxu0 0.0
    %2180 = vmatpush1.xpose.msra.mxu0 0.0
    %2181 = vmatprep.subr.mxu0 0.0
    %2182 = vmatpush1.xpose.msra.mxu0 0.0
    %2183 = vmatprep.subr.mxu0 0.0
    %2184 = vmatpush1.xpose.msra.mxu0 0.0
    %2185 = vmatprep.subr.mxu0 0.0
    %2186 = vmatpush1.xpose.msra.mxu0 0.0
    %2187 = vmatprep.subr.mxu0 0.0
    %2188 = vmatpush1.xpose.msra.mxu0 0.0
    %2189 = vmatprep.subr.mxu0 0.0
    %2190 = vmatpush1.xpose.msra.mxu0 0.0
    %2191 = vmatprep.subr.mxu0 0.0
    %2192 = vmatpush1.xpose.msra.mxu0 0.0
    %2193 = vmatprep.subr.mxu0 0.0
    %2194 = vmatpush1.xpose.msra.mxu0 0.0
    %2195 = vmatprep.subr.mxu0 0.0
    %2196 = vmatpush1.xpose.msra.mxu0 0.0
    %2197 = vmatprep.subr.mxu0 0.0
    %2198 = vmatpush1.xpose.msra.mxu0 0.0
    %2199 = vmatprep.subr.mxu0 0.0
    %2200 = vmatpush1.xpose.msra.mxu0 0.0
    %2201 = vmatprep.subr.mxu0 0.0
    %2202 = vmatpush1.xpose.msra.mxu0 0.0
    %2203 = vmatprep.subr.mxu0 0.0
    %2204 = vmatpush1.xpose.msra.mxu0 0.0
    %2205 = vmatprep.subr.mxu0 0.0
    %2206 = vmatpush1.xpose.msra.mxu0 0.0
    %2207 = vmatprep.mubr.f32.mxu0 0.0
    %v2208 = vand.u32 %v1763, 4294901760
    %2209 = vmatmul.mubr.f32.gmra.mrb[0].mxu0 %v2208
    %v2210 = vpop.f32.mrb[0].mxu0
    %v2211 = vadd.f32 %v2139, %v2210
    %v2212 = vpop.f32.mrb[0].mxu0
    %2213 = vdwg.mxu0
    %v2214 = vsel %vm1761, %v2211, -inf
    %2215 = vmax.xlane.f32.xlu0 %v2214
    %v2216 = vpop.xlane.xlu0 %2215
    %v2217 = vsub.f32 %v2211, %v2216
    %v2218 = vmul.f32 %v2217, 1.442695
    %v2219 = vpow.pop %v2218
    %v2220 = vsel %vm1761, %v2219, 0.0
    %2221 = vadd.xlane.f32.xlu0 %v2220
    %v2222 = vpop.xlane.xlu0 %2221
    %v2223 = vrcp.pop %v2222
    %v2224 = vmul.f32 %v2219, %v2223
    %2225 = vst.msk [vmem:[#allocation12] sm:$0xff] %vm1761, %v2224
    %v2227 = vsel %vm1761, %v2224, 0
    %2229 = vmatprep.subr.mxu0 0.0
    %v2230 = vand.u32 %v1752, 4294901760
    %2231 = vmatpush1.msra.mxu0 %v2230
    %2232 = vmatprep.subr.mxu0 0.0
    %2233 = vmatpush1.msra.mxu0 0.0
    %2234 = vmatprep.subr.mxu0 0.0
    %2235 = vmatpush1.msra.mxu0 0.0
    %2236 = vmatprep.subr.mxu0 0.0
    %2237 = vmatpush1.msra.mxu0 0.0
    %2238 = vmatprep.subr.mxu0 0.0
    %2239 = vmatpush1.msra.mxu0 0.0
    %2240 = vmatprep.subr.mxu0 0.0
    %2241 = vmatpush1.msra.mxu0 0.0
    %2242 = vmatprep.subr.mxu0 0.0
    %2243 = vmatpush1.msra.mxu0 0.0
    %2244 = vmatprep.subr.mxu0 0.0
    %2245 = vmatpush1.msra.mxu0 0.0
    %2246 = vmatprep.subr.mxu0 0.0
    %2247 = vmatpush1.msra.mxu0 0.0
    %2248 = vmatprep.subr.mxu0 0.0
    %2249 = vmatpush1.msra.mxu0 0.0
    %2250 = vmatprep.subr.mxu0 0.0
    %2251 = vmatpush1.msra.mxu0 0.0
    %2252 = vmatprep.subr.mxu0 0.0
    %2253 = vmatpush1.msra.mxu0 0.0
    %2254 = vmatprep.subr.mxu0 0.0
    %2255 = vmatpush1.msra.mxu0 0.0
    %2256 = vmatprep.subr.mxu0 0.0
    %2257 = vmatpush1.msra.mxu0 0.0
    %2258 = vmatprep.subr.mxu0 0.0
    %2259 = vmatpush1.msra.mxu0 0.0
    %2260 = vmatprep.subr.mxu0 0.0
    %2261 = vmatpush1.msra.mxu0 0.0
    %2262 = vmatprep.subr.mxu0 0.0
    %2263 = vmatpush1.msra.mxu0 0.0
    %2264 = vmatprep.subr.mxu0 0.0
    %2265 = vmatpush1.msra.mxu0 0.0
    %2266 = vmatprep.subr.mxu0 0.0
    %2267 = vmatpush1.msra.mxu0 0.0
    %2268 = vmatprep.subr.mxu0 0.0
    %2269 = vmatpush1.msra.mxu0 0.0
    %2270 = vmatprep.subr.mxu0 0.0
    %2271 = vmatpush1.msra.mxu0 0.0
    %2272 = vmatprep.subr.mxu0 0.0
    %2273 = vmatpush1.msra.mxu0 0.0
    %2274 = vmatprep.subr.mxu0 0.0
    %2275 = vmatpush1.msra.mxu0 0.0
    %2276 = vmatprep.subr.mxu0 0.0
    %2277 = vmatpush1.msra.mxu0 0.0
    %2278 = vmatprep.subr.mxu0 0.0
    %2279 = vmatpush1.msra.mxu0 0.0
    %2280 = vmatprep.subr.mxu0 0.0
    %2281 = vmatpush1.msra.mxu0 0.0
    %2282 = vmatprep.subr.mxu0 0.0
    %2283 = vmatpush1.msra.mxu0 0.0
    %2284 = vmatprep.subr.mxu0 0.0
    %2285 = vmatpush1.msra.mxu0 0.0
    %2286 = vmatprep.subr.mxu0 0.0
    %2287 = vmatpush1.msra.mxu0 0.0
    %2288 = vmatprep.subr.mxu0 0.0
    %2289 = vmatpush1.msra.mxu0 0.0
    %2290 = vmatprep.subr.mxu0 0.0
    %2291 = vmatpush1.msra.mxu0 0.0
    %2292 = vmatprep.subr.mxu0 0.0
    %2293 = vmatpush1.msra.mxu0 0.0
    %2294 = vmatprep.mubr.f32.mxu0 0.0
    %v2295 = vand.u32 %v2227, 4294901760
    %v2296 = vsub.f32 %v2227, %v2295
    %v2297 = vand.u32 %v2296, 4294901760
    %v2298 = vsub.f32 %v2296, %v2297
    %v2299 = vand.u32 %v2298, 4294901760
    %2300 = vmatmul.mubr.f32.gmra.mrb[0].mxu0 %v2299
    %v2301 = vpop.f32.mrb[0].mxu0
    %v2302 = vadd.f32 0.0, %v2301
    %v2303 = vpop.f32.mrb[0].mxu0
    %2304 = vdwg.mxu0
    %2305 = vmatprep.subr.mxu0 0.0
    %v2306 = vand.u32 %v1752, 4294901760
    %v2307 = vsub.f32 %v1752, %v2306
    %v2308 = vand.u32 %v2307, 4294901760
    %v2309 = vsub.f32 %v2307, %v2308
    %v2310 = vand.u32 %v2309, 4294901760
    %2311 = vmatpush1.msra.mxu0 %v2310
    %2312 = vmatprep.subr.mxu0 0.0
    %2313 = vmatpush1.msra.mxu0 0.0
    %2314 = vmatprep.subr.mxu0 0.0
    %2315 = vmatpush1.msra.mxu0 0.0
    %2316 = vmatprep.subr.mxu0 0.0
    %2317 = vmatpush1.msra.mxu0 0.0
    %2318 = vmatprep.subr.mxu0 0.0
    %2319 = vmatpush1.msra.mxu0 0.0
    %2320 = vmatprep.subr.mxu0 0.0
    %2321 = vmatpush1.msra.mxu0 0.0
    %2322 = vmatprep.subr.mxu0 0.0
    %2323 = vmatpush1.msra.mxu0 0.0
    %2324 = vmatprep.subr.mxu0 0.0
    %2325 = vmatpush1.msra.mxu0 0.0
    %2326 = vmatprep.subr.mxu0 0.0
    %2327 = vmatpush1.msra.mxu0 0.0
    %2328 = vmatprep.subr.mxu0 0.0
    %2329 = vmatpush1.msra.mxu0 0.0
    %2330 = vmatprep.subr.mxu0 0.0
    %2331 = vmatpush1.msra.mxu0 0.0
    %2332 = vmatprep.subr.mxu0 0.0
    %2333 = vmatpush1.msra.mxu0 0.0
    %2334 = vmatprep.subr.mxu0 0.0
    %2335 = vmatpush1.msra.mxu0 0.0
    %2336 = vmatprep.subr.mxu0 0.0
    %2337 = vmatpush1.msra.mxu0 0.0
    %2338 = vmatprep.subr.mxu0 0.0
    %2339 = vmatpush1.msra.mxu0 0.0
    %2340 = vmatprep.subr.mxu0 0.0
    %2341 = vmatpush1.msra.mxu0 0.0
    %2342 = vmatprep.subr.mxu0 0.0
    %2343 = vmatpush1.msra.mxu0 0.0
    %2344 = vmatprep.subr.mxu0 0.0
    %2345 = vmatpush1.msra.mxu0 0.0
    %2346 = vmatprep.subr.mxu0 0.0
    %2347 = vmatpush1.msra.mxu0 0.0
    %2348 = vmatprep.subr.mxu0 0.0
    %2349 = vmatpush1.msra.mxu0 0.0
    %2350 = vmatprep.subr.mxu0 0.0
    %2351 = vmatpush1.msra.mxu0 0.0
    %2352 = vmatprep.subr.mxu0 0.0
    %2353 = vmatpush1.msra.mxu0 0.0
    %2354 = vmatprep.subr.mxu0 0.0
    %2355 = vmatpush1.msra.mxu0 0.0
    %2356 = vmatprep.subr.mxu0 0.0
    %2357 = vmatpush1.msra.mxu0 0.0
    %2358 = vmatprep.subr.mxu0 0.0
    %2359 = vmatpush1.msra.mxu0 0.0
    %2360 = vmatprep.subr.mxu0 0.0
    %2361 = vmatpush1.msra.mxu0 0.0
    %2362 = vmatprep.subr.mxu0 0.0
    %2363 = vmatpush1.msra.mxu0 0.0
    %2364 = vmatprep.subr.mxu0 0.0
    %2365 = vmatpush1.msra.mxu0 0.0
    %2366 = vmatprep.subr.mxu0 0.0
    %2367 = vmatpush1.msra.mxu0 0.0
    %2368 = vmatprep.subr.mxu0 0.0
    %2369 = vmatpush1.msra.mxu0 0.0
    %2370 = vmatprep.subr.mxu0 0.0
    %2371 = vmatpush1.msra.mxu0 0.0
    %2372 = vmatprep.subr.mxu0 0.0
    %2373 = vmatpush1.msra.mxu0 0.0
    %2374 = vmatprep.mubr.f32.mxu0 0.0
    %v2375 = vand.u32 %v2227, 4294901760
    %2376 = vmatmul.mubr.f32.gmra.mrb[0].mxu0 %v2375
    %v2377 = vpop.f32.mrb[0].mxu0
    %v2378 = vadd.f32 %v2302, %v2377
    %v2379 = vpop.f32.mrb[0].mxu0
    %2380 = vdwg.mxu0
    %2381 = vmatprep.subr.mxu0 0.0
    %v2382 = vand.u32 %v1752, 4294901760
    %v2383 = vsub.f32 %v1752, %v2382
    %2384 = vmatpush1.msra.mxu0 %v2383
    %2385 = vmatprep.subr.mxu0 0.0
    %2386 = vmatpush1.msra.mxu0 0.0
    %2387 = vmatprep.subr.mxu0 0.0
    %2388 = vmatpush1.msra.mxu0 0.0
    %2389 = vmatprep.subr.mxu0 0.0
    %2390 = vmatpush1.msra.mxu0 0.0
    %2391 = vmatprep.subr.mxu0 0.0
    %2392 = vmatpush1.msra.mxu0 0.0
    %2393 = vmatprep.subr.mxu0 0.0
    %2394 = vmatpush1.msra.mxu0 0.0
    %2395 = vmatprep.subr.mxu0 0.0
    %2396 = vmatpush1.msra.mxu0 0.0
    %2397 = vmatprep.subr.mxu0 0.0
    %2398 = vmatpush1.msra.mxu0 0.0
    %2399 = vmatprep.subr.mxu0 0.0
    %2400 = vmatpush1.msra.mxu0 0.0
    %2401 = vmatprep.subr.mxu0 0.0
    %2402 = vmatpush1.msra.mxu0 0.0
    %2403 = vmatprep.subr.mxu0 0.0
    %2404 = vmatpush1.msra.mxu0 0.0
    %2405 = vmatprep.subr.mxu0 0.0
    %2406 = vmatpush1.msra.mxu0 0.0
    %2407 = vmatprep.subr.mxu0 0.0
    %2408 = vmatpush1.msra.mxu0 0.0
    %2409 = vmatprep.subr.mxu0 0.0
    %2410 = vmatpush1.msra.mxu0 0.0
    %2411 = vmatprep.subr.mxu0 0.0
    %2412 = vmatpush1.msra.mxu0 0.0
    %2413 = vmatprep.subr.mxu0 0.0
    %2414 = vmatpush1.msra.mxu0 0.0
    %2415 = vmatprep.subr.mxu0 0.0
    %2416 = vmatpush1.msra.mxu0 0.0
    %2417 = vmatprep.subr.mxu0 0.0
    %2418 = vmatpush1.msra.mxu0 0.0
    %2419 = vmatprep.subr.mxu0 0.0
    %2420 = vmatpush1.msra.mxu0 0.0
    %2421 = vmatprep.subr.mxu0 0.0
    %2422 = vmatpush1.msra.mxu0 0.0
    %2423 = vmatprep.subr.mxu0 0.0
    %2424 = vmatpush1.msra.mxu0 0.0
    %2425 = vmatprep.subr.mxu0 0.0
    %2426 = vmatpush1.msra.mxu0 0.0
    %2427 = vmatprep.subr.mxu0 0.0
    %2428 = vmatpush1.msra.mxu0 0.0
    %2429 = vmatprep.subr.mxu0 0.0
    %2430 = vmatpush1.msra.mxu0 0.0
    %2431 = vmatprep.subr.mxu0 0.0
    %2432 = vmatpush1.msra.mxu0 0.0
    %2433 = vmatprep.subr.mxu0 0.0
    %2434 = vmatpush1.msra.mxu0 0.0
    %2435 = vmatprep.subr.mxu0 0.0
    %2436 = vmatpush1.msra.mxu0 0.0
    %2437 = vmatprep.subr.mxu0 0.0
    %2438 = vmatpush1.msra.mxu0 0.0
    %2439 = vmatprep.subr.mxu0 0.0
    %2440 = vmatpush1.msra.mxu0 0.0
    %2441 = vmatprep.subr.mxu0 0.0
    %2442 = vmatpush1.msra.mxu0 0.0
    %2443 = vmatprep.subr.mxu0 0.0
    %2444 = vmatpush1.msra.mxu0 0.0
    %2445 = vmatprep.subr.mxu0 0.0
    %2446 = vmatpush1.msra.mxu0 0.0
    %2447 = vmatprep.mubr.f32.mxu0 0.0
    %v2448 = vand.u32 %v2227, 4294901760
    %v2449 = vsub.f32 %v2227, %v2448
    %2450 = vmatmul.mubr.f32.gmra.mrb[0].mxu0 %v2449
    %v2451 = vpop.f32.mrb[0].mxu0
    %v2452 = vadd.f32 %v2378, %v2451
    %v2453 = vpop.f32.mrb[0].mxu0
    %2454 = vdwg.mxu0
    %2455 = vmatprep.subr.mxu0 0.0
    %v2456 = vand.u32 %v1752, 4294901760
    %2457 = vmatpush1.msra.mxu0 %v2456
    %2458 = vmatprep.subr.mxu0 0.0
    %2459 = vmatpush1.msra.mxu0 0.0
    %2460 = vmatprep.subr.mxu0 0.0
    %2461 = vmatpush1.msra.mxu0 0.0
    %2462 = vmatprep.subr.mxu0 0.0
    %2463 = vmatpush1.msra.mxu0 0.0
    %2464 = vmatprep.subr.mxu0 0.0
    %2465 = vmatpush1.msra.mxu0 0.0
    %2466 = vmatprep.subr.mxu0 0.0
    %2467 = vmatpush1.msra.mxu0 0.0
    %2468 = vmatprep.subr.mxu0 0.0
    %2469 = vmatpush1.msra.mxu0 0.0
    %2470 = vmatprep.subr.mxu0 0.0
    %2471 = vmatpush1.msra.mxu0 0.0
    %2472 = vmatprep.subr.mxu0 0.0
    %2473 = vmatpush1.msra.mxu0 0.0
    %2474 = vmatprep.subr.mxu0 0.0
    %2475 = vmatpush1.msra.mxu0 0.0
    %2476 = vmatprep.subr.mxu0 0.0
    %2477 = vmatpush1.msra.mxu0 0.0
    %2478 = vmatprep.subr.mxu0 0.0
    %2479 = vmatpush1.msra.mxu0 0.0
    %2480 = vmatprep.subr.mxu0 0.0
    %2481 = vmatpush1.msra.mxu0 0.0
    %2482 = vmatprep.subr.mxu0 0.0
    %2483 = vmatpush1.msra.mxu0 0.0
    %2484 = vmatprep.subr.mxu0 0.0
    %2485 = vmatpush1.msra.mxu0 0.0
    %2486 = vmatprep.subr.mxu0 0.0
    %2487 = vmatpush1.msra.mxu0 0.0
    %2488 = vmatprep.subr.mxu0 0.0
    %2489 = vmatpush1.msra.mxu0 0.0
    %2490 = vmatprep.subr.mxu0 0.0
    %2491 = vmatpush1.msra.mxu0 0.0
    %2492 = vmatprep.subr.mxu0 0.0
    %2493 = vmatpush1.msra.mxu0 0.0
    %2494 = vmatprep.subr.mxu0 0.0
    %2495 = vmatpush1.msra.mxu0 0.0
    %2496 = vmatprep.subr.mxu0 0.0
    %2497 = vmatpush1.msra.mxu0 0.0
    %2498 = vmatprep.subr.mxu0 0.0
    %2499 = vmatpush1.msra.mxu0 0.0
    %2500 = vmatprep.subr.mxu0 0.0
    %2501 = vmatpush1.msra.mxu0 0.0
    %2502 = vmatprep.subr.mxu0 0.0
    %2503 = vmatpush1.msra.mxu0 0.0
    %2504 = vmatprep.subr.mxu0 0.0
    %2505 = vmatpush1.msra.mxu0 0.0
    %2506 = vmatprep.subr.mxu0 0.0
    %2507 = vmatpush1.msra.mxu0 0.0
    %2508 = vmatprep.subr.mxu0 0.0
    %2509 = vmatpush1.msra.mxu0 0.0
    %2510 = vmatprep.subr.mxu0 0.0
    %2511 = vmatpush1.msra.mxu0 0.0
    %2512 = vmatprep.subr.mxu0 0.0
    %2513 = vmatpush1.msra.mxu0 0.0
    %2514 = vmatprep.subr.mxu0 0.0
    %2515 = vmatpush1.msra.mxu0 0.0
    %2516 = vmatprep.subr.mxu0 0.0
    %2517 = vmatpush1.msra.mxu0 0.0
    %2518 = vmatprep.subr.mxu0 0.0
    %2519 = vmatpush1.msra.mxu0 0.0
    %2520 = vmatprep.mubr.f32.mxu0 0.0
    %v2521 = vand.u32 %v2227, 4294901760
    %v2522 = vsub.f32 %v2227, %v2521
    %v2523 = vand.u32 %v2522, 4294901760
    %2524 = vmatmul.mubr.f32.gmra.mrb[0].mxu0 %v2523
    %v2525 = vpop.f32.mrb[0].mxu0
    %v2526 = vadd.f32 %v2452, %v2525
    %v2527 = vpop.f32.mrb[0].mxu0
    %2528 = vdwg.mxu0
    %2529 = vmatprep.subr.mxu0 0.0
    %v2530 = vand.u32 %v1752, 4294901760
    %v2531 = vsub.f32 %v1752, %v2530
    %v2532 = vand.u32 %v2531, 4294901760
    %2533 = vmatpush1.msra.mxu0 %v2532
    %2534 = vmatprep.subr.mxu0 0.0
    %2535 = vmatpush1.msra.mxu0 0.0
    %2536 = vmatprep.subr.mxu0 0.0
    %2537 = vmatpush1.msra.mxu0 0.0
    %2538 = vmatprep.subr.mxu0 0.0
    %2539 = vmatpush1.msra.mxu0 0.0
    %2540 = vmatprep.subr.mxu0 0.0
    %2541 = vmatpush1.msra.mxu0 0.0
    %2542 = vmatprep.subr.mxu0 0.0
    %2543 = vmatpush1.msra.mxu0 0.0
    %2544 = vmatprep.subr.mxu0 0.0
    %2545 = vmatpush1.msra.mxu0 0.0
    %2546 = vmatprep.subr.mxu0 0.0
    %2547 = vmatpush1.msra.mxu0 0.0
    %2548 = vmatprep.subr.mxu0 0.0
    %2549 = vmatpush1.msra.mxu0 0.0
    %2550 = vmatprep.subr.mxu0 0.0
    %2551 = vmatpush1.msra.mxu0 0.0
    %2552 = vmatprep.subr.mxu0 0.0
    %2553 = vmatpush1.msra.mxu0 0.0
    %2554 = vmatprep.subr.mxu0 0.0
    %2555 = vmatpush1.msra.mxu0 0.0
    %2556 = vmatprep.subr.mxu0 0.0
    %2557 = vmatpush1.msra.mxu0 0.0
    %2558 = vmatprep.subr.mxu0 0.0
    %2559 = vmatpush1.msra.mxu0 0.0
    %2560 = vmatprep.subr.mxu0 0.0
    %2561 = vmatpush1.msra.mxu0 0.0
    %2562 = vmatprep.subr.mxu0 0.0
    %2563 = vmatpush1.msra.mxu0 0.0
    %2564 = vmatprep.subr.mxu0 0.0
    %2565 = vmatpush1.msra.mxu0 0.0
    %2566 = vmatprep.subr.mxu0 0.0
    %2567 = vmatpush1.msra.mxu0 0.0
    %2568 = vmatprep.subr.mxu0 0.0
    %2569 = vmatpush1.msra.mxu0 0.0
    %2570 = vmatprep.subr.mxu0 0.0
    %2571 = vmatpush1.msra.mxu0 0.0
    %2572 = vmatprep.subr.mxu0 0.0
    %2573 = vmatpush1.msra.mxu0 0.0
    %2574 = vmatprep.subr.mxu0 0.0
    %2575 = vmatpush1.msra.mxu0 0.0
    %2576 = vmatprep.subr.mxu0 0.0
    %2577 = vmatpush1.msra.mxu0 0.0
    %2578 = vmatprep.subr.mxu0 0.0
    %2579 = vmatpush1.msra.mxu0 0.0
    %2580 = vmatprep.subr.mxu0 0.0
    %2581 = vmatpush1.msra.mxu0 0.0
    %2582 = vmatprep.subr.mxu0 0.0
    %2583 = vmatpush1.msra.mxu0 0.0
    %2584 = vmatprep.subr.mxu0 0.0
    %2585 = vmatpush1.msra.mxu0 0.0
    %2586 = vmatprep.subr.mxu0 0.0
    %2587 = vmatpush1.msra.mxu0 0.0
    %2588 = vmatprep.subr.mxu0 0.0
    %2589 = vmatpush1.msra.mxu0 0.0
    %2590 = vmatprep.subr.mxu0 0.0
    %2591 = vmatpush1.msra.mxu0 0.0
    %2592 = vmatprep.subr.mxu0 0.0
    %2593 = vmatpush1.msra.mxu0 0.0
    %2594 = vmatprep.subr.mxu0 0.0
    %2595 = vmatpush1.msra.mxu0 0.0
    %2596 = vmatprep.mubr.f32.mxu0 0.0
    %v2597 = vand.u32 %v2227, 4294901760
    %2598 = vmatmul.mubr.f32.gmra.mrb[0].mxu0 %v2597
    %v2599 = vpop.f32.mrb[0].mxu0
    %v2600 = vadd.f32 %v2526, %v2599
    %v2601 = vpop.f32.mrb[0].mxu0
    %2602 = vdwg.mxu0
    %2603 = vmatprep.subr.mxu0 0.0
    %v2604 = vand.u32 %v1752, 4294901760
    %2605 = vmatpush1.msra.mxu0 %v2604
    %2606 = vmatprep.subr.mxu0 0.0
    %2607 = vmatpush1.msra.mxu0 0.0
    %2608 = vmatprep.subr.mxu0 0.0
    %2609 = vmatpush1.msra.mxu0 0.0
    %2610 = vmatprep.subr.mxu0 0.0
    %2611 = vmatpush1.msra.mxu0 0.0
    %2612 = vmatprep.subr.mxu0 0.0
    %2613 = vmatpush1.msra.mxu0 0.0
    %2614 = vmatprep.subr.mxu0 0.0
    %2615 = vmatpush1.msra.mxu0 0.0
    %2616 = vmatprep.subr.mxu0 0.0
    %2617 = vmatpush1.msra.mxu0 0.0
    %2618 = vmatprep.subr.mxu0 0.0
    %2619 = vmatpush1.msra.mxu0 0.0
    %2620 = vmatprep.subr.mxu0 0.0
    %2621 = vmatpush1.msra.mxu0 0.0
    %2622 = vmatprep.subr.mxu0 0.0
    %2623 = vmatpush1.msra.mxu0 0.0
    %2624 = vmatprep.subr.mxu0 0.0
    %2625 = vmatpush1.msra.mxu0 0.0
    %2626 = vmatprep.subr.mxu0 0.0
    %2627 = vmatpush1.msra.mxu0 0.0
    %2628 = vmatprep.subr.mxu0 0.0
    %2629 = vmatpush1.msra.mxu0 0.0
    %2630 = vmatprep.subr.mxu0 0.0
    %2631 = vmatpush1.msra.mxu0 0.0
    %2632 = vmatprep.subr.mxu0 0.0
    %2633 = vmatpush1.msra.mxu0 0.0
    %2634 = vmatprep.subr.mxu0 0.0
    %2635 = vmatpush1.msra.mxu0 0.0
    %2636 = vmatprep.subr.mxu0 0.0
    %2637 = vmatpush1.msra.mxu0 0.0
    %2638 = vmatprep.subr.mxu0 0.0
    %2639 = vmatpush1.msra.mxu0 0.0
    %2640 = vmatprep.subr.mxu0 0.0
    %2641 = vmatpush1.msra.mxu0 0.0
    %2642 = vmatprep.subr.mxu0 0.0
    %2643 = vmatpush1.msra.mxu0 0.0
    %2644 = vmatprep.subr.mxu0 0.0
    %2645 = vmatpush1.msra.mxu0 0.0
    %2646 = vmatprep.subr.mxu0 0.0
    %2647 = vmatpush1.msra.mxu0 0.0
    %2648 = vmatprep.subr.mxu0 0.0
    %2649 = vmatpush1.msra.mxu0 0.0
    %2650 = vmatprep.subr.mxu0 0.0
    %2651 = vmatpush1.msra.mxu0 0.0
    %2652 = vmatprep.subr.mxu0 0.0
    %2653 = vmatpush1.msra.mxu0 0.0
    %2654 = vmatprep.subr.mxu0 0.0
    %2655 = vmatpush1.msra.mxu0 0.0
    %2656 = vmatprep.subr.mxu0 0.0
    %2657 = vmatpush1.msra.mxu0 0.0
    %2658 = vmatprep.subr.mxu0 0.0
    %2659 = vmatpush1.msra.mxu0 0.0
    %2660 = vmatprep.subr.mxu0 0.0
    %2661 = vmatpush1.msra.mxu0 0.0
    %2662 = vmatprep.subr.mxu0 0.0
    %2663 = vmatpush1.msra.mxu0 0.0
    %2664 = vmatprep.subr.mxu0 0.0
    %2665 = vmatpush1.msra.mxu0 0.0
    %2666 = vmatprep.subr.mxu0 0.0
    %2667 = vmatpush1.msra.mxu0 0.0
    %2668 = vmatprep.mubr.f32.mxu0 0.0
    %v2669 = vand.u32 %v2227, 4294901760
    %2670 = vmatmul.mubr.f32.gmra.mrb[0].mxu0 %v2669
    %v2671 = vpop.f32.mrb[0].mxu0
    %v2672 = vadd.f32 %v2600, %v2671
    %v2673 = vpop.f32.mrb[0].mxu0
    %2674 = vdwg.mxu0
    %2675 = vst.msk [vmem:[#allocation2] sm:$0xff] %vm1761, %v2672
    %2676 = vrot.lane.b32.xlu0 %v655, 120
    %v2677 = vpop.permute.xlu0 %2676
    %2678 = vrot.lane.b32.xlu0 %v1200, 120
    %v2679 = vpop.permute.xlu0 %2678
    %v2680 = vsel %vm1761, %v2677, 0
    %v2682 = vsel %vm1761, %v2679, 0
    %2684 = vmatprep.subr.mxu0 0.0
    %v2685 = vand.u32 %v2682, 4294901760
    %2686 = vmatpush1.xpose.msra.mxu0 %v2685
    %2687 = vmatprep.subr.mxu0 0.0
    %2688 = vmatpush1.xpose.msra.mxu0 0.0
    %2689 = vmatprep.subr.mxu0 0.0
    %2690 = vmatpush1.xpose.msra.mxu0 0.0
    %2691 = vmatprep.subr.mxu0 0.0
    %2692 = vmatpush1.xpose.msra.mxu0 0.0
    %2693 = vmatprep.subr.mxu0 0.0
    %2694 = vmatpush1.xpose.msra.mxu0 0.0
    %2695 = vmatprep.subr.mxu0 0.0
    %2696 = vmatpush1.xpose.msra.mxu0 0.0
    %2697 = vmatprep.subr.mxu0 0.0
    %2698 = vmatpush1.xpose.msra.mxu0 0.0
    %2699 = vmatprep.subr.mxu0 0.0
    %2700 = vmatpush1.xpose.msra.mxu0 0.0
    %2701 = vmatprep.subr.mxu0 0.0
    %2702 = vmatpush1.xpose.msra.mxu0 0.0
    %2703 = vmatprep.subr.mxu0 0.0
    %2704 = vmatpush1.xpose.msra.mxu0 0.0
    %2705 = vmatprep.subr.mxu0 0.0
    %2706 = vmatpush1.xpose.msra.mxu0 0.0
    %2707 = vmatprep.subr.mxu0 0.0
    %2708 = vmatpush1.xpose.msra.mxu0 0.0
    %2709 = vmatprep.subr.mxu0 0.0
    %2710 = vmatpush1.xpose.msra.mxu0 0.0
    %2711 = vmatprep.subr.mxu0 0.0
    %2712 = vmatpush1.xpose.msra.mxu0 0.0
    %2713 = vmatprep.subr.mxu0 0.0
    %2714 = vmatpush1.xpose.msra.mxu0 0.0
    %2715 = vmatprep.subr.mxu0 0.0
    %2716 = vmatpush1.xpose.msra.mxu0 0.0
    %2717 = vmatprep.subr.mxu0 0.0
    %2718 = vmatpush1.xpose.msra.mxu0 0.0
    %2719 = vmatprep.subr.mxu0 0.0
    %2720 = vmatpush1.xpose.msra.mxu0 0.0
    %2721 = vmatprep.subr.mxu0 0.0
    %2722 = vmatpush1.xpose.msra.mxu0 0.0
    %2723 = vmatprep.subr.mxu0 0.0
    %2724 = vmatpush1.xpose.msra.mxu0 0.0
    %2725 = vmatprep.subr.mxu0 0.0
    %2726 = vmatpush1.xpose.msra.mxu0 0.0
    %2727 = vmatprep.subr.mxu0 0.0
    %2728 = vmatpush1.xpose.msra.mxu0 0.0
    %2729 = vmatprep.subr.mxu0 0.0
    %2730 = vmatpush1.xpose.msra.mxu0 0.0
    %2731 = vmatprep.subr.mxu0 0.0
    %2732 = vmatpush1.xpose.msra.mxu0 0.0
    %2733 = vmatprep.subr.mxu0 0.0
    %2734 = vmatpush1.xpose.msra.mxu0 0.0
    %2735 = vmatprep.subr.mxu0 0.0
    %2736 = vmatpush1.xpose.msra.mxu0 0.0
    %2737 = vmatprep.subr.mxu0 0.0
    %2738 = vmatpush1.xpose.msra.mxu0 0.0
    %2739 = vmatprep.subr.mxu0 0.0
    %2740 = vmatpush1.xpose.msra.mxu0 0.0
    %2741 = vmatprep.subr.mxu0 0.0
    %2742 = vmatpush1.xpose.msra.mxu0 0.0
    %2743 = vmatprep.subr.mxu0 0.0
    %2744 = vmatpush1.xpose.msra.mxu0 0.0
    %2745 = vmatprep.subr.mxu0 0.0
    %2746 = vmatpush1.xpose.msra.mxu0 0.0
    %2747 = vmatprep.subr.mxu0 0.0
    %2748 = vmatpush1.xpose.msra.mxu0 0.0
    %2749 = vmatprep.mubr.f32.mxu0 0.0
    %v2750 = vand.u32 %v2680, 4294901760
    %v2751 = vsub.f32 %v2680, %v2750
    %v2752 = vand.u32 %v2751, 4294901760
    %v2753 = vsub.f32 %v2751, %v2752
    %v2754 = vand.u32 %v2753, 4294901760
    %2755 = vmatmul.mubr.f32.gmra.mrb[0].mxu0 %v2754
    %v2756 = vpop.f32.mrb[0].mxu0
    %v2757 = vadd.f32 0.0, %v2756
    %v2758 = vpop.f32.mrb[0].mxu0
    %2759 = vdwg.mxu0
    %2760 = vmatprep.subr.mxu0 0.0
    %v2761 = vand.u32 %v2682, 4294901760
    %v2762 = vsub.f32 %v2682, %v2761
    %v2763 = vand.u32 %v2762, 4294901760
    %v2764 = vsub.f32 %v2762, %v2763
    %v2765 = vand.u32 %v2764, 4294901760
    %2766 = vmatpush1.xpose.msra.mxu0 %v2765
    %2767 = vmatprep.subr.mxu0 0.0
    %2768 = vmatpush1.xpose.msra.mxu0 0.0
    %2769 = vmatprep.subr.mxu0 0.0
    %2770 = vmatpush1.xpose.msra.mxu0 0.0
    %2771 = vmatprep.subr.mxu0 0.0
    %2772 = vmatpush1.xpose.msra.mxu0 0.0
    %2773 = vmatprep.subr.mxu0 0.0
    %2774 = vmatpush1.xpose.msra.mxu0 0.0
    %2775 = vmatprep.subr.mxu0 0.0
    %2776 = vmatpush1.xpose.msra.mxu0 0.0
    %2777 = vmatprep.subr.mxu0 0.0
    %2778 = vmatpush1.xpose.msra.mxu0 0.0
    %2779 = vmatprep.subr.mxu0 0.0
    %2780 = vmatpush1.xpose.msra.mxu0 0.0
    %2781 = vmatprep.subr.mxu0 0.0
    %2782 = vmatpush1.xpose.msra.mxu0 0.0
    %2783 = vmatprep.subr.mxu0 0.0
    %2784 = vmatpush1.xpose.msra.mxu0 0.0
    %2785 = vmatprep.subr.mxu0 0.0
    %2786 = vmatpush1.xpose.msra.mxu0 0.0
    %2787 = vmatprep.subr.mxu0 0.0
    %2788 = vmatpush1.xpose.msra.mxu0 0.0
    %2789 = vmatprep.subr.mxu0 0.0
    %2790 = vmatpush1.xpose.msra.mxu0 0.0
    %2791 = vmatprep.subr.mxu0 0.0
    %2792 = vmatpush1.xpose.msra.mxu0 0.0
    %2793 = vmatprep.subr.mxu0 0.0
    %2794 = vmatpush1.xpose.msra.mxu0 0.0
    %2795 = vmatprep.subr.mxu0 0.0
    %2796 = vmatpush1.xpose.msra.mxu0 0.0
    %2797 = vmatprep.subr.mxu0 0.0
    %2798 = vmatpush1.xpose.msra.mxu0 0.0
    %2799 = vmatprep.subr.mxu0 0.0
    %2800 = vmatpush1.xpose.msra.mxu0 0.0
    %2801 = vmatprep.subr.mxu0 0.0
    %2802 = vmatpush1.xpose.msra.mxu0 0.0
    %2803 = vmatprep.subr.mxu0 0.0
    %2804 = vmatpush1.xpose.msra.mxu0 0.0
    %2805 = vmatprep.subr.mxu0 0.0
    %2806 = vmatpush1.xpose.msra.mxu0 0.0
    %2807 = vmatprep.subr.mxu0 0.0
    %2808 = vmatpush1.xpose.msra.mxu0 0.0
    %2809 = vmatprep.subr.mxu0 0.0
    %2810 = vmatpush1.xpose.msra.mxu0 0.0
    %2811 = vmatprep.subr.mxu0 0.0
    %2812 = vmatpush1.xpose.msra.mxu0 0.0
    %2813 = vmatprep.subr.mxu0 0.0
    %2814 = vmatpush1.xpose.msra.mxu0 0.0
    %2815 = vmatprep.subr.mxu0 0.0
    %2816 = vmatpush1.xpose.msra.mxu0 0.0
    %2817 = vmatprep.subr.mxu0 0.0
    %2818 = vmatpush1.xpose.msra.mxu0 0.0
    %2819 = vmatprep.subr.mxu0 0.0
    %2820 = vmatpush1.xpose.msra.mxu0 0.0
    %2821 = vmatprep.subr.mxu0 0.0
    %2822 = vmatpush1.xpose.msra.mxu0 0.0
    %2823 = vmatprep.subr.mxu0 0.0
    %2824 = vmatpush1.xpose.msra.mxu0 0.0
    %2825 = vmatprep.subr.mxu0 0.0
    %2826 = vmatpush1.xpose.msra.mxu0 0.0
    %2827 = vmatprep.subr.mxu0 0.0
    %2828 = vmatpush1.xpose.msra.mxu0 0.0
    %2829 = vmatprep.mubr.f32.mxu0 0.0
    %v2830 = vand.u32 %v2680, 4294901760
    %2831 = vmatmul.mubr.f32.gmra.mrb[0].mxu0 %v2830
    %v2832 = vpop.f32.mrb[0].mxu0
    %v2833 = vadd.f32 %v2757, %v2832
    %v2834 = vpop.f32.mrb[0].mxu0
    %2835 = vdwg.mxu0
    %2836 = vmatprep.subr.mxu0 0.0
    %v2837 = vand.u32 %v2682, 4294901760
    %v2838 = vsub.f32 %v2682, %v2837
    %2839 = vmatpush1.xpose.msra.mxu0 %v2838
    %2840 = vmatprep.subr.mxu0 0.0
    %2841 = vmatpush1.xpose.msra.mxu0 0.0
    %2842 = vmatprep.subr.mxu0 0.0
    %2843 = vmatpush1.xpose.msra.mxu0 0.0
    %2844 = vmatprep.subr.mxu0 0.0
    %2845 = vmatpush1.xpose.msra.mxu0 0.0
    %2846 = vmatprep.subr.mxu0 0.0
    %2847 = vmatpush1.xpose.msra.mxu0 0.0
    %2848 = vmatprep.subr.mxu0 0.0
    %2849 = vmatpush1.xpose.msra.mxu0 0.0
    %2850 = vmatprep.subr.mxu0 0.0
    %2851 = vmatpush1.xpose.msra.mxu0 0.0
    %2852 = vmatprep.subr.mxu0 0.0
    %2853 = vmatpush1.xpose.msra.mxu0 0.0
    %2854 = vmatprep.subr.mxu0 0.0
    %2855 = vmatpush1.xpose.msra.mxu0 0.0
    %2856 = vmatprep.subr.mxu0 0.0
    %2857 = vmatpush1.xpose.msra.mxu0 0.0
    %2858 = vmatprep.subr.mxu0 0.0
    %2859 = vmatpush1.xpose.msra.mxu0 0.0
    %2860 = vmatprep.subr.mxu0 0.0
    %2861 = vmatpush1.xpose.msra.mxu0 0.0
    %2862 = vmatprep.subr.mxu0 0.0
    %2863 = vmatpush1.xpose.msra.mxu0 0.0
    %2864 = vmatprep.subr.mxu0 0.0
    %2865 = vmatpush1.xpose.msra.mxu0 0.0
    %2866 = vmatprep.subr.mxu0 0.0
    %2867 = vmatpush1.xpose.msra.mxu0 0.0
    %2868 = vmatprep.subr.mxu0 0.0
    %2869 = vmatpush1.xpose.msra.mxu0 0.0
    %2870 = vmatprep.subr.mxu0 0.0
    %2871 = vmatpush1.xpose.msra.mxu0 0.0
    %2872 = vmatprep.subr.mxu0 0.0
    %2873 = vmatpush1.xpose.msra.mxu0 0.0
    %2874 = vmatprep.subr.mxu0 0.0
    %2875 = vmatpush1.xpose.msra.mxu0 0.0
    %2876 = vmatprep.subr.mxu0 0.0
    %2877 = vmatpush1.xpose.msra.mxu0 0.0
    %2878 = vmatprep.subr.mxu0 0.0
    %2879 = vmatpush1.xpose.msra.mxu0 0.0
    %2880 = vmatprep.subr.mxu0 0.0
    %2881 = vmatpush1.xpose.msra.mxu0 0.0
    %2882 = vmatprep.subr.mxu0 0.0
    %2883 = vmatpush1.xpose.msra.mxu0 0.0
    %2884 = vmatprep.subr.mxu0 0.0
    %2885 = vmatpush1.xpose.msra.mxu0 0.0
    %2886 = vmatprep.subr.mxu0 0.0
    %2887 = vmatpush1.xpose.msra.mxu0 0.0
    %2888 = vmatprep.subr.mxu0 0.0
    %2889 = vmatpush1.xpose.msra.mxu0 0.0
    %2890 = vmatprep.subr.mxu0 0.0
    %2891 = vmatpush1.xpose.msra.mxu0 0.0
    %2892 = vmatprep.subr.mxu0 0.0
    %2893 = vmatpush1.xpose.msra.mxu0 0.0
    %2894 = vmatprep.subr.mxu0 0.0
    %2895 = vmatpush1.xpose.msra.mxu0 0.0
    %2896 = vmatprep.subr.mxu0 0.0
    %2897 = vmatpush1.xpose.msra.mxu0 0.0
    %2898 = vmatprep.subr.mxu0 0.0
    %2899 = vmatpush1.xpose.msra.mxu0 0.0
    %2900 = vmatprep.subr.mxu0 0.0
    %2901 = vmatpush1.xpose.msra.mxu0 0.0
    %2902 = vmatprep.mubr.f32.mxu0 0.0
    %v2903 = vand.u32 %v2680, 4294901760
    %v2904 = vsub.f32 %v2680, %v2903
    %2905 = vmatmul.mubr.f32.gmra.mrb[0].mxu0 %v2904
    %v2906 = vpop.f32.mrb[0].mxu0
    %v2907 = vadd.f32 %v2833, %v2906
    %v2908 = vpop.f32.mrb[0].mxu0
    %2909 = vdwg.mxu0
    %2910 = vmatprep.subr.mxu0 0.0
    %v2911 = vand.u32 %v2682, 4294901760
    %2912 = vmatpush1.xpose.msra.mxu0 %v2911
    %2913 = vmatprep.subr.mxu0 0.0
    %2914 = vmatpush1.xpose.msra.mxu0 0.0
    %2915 = vmatprep.subr.mxu0 0.0
    %2916 = vmatpush1.xpose.msra.mxu0 0.0
    %2917 = vmatprep.subr.mxu0 0.0
    %2918 = vmatpush1.xpose.msra.mxu0 0.0
    %2919 = vmatprep.subr.mxu0 0.0
    %2920 = vmatpush1.xpose.msra.mxu0 0.0
    %2921 = vmatprep.subr.mxu0 0.0
    %2922 = vmatpush1.xpose.msra.mxu0 0.0
    %2923 = vmatprep.subr.mxu0 0.0
    %2924 = vmatpush1.xpose.msra.mxu0 0.0
    %2925 = vmatprep.subr.mxu0 0.0
    %2926 = vmatpush1.xpose.msra.mxu0 0.0
    %2927 = vmatprep.subr.mxu0 0.0
    %2928 = vmatpush1.xpose.msra.mxu0 0.0
    %2929 = vmatprep.subr.mxu0 0.0
    %2930 = vmatpush1.xpose.msra.mxu0 0.0
    %2931 = vmatprep.subr.mxu0 0.0
    %2932 = vmatpush1.xpose.msra.mxu0 0.0
    %2933 = vmatprep.subr.mxu0 0.0
    %2934 = vmatpush1.xpose.msra.mxu0 0.0
    %2935 = vmatprep.subr.mxu0 0.0
    %2936 = vmatpush1.xpose.msra.mxu0 0.0
    %2937 = vmatprep.subr.mxu0 0.0
    %2938 = vmatpush1.xpose.msra.mxu0 0.0
    %2939 = vmatprep.subr.mxu0 0.0
    %2940 = vmatpush1.xpose.msra.mxu0 0.0
    %2941 = vmatprep.subr.mxu0 0.0
    %2942 = vmatpush1.xpose.msra.mxu0 0.0
    %2943 = vmatprep.subr.mxu0 0.0
    %2944 = vmatpush1.xpose.msra.mxu0 0.0
    %2945 = vmatprep.subr.mxu0 0.0
    %2946 = vmatpush1.xpose.msra.mxu0 0.0
    %2947 = vmatprep.subr.mxu0 0.0
    %2948 = vmatpush1.xpose.msra.mxu0 0.0
    %2949 = vmatprep.subr.mxu0 0.0
    %2950 = vmatpush1.xpose.msra.mxu0 0.0
    %2951 = vmatprep.subr.mxu0 0.0
    %2952 = vmatpush1.xpose.msra.mxu0 0.0
    %2953 = vmatprep.subr.mxu0 0.0
    %2954 = vmatpush1.xpose.msra.mxu0 0.0
    %2955 = vmatprep.subr.mxu0 0.0
    %2956 = vmatpush1.xpose.msra.mxu0 0.0
    %2957 = vmatprep.subr.mxu0 0.0
    %2958 = vmatpush1.xpose.msra.mxu0 0.0
    %2959 = vmatprep.subr.mxu0 0.0
    %2960 = vmatpush1.xpose.msra.mxu0 0.0
    %2961 = vmatprep.subr.mxu0 0.0
    %2962 = vmatpush1.xpose.msra.mxu0 0.0
    %2963 = vmatprep.subr.mxu0 0.0
    %2964 = vmatpush1.xpose.msra.mxu0 0.0
    %2965 = vmatprep.subr.mxu0 0.0
    %2966 = vmatpush1.xpose.msra.mxu0 0.0
    %2967 = vmatprep.subr.mxu0 0.0
    %2968 = vmatpush1.xpose.msra.mxu0 0.0
    %2969 = vmatprep.subr.mxu0 0.0
    %2970 = vmatpush1.xpose.msra.mxu0 0.0
    %2971 = vmatprep.subr.mxu0 0.0
    %2972 = vmatpush1.xpose.msra.mxu0 0.0
    %2973 = vmatprep.subr.mxu0 0.0
    %2974 = vmatpush1.xpose.msra.mxu0 0.0
    %2975 = vmatprep.mubr.f32.mxu0 0.0
    %v2976 = vand.u32 %v2680, 4294901760
    %v2977 = vsub.f32 %v2680, %v2976
    %v2978 = vand.u32 %v2977, 4294901760
    %2979 = vmatmul.mubr.f32.gmra.mrb[0].mxu0 %v2978
    %v2980 = vpop.f32.mrb[0].mxu0
    %v2981 = vadd.f32 %v2907, %v2980
    %v2982 = vpop.f32.mrb[0].mxu0
    %2983 = vdwg.mxu0
    %2984 = vmatprep.subr.mxu0 0.0
    %v2985 = vand.u32 %v2682, 4294901760
    %v2986 = vsub.f32 %v2682, %v2985
    %v2987 = vand.u32 %v2986, 4294901760
    %2988 = vmatpush1.xpose.msra.mxu0 %v2987
    %2989 = vmatprep.subr.mxu0 0.0
    %2990 = vmatpush1.xpose.msra.mxu0 0.0
    %2991 = vmatprep.subr.mxu0 0.0
    %2992 = vmatpush1.xpose.msra.mxu0 0.0
    %2993 = vmatprep.subr.mxu0 0.0
    %2994 = vmatpush1.xpose.msra.mxu0 0.0
    %2995 = vmatprep.subr.mxu0 0.0
    %2996 = vmatpush1.xpose.msra.mxu0 0.0
    %2997 = vmatprep.subr.mxu0 0.0
    %2998 = vmatpush1.xpose.msra.mxu0 0.0
    %2999 = vmatprep.subr.mxu0 0.0
    %3000 = vmatpush1.xpose.msra.mxu0 0.0
    %3001 = vmatprep.subr.mxu0 0.0
    %3002 = vmatpush1.xpose.msra.mxu0 0.0
    %3003 = vmatprep.subr.mxu0 0.0
    %3004 = vmatpush1.xpose.msra.mxu0 0.0
    %3005 = vmatprep.subr.mxu0 0.0
    %3006 = vmatpush1.xpose.msra.mxu0 0.0
    %3007 = vmatprep.subr.mxu0 0.0
    %3008 = vmatpush1.xpose.msra.mxu0 0.0
    %3009 = vmatprep.subr.mxu0 0.0
    %3010 = vmatpush1.xpose.msra.mxu0 0.0
    %3011 = vmatprep.subr.mxu0 0.0
    %3012 = vmatpush1.xpose.msra.mxu0 0.0
    %3013 = vmatprep.subr.mxu0 0.0
    %3014 = vmatpush1.xpose.msra.mxu0 0.0
    %3015 = vmatprep.subr.mxu0 0.0
    %3016 = vmatpush1.xpose.msra.mxu0 0.0
    %3017 = vmatprep.subr.mxu0 0.0
    %3018 = vmatpush1.xpose.msra.mxu0 0.0
    %3019 = vmatprep.subr.mxu0 0.0
    %3020 = vmatpush1.xpose.msra.mxu0 0.0
    %3021 = vmatprep.subr.mxu0 0.0
    %3022 = vmatpush1.xpose.msra.mxu0 0.0
    %3023 = vmatprep.subr.mxu0 0.0
    %3024 = vmatpush1.xpose.msra.mxu0 0.0
    %3025 = vmatprep.subr.mxu0 0.0
    %3026 = vmatpush1.xpose.msra.mxu0 0.0
    %3027 = vmatprep.subr.mxu0 0.0
    %3028 = vmatpush1.xpose.msra.mxu0 0.0
    %3029 = vmatprep.subr.mxu0 0.0
    %3030 = vmatpush1.xpose.msra.mxu0 0.0
    %3031 = vmatprep.subr.mxu0 0.0
    %3032 = vmatpush1.xpose.msra.mxu0 0.0
    %3033 = vmatprep.subr.mxu0 0.0
    %3034 = vmatpush1.xpose.msra.mxu0 0.0
    %3035 = vmatprep.subr.mxu0 0.0
    %3036 = vmatpush1.xpose.msra.mxu0 0.0
    %3037 = vmatprep.subr.mxu0 0.0
    %3038 = vmatpush1.xpose.msra.mxu0 0.0
    %3039 = vmatprep.subr.mxu0 0.0
    %3040 = vmatpush1.xpose.msra.mxu0 0.0
    %3041 = vmatprep.subr.mxu0 0.0
    %3042 = vmatpush1.xpose.msra.mxu0 0.0
    %3043 = vmatprep.subr.mxu0 0.0
    %3044 = vmatpush1.xpose.msra.mxu0 0.0
    %3045 = vmatprep.subr.mxu0 0.0
    %3046 = vmatpush1.xpose.msra.mxu0 0.0
    %3047 = vmatprep.subr.mxu0 0.0
    %3048 = vmatpush1.xpose.msra.mxu0 0.0
    %3049 = vmatprep.subr.mxu0 0.0
    %3050 = vmatpush1.xpose.msra.mxu0 0.0
    %3051 = vmatprep.mubr.f32.mxu0 0.0
    %v3052 = vand.u32 %v2680, 4294901760
    %3053 = vmatmul.mubr.f32.gmra.mrb[0].mxu0 %v3052
    %v3054 = vpop.f32.mrb[0].mxu0
    %v3055 = vadd.f32 %v2981, %v3054
    %v3056 = vpop.f32.mrb[0].mxu0
    %3057 = vdwg.mxu0
    %3058 = vmatprep.subr.mxu0 0.0
    %v3059 = vand.u32 %v2682, 4294901760
    %3060 = vmatpush1.xpose.msra.mxu0 %v3059
    %3061 = vmatprep.subr.mxu0 0.0
    %3062 = vmatpush1.xpose.msra.mxu0 0.0
    %3063 = vmatprep.subr.mxu0 0.0
    %3064 = vmatpush1.xpose.msra.mxu0 0.0
    %3065 = vmatprep.subr.mxu0 0.0
    %3066 = vmatpush1.xpose.msra.mxu0 0.0
    %3067 = vmatprep.subr.mxu0 0.0
    %3068 = vmatpush1.xpose.msra.mxu0 0.0
    %3069 = vmatprep.subr.mxu0 0.0
    %3070 = vmatpush1.xpose.msra.mxu0 0.0
    %3071 = vmatprep.subr.mxu0 0.0
    %3072 = vmatpush1.xpose.msra.mxu0 0.0
    %3073 = vmatprep.subr.mxu0 0.0
    %3074 = vmatpush1.xpose.msra.mxu0 0.0
    %3075 = vmatprep.subr.mxu0 0.0
    %3076 = vmatpush1.xpose.msra.mxu0 0.0
    %3077 = vmatprep.subr.mxu0 0.0
    %3078 = vmatpush1.xpose.msra.mxu0 0.0
    %3079 = vmatprep.subr.mxu0 0.0
    %3080 = vmatpush1.xpose.msra.mxu0 0.0
    %3081 = vmatprep.subr.mxu0 0.0
    %3082 = vmatpush1.xpose.msra.mxu0 0.0
    %3083 = vmatprep.subr.mxu0 0.0
    %3084 = vmatpush1.xpose.msra.mxu0 0.0
    %3085 = vmatprep.subr.mxu0 0.0
    %3086 = vmatpush1.xpose.msra.mxu0 0.0
    %3087 = vmatprep.subr.mxu0 0.0
    %3088 = vmatpush1.xpose.msra.mxu0 0.0
    %3089 = vmatprep.subr.mxu0 0.0
    %3090 = vmatpush1.xpose.msra.mxu0 0.0
    %3091 = vmatprep.subr.mxu0 0.0
    %3092 = vmatpush1.xpose.msra.mxu0 0.0
    %3093 = vmatprep.subr.mxu0 0.0
    %3094 = vmatpush1.xpose.msra.mxu0 0.0
    %3095 = vmatprep.subr.mxu0 0.0
    %3096 = vmatpush1.xpose.msra.mxu0 0.0
    %3097 = vmatprep.subr.mxu0 0.0
    %3098 = vmatpush1.xpose.msra.mxu0 0.0
    %3099 = vmatprep.subr.mxu0 0.0
    %3100 = vmatpush1.xpose.msra.mxu0 0.0
    %3101 = vmatprep.subr.mxu0 0.0
    %3102 = vmatpush1.xpose.msra.mxu0 0.0
    %3103 = vmatprep.subr.mxu0 0.0
    %3104 = vmatpush1.xpose.msra.mxu0 0.0
    %3105 = vmatprep.subr.mxu0 0.0
    %3106 = vmatpush1.xpose.msra.mxu0 0.0
    %3107 = vmatprep.subr.mxu0 0.0
    %3108 = vmatpush1.xpose.msra.mxu0 0.0
    %3109 = vmatprep.subr.mxu0 0.0
    %3110 = vmatpush1.xpose.msra.mxu0 0.0
    %3111 = vmatprep.subr.mxu0 0.0
    %3112 = vmatpush1.xpose.msra.mxu0 0.0
    %3113 = vmatprep.subr.mxu0 0.0
    %3114 = vmatpush1.xpose.msra.mxu0 0.0
    %3115 = vmatprep.subr.mxu0 0.0
    %3116 = vmatpush1.xpose.msra.mxu0 0.0
    %3117 = vmatprep.subr.mxu0 0.0
    %3118 = vmatpush1.xpose.msra.mxu0 0.0
    %3119 = vmatprep.subr.mxu0 0.0
    %3120 = vmatpush1.xpose.msra.mxu0 0.0
    %3121 = vmatprep.subr.mxu0 0.0
    %3122 = vmatpush1.xpose.msra.mxu0 0.0
    %3123 = vmatprep.mubr.f32.mxu0 0.0
    %v3124 = vand.u32 %v2680, 4294901760
    %3125 = vmatmul.mubr.f32.gmra.mrb[0].mxu0 %v3124
    %v3126 = vpop.f32.mrb[0].mxu0
    %v3127 = vadd.f32 %v3055, %v3126
    %v3128 = vpop.f32.mrb[0].mxu0
    %3129 = vdwg.mxu0
    %v3130 = vsel %vm1761, %v3127, -inf
    %3131 = vmax.xlane.f32.xlu0 %v3130
    %v3132 = vpop.xlane.xlu0 %3131
    %v3133 = vsub.f32 %v3127, %v3132
    %v3134 = vmul.f32 %v3133, 1.442695
    %v3135 = vpow.pop %v3134
    %v3136 = vsel %vm1761, %v3135, 0.0
    %3137 = vadd.xlane.f32.xlu0 %v3136
    %v3138 = vpop.xlane.xlu0 %3137
    %v3139 = vrcp.pop %v3138
    %v3140 = vmul.f32 %v3135, %v3139
    %s3141 = scalar_lea.vmem [#allocation12], 8
    %3142 = vst.msk [vmem:[%s3141] sm:$0xff] %vm1761, %v3140
    %3144 = vrot.lane.b32.xlu0 %v1752, 120
    %v3145 = vpop.permute.xlu0 %3144
    %v3148 = vsel %vm1761, %v3140, 0
    %3150 = vmatprep.subr.mxu0 0.0
    %v3151 = vand.u32 %v3145, 4294901760
    %3152 = vmatpush1.msra.mxu0 %v3151
    %3153 = vmatprep.subr.mxu0 0.0
    %3154 = vmatpush1.msra.mxu0 0.0
    %3155 = vmatprep.subr.mxu0 0.0
    %3156 = vmatpush1.msra.mxu0 0.0
    %3157 = vmatprep.subr.mxu0 0.0
    %3158 = vmatpush1.msra.mxu0 0.0
    %3159 = vmatprep.subr.mxu0 0.0
    %3160 = vmatpush1.msra.mxu0 0.0
    %3161 = vmatprep.subr.mxu0 0.0
    %3162 = vmatpush1.msra.mxu0 0.0
    %3163 = vmatprep.subr.mxu0 0.0
    %3164 = vmatpush1.msra.mxu0 0.0
    %3165 = vmatprep.subr.mxu0 0.0
    %3166 = vmatpush1.msra.mxu0 0.0
    %3167 = vmatprep.subr.mxu0 0.0
    %3168 = vmatpush1.msra.mxu0 0.0
    %3169 = vmatprep.subr.mxu0 0.0
    %3170 = vmatpush1.msra.mxu0 0.0
    %3171 = vmatprep.subr.mxu0 0.0
    %3172 = vmatpush1.msra.mxu0 0.0
    %3173 = vmatprep.subr.mxu0 0.0
    %3174 = vmatpush1.msra.mxu0 0.0
    %3175 = vmatprep.subr.mxu0 0.0
    %3176 = vmatpush1.msra.mxu0 0.0
    %3177 = vmatprep.subr.mxu0 0.0
    %3178 = vmatpush1.msra.mxu0 0.0
    %3179 = vmatprep.subr.mxu0 0.0
    %3180 = vmatpush1.msra.mxu0 0.0
    %3181 = vmatprep.subr.mxu0 0.0
    %3182 = vmatpush1.msra.mxu0 0.0
    %3183 = vmatprep.subr.mxu0 0.0
    %3184 = vmatpush1.msra.mxu0 0.0
    %3185 = vmatprep.subr.mxu0 0.0
    %3186 = vmatpush1.msra.mxu0 0.0
    %3187 = vmatprep.subr.mxu0 0.0
    %3188 = vmatpush1.msra.mxu0 0.0
    %3189 = vmatprep.subr.mxu0 0.0
    %3190 = vmatpush1.msra.mxu0 0.0
    %3191 = vmatprep.subr.mxu0 0.0
    %3192 = vmatpush1.msra.mxu0 0.0
    %3193 = vmatprep.subr.mxu0 0.0
    %3194 = vmatpush1.msra.mxu0 0.0
    %3195 = vmatprep.subr.mxu0 0.0
    %3196 = vmatpush1.msra.mxu0 0.0
    %3197 = vmatprep.subr.mxu0 0.0
    %3198 = vmatpush1.msra.mxu0 0.0
    %3199 = vmatprep.subr.mxu0 0.0
    %3200 = vmatpush1.msra.mxu0 0.0
    %3201 = vmatprep.subr.mxu0 0.0
    %3202 = vmatpush1.msra.mxu0 0.0
    %3203 = vmatprep.subr.mxu0 0.0
    %3204 = vmatpush1.msra.mxu0 0.0
    %3205 = vmatprep.subr.mxu0 0.0
    %3206 = vmatpush1.msra.mxu0 0.0
    %3207 = vmatprep.subr.mxu0 0.0
    %3208 = vmatpush1.msra.mxu0 0.0
    %3209 = vmatprep.subr.mxu0 0.0
    %3210 = vmatpush1.msra.mxu0 0.0
    %3211 = vmatprep.subr.mxu0 0.0
    %3212 = vmatpush1.msra.mxu0 0.0
    %3213 = vmatprep.subr.mxu0 0.0
    %3214 = vmatpush1.msra.mxu0 0.0
    %3215 = vmatprep.mubr.f32.mxu0 0.0
    %v3216 = vand.u32 %v3148, 4294901760
    %v3217 = vsub.f32 %v3148, %v3216
    %v3218 = vand.u32 %v3217, 4294901760
    %v3219 = vsub.f32 %v3217, %v3218
    %v3220 = vand.u32 %v3219, 4294901760
    %3221 = vmatmul.mubr.f32.gmra.mrb[0].mxu0 %v3220
    %v3222 = vpop.f32.mrb[0].mxu0
    %v3223 = vadd.f32 0.0, %v3222
    %v3224 = vpop.f32.mrb[0].mxu0
    %3225 = vdwg.mxu0
    %3226 = vmatprep.subr.mxu0 0.0
    %v3227 = vand.u32 %v3145, 4294901760
    %v3228 = vsub.f32 %v3145, %v3227
    %v3229 = vand.u32 %v3228, 4294901760
    %v3230 = vsub.f32 %v3228, %v3229
    %v3231 = vand.u32 %v3230, 4294901760
    %3232 = vmatpush1.msra.mxu0 %v3231
    %3233 = vmatprep.subr.mxu0 0.0
    %3234 = vmatpush1.msra.mxu0 0.0
    %3235 = vmatprep.subr.mxu0 0.0
    %3236 = vmatpush1.msra.mxu0 0.0
    %3237 = vmatprep.subr.mxu0 0.0
    %3238 = vmatpush1.msra.mxu0 0.0
    %3239 = vmatprep.subr.mxu0 0.0
    %3240 = vmatpush1.msra.mxu0 0.0
    %3241 = vmatprep.subr.mxu0 0.0
    %3242 = vmatpush1.msra.mxu0 0.0
    %3243 = vmatprep.subr.mxu0 0.0
    %3244 = vmatpush1.msra.mxu0 0.0
    %3245 = vmatprep.subr.mxu0 0.0
    %3246 = vmatpush1.msra.mxu0 0.0
    %3247 = vmatprep.subr.mxu0 0.0
    %3248 = vmatpush1.msra.mxu0 0.0
    %3249 = vmatprep.subr.mxu0 0.0
    %3250 = vmatpush1.msra.mxu0 0.0
    %3251 = vmatprep.subr.mxu0 0.0
    %3252 = vmatpush1.msra.mxu0 0.0
    %3253 = vmatprep.subr.mxu0 0.0
    %3254 = vmatpush1.msra.mxu0 0.0
    %3255 = vmatprep.subr.mxu0 0.0
    %3256 = vmatpush1.msra.mxu0 0.0
    %3257 = vmatprep.subr.mxu0 0.0
    %3258 = vmatpush1.msra.mxu0 0.0
    %3259 = vmatprep.subr.mxu0 0.0
    %3260 = vmatpush1.msra.mxu0 0.0
    %3261 = vmatprep.subr.mxu0 0.0
    %3262 = vmatpush1.msra.mxu0 0.0
    %3263 = vmatprep.subr.mxu0 0.0
    %3264 = vmatpush1.msra.mxu0 0.0
    %3265 = vmatprep.subr.mxu0 0.0
    %3266 = vmatpush1.msra.mxu0 0.0
    %3267 = vmatprep.subr.mxu0 0.0
    %3268 = vmatpush1.msra.mxu0 0.0
    %3269 = vmatprep.subr.mxu0 0.0
    %3270 = vmatpush1.msra.mxu0 0.0
    %3271 = vmatprep.subr.mxu0 0.0
    %3272 = vmatpush1.msra.mxu0 0.0
    %3273 = vmatprep.subr.mxu0 0.0
    %3274 = vmatpush1.msra.mxu0 0.0
    %3275 = vmatprep.subr.mxu0 0.0
    %3276 = vmatpush1.msra.mxu0 0.0
    %3277 = vmatprep.subr.mxu0 0.0
    %3278 = vmatpush1.msra.mxu0 0.0
    %3279 = vmatprep.subr.mxu0 0.0
    %3280 = vmatpush1.msra.mxu0 0.0
    %3281 = vmatprep.subr.mxu0 0.0
    %3282 = vmatpush1.msra.mxu0 0.0
    %3283 = vmatprep.subr.mxu0 0.0
    %3284 = vmatpush1.msra.mxu0 0.0
    %3285 = vmatprep.subr.mxu0 0.0
    %3286 = vmatpush1.msra.mxu0 0.0
    %3287 = vmatprep.subr.mxu0 0.0
    %3288 = vmatpush1.msra.mxu0 0.0
    %3289 = vmatprep.subr.mxu0 0.0
    %3290 = vmatpush1.msra.mxu0 0.0
    %3291 = vmatprep.subr.mxu0 0.0
    %3292 = vmatpush1.msra.mxu0 0.0
    %3293 = vmatprep.subr.mxu0 0.0
    %3294 = vmatpush1.msra.mxu0 0.0
    %3295 = vmatprep.mubr.f32.mxu0 0.0
    %v3296 = vand.u32 %v3148, 4294901760
    %3297 = vmatmul.mubr.f32.gmra.mrb[0].mxu0 %v3296
    %v3298 = vpop.f32.mrb[0].mxu0
    %v3299 = vadd.f32 %v3223, %v3298
    %v3300 = vpop.f32.mrb[0].mxu0
    %3301 = vdwg.mxu0
    %3302 = vmatprep.subr.mxu0 0.0
    %v3303 = vand.u32 %v3145, 4294901760
    %v3304 = vsub.f32 %v3145, %v3303
    %3305 = vmatpush1.msra.mxu0 %v3304
    %3306 = vmatprep.subr.mxu0 0.0
    %3307 = vmatpush1.msra.mxu0 0.0
    %3308 = vmatprep.subr.mxu0 0.0
    %3309 = vmatpush1.msra.mxu0 0.0
    %3310 = vmatprep.subr.mxu0 0.0
    %3311 = vmatpush1.msra.mxu0 0.0
    %3312 = vmatprep.subr.mxu0 0.0
    %3313 = vmatpush1.msra.mxu0 0.0
    %3314 = vmatprep.subr.mxu0 0.0
    %3315 = vmatpush1.msra.mxu0 0.0
    %3316 = vmatprep.subr.mxu0 0.0
    %3317 = vmatpush1.msra.mxu0 0.0
    %3318 = vmatprep.subr.mxu0 0.0
    %3319 = vmatpush1.msra.mxu0 0.0
    %3320 = vmatprep.subr.mxu0 0.0
    %3321 = vmatpush1.msra.mxu0 0.0
    %3322 = vmatprep.subr.mxu0 0.0
    %3323 = vmatpush1.msra.mxu0 0.0
    %3324 = vmatprep.subr.mxu0 0.0
    %3325 = vmatpush1.msra.mxu0 0.0
    %3326 = vmatprep.subr.mxu0 0.0
    %3327 = vmatpush1.msra.mxu0 0.0
    %3328 = vmatprep.subr.mxu0 0.0
    %3329 = vmatpush1.msra.mxu0 0.0
    %3330 = vmatprep.subr.mxu0 0.0
    %3331 = vmatpush1.msra.mxu0 0.0
    %3332 = vmatprep.subr.mxu0 0.0
    %3333 = vmatpush1.msra.mxu0 0.0
    %3334 = vmatprep.subr.mxu0 0.0
    %3335 = vmatpush1.msra.mxu0 0.0
    %3336 = vmatprep.subr.mxu0 0.0
    %3337 = vmatpush1.msra.mxu0 0.0
    %3338 = vmatprep.subr.mxu0 0.0
    %3339 = vmatpush1.msra.mxu0 0.0
    %3340 = vmatprep.subr.mxu0 0.0
    %3341 = vmatpush1.msra.mxu0 0.0
    %3342 = vmatprep.subr.mxu0 0.0
    %3343 = vmatpush1.msra.mxu0 0.0
    %3344 = vmatprep.subr.mxu0 0.0
    %3345 = vmatpush1.msra.mxu0 0.0
    %3346 = vmatprep.subr.mxu0 0.0
    %3347 = vmatpush1.msra.mxu0 0.0
    %3348 = vmatprep.subr.mxu0 0.0
    %3349 = vmatpush1.msra.mxu0 0.0
    %3350 = vmatprep.subr.mxu0 0.0
    %3351 = vmatpush1.msra.mxu0 0.0
    %3352 = vmatprep.subr.mxu0 0.0
    %3353 = vmatpush1.msra.mxu0 0.0
    %3354 = vmatprep.subr.mxu0 0.0
    %3355 = vmatpush1.msra.mxu0 0.0
    %3356 = vmatprep.subr.mxu0 0.0
    %3357 = vmatpush1.msra.mxu0 0.0
    %3358 = vmatprep.subr.mxu0 0.0
    %3359 = vmatpush1.msra.mxu0 0.0
    %3360 = vmatprep.subr.mxu0 0.0
    %3361 = vmatpush1.msra.mxu0 0.0
    %3362 = vmatprep.subr.mxu0 0.0
    %3363 = vmatpush1.msra.mxu0 0.0
    %3364 = vmatprep.subr.mxu0 0.0
    %3365 = vmatpush1.msra.mxu0 0.0
    %3366 = vmatprep.subr.mxu0 0.0
    %3367 = vmatpush1.msra.mxu0 0.0
    %3368 = vmatprep.mubr.f32.mxu0 0.0
    %v3369 = vand.u32 %v3148, 4294901760
    %v3370 = vsub.f32 %v3148, %v3369
    %3371 = vmatmul.mubr.f32.gmra.mrb[0].mxu0 %v3370
    %v3372 = vpop.f32.mrb[0].mxu0
    %v3373 = vadd.f32 %v3299, %v3372
    %v3374 = vpop.f32.mrb[0].mxu0
    %3375 = vdwg.mxu0
    %3376 = vmatprep.subr.mxu0 0.0
    %v3377 = vand.u32 %v3145, 4294901760
    %3378 = vmatpush1.msra.mxu0 %v3377
    %3379 = vmatprep.subr.mxu0 0.0
    %3380 = vmatpush1.msra.mxu0 0.0
    %3381 = vmatprep.subr.mxu0 0.0
    %3382 = vmatpush1.msra.mxu0 0.0
    %3383 = vmatprep.subr.mxu0 0.0
    %3384 = vmatpush1.msra.mxu0 0.0
    %3385 = vmatprep.subr.mxu0 0.0
    %3386 = vmatpush1.msra.mxu0 0.0
    %3387 = vmatprep.subr.mxu0 0.0
    %3388 = vmatpush1.msra.mxu0 0.0
    %3389 = vmatprep.subr.mxu0 0.0
    %3390 = vmatpush1.msra.mxu0 0.0
    %3391 = vmatprep.subr.mxu0 0.0
    %3392 = vmatpush1.msra.mxu0 0.0
    %3393 = vmatprep.subr.mxu0 0.0
    %3394 = vmatpush1.msra.mxu0 0.0
    %3395 = vmatprep.subr.mxu0 0.0
    %3396 = vmatpush1.msra.mxu0 0.0
    %3397 = vmatprep.subr.mxu0 0.0
    %3398 = vmatpush1.msra.mxu0 0.0
    %3399 = vmatprep.subr.mxu0 0.0
    %3400 = vmatpush1.msra.mxu0 0.0
    %3401 = vmatprep.subr.mxu0 0.0
    %3402 = vmatpush1.msra.mxu0 0.0
    %3403 = vmatprep.subr.mxu0 0.0
    %3404 = vmatpush1.msra.mxu0 0.0
    %3405 = vmatprep.subr.mxu0 0.0
    %3406 = vmatpush1.msra.mxu0 0.0
    %3407 = vmatprep.subr.mxu0 0.0
    %3408 = vmatpush1.msra.mxu0 0.0
    %3409 = vmatprep.subr.mxu0 0.0
    %3410 = vmatpush1.msra.mxu0 0.0
    %3411 = vmatprep.subr.mxu0 0.0
    %3412 = vmatpush1.msra.mxu0 0.0
    %3413 = vmatprep.subr.mxu0 0.0
    %3414 = vmatpush1.msra.mxu0 0.0
    %3415 = vmatprep.subr.mxu0 0.0
    %3416 = vmatpush1.msra.mxu0 0.0
    %3417 = vmatprep.subr.mxu0 0.0
    %3418 = vmatpush1.msra.mxu0 0.0
    %3419 = vmatprep.subr.mxu0 0.0
    %3420 = vmatpush1.msra.mxu0 0.0
    %3421 = vmatprep.subr.mxu0 0.0
    %3422 = vmatpush1.msra.mxu0 0.0
    %3423 = vmatprep.subr.mxu0 0.0
    %3424 = vmatpush1.msra.mxu0 0.0
    %3425 = vmatprep.subr.mxu0 0.0
    %3426 = vmatpush1.msra.mxu0 0.0
    %3427 = vmatprep.subr.mxu0 0.0
    %3428 = vmatpush1.msra.mxu0 0.0
    %3429 = vmatprep.subr.mxu0 0.0
    %3430 = vmatpush1.msra.mxu0 0.0
    %3431 = vmatprep.subr.mxu0 0.0
    %3432 = vmatpush1.msra.mxu0 0.0
    %3433 = vmatprep.subr.mxu0 0.0
    %3434 = vmatpush1.msra.mxu0 0.0
    %3435 = vmatprep.subr.mxu0 0.0
    %3436 = vmatpush1.msra.mxu0 0.0
    %3437 = vmatprep.subr.mxu0 0.0
    %3438 = vmatpush1.msra.mxu0 0.0
    %3439 = vmatprep.subr.mxu0 0.0
    %3440 = vmatpush1.msra.mxu0 0.0
    %3441 = vmatprep.mubr.f32.mxu0 0.0
    %v3442 = vand.u32 %v3148, 4294901760
    %v3443 = vsub.f32 %v3148, %v3442
    %v3444 = vand.u32 %v3443, 4294901760
    %3445 = vmatmul.mubr.f32.gmra.mrb[0].mxu0 %v3444
    %v3446 = vpop.f32.mrb[0].mxu0
    %v3447 = vadd.f32 %v3373, %v3446
    %v3448 = vpop.f32.mrb[0].mxu0
    %3449 = vdwg.mxu0
    %3450 = vmatprep.subr.mxu0 0.0
    %v3451 = vand.u32 %v3145, 4294901760
    %v3452 = vsub.f32 %v3145, %v3451
    %v3453 = vand.u32 %v3452, 4294901760
    %3454 = vmatpush1.msra.mxu0 %v3453
    %3455 = vmatprep.subr.mxu0 0.0
    %3456 = vmatpush1.msra.mxu0 0.0
    %3457 = vmatprep.subr.mxu0 0.0
    %3458 = vmatpush1.msra.mxu0 0.0
    %3459 = vmatprep.subr.mxu0 0.0
    %3460 = vmatpush1.msra.mxu0 0.0
    %3461 = vmatprep.subr.mxu0 0.0
    %3462 = vmatpush1.msra.mxu0 0.0
    %3463 = vmatprep.subr.mxu0 0.0
    %3464 = vmatpush1.msra.mxu0 0.0
    %3465 = vmatprep.subr.mxu0 0.0
    %3466 = vmatpush1.msra.mxu0 0.0
    %3467 = vmatprep.subr.mxu0 0.0
    %3468 = vmatpush1.msra.mxu0 0.0
    %3469 = vmatprep.subr.mxu0 0.0
    %3470 = vmatpush1.msra.mxu0 0.0
    %3471 = vmatprep.subr.mxu0 0.0
    %3472 = vmatpush1.msra.mxu0 0.0
    %3473 = vmatprep.subr.mxu0 0.0
    %3474 = vmatpush1.msra.mxu0 0.0
    %3475 = vmatprep.subr.mxu0 0.0
    %3476 = vmatpush1.msra.mxu0 0.0
    %3477 = vmatprep.subr.mxu0 0.0
    %3478 = vmatpush1.msra.mxu0 0.0
    %3479 = vmatprep.subr.mxu0 0.0
    %3480 = vmatpush1.msra.mxu0 0.0
    %3481 = vmatprep.subr.mxu0 0.0
    %3482 = vmatpush1.msra.mxu0 0.0
    %3483 = vmatprep.subr.mxu0 0.0
    %3484 = vmatpush1.msra.mxu0 0.0
    %3485 = vmatprep.subr.mxu0 0.0
    %3486 = vmatpush1.msra.mxu0 0.0
    %3487 = vmatprep.subr.mxu0 0.0
    %3488 = vmatpush1.msra.mxu0 0.0
    %3489 = vmatprep.subr.mxu0 0.0
    %3490 = vmatpush1.msra.mxu0 0.0
    %3491 = vmatprep.subr.mxu0 0.0
    %3492 = vmatpush1.msra.mxu0 0.0
    %3493 = vmatprep.subr.mxu0 0.0
    %3494 = vmatpush1.msra.mxu0 0.0
    %3495 = vmatprep.subr.mxu0 0.0
    %3496 = vmatpush1.msra.mxu0 0.0
    %3497 = vmatprep.subr.mxu0 0.0
    %3498 = vmatpush1.msra.mxu0 0.0
    %3499 = vmatprep.subr.mxu0 0.0
    %3500 = vmatpush1.msra.mxu0 0.0
    %3501 = vmatprep.subr.mxu0 0.0
    %3502 = vmatpush1.msra.mxu0 0.0
    %3503 = vmatprep.subr.mxu0 0.0
    %3504 = vmatpush1.msra.mxu0 0.0
    %3505 = vmatprep.subr.mxu0 0.0
    %3506 = vmatpush1.msra.mxu0 0.0
    %3507 = vmatprep.subr.mxu0 0.0
    %3508 = vmatpush1.msra.mxu0 0.0
    %3509 = vmatprep.subr.mxu0 0.0
    %3510 = vmatpush1.msra.mxu0 0.0
    %3511 = vmatprep.subr.mxu0 0.0
    %3512 = vmatpush1.msra.mxu0 0.0
    %3513 = vmatprep.subr.mxu0 0.0
    %3514 = vmatpush1.msra.mxu0 0.0
    %3515 = vmatprep.subr.mxu0 0.0
    %3516 = vmatpush1.msra.mxu0 0.0
    %3517 = vmatprep.mubr.f32.mxu0 0.0
    %v3518 = vand.u32 %v3148, 4294901760
    %3519 = vmatmul.mubr.f32.gmra.mrb[0].mxu0 %v3518
    %v3520 = vpop.f32.mrb[0].mxu0
    %v3521 = vadd.f32 %v3447, %v3520
    %v3522 = vpop.f32.mrb[0].mxu0
    %3523 = vdwg.mxu0
    %3524 = vmatprep.subr.mxu0 0.0
    %v3525 = vand.u32 %v3145, 4294901760
    %3526 = vmatpush1.msra.mxu0 %v3525
    %3527 = vmatprep.subr.mxu0 0.0
    %3528 = vmatpush1.msra.mxu0 0.0
    %3529 = vmatprep.subr.mxu0 0.0
    %3530 = vmatpush1.msra.mxu0 0.0
    %3531 = vmatprep.subr.mxu0 0.0
    %3532 = vmatpush1.msra.mxu0 0.0
    %3533 = vmatprep.subr.mxu0 0.0
    %3534 = vmatpush1.msra.mxu0 0.0
    %3535 = vmatprep.subr.mxu0 0.0
    %3536 = vmatpush1.msra.mxu0 0.0
    %3537 = vmatprep.subr.mxu0 0.0
    %3538 = vmatpush1.msra.mxu0 0.0
    %3539 = vmatprep.subr.mxu0 0.0
    %3540 = vmatpush1.msra.mxu0 0.0
    %3541 = vmatprep.subr.mxu0 0.0
    %3542 = vmatpush1.msra.mxu0 0.0
    %3543 = vmatprep.subr.mxu0 0.0
    %3544 = vmatpush1.msra.mxu0 0.0
    %3545 = vmatprep.subr.mxu0 0.0
    %3546 = vmatpush1.msra.mxu0 0.0
    %3547 = vmatprep.subr.mxu0 0.0
    %3548 = vmatpush1.msra.mxu0 0.0
    %3549 = vmatprep.subr.mxu0 0.0
    %3550 = vmatpush1.msra.mxu0 0.0
    %3551 = vmatprep.subr.mxu0 0.0
    %3552 = vmatpush1.msra.mxu0 0.0
    %3553 = vmatprep.subr.mxu0 0.0
    %3554 = vmatpush1.msra.mxu0 0.0
    %3555 = vmatprep.subr.mxu0 0.0
    %3556 = vmatpush1.msra.mxu0 0.0
    %3557 = vmatprep.subr.mxu0 0.0
    %3558 = vmatpush1.msra.mxu0 0.0
    %3559 = vmatprep.subr.mxu0 0.0
    %3560 = vmatpush1.msra.mxu0 0.0
    %3561 = vmatprep.subr.mxu0 0.0
    %3562 = vmatpush1.msra.mxu0 0.0
    %3563 = vmatprep.subr.mxu0 0.0
    %3564 = vmatpush1.msra.mxu0 0.0
    %3565 = vmatprep.subr.mxu0 0.0
    %3566 = vmatpush1.msra.mxu0 0.0
    %3567 = vmatprep.subr.mxu0 0.0
    %3568 = vmatpush1.msra.mxu0 0.0
    %3569 = vmatprep.subr.mxu0 0.0
    %3570 = vmatpush1.msra.mxu0 0.0
    %3571 = vmatprep.subr.mxu0 0.0
    %3572 = vmatpush1.msra.mxu0 0.0
    %3573 = vmatprep.subr.mxu0 0.0
    %3574 = vmatpush1.msra.mxu0 0.0
    %3575 = vmatprep.subr.mxu0 0.0
    %3576 = vmatpush1.msra.mxu0 0.0
    %3577 = vmatprep.subr.mxu0 0.0
    %3578 = vmatpush1.msra.mxu0 0.0
    %3579 = vmatprep.subr.mxu0 0.0
    %3580 = vmatpush1.msra.mxu0 0.0
    %3581 = vmatprep.subr.mxu0 0.0
    %3582 = vmatpush1.msra.mxu0 0.0
    %3583 = vmatprep.subr.mxu0 0.0
    %3584 = vmatpush1.msra.mxu0 0.0
    %3585 = vmatprep.subr.mxu0 0.0
    %3586 = vmatpush1.msra.mxu0 0.0
    %3587 = vmatprep.subr.mxu0 0.0
    %3588 = vmatpush1.msra.mxu0 0.0
    %3589 = vmatprep.mubr.f32.mxu0 0.0
    %v3590 = vand.u32 %v3148, 4294901760
    %3591 = vmatmul.mubr.f32.gmra.mrb[0].mxu0 %v3590
    %v3592 = vpop.f32.mrb[0].mxu0
    %v3593 = vadd.f32 %v3521, %v3592
    %v3594 = vpop.f32.mrb[0].mxu0
    %3595 = vdwg.mxu0
    %3597 = vrot.lane.b32.xlu0 %v3593, 8
    %v3598 = vpop.permute.xlu0 %3597
    %vm3600 = vcmask 130112
    %3601 = vst.msk [vmem:[#allocation2] sm:$0xff] %vm3600, %v3598
    %3602 = vrot.lane.b32.xlu0 %v655, 112
    %v3603 = vpop.permute.xlu0 %3602
    %3604 = vrot.lane.b32.xlu0 %v1200, 112
    %v3605 = vpop.permute.xlu0 %3604
    %v3606 = vsel %vm1761, %v3603, 0
    %v3608 = vsel %vm1761, %v3605, 0
    %3610 = vmatprep.subr.mxu0 0.0
    %v3611 = vand.u32 %v3608, 4294901760
    %3612 = vmatpush1.xpose.msra.mxu0 %v3611
    %3613 = vmatprep.subr.mxu0 0.0
    %3614 = vmatpush1.xpose.msra.mxu0 0.0
    %3615 = vmatprep.subr.mxu0 0.0
    %3616 = vmatpush1.xpose.msra.mxu0 0.0
    %3617 = vmatprep.subr.mxu0 0.0
    %3618 = vmatpush1.xpose.msra.mxu0 0.0
    %3619 = vmatprep.subr.mxu0 0.0
    %3620 = vmatpush1.xpose.msra.mxu0 0.0
    %3621 = vmatprep.subr.mxu0 0.0
    %3622 = vmatpush1.xpose.msra.mxu0 0.0
    %3623 = vmatprep.subr.mxu0 0.0
    %3624 = vmatpush1.xpose.msra.mxu0 0.0
    %3625 = vmatprep.subr.mxu0 0.0
    %3626 = vmatpush1.xpose.msra.mxu0 0.0
    %3627 = vmatprep.subr.mxu0 0.0
    %3628 = vmatpush1.xpose.msra.mxu0 0.0
    %3629 = vmatprep.subr.mxu0 0.0
    %3630 = vmatpush1.xpose.msra.mxu0 0.0
    %3631 = vmatprep.subr.mxu0 0.0
    %3632 = vmatpush1.xpose.msra.mxu0 0.0
    %3633 = vmatprep.subr.mxu0 0.0
    %3634 = vmatpush1.xpose.msra.mxu0 0.0
    %3635 = vmatprep.subr.mxu0 0.0
    %3636 = vmatpush1.xpose.msra.mxu0 0.0
    %3637 = vmatprep.subr.mxu0 0.0
    %3638 = vmatpush1.xpose.msra.mxu0 0.0
    %3639 = vmatprep.subr.mxu0 0.0
    %3640 = vmatpush1.xpose.msra.mxu0 0.0
    %3641 = vmatprep.subr.mxu0 0.0
    %3642 = vmatpush1.xpose.msra.mxu0 0.0
    %3643 = vmatprep.subr.mxu0 0.0
    %3644 = vmatpush1.xpose.msra.mxu0 0.0
    %3645 = vmatprep.subr.mxu0 0.0
    %3646 = vmatpush1.xpose.msra.mxu0 0.0
    %3647 = vmatprep.subr.mxu0 0.0
    %3648 = vmatpush1.xpose.msra.mxu0 0.0
    %3649 = vmatprep.subr.mxu0 0.0
    %3650 = vmatpush1.xpose.msra.mxu0 0.0
    %3651 = vmatprep.subr.mxu0 0.0
    %3652 = vmatpush1.xpose.msra.mxu0 0.0
    %3653 = vmatprep.subr.mxu0 0.0
    %3654 = vmatpush1.xpose.msra.mxu0 0.0
    %3655 = vmatprep.subr.mxu0 0.0
    %3656 = vmatpush1.xpose.msra.mxu0 0.0
    %3657 = vmatprep.subr.mxu0 0.0
    %3658 = vmatpush1.xpose.msra.mxu0 0.0
    %3659 = vmatprep.subr.mxu0 0.0
    %3660 = vmatpush1.xpose.msra.mxu0 0.0
    %3661 = vmatprep.subr.mxu0 0.0
    %3662 = vmatpush1.xpose.msra.mxu0 0.0
    %3663 = vmatprep.subr.mxu0 0.0
    %3664 = vmatpush1.xpose.msra.mxu0 0.0
    %3665 = vmatprep.subr.mxu0 0.0
    %3666 = vmatpush1.xpose.msra.mxu0 0.0
    %3667 = vmatprep.subr.mxu0 0.0
    %3668 = vmatpush1.xpose.msra.mxu0 0.0
    %3669 = vmatprep.subr.mxu0 0.0
    %3670 = vmatpush1.xpose.msra.mxu0 0.0
    %3671 = vmatprep.subr.mxu0 0.0
    %3672 = vmatpush1.xpose.msra.mxu0 0.0
    %3673 = vmatprep.subr.mxu0 0.0
    %3674 = vmatpush1.xpose.msra.mxu0 0.0
    %3675 = vmatprep.mubr.f32.mxu0 0.0
    %v3676 = vand.u32 %v3606, 4294901760
    %v3677 = vsub.f32 %v3606, %v3676
    %v3678 = vand.u32 %v3677, 4294901760
    %v3679 = vsub.f32 %v3677, %v3678
    %v3680 = vand.u32 %v3679, 4294901760
    %3681 = vmatmul.mubr.f32.gmra.mrb[0].mxu0 %v3680
    %v3682 = vpop.f32.mrb[0].mxu0
    %v3683 = vadd.f32 0.0, %v3682
    %v3684 = vpop.f32.mrb[0].mxu0
    %3685 = vdwg.mxu0
    %3686 = vmatprep.subr.mxu0 0.0
    %v3687 = vand.u32 %v3608, 4294901760
    %v3688 = vsub.f32 %v3608, %v3687
    %v3689 = vand.u32 %v3688, 4294901760
    %v3690 = vsub.f32 %v3688, %v3689
    %v3691 = vand.u32 %v3690, 4294901760
    %3692 = vmatpush1.xpose.msra.mxu0 %v3691
    %3693 = vmatprep.subr.mxu0 0.0
    %3694 = vmatpush1.xpose.msra.mxu0 0.0
    %3695 = vmatprep.subr.mxu0 0.0
    %3696 = vmatpush1.xpose.msra.mxu0 0.0
    %3697 = vmatprep.subr.mxu0 0.0
    %3698 = vmatpush1.xpose.msra.mxu0 0.0
    %3699 = vmatprep.subr.mxu0 0.0
    %3700 = vmatpush1.xpose.msra.mxu0 0.0
    %3701 = vmatprep.subr.mxu0 0.0
    %3702 = vmatpush1.xpose.msra.mxu0 0.0
    %3703 = vmatprep.subr.mxu0 0.0
    %3704 = vmatpush1.xpose.msra.mxu0 0.0
    %3705 = vmatprep.subr.mxu0 0.0
    %3706 = vmatpush1.xpose.msra.mxu0 0.0
    %3707 = vmatprep.subr.mxu0 0.0
    %3708 = vmatpush1.xpose.msra.mxu0 0.0
    %3709 = vmatprep.subr.mxu0 0.0
    %3710 = vmatpush1.xpose.msra.mxu0 0.0
    %3711 = vmatprep.subr.mxu0 0.0
    %3712 = vmatpush1.xpose.msra.mxu0 0.0
    %3713 = vmatprep.subr.mxu0 0.0
    %3714 = vmatpush1.xpose.msra.mxu0 0.0
    %3715 = vmatprep.subr.mxu0 0.0
    %3716 = vmatpush1.xpose.msra.mxu0 0.0
    %3717 = vmatprep.subr.mxu0 0.0
    %3718 = vmatpush1.xpose.msra.mxu0 0.0
    %3719 = vmatprep.subr.mxu0 0.0
    %3720 = vmatpush1.xpose.msra.mxu0 0.0
    %3721 = vmatprep.subr.mxu0 0.0
    %3722 = vmatpush1.xpose.msra.mxu0 0.0
    %3723 = vmatprep.subr.mxu0 0.0
    %3724 = vmatpush1.xpose.msra.mxu0 0.0
    %3725 = vmatprep.subr.mxu0 0.0
    %3726 = vmatpush1.xpose.msra.mxu0 0.0
    %3727 = vmatprep.subr.mxu0 0.0
    %3728 = vmatpush1.xpose.msra.mxu0 0.0
    %3729 = vmatprep.subr.mxu0 0.0
    %3730 = vmatpush1.xpose.msra.mxu0 0.0
    %3731 = vmatprep.subr.mxu0 0.0
    %3732 = vmatpush1.xpose.msra.mxu0 0.0
    %3733 = vmatprep.subr.mxu0 0.0
    %3734 = vmatpush1.xpose.msra.mxu0 0.0
    %3735 = vmatprep.subr.mxu0 0.0
    %3736 = vmatpush1.xpose.msra.mxu0 0.0
    %3737 = vmatprep.subr.mxu0 0.0
    %3738 = vmatpush1.xpose.msra.mxu0 0.0
    %3739 = vmatprep.subr.mxu0 0.0
    %3740 = vmatpush1.xpose.msra.mxu0 0.0
    %3741 = vmatprep.subr.mxu0 0.0
    %3742 = vmatpush1.xpose.msra.mxu0 0.0
    %3743 = vmatprep.subr.mxu0 0.0
    %3744 = vmatpush1.xpose.msra.mxu0 0.0
    %3745 = vmatprep.subr.mxu0 0.0
    %3746 = vmatpush1.xpose.msra.mxu0 0.0
    %3747 = vmatprep.subr.mxu0 0.0
    %3748 = vmatpush1.xpose.msra.mxu0 0.0
    %3749 = vmatprep.subr.mxu0 0.0
    %3750 = vmatpush1.xpose.msra.mxu0 0.0
    %3751 = vmatprep.subr.mxu0 0.0
    %3752 = vmatpush1.xpose.msra.mxu0 0.0
    %3753 = vmatprep.subr.mxu0 0.0
    %3754 = vmatpush1.xpose.msra.mxu0 0.0
    %3755 = vmatprep.mubr.f32.mxu0 0.0
    %v3756 = vand.u32 %v3606, 4294901760
    %3757 = vmatmul.mubr.f32.gmra.mrb[0].mxu0 %v3756
    %v3758 = vpop.f32.mrb[0].mxu0
    %v3759 = vadd.f32 %v3683, %v3758
    %v3760 = vpop.f32.mrb[0].mxu0
    %3761 = vdwg.mxu0
    %3762 = vmatprep.subr.mxu0 0.0
    %v3763 = vand.u32 %v3608, 4294901760
    %v3764 = vsub.f32 %v3608, %v3763
    %3765 = vmatpush1.xpose.msra.mxu0 %v3764
    %3766 = vmatprep.subr.mxu0 0.0
    %3767 = vmatpush1.xpose.msra.mxu0 0.0
    %3768 = vmatprep.subr.mxu0 0.0
    %3769 = vmatpush1.xpose.msra.mxu0 0.0
    %3770 = vmatprep.subr.mxu0 0.0
    %3771 = vmatpush1.xpose.msra.mxu0 0.0
    %3772 = vmatprep.subr.mxu0 0.0
    %3773 = vmatpush1.xpose.msra.mxu0 0.0
    %3774 = vmatprep.subr.mxu0 0.0
    %3775 = vmatpush1.xpose.msra.mxu0 0.0
    %3776 = vmatprep.subr.mxu0 0.0
    %3777 = vmatpush1.xpose.msra.mxu0 0.0
    %3778 = vmatprep.subr.mxu0 0.0
    %3779 = vmatpush1.xpose.msra.mxu0 0.0
    %3780 = vmatprep.subr.mxu0 0.0
    %3781 = vmatpush1.xpose.msra.mxu0 0.0
    %3782 = vmatprep.subr.mxu0 0.0
    %3783 = vmatpush1.xpose.msra.mxu0 0.0
    %3784 = vmatprep.subr.mxu0 0.0
    %3785 = vmatpush1.xpose.msra.mxu0 0.0
    %3786 = vmatprep.subr.mxu0 0.0
    %3787 = vmatpush1.xpose.msra.mxu0 0.0
    %3788 = vmatprep.subr.mxu0 0.0
    %3789 = vmatpush1.xpose.msra.mxu0 0.0
    %3790 = vmatprep.subr.mxu0 0.0
    %3791 = vmatpush1.xpose.msra.mxu0 0.0
    %3792 = vmatprep.subr.mxu0 0.0
    %3793 = vmatpush1.xpose.msra.mxu0 0.0
    %3794 = vmatprep.subr.mxu0 0.0
    %3795 = vmatpush1.xpose.msra.mxu0 0.0
    %3796 = vmatprep.subr.mxu0 0.0
    %3797 = vmatpush1.xpose.msra.mxu0 0.0
    %3798 = vmatprep.subr.mxu0 0.0
    %3799 = vmatpush1.xpose.msra.mxu0 0.0
    %3800 = vmatprep.subr.mxu0 0.0
    %3801 = vmatpush1.xpose.msra.mxu0 0.0
    %3802 = vmatprep.subr.mxu0 0.0
    %3803 = vmatpush1.xpose.msra.mxu0 0.0
    %3804 = vmatprep.subr.mxu0 0.0
    %3805 = vmatpush1.xpose.msra.mxu0 0.0
    %3806 = vmatprep.subr.mxu0 0.0
    %3807 = vmatpush1.xpose.msra.mxu0 0.0
    %3808 = vmatprep.subr.mxu0 0.0
    %3809 = vmatpush1.xpose.msra.mxu0 0.0
    %3810 = vmatprep.subr.mxu0 0.0
    %3811 = vmatpush1.xpose.msra.mxu0 0.0
    %3812 = vmatprep.subr.mxu0 0.0
    %3813 = vmatpush1.xpose.msra.mxu0 0.0
    %3814 = vmatprep.subr.mxu0 0.0
    %3815 = vmatpush1.xpose.msra.mxu0 0.0
    %3816 = vmatprep.subr.mxu0 0.0
    %3817 = vmatpush1.xpose.msra.mxu0 0.0
    %3818 = vmatprep.subr.mxu0 0.0
    %3819 = vmatpush1.xpose.msra.mxu0 0.0
    %3820 = vmatprep.subr.mxu0 0.0
    %3821 = vmatpush1.xpose.msra.mxu0 0.0
    %3822 = vmatprep.subr.mxu0 0.0
    %3823 = vmatpush1.xpose.msra.mxu0 0.0
    %3824 = vmatprep.subr.mxu0 0.0
    %3825 = vmatpush1.xpose.msra.mxu0 0.0
    %3826 = vmatprep.subr.mxu0 0.0
    %3827 = vmatpush1.xpose.msra.mxu0 0.0
    %3828 = vmatprep.mubr.f32.mxu0 0.0
    %v3829 = vand.u32 %v3606, 4294901760
    %v3830 = vsub.f32 %v3606, %v3829
    %3831 = vmatmul.mubr.f32.gmra.mrb[0].mxu0 %v3830
    %v3832 = vpop.f32.mrb[0].mxu0
    %v3833 = vadd.f32 %v3759, %v3832
    %v3834 = vpop.f32.mrb[0].mxu0
    %3835 = vdwg.mxu0
    %3836 = vmatprep.subr.mxu0 0.0
    %v3837 = vand.u32 %v3608, 4294901760
    %3838 = vmatpush1.xpose.msra.mxu0 %v3837
    %3839 = vmatprep.subr.mxu0 0.0
    %3840 = vmatpush1.xpose.msra.mxu0 0.0
    %3841 = vmatprep.subr.mxu0 0.0
    %3842 = vmatpush1.xpose.msra.mxu0 0.0
    %3843 = vmatprep.subr.mxu0 0.0
    %3844 = vmatpush1.xpose.msra.mxu0 0.0
    %3845 = vmatprep.subr.mxu0 0.0
    %3846 = vmatpush1.xpose.msra.mxu0 0.0
    %3847 = vmatprep.subr.mxu0 0.0
    %3848 = vmatpush1.xpose.msra.mxu0 0.0
    %3849 = vmatprep.subr.mxu0 0.0
    %3850 = vmatpush1.xpose.msra.mxu0 0.0
    %3851 = vmatprep.subr.mxu0 0.0
    %3852 = vmatpush1.xpose.msra.mxu0 0.0
    %3853 = vmatprep.subr.mxu0 0.0
    %3854 = vmatpush1.xpose.msra.mxu0 0.0
    %3855 = vmatprep.subr.mxu0 0.0
    %3856 = vmatpush1.xpose.msra.mxu0 0.0
    %3857 = vmatprep.subr.mxu0 0.0
    %3858 = vmatpush1.xpose.msra.mxu0 0.0
    %3859 = vmatprep.subr.mxu0 0.0
    %3860 = vmatpush1.xpose.msra.mxu0 0.0
    %3861 = vmatprep.subr.mxu0 0.0
    %3862 = vmatpush1.xpose.msra.mxu0 0.0
    %3863 = vmatprep.subr.mxu0 0.0
    %3864 = vmatpush1.xpose.msra.mxu0 0.0
    %3865 = vmatprep.subr.mxu0 0.0
    %3866 = vmatpush1.xpose.msra.mxu0 0.0
    %3867 = vmatprep.subr.mxu0 0.0
    %3868 = vmatpush1.xpose.msra.mxu0 0.0
    %3869 = vmatprep.subr.mxu0 0.0
    %3870 = vmatpush1.xpose.msra.mxu0 0.0
    %3871 = vmatprep.subr.mxu0 0.0
    %3872 = vmatpush1.xpose.msra.mxu0 0.0
    %3873 = vmatprep.subr.mxu0 0.0
    %3874 = vmatpush1.xpose.msra.mxu0 0.0
    %3875 = vmatprep.subr.mxu0 0.0
    %3876 = vmatpush1.xpose.msra.mxu0 0.0
    %3877 = vmatprep.subr.mxu0 0.0
    %3878 = vmatpush1.xpose.msra.mxu0 0.0
    %3879 = vmatprep.subr.mxu0 0.0
    %3880 = vmatpush1.xpose.msra.mxu0 0.0
    %3881 = vmatprep.subr.mxu0 0.0
    %3882 = vmatpush1.xpose.msra.mxu0 0.0
    %3883 = vmatprep.subr.mxu0 0.0
    %3884 = vmatpush1.xpose.msra.mxu0 0.0
    %3885 = vmatprep.subr.mxu0 0.0
    %3886 = vmatpush1.xpose.msra.mxu0 0.0
    %3887 = vmatprep.subr.mxu0 0.0
    %3888 = vmatpush1.xpose.msra.mxu0 0.0
    %3889 = vmatprep.subr.mxu0 0.0
    %3890 = vmatpush1.xpose.msra.mxu0 0.0
    %3891 = vmatprep.subr.mxu0 0.0
    %3892 = vmatpush1.xpose.msra.mxu0 0.0
    %3893 = vmatprep.subr.mxu0 0.0
    %3894 = vmatpush1.xpose.msra.mxu0 0.0
    %3895 = vmatprep.subr.mxu0 0.0
    %3896 = vmatpush1.xpose.msra.mxu0 0.0
    %3897 = vmatprep.subr.mxu0 0.0
    %3898 = vmatpush1.xpose.msra.mxu0 0.0
    %3899 = vmatprep.subr.mxu0 0.0
    %3900 = vmatpush1.xpose.msra.mxu0 0.0
    %3901 = vmatprep.mubr.f32.mxu0 0.0
    %v3902 = vand.u32 %v3606, 4294901760
    %v3903 = vsub.f32 %v3606, %v3902
    %v3904 = vand.u32 %v3903, 4294901760
    %3905 = vmatmul.mubr.f32.gmra.mrb[0].mxu0 %v3904
    %v3906 = vpop.f32.mrb[0].mxu0
    %v3907 = vadd.f32 %v3833, %v3906
    %v3908 = vpop.f32.mrb[0].mxu0
    %3909 = vdwg.mxu0
    %3910 = vmatprep.subr.mxu0 0.0
    %v3911 = vand.u32 %v3608, 4294901760
    %v3912 = vsub.f32 %v3608, %v3911
    %v3913 = vand.u32 %v3912, 4294901760
    %3914 = vmatpush1.xpose.msra.mxu0 %v3913
    %3915 = vmatprep.subr.mxu0 0.0
    %3916 = vmatpush1.xpose.msra.mxu0 0.0
    %3917 = vmatprep.subr.mxu0 0.0
    %3918 = vmatpush1.xpose.msra.mxu0 0.0
    %3919 = vmatprep.subr.mxu0 0.0
    %3920 = vmatpush1.xpose.msra.mxu0 0.0
    %3921 = vmatprep.subr.mxu0 0.0
    %3922 = vmatpush1.xpose.msra.mxu0 0.0
    %3923 = vmatprep.subr.mxu0 0.0
    %3924 = vmatpush1.xpose.msra.mxu0 0.0
    %3925 = vmatprep.subr.mxu0 0.0
    %3926 = vmatpush1.xpose.msra.mxu0 0.0
    %3927 = vmatprep.subr.mxu0 0.0
    %3928 = vmatpush1.xpose.msra.mxu0 0.0
    %3929 = vmatprep.subr.mxu0 0.0
    %3930 = vmatpush1.xpose.msra.mxu0 0.0
    %3931 = vmatprep.subr.mxu0 0.0
    %3932 = vmatpush1.xpose.msra.mxu0 0.0
    %3933 = vmatprep.subr.mxu0 0.0
    %3934 = vmatpush1.xpose.msra.mxu0 0.0
    %3935 = vmatprep.subr.mxu0 0.0
    %3936 = vmatpush1.xpose.msra.mxu0 0.0
    %3937 = vmatprep.subr.mxu0 0.0
    %3938 = vmatpush1.xpose.msra.mxu0 0.0
    %3939 = vmatprep.subr.mxu0 0.0
    %3940 = vmatpush1.xpose.msra.mxu0 0.0
    %3941 = vmatprep.subr.mxu0 0.0
    %3942 = vmatpush1.xpose.msra.mxu0 0.0
    %3943 = vmatprep.subr.mxu0 0.0
    %3944 = vmatpush1.xpose.msra.mxu0 0.0
    %3945 = vmatprep.subr.mxu0 0.0
    %3946 = vmatpush1.xpose.msra.mxu0 0.0
    %3947 = vmatprep.subr.mxu0 0.0
    %3948 = vmatpush1.xpose.msra.mxu0 0.0
    %3949 = vmatprep.subr.mxu0 0.0
    %3950 = vmatpush1.xpose.msra.mxu0 0.0
    %3951 = vmatprep.subr.mxu0 0.0
    %3952 = vmatpush1.xpose.msra.mxu0 0.0
    %3953 = vmatprep.subr.mxu0 0.0
    %3954 = vmatpush1.xpose.msra.mxu0 0.0
    %3955 = vmatprep.subr.mxu0 0.0
    %3956 = vmatpush1.xpose.msra.mxu0 0.0
    %3957 = vmatprep.subr.mxu0 0.0
    %3958 = vmatpush1.xpose.msra.mxu0 0.0
    %3959 = vmatprep.subr.mxu0 0.0
    %3960 = vmatpush1.xpose.msra.mxu0 0.0
    %3961 = vmatprep.subr.mxu0 0.0
    %3962 = vmatpush1.xpose.msra.mxu0 0.0
    %3963 = vmatprep.subr.mxu0 0.0
    %3964 = vmatpush1.xpose.msra.mxu0 0.0
    %3965 = vmatprep.subr.mxu0 0.0
    %3966 = vmatpush1.xpose.msra.mxu0 0.0
    %3967 = vmatprep.subr.mxu0 0.0
    %3968 = vmatpush1.xpose.msra.mxu0 0.0
    %3969 = vmatprep.subr.mxu0 0.0
    %3970 = vmatpush1.xpose.msra.mxu0 0.0
    %3971 = vmatprep.subr.mxu0 0.0
    %3972 = vmatpush1.xpose.msra.mxu0 0.0
    %3973 = vmatprep.subr.mxu0 0.0
    %3974 = vmatpush1.xpose.msra.mxu0 0.0
    %3975 = vmatprep.subr.mxu0 0.0
    %3976 = vmatpush1.xpose.msra.mxu0 0.0
    %3977 = vmatprep.mubr.f32.mxu0 0.0
    %v3978 = vand.u32 %v3606, 4294901760
    %3979 = vmatmul.mubr.f32.gmra.mrb[0].mxu0 %v3978
    %v3980 = vpop.f32.mrb[0].mxu0
    %v3981 = vadd.f32 %v3907, %v3980
    %v3982 = vpop.f32.mrb[0].mxu0
    %3983 = vdwg.mxu0
    %3984 = vmatprep.subr.mxu0 0.0
    %v3985 = vand.u32 %v3608, 4294901760
    %3986 = vmatpush1.xpose.msra.mxu0 %v3985
    %3987 = vmatprep.subr.mxu0 0.0
    %3988 = vmatpush1.xpose.msra.mxu0 0.0
    %3989 = vmatprep.subr.mxu0 0.0
    %3990 = vmatpush1.xpose.msra.mxu0 0.0
    %3991 = vmatprep.subr.mxu0 0.0
    %3992 = vmatpush1.xpose.msra.mxu0 0.0
    %3993 = vmatprep.subr.mxu0 0.0
    %3994 = vmatpush1.xpose.msra.mxu0 0.0
    %3995 = vmatprep.subr.mxu0 0.0
    %3996 = vmatpush1.xpose.msra.mxu0 0.0
    %3997 = vmatprep.subr.mxu0 0.0
    %3998 = vmatpush1.xpose.msra.mxu0 0.0
    %3999 = vmatprep.subr.mxu0 0.0
    %4000 = vmatpush1.xpose.msra.mxu0 0.0
    %4001 = vmatprep.subr.mxu0 0.0
    %4002 = vmatpush1.xpose.msra.mxu0 0.0
    %4003 = vmatprep.subr.mxu0 0.0
    %4004 = vmatpush1.xpose.msra.mxu0 0.0
    %4005 = vmatprep.subr.mxu0 0.0
    %4006 = vmatpush1.xpose.msra.mxu0 0.0
    %4007 = vmatprep.subr.mxu0 0.0
    %4008 = vmatpush1.xpose.msra.mxu0 0.0
    %4009 = vmatprep.subr.mxu0 0.0
    %4010 = vmatpush1.xpose.msra.mxu0 0.0
    %4011 = vmatprep.subr.mxu0 0.0
    %4012 = vmatpush1.xpose.msra.mxu0 0.0
    %4013 = vmatprep.subr.mxu0 0.0
    %4014 = vmatpush1.xpose.msra.mxu0 0.0
    %4015 = vmatprep.subr.mxu0 0.0
    %4016 = vmatpush1.xpose.msra.mxu0 0.0
    %4017 = vmatprep.subr.mxu0 0.0
    %4018 = vmatpush1.xpose.msra.mxu0 0.0
    %4019 = vmatprep.subr.mxu0 0.0
    %4020 = vmatpush1.xpose.msra.mxu0 0.0
    %4021 = vmatprep.subr.mxu0 0.0
    %4022 = vmatpush1.xpose.msra.mxu0 0.0
    %4023 = vmatprep.subr.mxu0 0.0
    %4024 = vmatpush1.xpose.msra.mxu0 0.0
    %4025 = vmatprep.subr.mxu0 0.0
    %4026 = vmatpush1.xpose.msra.mxu0 0.0
    %4027 = vmatprep.subr.mxu0 0.0
    %4028 = vmatpush1.xpose.msra.mxu0 0.0
    %4029 = vmatprep.subr.mxu0 0.0
    %4030 = vmatpush1.xpose.msra.mxu0 0.0
    %4031 = vmatprep.subr.mxu0 0.0
    %4032 = vmatpush1.xpose.msra.mxu0 0.0
    %4033 = vmatprep.subr.mxu0 0.0
    %4034 = vmatpush1.xpose.msra.mxu0 0.0
    %4035 = vmatprep.subr.mxu0 0.0
    %4036 = vmatpush1.xpose.msra.mxu0 0.0
    %4037 = vmatprep.subr.mxu0 0.0
    %4038 = vmatpush1.xpose.msra.mxu0 0.0
    %4039 = vmatprep.subr.mxu0 0.0
    %4040 = vmatpush1.xpose.msra.mxu0 0.0
    %4041 = vmatprep.subr.mxu0 0.0
    %4042 = vmatpush1.xpose.msra.mxu0 0.0
    %4043 = vmatprep.subr.mxu0 0.0
    %4044 = vmatpush1.xpose.msra.mxu0 0.0
    %4045 = vmatprep.subr.mxu0 0.0
    %4046 = vmatpush1.xpose.msra.mxu0 0.0
    %4047 = vmatprep.subr.mxu0 0.0
    %4048 = vmatpush1.xpose.msra.mxu0 0.0
    %4049 = vmatprep.mubr.f32.mxu0 0.0
    %v4050 = vand.u32 %v3606, 4294901760
    %4051 = vmatmul.mubr.f32.gmra.mrb[0].mxu0 %v4050
    %v4052 = vpop.f32.mrb[0].mxu0
    %v4053 = vadd.f32 %v3981, %v4052
    %v4054 = vpop.f32.mrb[0].mxu0
    %4055 = vdwg.mxu0
    %v4056 = vsel %vm1761, %v4053, -inf
    %4057 = vmax.xlane.f32.xlu0 %v4056
    %v4058 = vpop.xlane.xlu0 %4057
    %v4059 = vsub.f32 %v4053, %v4058
    %v4060 = vmul.f32 %v4059, 1.442695
    %v4061 = vpow.pop %v4060
    %v4062 = vsel %vm1761, %v4061, 0.0
    %4063 = vadd.xlane.f32.xlu0 %v4062
    %v4064 = vpop.xlane.xlu0 %4063
    %v4065 = vrcp.pop %v4064
    %v4066 = vmul.f32 %v4061, %v4065
    %s4067 = scalar_lea.vmem [#allocation12], 16
    %4068 = vst.msk [vmem:[%s4067] sm:$0xff] %vm1761, %v4066
    %4069 = vrot.lane.b32.xlu0 %v1752, 112
    %v4070 = vpop.permute.xlu0 %4069
    %v4073 = vsel %vm1761, %v4066, 0
    %4075 = vmatprep.subr.mxu0 0.0
    %v4076 = vand.u32 %v4070, 4294901760
    %4077 = vmatpush1.msra.mxu0 %v4076
    %4078 = vmatprep.subr.mxu0 0.0
    %4079 = vmatpush1.msra.mxu0 0.0
    %4080 = vmatprep.subr.mxu0 0.0
    %4081 = vmatpush1.msra.mxu0 0.0
    %4082 = vmatprep.subr.mxu0 0.0
    %4083 = vmatpush1.msra.mxu0 0.0
    %4084 = vmatprep.subr.mxu0 0.0
    %4085 = vmatpush1.msra.mxu0 0.0
    %4086 = vmatprep.subr.mxu0 0.0
    %4087 = vmatpush1.msra.mxu0 0.0
    %4088 = vmatprep.subr.mxu0 0.0
    %4089 = vmatpush1.msra.mxu0 0.0
    %4090 = vmatprep.subr.mxu0 0.0
    %4091 = vmatpush1.msra.mxu0 0.0
    %4092 = vmatprep.subr.mxu0 0.0
    %4093 = vmatpush1.msra.mxu0 0.0
    %4094 = vmatprep.subr.mxu0 0.0
    %4095 = vmatpush1.msra.mxu0 0.0
    %4096 = vmatprep.subr.mxu0 0.0
    %4097 = vmatpush1.msra.mxu0 0.0
    %4098 = vmatprep.subr.mxu0 0.0
    %4099 = vmatpush1.msra.mxu0 0.0
    %4100 = vmatprep.subr.mxu0 0.0
    %4101 = vmatpush1.msra.mxu0 0.0
    %4102 = vmatprep.subr.mxu0 0.0
    %4103 = vmatpush1.msra.mxu0 0.0
    %4104 = vmatprep.subr.mxu0 0.0
    %4105 = vmatpush1.msra.mxu0 0.0
    %4106 = vmatprep.subr.mxu0 0.0
    %4107 = vmatpush1.msra.mxu0 0.0
    %4108 = vmatprep.subr.mxu0 0.0
    %4109 = vmatpush1.msra.mxu0 0.0
    %4110 = vmatprep.subr.mxu0 0.0
    %4111 = vmatpush1.msra.mxu0 0.0
    %4112 = vmatprep.subr.mxu0 0.0
    %4113 = vmatpush1.msra.mxu0 0.0
    %4114 = vmatprep.subr.mxu0 0.0
    %4115 = vmatpush1.msra.mxu0 0.0
    %4116 = vmatprep.subr.mxu0 0.0
    %4117 = vmatpush1.msra.mxu0 0.0
    %4118 = vmatprep.subr.mxu0 0.0
    %4119 = vmatpush1.msra.mxu0 0.0
    %4120 = vmatprep.subr.mxu0 0.0
    %4121 = vmatpush1.msra.mxu0 0.0
    %4122 = vmatprep.subr.mxu0 0.0
    %4123 = vmatpush1.msra.mxu0 0.0
    %4124 = vmatprep.subr.mxu0 0.0
    %4125 = vmatpush1.msra.mxu0 0.0
    %4126 = vmatprep.subr.mxu0 0.0
    %4127 = vmatpush1.msra.mxu0 0.0
    %4128 = vmatprep.subr.mxu0 0.0
    %4129 = vmatpush1.msra.mxu0 0.0
    %4130 = vmatprep.subr.mxu0 0.0
    %4131 = vmatpush1.msra.mxu0 0.0
    %4132 = vmatprep.subr.mxu0 0.0
    %4133 = vmatpush1.msra.mxu0 0.0
    %4134 = vmatprep.subr.mxu0 0.0
    %4135 = vmatpush1.msra.mxu0 0.0
    %4136 = vmatprep.subr.mxu0 0.0
    %4137 = vmatpush1.msra.mxu0 0.0
    %4138 = vmatprep.subr.mxu0 0.0
    %4139 = vmatpush1.msra.mxu0 0.0
    %4140 = vmatprep.mubr.f32.mxu0 0.0
    %v4141 = vand.u32 %v4073, 4294901760
    %v4142 = vsub.f32 %v4073, %v4141
    %v4143 = vand.u32 %v4142, 4294901760
    %v4144 = vsub.f32 %v4142, %v4143
    %v4145 = vand.u32 %v4144, 4294901760
    %4146 = vmatmul.mubr.f32.gmra.mrb[0].mxu0 %v4145
    %v4147 = vpop.f32.mrb[0].mxu0
    %v4148 = vadd.f32 0.0, %v4147
    %v4149 = vpop.f32.mrb[0].mxu0
    %4150 = vdwg.mxu0
    %4151 = vmatprep.subr.mxu0 0.0
    %v4152 = vand.u32 %v4070, 4294901760
    %v4153 = vsub.f32 %v4070, %v4152
    %v4154 = vand.u32 %v4153, 4294901760
    %v4155 = vsub.f32 %v4153, %v4154
    %v4156 = vand.u32 %v4155, 4294901760
    %4157 = vmatpush1.msra.mxu0 %v4156
    %4158 = vmatprep.subr.mxu0 0.0
    %4159 = vmatpush1.msra.mxu0 0.0
    %4160 = vmatprep.subr.mxu0 0.0
    %4161 = vmatpush1.msra.mxu0 0.0
    %4162 = vmatprep.subr.mxu0 0.0
    %4163 = vmatpush1.msra.mxu0 0.0
    %4164 = vmatprep.subr.mxu0 0.0
    %4165 = vmatpush1.msra.mxu0 0.0
    %4166 = vmatprep.subr.mxu0 0.0
    %4167 = vmatpush1.msra.mxu0 0.0
    %4168 = vmatprep.subr.mxu0 0.0
    %4169 = vmatpush1.msra.mxu0 0.0
    %4170 = vmatprep.subr.mxu0 0.0
    %4171 = vmatpush1.msra.mxu0 0.0
    %4172 = vmatprep.subr.mxu0 0.0
    %4173 = vmatpush1.msra.mxu0 0.0
    %4174 = vmatprep.subr.mxu0 0.0
    %4175 = vmatpush1.msra.mxu0 0.0
    %4176 = vmatprep.subr.mxu0 0.0
    %4177 = vmatpush1.msra.mxu0 0.0
    %4178 = vmatprep.subr.mxu0 0.0
    %4179 = vmatpush1.msra.mxu0 0.0
    %4180 = vmatprep.subr.mxu0 0.0
    %4181 = vmatpush1.msra.mxu0 0.0
    %4182 = vmatprep.subr.mxu0 0.0
    %4183 = vmatpush1.msra.mxu0 0.0
    %4184 = vmatprep.subr.mxu0 0.0
    %4185 = vmatpush1.msra.mxu0 0.0
    %4186 = vmatprep.subr.mxu0 0.0
    %4187 = vmatpush1.msra.mxu0 0.0
    %4188 = vmatprep.subr.mxu0 0.0
    %4189 = vmatpush1.msra.mxu0 0.0
    %4190 = vmatprep.subr.mxu0 0.0
    %4191 = vmatpush1.msra.mxu0 0.0
    %4192 = vmatprep.subr.mxu0 0.0
    %4193 = vmatpush1.msra.mxu0 0.0
    %4194 = vmatprep.subr.mxu0 0.0
    %4195 = vmatpush1.msra.mxu0 0.0
    %4196 = vmatprep.subr.mxu0 0.0
    %4197 = vmatpush1.msra.mxu0 0.0
    %4198 = vmatprep.subr.mxu0 0.0
    %4199 = vmatpush1.msra.mxu0 0.0
    %4200 = vmatprep.subr.mxu0 0.0
    %4201 = vmatpush1.msra.mxu0 0.0
    %4202 = vmatprep.subr.mxu0 0.0
    %4203 = vmatpush1.msra.mxu0 0.0
    %4204 = vmatprep.subr.mxu0 0.0
    %4205 = vmatpush1.msra.mxu0 0.0
    %4206 = vmatprep.subr.mxu0 0.0
    %4207 = vmatpush1.msra.mxu0 0.0
    %4208 = vmatprep.subr.mxu0 0.0
    %4209 = vmatpush1.msra.mxu0 0.0
    %4210 = vmatprep.subr.mxu0 0.0
    %4211 = vmatpush1.msra.mxu0 0.0
    %4212 = vmatprep.subr.mxu0 0.0
    %4213 = vmatpush1.msra.mxu0 0.0
    %4214 = vmatprep.subr.mxu0 0.0
    %4215 = vmatpush1.msra.mxu0 0.0
    %4216 = vmatprep.subr.mxu0 0.0
    %4217 = vmatpush1.msra.mxu0 0.0
    %4218 = vmatprep.subr.mxu0 0.0
    %4219 = vmatpush1.msra.mxu0 0.0
    %4220 = vmatprep.mubr.f32.mxu0 0.0
    %v4221 = vand.u32 %v4073, 4294901760
    %4222 = vmatmul.mubr.f32.gmra.mrb[0].mxu0 %v4221
    %v4223 = vpop.f32.mrb[0].mxu0
    %v4224 = vadd.f32 %v4148, %v4223
    %v4225 = vpop.f32.mrb[0].mxu0
    %4226 = vdwg.mxu0
    %4227 = vmatprep.subr.mxu0 0.0
    %v4228 = vand.u32 %v4070, 4294901760
    %v4229 = vsub.f32 %v4070, %v4228
    %4230 = vmatpush1.msra.mxu0 %v4229
    %4231 = vmatprep.subr.mxu0 0.0
    %4232 = vmatpush1.msra.mxu0 0.0
    %4233 = vmatprep.subr.mxu0 0.0
    %4234 = vmatpush1.msra.mxu0 0.0
    %4235 = vmatprep.subr.mxu0 0.0
    %4236 = vmatpush1.msra.mxu0 0.0
    %4237 = vmatprep.subr.mxu0 0.0
    %4238 = vmatpush1.msra.mxu0 0.0
    %4239 = vmatprep.subr.mxu0 0.0
    %4240 = vmatpush1.msra.mxu0 0.0
    %4241 = vmatprep.subr.mxu0 0.0
    %4242 = vmatpush1.msra.mxu0 0.0
    %4243 = vmatprep.subr.mxu0 0.0
    %4244 = vmatpush1.msra.mxu0 0.0
    %4245 = vmatprep.subr.mxu0 0.0
    %4246 = vmatpush1.msra.mxu0 0.0
    %4247 = vmatprep.subr.mxu0 0.0
    %4248 = vmatpush1.msra.mxu0 0.0
    %4249 = vmatprep.subr.mxu0 0.0
    %4250 = vmatpush1.msra.mxu0 0.0
    %4251 = vmatprep.subr.mxu0 0.0
    %4252 = vmatpush1.msra.mxu0 0.0
    %4253 = vmatprep.subr.mxu0 0.0
    %4254 = vmatpush1.msra.mxu0 0.0
    %4255 = vmatprep.subr.mxu0 0.0
    %4256 = vmatpush1.msra.mxu0 0.0
    %4257 = vmatprep.subr.mxu0 0.0
    %4258 = vmatpush1.msra.mxu0 0.0
    %4259 = vmatprep.subr.mxu0 0.0
    %4260 = vmatpush1.msra.mxu0 0.0
    %4261 = vmatprep.subr.mxu0 0.0
    %4262 = vmatpush1.msra.mxu0 0.0
    %4263 = vmatprep.subr.mxu0 0.0
    %4264 = vmatpush1.msra.mxu0 0.0
    %4265 = vmatprep.subr.mxu0 0.0
    %4266 = vmatpush1.msra.mxu0 0.0
    %4267 = vmatprep.subr.mxu0 0.0
    %4268 = vmatpush1.msra.mxu0 0.0
    %4269 = vmatprep.subr.mxu0 0.0
    %4270 = vmatpush1.msra.mxu0 0.0
    %4271 = vmatprep.subr.mxu0 0.0
    %4272 = vmatpush1.msra.mxu0 0.0
    %4273 = vmatprep.subr.mxu0 0.0
    %4274 = vmatpush1.msra.mxu0 0.0
    %4275 = vmatprep.subr.mxu0 0.0
    %4276 = vmatpush1.msra.mxu0 0.0
    %4277 = vmatprep.subr.mxu0 0.0
    %4278 = vmatpush1.msra.mxu0 0.0
    %4279 = vmatprep.subr.mxu0 0.0
    %4280 = vmatpush1.msra.mxu0 0.0
    %4281 = vmatprep.subr.mxu0 0.0
    %4282 = vmatpush1.msra.mxu0 0.0
    %4283 = vmatprep.subr.mxu0 0.0
    %4284 = vmatpush1.msra.mxu0 0.0
    %4285 = vmatprep.subr.mxu0 0.0
    %4286 = vmatpush1.msra.mxu0 0.0
    %4287 = vmatprep.subr.mxu0 0.0
    %4288 = vmatpush1.msra.mxu0 0.0
    %4289 = vmatprep.subr.mxu0 0.0
    %4290 = vmatpush1.msra.mxu0 0.0
    %4291 = vmatprep.subr.mxu0 0.0
    %4292 = vmatpush1.msra.mxu0 0.0
    %4293 = vmatprep.mubr.f32.mxu0 0.0
    %v4294 = vand.u32 %v4073, 4294901760
    %v4295 = vsub.f32 %v4073, %v4294
    %4296 = vmatmul.mubr.f32.gmra.mrb[0].mxu0 %v4295
    %v4297 = vpop.f32.mrb[0].mxu0
    %v4298 = vadd.f32 %v4224, %v4297
    %v4299 = vpop.f32.mrb[0].mxu0
    %4300 = vdwg.mxu0
    %4301 = vmatprep.subr.mxu0 0.0
    %v4302 = vand.u32 %v4070, 4294901760
    %4303 = vmatpush1.msra.mxu0 %v4302
    %4304 = vmatprep.subr.mxu0 0.0
    %4305 = vmatpush1.msra.mxu0 0.0
    %4306 = vmatprep.subr.mxu0 0.0
    %4307 = vmatpush1.msra.mxu0 0.0
    %4308 = vmatprep.subr.mxu0 0.0
    %4309 = vmatpush1.msra.mxu0 0.0
    %4310 = vmatprep.subr.mxu0 0.0
    %4311 = vmatpush1.msra.mxu0 0.0
    %4312 = vmatprep.subr.mxu0 0.0
    %4313 = vmatpush1.msra.mxu0 0.0
    %4314 = vmatprep.subr.mxu0 0.0
    %4315 = vmatpush1.msra.mxu0 0.0
    %4316 = vmatprep.subr.mxu0 0.0
    %4317 = vmatpush1.msra.mxu0 0.0
    %4318 = vmatprep.subr.mxu0 0.0
    %4319 = vmatpush1.msra.mxu0 0.0
    %4320 = vmatprep.subr.mxu0 0.0
    %4321 = vmatpush1.msra.mxu0 0.0
    %4322 = vmatprep.subr.mxu0 0.0
    %4323 = vmatpush1.msra.mxu0 0.0
    %4324 = vmatprep.subr.mxu0 0.0
    %4325 = vmatpush1.msra.mxu0 0.0
    %4326 = vmatprep.subr.mxu0 0.0
    %4327 = vmatpush1.msra.mxu0 0.0
    %4328 = vmatprep.subr.mxu0 0.0
    %4329 = vmatpush1.msra.mxu0 0.0
    %4330 = vmatprep.subr.mxu0 0.0
    %4331 = vmatpush1.msra.mxu0 0.0
    %4332 = vmatprep.subr.mxu0 0.0
    %4333 = vmatpush1.msra.mxu0 0.0
    %4334 = vmatprep.subr.mxu0 0.0
    %4335 = vmatpush1.msra.mxu0 0.0
    %4336 = vmatprep.subr.mxu0 0.0
    %4337 = vmatpush1.msra.mxu0 0.0
    %4338 = vmatprep.subr.mxu0 0.0
    %4339 = vmatpush1.msra.mxu0 0.0
    %4340 = vmatprep.subr.mxu0 0.0
    %4341 = vmatpush1.msra.mxu0 0.0
    %4342 = vmatprep.subr.mxu0 0.0
    %4343 = vmatpush1.msra.mxu0 0.0
    %4344 = vmatprep.subr.mxu0 0.0
    %4345 = vmatpush1.msra.mxu0 0.0
    %4346 = vmatprep.subr.mxu0 0.0
    %4347 = vmatpush1.msra.mxu0 0.0
    %4348 = vmatprep.subr.mxu0 0.0
    %4349 = vmatpush1.msra.mxu0 0.0
    %4350 = vmatprep.subr.mxu0 0.0
    %4351 = vmatpush1.msra.mxu0 0.0
    %4352 = vmatprep.subr.mxu0 0.0
    %4353 = vmatpush1.msra.mxu0 0.0
    %4354 = vmatprep.subr.mxu0 0.0
    %4355 = vmatpush1.msra.mxu0 0.0
    %4356 = vmatprep.subr.mxu0 0.0
    %4357 = vmatpush1.msra.mxu0 0.0
    %4358 = vmatprep.subr.mxu0 0.0
    %4359 = vmatpush1.msra.mxu0 0.0
    %4360 = vmatprep.subr.mxu0 0.0
    %4361 = vmatpush1.msra.mxu0 0.0
    %4362 = vmatprep.subr.mxu0 0.0
    %4363 = vmatpush1.msra.mxu0 0.0
    %4364 = vmatprep.subr.mxu0 0.0
    %4365 = vmatpush1.msra.mxu0 0.0
    %4366 = vmatprep.mubr.f32.mxu0 0.0
    %v4367 = vand.u32 %v4073, 4294901760
    %v4368 = vsub.f32 %v4073, %v4367
    %v4369 = vand.u32 %v4368, 4294901760
    %4370 = vmatmul.mubr.f32.gmra.mrb[0].mxu0 %v4369
    %v4371 = vpop.f32.mrb[0].mxu0
    %v4372 = vadd.f32 %v4298, %v4371
    %v4373 = vpop.f32.mrb[0].mxu0
    %4374 = vdwg.mxu0
    %4375 = vmatprep.subr.mxu0 0.0
    %v4376 = vand.u32 %v4070, 4294901760
    %v4377 = vsub.f32 %v4070, %v4376
    %v4378 = vand.u32 %v4377, 4294901760
    %4379 = vmatpush1.msra.mxu0 %v4378
    %4380 = vmatprep.subr.mxu0 0.0
    %4381 = vmatpush1.msra.mxu0 0.0
    %4382 = vmatprep.subr.mxu0 0.0
    %4383 = vmatpush1.msra.mxu0 0.0
    %4384 = vmatprep.subr.mxu0 0.0
    %4385 = vmatpush1.msra.mxu0 0.0
    %4386 = vmatprep.subr.mxu0 0.0
    %4387 = vmatpush1.msra.mxu0 0.0
    %4388 = vmatprep.subr.mxu0 0.0
    %4389 = vmatpush1.msra.mxu0 0.0
    %4390 = vmatprep.subr.mxu0 0.0
    %4391 = vmatpush1.msra.mxu0 0.0
    %4392 = vmatprep.subr.mxu0 0.0
    %4393 = vmatpush1.msra.mxu0 0.0
    %4394 = vmatprep.subr.mxu0 0.0
    %4395 = vmatpush1.msra.mxu0 0.0
    %4396 = vmatprep.subr.mxu0 0.0
    %4397 = vmatpush1.msra.mxu0 0.0
    %4398 = vmatprep.subr.mxu0 0.0
    %4399 = vmatpush1.msra.mxu0 0.0
    %4400 = vmatprep.subr.mxu0 0.0
    %4401 = vmatpush1.msra.mxu0 0.0
    %4402 = vmatprep.subr.mxu0 0.0
    %4403 = vmatpush1.msra.mxu0 0.0
    %4404 = vmatprep.subr.mxu0 0.0
    %4405 = vmatpush1.msra.mxu0 0.0
    %4406 = vmatprep.subr.mxu0 0.0
    %4407 = vmatpush1.msra.mxu0 0.0
    %4408 = vmatprep.subr.mxu0 0.0
    %4409 = vmatpush1.msra.mxu0 0.0
    %4410 = vmatprep.subr.mxu0 0.0
    %4411 = vmatpush1.msra.mxu0 0.0
    %4412 = vmatprep.subr.mxu0 0.0
    %4413 = vmatpush1.msra.mxu0 0.0
    %4414 = vmatprep.subr.mxu0 0.0
    %4415 = vmatpush1.msra.mxu0 0.0
    %4416 = vmatprep.subr.mxu0 0.0
    %4417 = vmatpush1.msra.mxu0 0.0
    %4418 = vmatprep.subr.mxu0 0.0
    %4419 = vmatpush1.msra.mxu0 0.0
    %4420 = vmatprep.subr.mxu0 0.0
    %4421 = vmatpush1.msra.mxu0 0.0
    %4422 = vmatprep.subr.mxu0 0.0
    %4423 = vmatpush1.msra.mxu0 0.0
    %4424 = vmatprep.subr.mxu0 0.0
    %4425 = vmatpush1.msra.mxu0 0.0
    %4426 = vmatprep.subr.mxu0 0.0
    %4427 = vmatpush1.msra.mxu0 0.0
    %4428 = vmatprep.subr.mxu0 0.0
    %4429 = vmatpush1.msra.mxu0 0.0
    %4430 = vmatprep.subr.mxu0 0.0
    %4431 = vmatpush1.msra.mxu0 0.0
    %4432 = vmatprep.subr.mxu0 0.0
    %4433 = vmatpush1.msra.mxu0 0.0
    %4434 = vmatprep.subr.mxu0 0.0
    %4435 = vmatpush1.msra.mxu0 0.0
    %4436 = vmatprep.subr.mxu0 0.0
    %4437 = vmatpush1.msra.mxu0 0.0
    %4438 = vmatprep.subr.mxu0 0.0
    %4439 = vmatpush1.msra.mxu0 0.0
    %4440 = vmatprep.subr.mxu0 0.0
    %4441 = vmatpush1.msra.mxu0 0.0
    %4442 = vmatprep.mubr.f32.mxu0 0.0
    %v4443 = vand.u32 %v4073, 4294901760
    %4444 = vmatmul.mubr.f32.gmra.mrb[0].mxu0 %v4443
    %v4445 = vpop.f32.mrb[0].mxu0
    %v4446 = vadd.f32 %v4372, %v4445
    %v4447 = vpop.f32.mrb[0].mxu0
    %4448 = vdwg.mxu0
    %4449 = vmatprep.subr.mxu0 0.0
    %v4450 = vand.u32 %v4070, 4294901760
    %4451 = vmatpush1.msra.mxu0 %v4450
    %4452 = vmatprep.subr.mxu0 0.0
    %4453 = vmatpush1.msra.mxu0 0.0
    %4454 = vmatprep.subr.mxu0 0.0
    %4455 = vmatpush1.msra.mxu0 0.0
    %4456 = vmatprep.subr.mxu0 0.0
    %4457 = vmatpush1.msra.mxu0 0.0
    %4458 = vmatprep.subr.mxu0 0.0
    %4459 = vmatpush1.msra.mxu0 0.0
    %4460 = vmatprep.subr.mxu0 0.0
    %4461 = vmatpush1.msra.mxu0 0.0
    %4462 = vmatprep.subr.mxu0 0.0
    %4463 = vmatpush1.msra.mxu0 0.0
    %4464 = vmatprep.subr.mxu0 0.0
    %4465 = vmatpush1.msra.mxu0 0.0
    %4466 = vmatprep.subr.mxu0 0.0
    %4467 = vmatpush1.msra.mxu0 0.0
    %4468 = vmatprep.subr.mxu0 0.0
    %4469 = vmatpush1.msra.mxu0 0.0
    %4470 = vmatprep.subr.mxu0 0.0
    %4471 = vmatpush1.msra.mxu0 0.0
    %4472 = vmatprep.subr.mxu0 0.0
    %4473 = vmatpush1.msra.mxu0 0.0
    %4474 = vmatprep.subr.mxu0 0.0
    %4475 = vmatpush1.msra.mxu0 0.0
    %4476 = vmatprep.subr.mxu0 0.0
    %4477 = vmatpush1.msra.mxu0 0.0
    %4478 = vmatprep.subr.mxu0 0.0
    %4479 = vmatpush1.msra.mxu0 0.0
    %4480 = vmatprep.subr.mxu0 0.0
    %4481 = vmatpush1.msra.mxu0 0.0
    %4482 = vmatprep.subr.mxu0 0.0
    %4483 = vmatpush1.msra.mxu0 0.0
    %4484 = vmatprep.subr.mxu0 0.0
    %4485 = vmatpush1.msra.mxu0 0.0
    %4486 = vmatprep.subr.mxu0 0.0
    %4487 = vmatpush1.msra.mxu0 0.0
    %4488 = vmatprep.subr.mxu0 0.0
    %4489 = vmatpush1.msra.mxu0 0.0
    %4490 = vmatprep.subr.mxu0 0.0
    %4491 = vmatpush1.msra.mxu0 0.0
    %4492 = vmatprep.subr.mxu0 0.0
    %4493 = vmatpush1.msra.mxu0 0.0
    %4494 = vmatprep.subr.mxu0 0.0
    %4495 = vmatpush1.msra.mxu0 0.0
    %4496 = vmatprep.subr.mxu0 0.0
    %4497 = vmatpush1.msra.mxu0 0.0
    %4498 = vmatprep.subr.mxu0 0.0
    %4499 = vmatpush1.msra.mxu0 0.0
    %4500 = vmatprep.subr.mxu0 0.0
    %4501 = vmatpush1.msra.mxu0 0.0
    %4502 = vmatprep.subr.mxu0 0.0
    %4503 = vmatpush1.msra.mxu0 0.0
    %4504 = vmatprep.subr.mxu0 0.0
    %4505 = vmatpush1.msra.mxu0 0.0
    %4506 = vmatprep.subr.mxu0 0.0
    %4507 = vmatpush1.msra.mxu0 0.0
    %4508 = vmatprep.subr.mxu0 0.0
    %4509 = vmatpush1.msra.mxu0 0.0
    %4510 = vmatprep.subr.mxu0 0.0
    %4511 = vmatpush1.msra.mxu0 0.0
    %4512 = vmatprep.subr.mxu0 0.0
    %4513 = vmatpush1.msra.mxu0 0.0
    %4514 = vmatprep.mubr.f32.mxu0 0.0
    %v4515 = vand.u32 %v4073, 4294901760
    %4516 = vmatmul.mubr.f32.gmra.mrb[0].mxu0 %v4515
    %v4517 = vpop.f32.mrb[0].mxu0
    %v4518 = vadd.f32 %v4446, %v4517
    %v4519 = vpop.f32.mrb[0].mxu0
    %4520 = vdwg.mxu0
    %4522 = vrot.lane.b32.xlu0 %v4518, 16
    %v4523 = vpop.permute.xlu0 %4522
    %vm4525 = vcmask 195712
    %4526 = vst.msk [vmem:[#allocation2] sm:$0xff] %vm4525, %v4523
    %4527 = vrot.lane.b32.xlu0 %v655, 104
    %v4528 = vpop.permute.xlu0 %4527
    %4529 = vrot.lane.b32.xlu0 %v1200, 104
    %v4530 = vpop.permute.xlu0 %4529
    %v4531 = vsel %vm1761, %v4528, 0
    %v4533 = vsel %vm1761, %v4530, 0
    %4535 = vmatprep.subr.mxu0 0.0
    %v4536 = vand.u32 %v4533, 4294901760
    %4537 = vmatpush1.xpose.msra.mxu0 %v4536
    %4538 = vmatprep.subr.mxu0 0.0
    %4539 = vmatpush1.xpose.msra.mxu0 0.0
    %4540 = vmatprep.subr.mxu0 0.0
    %4541 = vmatpush1.xpose.msra.mxu0 0.0
    %4542 = vmatprep.subr.mxu0 0.0
    %4543 = vmatpush1.xpose.msra.mxu0 0.0
    %4544 = vmatprep.subr.mxu0 0.0
    %4545 = vmatpush1.xpose.msra.mxu0 0.0
    %4546 = vmatprep.subr.mxu0 0.0
    %4547 = vmatpush1.xpose.msra.mxu0 0.0
    %4548 = vmatprep.subr.mxu0 0.0
    %4549 = vmatpush1.xpose.msra.mxu0 0.0
    %4550 = vmatprep.subr.mxu0 0.0
    %4551 = vmatpush1.xpose.msra.mxu0 0.0
    %4552 = vmatprep.subr.mxu0 0.0
    %4553 = vmatpush1.xpose.msra.mxu0 0.0
    %4554 = vmatprep.subr.mxu0 0.0
    %4555 = vmatpush1.xpose.msra.mxu0 0.0
    %4556 = vmatprep.subr.mxu0 0.0
    %4557 = vmatpush1.xpose.msra.mxu0 0.0
    %4558 = vmatprep.subr.mxu0 0.0
    %4559 = vmatpush1.xpose.msra.mxu0 0.0
    %4560 = vmatprep.subr.mxu0 0.0
    %4561 = vmatpush1.xpose.msra.mxu0 0.0
    %4562 = vmatprep.subr.mxu0 0.0
    %4563 = vmatpush1.xpose.msra.mxu0 0.0
    %4564 = vmatprep.subr.mxu0 0.0
    %4565 = vmatpush1.xpose.msra.mxu0 0.0
    %4566 = vmatprep.subr.mxu0 0.0
    %4567 = vmatpush1.xpose.msra.mxu0 0.0
    %4568 = vmatprep.subr.mxu0 0.0
    %4569 = vmatpush1.xpose.msra.mxu0 0.0
    %4570 = vmatprep.subr.mxu0 0.0
    %4571 = vmatpush1.xpose.msra.mxu0 0.0
    %4572 = vmatprep.subr.mxu0 0.0
    %4573 = vmatpush1.xpose.msra.mxu0 0.0
    %4574 = vmatprep.subr.mxu0 0.0
    %4575 = vmatpush1.xpose.msra.mxu0 0.0
    %4576 = vmatprep.subr.mxu0 0.0
    %4577 = vmatpush1.xpose.msra.mxu0 0.0
    %4578 = vmatprep.subr.mxu0 0.0
    %4579 = vmatpush1.xpose.msra.mxu0 0.0
    %4580 = vmatprep.subr.mxu0 0.0
    %4581 = vmatpush1.xpose.msra.mxu0 0.0
    %4582 = vmatprep.subr.mxu0 0.0
    %4583 = vmatpush1.xpose.msra.mxu0 0.0
    %4584 = vmatprep.subr.mxu0 0.0
    %4585 = vmatpush1.xpose.msra.mxu0 0.0
    %4586 = vmatprep.subr.mxu0 0.0
    %4587 = vmatpush1.xpose.msra.mxu0 0.0
    %4588 = vmatprep.subr.mxu0 0.0
    %4589 = vmatpush1.xpose.msra.mxu0 0.0
    %4590 = vmatprep.subr.mxu0 0.0
    %4591 = vmatpush1.xpose.msra.mxu0 0.0
    %4592 = vmatprep.subr.mxu0 0.0
    %4593 = vmatpush1.xpose.msra.mxu0 0.0
    %4594 = vmatprep.subr.mxu0 0.0
    %4595 = vmatpush1.xpose.msra.mxu0 0.0
    %4596 = vmatprep.subr.mxu0 0.0
    %4597 = vmatpush1.xpose.msra.mxu0 0.0
    %4598 = vmatprep.subr.mxu0 0.0
    %4599 = vmatpush1.xpose.msra.mxu0 0.0
    %4600 = vmatprep.mubr.f32.mxu0 0.0
    %v4601 = vand.u32 %v4531, 4294901760
    %v4602 = vsub.f32 %v4531, %v4601
    %v4603 = vand.u32 %v4602, 4294901760
    %v4604 = vsub.f32 %v4602, %v4603
    %v4605 = vand.u32 %v4604, 4294901760
    %4606 = vmatmul.mubr.f32.gmra.mrb[0].mxu0 %v4605
    %v4607 = vpop.f32.mrb[0].mxu0
    %v4608 = vadd.f32 0.0, %v4607
    %v4609 = vpop.f32.mrb[0].mxu0
    %4610 = vdwg.mxu0
    %4611 = vmatprep.subr.mxu0 0.0
    %v4612 = vand.u32 %v4533, 4294901760
    %v4613 = vsub.f32 %v4533, %v4612
    %v4614 = vand.u32 %v4613, 4294901760
    %v4615 = vsub.f32 %v4613, %v4614
    %v4616 = vand.u32 %v4615, 4294901760
    %4617 = vmatpush1.xpose.msra.mxu0 %v4616
    %4618 = vmatprep.subr.mxu0 0.0
    %4619 = vmatpush1.xpose.msra.mxu0 0.0
    %4620 = vmatprep.subr.mxu0 0.0
    %4621 = vmatpush1.xpose.msra.mxu0 0.0
    %4622 = vmatprep.subr.mxu0 0.0
    %4623 = vmatpush1.xpose.msra.mxu0 0.0
    %4624 = vmatprep.subr.mxu0 0.0
    %4625 = vmatpush1.xpose.msra.mxu0 0.0
    %4626 = vmatprep.subr.mxu0 0.0
    %4627 = vmatpush1.xpose.msra.mxu0 0.0
    %4628 = vmatprep.subr.mxu0 0.0
    %4629 = vmatpush1.xpose.msra.mxu0 0.0
    %4630 = vmatprep.subr.mxu0 0.0
    %4631 = vmatpush1.xpose.msra.mxu0 0.0
    %4632 = vmatprep.subr.mxu0 0.0
    %4633 = vmatpush1.xpose.msra.mxu0 0.0
    %4634 = vmatprep.subr.mxu0 0.0
    %4635 = vmatpush1.xpose.msra.mxu0 0.0
    %4636 = vmatprep.subr.mxu0 0.0
    %4637 = vmatpush1.xpose.msra.mxu0 0.0
    %4638 = vmatprep.subr.mxu0 0.0
    %4639 = vmatpush1.xpose.msra.mxu0 0.0
    %4640 = vmatprep.subr.mxu0 0.0
    %4641 = vmatpush1.xpose.msra.mxu0 0.0
    %4642 = vmatprep.subr.mxu0 0.0
    %4643 = vmatpush1.xpose.msra.mxu0 0.0
    %4644 = vmatprep.subr.mxu0 0.0
    %4645 = vmatpush1.xpose.msra.mxu0 0.0
    %4646 = vmatprep.subr.mxu0 0.0
    %4647 = vmatpush1.xpose.msra.mxu0 0.0
    %4648 = vmatprep.subr.mxu0 0.0
    %4649 = vmatpush1.xpose.msra.mxu0 0.0
    %4650 = vmatprep.subr.mxu0 0.0
    %4651 = vmatpush1.xpose.msra.mxu0 0.0
    %4652 = vmatprep.subr.mxu0 0.0
    %4653 = vmatpush1.xpose.msra.mxu0 0.0
    %4654 = vmatprep.subr.mxu0 0.0
    %4655 = vmatpush1.xpose.msra.mxu0 0.0
    %4656 = vmatprep.subr.mxu0 0.0
    %4657 = vmatpush1.xpose.msra.mxu0 0.0
    %4658 = vmatprep.subr.mxu0 0.0
    %4659 = vmatpush1.xpose.msra.mxu0 0.0
    %4660 = vmatprep.subr.mxu0 0.0
    %4661 = vmatpush1.xpose.msra.mxu0 0.0
    %4662 = vmatprep.subr.mxu0 0.0
    %4663 = vmatpush1.xpose.msra.mxu0 0.0
    %4664 = vmatprep.subr.mxu0 0.0
    %4665 = vmatpush1.xpose.msra.mxu0 0.0
    %4666 = vmatprep.subr.mxu0 0.0
    %4667 = vmatpush1.xpose.msra.mxu0 0.0
    %4668 = vmatprep.subr.mxu0 0.0
    %4669 = vmatpush1.xpose.msra.mxu0 0.0
    %4670 = vmatprep.subr.mxu0 0.0
    %4671 = vmatpush1.xpose.msra.mxu0 0.0
    %4672 = vmatprep.subr.mxu0 0.0
    %4673 = vmatpush1.xpose.msra.mxu0 0.0
    %4674 = vmatprep.subr.mxu0 0.0
    %4675 = vmatpush1.xpose.msra.mxu0 0.0
    %4676 = vmatprep.subr.mxu0 0.0
    %4677 = vmatpush1.xpose.msra.mxu0 0.0
    %4678 = vmatprep.subr.mxu0 0.0
    %4679 = vmatpush1.xpose.msra.mxu0 0.0
    %4680 = vmatprep.mubr.f32.mxu0 0.0
    %v4681 = vand.u32 %v4531, 4294901760
    %4682 = vmatmul.mubr.f32.gmra.mrb[0].mxu0 %v4681
    %v4683 = vpop.f32.mrb[0].mxu0
    %v4684 = vadd.f32 %v4608, %v4683
    %v4685 = vpop.f32.mrb[0].mxu0
    %4686 = vdwg.mxu0
    %4687 = vmatprep.subr.mxu0 0.0
    %v4688 = vand.u32 %v4533, 4294901760
    %v4689 = vsub.f32 %v4533, %v4688
    %4690 = vmatpush1.xpose.msra.mxu0 %v4689
    %4691 = vmatprep.subr.mxu0 0.0
    %4692 = vmatpush1.xpose.msra.mxu0 0.0
    %4693 = vmatprep.subr.mxu0 0.0
    %4694 = vmatpush1.xpose.msra.mxu0 0.0
    %4695 = vmatprep.subr.mxu0 0.0
    %4696 = vmatpush1.xpose.msra.mxu0 0.0
    %4697 = vmatprep.subr.mxu0 0.0
    %4698 = vmatpush1.xpose.msra.mxu0 0.0
    %4699 = vmatprep.subr.mxu0 0.0
    %4700 = vmatpush1.xpose.msra.mxu0 0.0
    %4701 = vmatprep.subr.mxu0 0.0
    %4702 = vmatpush1.xpose.msra.mxu0 0.0
    %4703 = vmatprep.subr.mxu0 0.0
    %4704 = vmatpush1.xpose.msra.mxu0 0.0
    %4705 = vmatprep.subr.mxu0 0.0
    %4706 = vmatpush1.xpose.msra.mxu0 0.0
    %4707 = vmatprep.subr.mxu0 0.0
    %4708 = vmatpush1.xpose.msra.mxu0 0.0
    %4709 = vmatprep.subr.mxu0 0.0
    %4710 = vmatpush1.xpose.msra.mxu0 0.0
    %4711 = vmatprep.subr.mxu0 0.0
    %4712 = vmatpush1.xpose.msra.mxu0 0.0
    %4713 = vmatprep.subr.mxu0 0.0
    %4714 = vmatpush1.xpose.msra.mxu0 0.0
    %4715 = vmatprep.subr.mxu0 0.0
    %4716 = vmatpush1.xpose.msra.mxu0 0.0
    %4717 = vmatprep.subr.mxu0 0.0
    %4718 = vmatpush1.xpose.msra.mxu0 0.0
    %4719 = vmatprep.subr.mxu0 0.0
    %4720 = vmatpush1.xpose.msra.mxu0 0.0
    %4721 = vmatprep.subr.mxu0 0.0
    %4722 = vmatpush1.xpose.msra.mxu0 0.0
    %4723 = vmatprep.subr.mxu0 0.0
    %4724 = vmatpush1.xpose.msra.mxu0 0.0
    %4725 = vmatprep.subr.mxu0 0.0
    %4726 = vmatpush1.xpose.msra.mxu0 0.0
    %4727 = vmatprep.subr.mxu0 0.0
    %4728 = vmatpush1.xpose.msra.mxu0 0.0
    %4729 = vmatprep.subr.mxu0 0.0
    %4730 = vmatpush1.xpose.msra.mxu0 0.0
    %4731 = vmatprep.subr.mxu0 0.0
    %4732 = vmatpush1.xpose.msra.mxu0 0.0
    %4733 = vmatprep.subr.mxu0 0.0
    %4734 = vmatpush1.xpose.msra.mxu0 0.0
    %4735 = vmatprep.subr.mxu0 0.0
    %4736 = vmatpush1.xpose.msra.mxu0 0.0
    %4737 = vmatprep.subr.mxu0 0.0
    %4738 = vmatpush1.xpose.msra.mxu0 0.0
    %4739 = vmatprep.subr.mxu0 0.0
    %4740 = vmatpush1.xpose.msra.mxu0 0.0
    %4741 = vmatprep.subr.mxu0 0.0
    %4742 = vmatpush1.xpose.msra.mxu0 0.0
    %4743 = vmatprep.subr.mxu0 0.0
    %4744 = vmatpush1.xpose.msra.mxu0 0.0
    %4745 = vmatprep.subr.mxu0 0.0
    %4746 = vmatpush1.xpose.msra.mxu0 0.0
    %4747 = vmatprep.subr.mxu0 0.0
    %4748 = vmatpush1.xpose.msra.mxu0 0.0
    %4749 = vmatprep.subr.mxu0 0.0
    %4750 = vmatpush1.xpose.msra.mxu0 0.0
    %4751 = vmatprep.subr.mxu0 0.0
    %4752 = vmatpush1.xpose.msra.mxu0 0.0
    %4753 = vmatprep.mubr.f32.mxu0 0.0
    %v4754 = vand.u32 %v4531, 4294901760
    %v4755 = vsub.f32 %v4531, %v4754
    %4756 = vmatmul.mubr.f32.gmra.mrb[0].mxu0 %v4755
    %v4757 = vpop.f32.mrb[0].mxu0
    %v4758 = vadd.f32 %v4684, %v4757
    %v4759 = vpop.f32.mrb[0].mxu0
    %4760 = vdwg.mxu0
    %4761 = vmatprep.subr.mxu0 0.0
    %v4762 = vand.u32 %v4533, 4294901760
    %4763 = vmatpush1.xpose.msra.mxu0 %v4762
    %4764 = vmatprep.subr.mxu0 0.0
    %4765 = vmatpush1.xpose.msra.mxu0 0.0
    %4766 = vmatprep.subr.mxu0 0.0
    %4767 = vmatpush1.xpose.msra.mxu0 0.0
    %4768 = vmatprep.subr.mxu0 0.0
    %4769 = vmatpush1.xpose.msra.mxu0 0.0
    %4770 = vmatprep.subr.mxu0 0.0
    %4771 = vmatpush1.xpose.msra.mxu0 0.0
    %4772 = vmatprep.subr.mxu0 0.0
    %4773 = vmatpush1.xpose.msra.mxu0 0.0
    %4774 = vmatprep.subr.mxu0 0.0
    %4775 = vmatpush1.xpose.msra.mxu0 0.0
    %4776 = vmatprep.subr.mxu0 0.0
    %4777 = vmatpush1.xpose.msra.mxu0 0.0
    %4778 = vmatprep.subr.mxu0 0.0
    %4779 = vmatpush1.xpose.msra.mxu0 0.0
    %4780 = vmatprep.subr.mxu0 0.0
    %4781 = vmatpush1.xpose.msra.mxu0 0.0
    %4782 = vmatprep.subr.mxu0 0.0
    %4783 = vmatpush1.xpose.msra.mxu0 0.0
    %4784 = vmatprep.subr.mxu0 0.0
    %4785 = vmatpush1.xpose.msra.mxu0 0.0
    %4786 = vmatprep.subr.mxu0 0.0
    %4787 = vmatpush1.xpose.msra.mxu0 0.0
    %4788 = vmatprep.subr.mxu0 0.0
    %4789 = vmatpush1.xpose.msra.mxu0 0.0
    %4790 = vmatprep.subr.mxu0 0.0
    %4791 = vmatpush1.xpose.msra.mxu0 0.0
    %4792 = vmatprep.subr.mxu0 0.0
    %4793 = vmatpush1.xpose.msra.mxu0 0.0
    %4794 = vmatprep.subr.mxu0 0.0
    %4795 = vmatpush1.xpose.msra.mxu0 0.0
    %4796 = vmatprep.subr.mxu0 0.0
    %4797 = vmatpush1.xpose.msra.mxu0 0.0
    %4798 = vmatprep.subr.mxu0 0.0
    %4799 = vmatpush1.xpose.msra.mxu0 0.0
    %4800 = vmatprep.subr.mxu0 0.0
    %4801 = vmatpush1.xpose.msra.mxu0 0.0
    %4802 = vmatprep.subr.mxu0 0.0
    %4803 = vmatpush1.xpose.msra.mxu0 0.0
    %4804 = vmatprep.subr.mxu0 0.0
    %4805 = vmatpush1.xpose.msra.mxu0 0.0
    %4806 = vmatprep.subr.mxu0 0.0
    %4807 = vmatpush1.xpose.msra.mxu0 0.0
    %4808 = vmatprep.subr.mxu0 0.0
    %4809 = vmatpush1.xpose.msra.mxu0 0.0
    %4810 = vmatprep.subr.mxu0 0.0
    %4811 = vmatpush1.xpose.msra.mxu0 0.0
    %4812 = vmatprep.subr.mxu0 0.0
    %4813 = vmatpush1.xpose.msra.mxu0 0.0
    %4814 = vmatprep.subr.mxu0 0.0
    %4815 = vmatpush1.xpose.msra.mxu0 0.0
    %4816 = vmatprep.subr.mxu0 0.0
    %4817 = vmatpush1.xpose.msra.mxu0 0.0
    %4818 = vmatprep.subr.mxu0 0.0
    %4819 = vmatpush1.xpose.msra.mxu0 0.0
    %4820 = vmatprep.subr.mxu0 0.0
    %4821 = vmatpush1.xpose.msra.mxu0 0.0
    %4822 = vmatprep.subr.mxu0 0.0
    %4823 = vmatpush1.xpose.msra.mxu0 0.0
    %4824 = vmatprep.subr.mxu0 0.0
    %4825 = vmatpush1.xpose.msra.mxu0 0.0
    %4826 = vmatprep.mubr.f32.mxu0 0.0
    %v4827 = vand.u32 %v4531, 4294901760
    %v4828 = vsub.f32 %v4531, %v4827
    %v4829 = vand.u32 %v4828, 4294901760
    %4830 = vmatmul.mubr.f32.gmra.mrb[0].mxu0 %v4829
    %v4831 = vpop.f32.mrb[0].mxu0
    %v4832 = vadd.f32 %v4758, %v4831
    %v4833 = vpop.f32.mrb[0].mxu0
    %4834 = vdwg.mxu0
    %4835 = vmatprep.subr.mxu0 0.0
    %v4836 = vand.u32 %v4533, 4294901760
    %v4837 = vsub.f32 %v4533, %v4836
    %v4838 = vand.u32 %v4837, 4294901760
    %4839 = vmatpush1.xpose.msra.mxu0 %v4838
    %4840 = vmatprep.subr.mxu0 0.0
    %4841 = vmatpush1.xpose.msra.mxu0 0.0
    %4842 = vmatprep.subr.mxu0 0.0
    %4843 = vmatpush1.xpose.msra.mxu0 0.0
    %4844 = vmatprep.subr.mxu0 0.0
    %4845 = vmatpush1.xpose.msra.mxu0 0.0
    %4846 = vmatprep.subr.mxu0 0.0
    %4847 = vmatpush1.xpose.msra.mxu0 0.0
    %4848 = vmatprep.subr.mxu0 0.0
    %4849 = vmatpush1.xpose.msra.mxu0 0.0
    %4850 = vmatprep.subr.mxu0 0.0
    %4851 = vmatpush1.xpose.msra.mxu0 0.0
    %4852 = vmatprep.subr.mxu0 0.0
    %4853 = vmatpush1.xpose.msra.mxu0 0.0
    %4854 = vmatprep.subr.mxu0 0.0
    %4855 = vmatpush1.xpose.msra.mxu0 0.0
    %4856 = vmatprep.subr.mxu0 0.0
    %4857 = vmatpush1.xpose.msra.mxu0 0.0
    %4858 = vmatprep.subr.mxu0 0.0
    %4859 = vmatpush1.xpose.msra.mxu0 0.0
    %4860 = vmatprep.subr.mxu0 0.0
    %4861 = vmatpush1.xpose.msra.mxu0 0.0
    %4862 = vmatprep.subr.mxu0 0.0
    %4863 = vmatpush1.xpose.msra.mxu0 0.0
    %4864 = vmatprep.subr.mxu0 0.0
    %4865 = vmatpush1.xpose.msra.mxu0 0.0
    %4866 = vmatprep.subr.mxu0 0.0
    %4867 = vmatpush1.xpose.msra.mxu0 0.0
    %4868 = vmatprep.subr.mxu0 0.0
    %4869 = vmatpush1.xpose.msra.mxu0 0.0
    %4870 = vmatprep.subr.mxu0 0.0
    %4871 = vmatpush1.xpose.msra.mxu0 0.0
    %4872 = vmatprep.subr.mxu0 0.0
    %4873 = vmatpush1.xpose.msra.mxu0 0.0
    %4874 = vmatprep.subr.mxu0 0.0
    %4875 = vmatpush1.xpose.msra.mxu0 0.0
    %4876 = vmatprep.subr.mxu0 0.0
    %4877 = vmatpush1.xpose.msra.mxu0 0.0
    %4878 = vmatprep.subr.mxu0 0.0
    %4879 = vmatpush1.xpose.msra.mxu0 0.0
    %4880 = vmatprep.subr.mxu0 0.0
    %4881 = vmatpush1.xpose.msra.mxu0 0.0
    %4882 = vmatprep.subr.mxu0 0.0
    %4883 = vmatpush1.xpose.msra.mxu0 0.0
    %4884 = vmatprep.subr.mxu0 0.0
    %4885 = vmatpush1.xpose.msra.mxu0 0.0
    %4886 = vmatprep.subr.mxu0 0.0
    %4887 = vmatpush1.xpose.msra.mxu0 0.0
    %4888 = vmatprep.subr.mxu0 0.0
    %4889 = vmatpush1.xpose.msra.mxu0 0.0
    %4890 = vmatprep.subr.mxu0 0.0
    %4891 = vmatpush1.xpose.msra.mxu0 0.0
    %4892 = vmatprep.subr.mxu0 0.0
    %4893 = vmatpush1.xpose.msra.mxu0 0.0
    %4894 = vmatprep.subr.mxu0 0.0
    %4895 = vmatpush1.xpose.msra.mxu0 0.0
    %4896 = vmatprep.subr.mxu0 0.0
    %4897 = vmatpush1.xpose.msra.mxu0 0.0
    %4898 = vmatprep.subr.mxu0 0.0
    %4899 = vmatpush1.xpose.msra.mxu0 0.0
    %4900 = vmatprep.subr.mxu0 0.0
    %4901 = vmatpush1.xpose.msra.mxu0 0.0
    %4902 = vmatprep.mubr.f32.mxu0 0.0
    %v4903 = vand.u32 %v4531, 4294901760
    %4904 = vmatmul.mubr.f32.gmra.mrb[0].mxu0 %v4903
    %v4905 = vpop.f32.mrb[0].mxu0
    %v4906 = vadd.f32 %v4832, %v4905
    %v4907 = vpop.f32.mrb[0].mxu0
    %4908 = vdwg.mxu0
    %4909 = vmatprep.subr.mxu0 0.0
    %v4910 = vand.u32 %v4533, 4294901760
    %4911 = vmatpush1.xpose.msra.mxu0 %v4910
    %4912 = vmatprep.subr.mxu0 0.0
    %4913 = vmatpush1.xpose.msra.mxu0 0.0
    %4914 = vmatprep.subr.mxu0 0.0
    %4915 = vmatpush1.xpose.msra.mxu0 0.0
    %4916 = vmatprep.subr.mxu0 0.0
    %4917 = vmatpush1.xpose.msra.mxu0 0.0
    %4918 = vmatprep.subr.mxu0 0.0
    %4919 = vmatpush1.xpose.msra.mxu0 0.0
    %4920 = vmatprep.subr.mxu0 0.0
    %4921 = vmatpush1.xpose.msra.mxu0 0.0
    %4922 = vmatprep.subr.mxu0 0.0
    %4923 = vmatpush1.xpose.msra.mxu0 0.0
    %4924 = vmatprep.subr.mxu0 0.0
    %4925 = vmatpush1.xpose.msra.mxu0 0.0
    %4926 = vmatprep.subr.mxu0 0.0
    %4927 = vmatpush1.xpose.msra.mxu0 0.0
    %4928 = vmatprep.subr.mxu0 0.0
    %4929 = vmatpush1.xpose.msra.mxu0 0.0
    %4930 = vmatprep.subr.mxu0 0.0
    %4931 = vmatpush1.xpose.msra.mxu0 0.0
    %4932 = vmatprep.subr.mxu0 0.0
    %4933 = vmatpush1.xpose.msra.mxu0 0.0
    %4934 = vmatprep.subr.mxu0 0.0
    %4935 = vmatpush1.xpose.msra.mxu0 0.0
    %4936 = vmatprep.subr.mxu0 0.0
    %4937 = vmatpush1.xpose.msra.mxu0 0.0
    %4938 = vmatprep.subr.mxu0 0.0
    %4939 = vmatpush1.xpose.msra.mxu0 0.0
    %4940 = vmatprep.subr.mxu0 0.0
    %4941 = vmatpush1.xpose.msra.mxu0 0.0
    %4942 = vmatprep.subr.mxu0 0.0
    %4943 = vmatpush1.xpose.msra.mxu0 0.0
    %4944 = vmatprep.subr.mxu0 0.0
    %4945 = vmatpush1.xpose.msra.mxu0 0.0
    %4946 = vmatprep.subr.mxu0 0.0
    %4947 = vmatpush1.xpose.msra.mxu0 0.0
    %4948 = vmatprep.subr.mxu0 0.0
    %4949 = vmatpush1.xpose.msra.mxu0 0.0
    %4950 = vmatprep.subr.mxu0 0.0
    %4951 = vmatpush1.xpose.msra.mxu0 0.0
    %4952 = vmatprep.subr.mxu0 0.0
    %4953 = vmatpush1.xpose.msra.mxu0 0.0
    %4954 = vmatprep.subr.mxu0 0.0
    %4955 = vmatpush1.xpose.msra.mxu0 0.0
    %4956 = vmatprep.subr.mxu0 0.0
    %4957 = vmatpush1.xpose.msra.mxu0 0.0
    %4958 = vmatprep.subr.mxu0 0.0
    %4959 = vmatpush1.xpose.msra.mxu0 0.0
    %4960 = vmatprep.subr.mxu0 0.0
    %4961 = vmatpush1.xpose.msra.mxu0 0.0
    %4962 = vmatprep.subr.mxu0 0.0
    %4963 = vmatpush1.xpose.msra.mxu0 0.0
    %4964 = vmatprep.subr.mxu0 0.0
    %4965 = vmatpush1.xpose.msra.mxu0 0.0
    %4966 = vmatprep.subr.mxu0 0.0
    %4967 = vmatpush1.xpose.msra.mxu0 0.0
    %4968 = vmatprep.subr.mxu0 0.0
    %4969 = vmatpush1.xpose.msra.mxu0 0.0
    %4970 = vmatprep.subr.mxu0 0.0
    %4971 = vmatpush1.xpose.msra.mxu0 0.0
    %4972 = vmatprep.subr.mxu0 0.0
    %4973 = vmatpush1.xpose.msra.mxu0 0.0
    %4974 = vmatprep.mubr.f32.mxu0 0.0
    %v4975 = vand.u32 %v4531, 4294901760
    %4976 = vmatmul.mubr.f32.gmra.mrb[0].mxu0 %v4975
    %v4977 = vpop.f32.mrb[0].mxu0
    %v4978 = vadd.f32 %v4906, %v4977
    %v4979 = vpop.f32.mrb[0].mxu0
    %4980 = vdwg.mxu0
    %v4981 = vsel %vm1761, %v4978, -inf
    %4982 = vmax.xlane.f32.xlu0 %v4981
    %v4983 = vpop.xlane.xlu0 %4982
    %v4984 = vsub.f32 %v4978, %v4983
    %v4985 = vmul.f32 %v4984, 1.442695
    %v4986 = vpow.pop %v4985
    %v4987 = vsel %vm1761, %v4986, 0.0
    %4988 = vadd.xlane.f32.xlu0 %v4987
    %v4989 = vpop.xlane.xlu0 %4988
    %v4990 = vrcp.pop %v4989
    %v4991 = vmul.f32 %v4986, %v4990
    %s4992 = scalar_lea.vmem [#allocation12], 24
    %4993 = vst.msk [vmem:[%s4992] sm:$0xff] %vm1761, %v4991
    %4994 = vrot.lane.b32.xlu0 %v1752, 104
    %v4995 = vpop.permute.xlu0 %4994
    %v4998 = vsel %vm1761, %v4991, 0
    %5000 = vmatprep.subr.mxu0 0.0
    %v5001 = vand.u32 %v4995, 4294901760
    %5002 = vmatpush1.msra.mxu0 %v5001
    %5003 = vmatprep.subr.mxu0 0.0
    %5004 = vmatpush1.msra.mxu0 0.0
    %5005 = vmatprep.subr.mxu0 0.0
    %5006 = vmatpush1.msra.mxu0 0.0
    %5007 = vmatprep.subr.mxu0 0.0
    %5008 = vmatpush1.msra.mxu0 0.0
    %5009 = vmatprep.subr.mxu0 0.0
    %5010 = vmatpush1.msra.mxu0 0.0
    %5011 = vmatprep.subr.mxu0 0.0
    %5012 = vmatpush1.msra.mxu0 0.0
    %5013 = vmatprep.subr.mxu0 0.0
    %5014 = vmatpush1.msra.mxu0 0.0
    %5015 = vmatprep.subr.mxu0 0.0
    %5016 = vmatpush1.msra.mxu0 0.0
    %5017 = vmatprep.subr.mxu0 0.0
    %5018 = vmatpush1.msra.mxu0 0.0
    %5019 = vmatprep.subr.mxu0 0.0
    %5020 = vmatpush1.msra.mxu0 0.0
    %5021 = vmatprep.subr.mxu0 0.0
    %5022 = vmatpush1.msra.mxu0 0.0
    %5023 = vmatprep.subr.mxu0 0.0
    %5024 = vmatpush1.msra.mxu0 0.0
    %5025 = vmatprep.subr.mxu0 0.0
    %5026 = vmatpush1.msra.mxu0 0.0
    %5027 = vmatprep.subr.mxu0 0.0
    %5028 = vmatpush1.msra.mxu0 0.0
    %5029 = vmatprep.subr.mxu0 0.0
    %5030 = vmatpush1.msra.mxu0 0.0
    %5031 = vmatprep.subr.mxu0 0.0
    %5032 = vmatpush1.msra.mxu0 0.0
    %5033 = vmatprep.subr.mxu0 0.0
    %5034 = vmatpush1.msra.mxu0 0.0
    %5035 = vmatprep.subr.mxu0 0.0
    %5036 = vmatpush1.msra.mxu0 0.0
    %5037 = vmatprep.subr.mxu0 0.0
    %5038 = vmatpush1.msra.mxu0 0.0
    %5039 = vmatprep.subr.mxu0 0.0
    %5040 = vmatpush1.msra.mxu0 0.0
    %5041 = vmatprep.subr.mxu0 0.0
    %5042 = vmatpush1.msra.mxu0 0.0
    %5043 = vmatprep.subr.mxu0 0.0
    %5044 = vmatpush1.msra.mxu0 0.0
    %5045 = vmatprep.subr.mxu0 0.0
    %5046 = vmatpush1.msra.mxu0 0.0
    %5047 = vmatprep.subr.mxu0 0.0
    %5048 = vmatpush1.msra.mxu0 0.0
    %5049 = vmatprep.subr.mxu0 0.0
    %5050 = vmatpush1.msra.mxu0 0.0
    %5051 = vmatprep.subr.mxu0 0.0
    %5052 = vmatpush1.msra.mxu0 0.0
    %5053 = vmatprep.subr.mxu0 0.0
    %5054 = vmatpush1.msra.mxu0 0.0
    %5055 = vmatprep.subr.mxu0 0.0
    %5056 = vmatpush1.msra.mxu0 0.0
    %5057 = vmatprep.subr.mxu0 0.0
    %5058 = vmatpush1.msra.mxu0 0.0
    %5059 = vmatprep.subr.mxu0 0.0
    %5060 = vmatpush1.msra.mxu0 0.0
    %5061 = vmatprep.subr.mxu0 0.0
    %5062 = vmatpush1.msra.mxu0 0.0
    %5063 = vmatprep.subr.mxu0 0.0
    %5064 = vmatpush1.msra.mxu0 0.0
    %5065 = vmatprep.mubr.f32.mxu0 0.0
    %v5066 = vand.u32 %v4998, 4294901760
    %v5067 = vsub.f32 %v4998, %v5066
    %v5068 = vand.u32 %v5067, 4294901760
    %v5069 = vsub.f32 %v5067, %v5068
    %v5070 = vand.u32 %v5069, 4294901760
    %5071 = vmatmul.mubr.f32.gmra.mrb[0].mxu0 %v5070
    %v5072 = vpop.f32.mrb[0].mxu0
    %v5073 = vadd.f32 0.0, %v5072
    %v5074 = vpop.f32.mrb[0].mxu0
    %5075 = vdwg.mxu0
    %5076 = vmatprep.subr.mxu0 0.0
    %v5077 = vand.u32 %v4995, 4294901760
    %v5078 = vsub.f32 %v4995, %v5077
    %v5079 = vand.u32 %v5078, 4294901760
    %v5080 = vsub.f32 %v5078, %v5079
    %v5081 = vand.u32 %v5080, 4294901760
    %5082 = vmatpush1.msra.mxu0 %v5081
    %5083 = vmatprep.subr.mxu0 0.0
    %5084 = vmatpush1.msra.mxu0 0.0
    %5085 = vmatprep.subr.mxu0 0.0
    %5086 = vmatpush1.msra.mxu0 0.0
    %5087 = vmatprep.subr.mxu0 0.0
    %5088 = vmatpush1.msra.mxu0 0.0
    %5089 = vmatprep.subr.mxu0 0.0
    %5090 = vmatpush1.msra.mxu0 0.0
    %5091 = vmatprep.subr.mxu0 0.0
    %5092 = vmatpush1.msra.mxu0 0.0
    %5093 = vmatprep.subr.mxu0 0.0
    %5094 = vmatpush1.msra.mxu0 0.0
    %5095 = vmatprep.subr.mxu0 0.0
    %5096 = vmatpush1.msra.mxu0 0.0
    %5097 = vmatprep.subr.mxu0 0.0
    %5098 = vmatpush1.msra.mxu0 0.0
    %5099 = vmatprep.subr.mxu0 0.0
    %5100 = vmatpush1.msra.mxu0 0.0
    %5101 = vmatprep.subr.mxu0 0.0
    %5102 = vmatpush1.msra.mxu0 0.0
    %5103 = vmatprep.subr.mxu0 0.0
    %5104 = vmatpush1.msra.mxu0 0.0
    %5105 = vmatprep.subr.mxu0 0.0
    %5106 = vmatpush1.msra.mxu0 0.0
    %5107 = vmatprep.subr.mxu0 0.0
    %5108 = vmatpush1.msra.mxu0 0.0
    %5109 = vmatprep.subr.mxu0 0.0
    %5110 = vmatpush1.msra.mxu0 0.0
    %5111 = vmatprep.subr.mxu0 0.0
    %5112 = vmatpush1.msra.mxu0 0.0
    %5113 = vmatprep.subr.mxu0 0.0
    %5114 = vmatpush1.msra.mxu0 0.0
    %5115 = vmatprep.subr.mxu0 0.0
    %5116 = vmatpush1.msra.mxu0 0.0
    %5117 = vmatprep.subr.mxu0 0.0
    %5118 = vmatpush1.msra.mxu0 0.0
    %5119 = vmatprep.subr.mxu0 0.0
    %5120 = vmatpush1.msra.mxu0 0.0
    %5121 = vmatprep.subr.mxu0 0.0
    %5122 = vmatpush1.msra.mxu0 0.0
    %5123 = vmatprep.subr.mxu0 0.0
    %5124 = vmatpush1.msra.mxu0 0.0
    %5125 = vmatprep.subr.mxu0 0.0
    %5126 = vmatpush1.msra.mxu0 0.0
    %5127 = vmatprep.subr.mxu0 0.0
    %5128 = vmatpush1.msra.mxu0 0.0
    %5129 = vmatprep.subr.mxu0 0.0
    %5130 = vmatpush1.msra.mxu0 0.0
    %5131 = vmatprep.subr.mxu0 0.0
    %5132 = vmatpush1.msra.mxu0 0.0
    %5133 = vmatprep.subr.mxu0 0.0
    %5134 = vmatpush1.msra.mxu0 0.0
    %5135 = vmatprep.subr.mxu0 0.0
    %5136 = vmatpush1.msra.mxu0 0.0
    %5137 = vmatprep.subr.mxu0 0.0
    %5138 = vmatpush1.msra.mxu0 0.0
    %5139 = vmatprep.subr.mxu0 0.0
    %5140 = vmatpush1.msra.mxu0 0.0
    %5141 = vmatprep.subr.mxu0 0.0
    %5142 = vmatpush1.msra.mxu0 0.0
    %5143 = vmatprep.subr.mxu0 0.0
    %5144 = vmatpush1.msra.mxu0 0.0
    %5145 = vmatprep.mubr.f32.mxu0 0.0
    %v5146 = vand.u32 %v4998, 4294901760
    %5147 = vmatmul.mubr.f32.gmra.mrb[0].mxu0 %v5146
    %v5148 = vpop.f32.mrb[0].mxu0
    %v5149 = vadd.f32 %v5073, %v5148
    %v5150 = vpop.f32.mrb[0].mxu0
    %5151 = vdwg.mxu0
    %5152 = vmatprep.subr.mxu0 0.0
    %v5153 = vand.u32 %v4995, 4294901760
    %v5154 = vsub.f32 %v4995, %v5153
    %5155 = vmatpush1.msra.mxu0 %v5154
    %5156 = vmatprep.subr.mxu0 0.0
    %5157 = vmatpush1.msra.mxu0 0.0
    %5158 = vmatprep.subr.mxu0 0.0
    %5159 = vmatpush1.msra.mxu0 0.0
    %5160 = vmatprep.subr.mxu0 0.0
    %5161 = vmatpush1.msra.mxu0 0.0
    %5162 = vmatprep.subr.mxu0 0.0
    %5163 = vmatpush1.msra.mxu0 0.0
    %5164 = vmatprep.subr.mxu0 0.0
    %5165 = vmatpush1.msra.mxu0 0.0
    %5166 = vmatprep.subr.mxu0 0.0
    %5167 = vmatpush1.msra.mxu0 0.0
    %5168 = vmatprep.subr.mxu0 0.0
    %5169 = vmatpush1.msra.mxu0 0.0
    %5170 = vmatprep.subr.mxu0 0.0
    %5171 = vmatpush1.msra.mxu0 0.0
    %5172 = vmatprep.subr.mxu0 0.0
    %5173 = vmatpush1.msra.mxu0 0.0
    %5174 = vmatprep.subr.mxu0 0.0
    %5175 = vmatpush1.msra.mxu0 0.0
    %5176 = vmatprep.subr.mxu0 0.0
    %5177 = vmatpush1.msra.mxu0 0.0
    %5178 = vmatprep.subr.mxu0 0.0
    %5179 = vmatpush1.msra.mxu0 0.0
    %5180 = vmatprep.subr.mxu0 0.0
    %5181 = vmatpush1.msra.mxu0 0.0
    %5182 = vmatprep.subr.mxu0 0.0
    %5183 = vmatpush1.msra.mxu0 0.0
    %5184 = vmatprep.subr.mxu0 0.0
    %5185 = vmatpush1.msra.mxu0 0.0
    %5186 = vmatprep.subr.mxu0 0.0
    %5187 = vmatpush1.msra.mxu0 0.0
    %5188 = vmatprep.subr.mxu0 0.0
    %5189 = vmatpush1.msra.mxu0 0.0
    %5190 = vmatprep.subr.mxu0 0.0
    %5191 = vmatpush1.msra.mxu0 0.0
    %5192 = vmatprep.subr.mxu0 0.0
    %5193 = vmatpush1.msra.mxu0 0.0
    %5194 = vmatprep.subr.mxu0 0.0
    %5195 = vmatpush1.msra.mxu0 0.0
    %5196 = vmatprep.subr.mxu0 0.0
    %5197 = vmatpush1.msra.mxu0 0.0
    %5198 = vmatprep.subr.mxu0 0.0
    %5199 = vmatpush1.msra.mxu0 0.0
    %5200 = vmatprep.subr.mxu0 0.0
    %5201 = vmatpush1.msra.mxu0 0.0
    %5202 = vmatprep.subr.mxu0 0.0
    %5203 = vmatpush1.msra.mxu0 0.0
    %5204 = vmatprep.subr.mxu0 0.0
    %5205 = vmatpush1.msra.mxu0 0.0
    %5206 = vmatprep.subr.mxu0 0.0
    %5207 = vmatpush1.msra.mxu0 0.0
    %5208 = vmatprep.subr.mxu0 0.0
    %5209 = vmatpush1.msra.mxu0 0.0
    %5210 = vmatprep.subr.mxu0 0.0
    %5211 = vmatpush1.msra.mxu0 0.0
    %5212 = vmatprep.subr.mxu0 0.0
    %5213 = vmatpush1.msra.mxu0 0.0
    %5214 = vmatprep.subr.mxu0 0.0
    %5215 = vmatpush1.msra.mxu0 0.0
    %5216 = vmatprep.subr.mxu0 0.0
    %5217 = vmatpush1.msra.mxu0 0.0
    %5218 = vmatprep.mubr.f32.mxu0 0.0
    %v5219 = vand.u32 %v4998, 4294901760
    %v5220 = vsub.f32 %v4998, %v5219
    %5221 = vmatmul.mubr.f32.gmra.mrb[0].mxu0 %v5220
    %v5222 = vpop.f32.mrb[0].mxu0
    %v5223 = vadd.f32 %v5149, %v5222
    %v5224 = vpop.f32.mrb[0].mxu0
    %5225 = vdwg.mxu0
    %5226 = vmatprep.subr.mxu0 0.0
    %v5227 = vand.u32 %v4995, 4294901760
    %5228 = vmatpush1.msra.mxu0 %v5227
    %5229 = vmatprep.subr.mxu0 0.0
    %5230 = vmatpush1.msra.mxu0 0.0
    %5231 = vmatprep.subr.mxu0 0.0
    %5232 = vmatpush1.msra.mxu0 0.0
    %5233 = vmatprep.subr.mxu0 0.0
    %5234 = vmatpush1.msra.mxu0 0.0
    %5235 = vmatprep.subr.mxu0 0.0
    %5236 = vmatpush1.msra.mxu0 0.0
    %5237 = vmatprep.subr.mxu0 0.0
    %5238 = vmatpush1.msra.mxu0 0.0
    %5239 = vmatprep.subr.mxu0 0.0
    %5240 = vmatpush1.msra.mxu0 0.0
    %5241 = vmatprep.subr.mxu0 0.0
    %5242 = vmatpush1.msra.mxu0 0.0
    %5243 = vmatprep.subr.mxu0 0.0
    %5244 = vmatpush1.msra.mxu0 0.0
    %5245 = vmatprep.subr.mxu0 0.0
    %5246 = vmatpush1.msra.mxu0 0.0
    %5247 = vmatprep.subr.mxu0 0.0
    %5248 = vmatpush1.msra.mxu0 0.0
    %5249 = vmatprep.subr.mxu0 0.0
    %5250 = vmatpush1.msra.mxu0 0.0
    %5251 = vmatprep.subr.mxu0 0.0
    %5252 = vmatpush1.msra.mxu0 0.0
    %5253 = vmatprep.subr.mxu0 0.0
    %5254 = vmatpush1.msra.mxu0 0.0
    %5255 = vmatprep.subr.mxu0 0.0
    %5256 = vmatpush1.msra.mxu0 0.0
    %5257 = vmatprep.subr.mxu0 0.0
    %5258 = vmatpush1.msra.mxu0 0.0
    %5259 = vmatprep.subr.mxu0 0.0
    %5260 = vmatpush1.msra.mxu0 0.0
    %5261 = vmatprep.subr.mxu0 0.0
    %5262 = vmatpush1.msra.mxu0 0.0
    %5263 = vmatprep.subr.mxu0 0.0
    %5264 = vmatpush1.msra.mxu0 0.0
    %5265 = vmatprep.subr.mxu0 0.0
    %5266 = vmatpush1.msra.mxu0 0.0
    %5267 = vmatprep.subr.mxu0 0.0
    %5268 = vmatpush1.msra.mxu0 0.0
    %5269 = vmatprep.subr.mxu0 0.0
    %5270 = vmatpush1.msra.mxu0 0.0
    %5271 = vmatprep.subr.mxu0 0.0
    %5272 = vmatpush1.msra.mxu0 0.0
    %5273 = vmatprep.subr.mxu0 0.0
    %5274 = vmatpush1.msra.mxu0 0.0
    %5275 = vmatprep.subr.mxu0 0.0
    %5276 = vmatpush1.msra.mxu0 0.0
    %5277 = vmatprep.subr.mxu0 0.0
    %5278 = vmatpush1.msra.mxu0 0.0
    %5279 = vmatprep.subr.mxu0 0.0
    %5280 = vmatpush1.msra.mxu0 0.0
    %5281 = vmatprep.subr.mxu0 0.0
    %5282 = vmatpush1.msra.mxu0 0.0
    %5283 = vmatprep.subr.mxu0 0.0
    %5284 = vmatpush1.msra.mxu0 0.0
    %5285 = vmatprep.subr.mxu0 0.0
    %5286 = vmatpush1.msra.mxu0 0.0
    %5287 = vmatprep.subr.mxu0 0.0
    %5288 = vmatpush1.msra.mxu0 0.0
    %5289 = vmatprep.subr.mxu0 0.0
    %5290 = vmatpush1.msra.mxu0 0.0
    %5291 = vmatprep.mubr.f32.mxu0 0.0
    %v5292 = vand.u32 %v4998, 4294901760
    %v5293 = vsub.f32 %v4998, %v5292
    %v5294 = vand.u32 %v5293, 4294901760
    %5295 = vmatmul.mubr.f32.gmra.mrb[0].mxu0 %v5294
    %v5296 = vpop.f32.mrb[0].mxu0
    %v5297 = vadd.f32 %v5223, %v5296
    %v5298 = vpop.f32.mrb[0].mxu0
    %5299 = vdwg.mxu0
    %5300 = vmatprep.subr.mxu0 0.0
    %v5301 = vand.u32 %v4995, 4294901760
    %v5302 = vsub.f32 %v4995, %v5301
    %v5303 = vand.u32 %v5302, 4294901760
    %5304 = vmatpush1.msra.mxu0 %v5303
    %5305 = vmatprep.subr.mxu0 0.0
    %5306 = vmatpush1.msra.mxu0 0.0
    %5307 = vmatprep.subr.mxu0 0.0
    %5308 = vmatpush1.msra.mxu0 0.0
    %5309 = vmatprep.subr.mxu0 0.0
    %5310 = vmatpush1.msra.mxu0 0.0
    %5311 = vmatprep.subr.mxu0 0.0
    %5312 = vmatpush1.msra.mxu0 0.0
    %5313 = vmatprep.subr.mxu0 0.0
    %5314 = vmatpush1.msra.mxu0 0.0
    %5315 = vmatprep.subr.mxu0 0.0
    %5316 = vmatpush1.msra.mxu0 0.0
    %5317 = vmatprep.subr.mxu0 0.0
    %5318 = vmatpush1.msra.mxu0 0.0
    %5319 = vmatprep.subr.mxu0 0.0
    %5320 = vmatpush1.msra.mxu0 0.0
    %5321 = vmatprep.subr.mxu0 0.0
    %5322 = vmatpush1.msra.mxu0 0.0
    %5323 = vmatprep.subr.mxu0 0.0
    %5324 = vmatpush1.msra.mxu0 0.0
    %5325 = vmatprep.subr.mxu0 0.0
    %5326 = vmatpush1.msra.mxu0 0.0
    %5327 = vmatprep.subr.mxu0 0.0
    %5328 = vmatpush1.msra.mxu0 0.0
    %5329 = vmatprep.subr.mxu0 0.0
    %5330 = vmatpush1.msra.mxu0 0.0
    %5331 = vmatprep.subr.mxu0 0.0
    %5332 = vmatpush1.msra.mxu0 0.0
    %5333 = vmatprep.subr.mxu0 0.0
    %5334 = vmatpush1.msra.mxu0 0.0
    %5335 = vmatprep.subr.mxu0 0.0
    %5336 = vmatpush1.msra.mxu0 0.0
    %5337 = vmatprep.subr.mxu0 0.0
    %5338 = vmatpush1.msra.mxu0 0.0
    %5339 = vmatprep.subr.mxu0 0.0
    %5340 = vmatpush1.msra.mxu0 0.0
    %5341 = vmatprep.subr.mxu0 0.0
    %5342 = vmatpush1.msra.mxu0 0.0
    %5343 = vmatprep.subr.mxu0 0.0
    %5344 = vmatpush1.msra.mxu0 0.0
    %5345 = vmatprep.subr.mxu0 0.0
    %5346 = vmatpush1.msra.mxu0 0.0
    %5347 = vmatprep.subr.mxu0 0.0
    %5348 = vmatpush1.msra.mxu0 0.0
    %5349 = vmatprep.subr.mxu0 0.0
    %5350 = vmatpush1.msra.mxu0 0.0
    %5351 = vmatprep.subr.mxu0 0.0
    %5352 = vmatpush1.msra.mxu0 0.0
    %5353 = vmatprep.subr.mxu0 0.0
    %5354 = vmatpush1.msra.mxu0 0.0
    %5355 = vmatprep.subr.mxu0 0.0
    %5356 = vmatpush1.msra.mxu0 0.0
    %5357 = vmatprep.subr.mxu0 0.0
    %5358 = vmatpush1.msra.mxu0 0.0
    %5359 = vmatprep.subr.mxu0 0.0
    %5360 = vmatpush1.msra.mxu0 0.0
    %5361 = vmatprep.subr.mxu0 0.0
    %5362 = vmatpush1.msra.mxu0 0.0
    %5363 = vmatprep.subr.mxu0 0.0
    %5364 = vmatpush1.msra.mxu0 0.0
    %5365 = vmatprep.subr.mxu0 0.0
    %5366 = vmatpush1.msra.mxu0 0.0
    %5367 = vmatprep.mubr.f32.mxu0 0.0
    %v5368 = vand.u32 %v4998, 4294901760
    %5369 = vmatmul.mubr.f32.gmra.mrb[0].mxu0 %v5368
    %v5370 = vpop.f32.mrb[0].mxu0
    %v5371 = vadd.f32 %v5297, %v5370
    %v5372 = vpop.f32.mrb[0].mxu0
    %5373 = vdwg.mxu0
    %5374 = vmatprep.subr.mxu0 0.0
    %v5375 = vand.u32 %v4995, 4294901760
    %5376 = vmatpush1.msra.mxu0 %v5375
    %5377 = vmatprep.subr.mxu0 0.0
    %5378 = vmatpush1.msra.mxu0 0.0
    %5379 = vmatprep.subr.mxu0 0.0
    %5380 = vmatpush1.msra.mxu0 0.0
    %5381 = vmatprep.subr.mxu0 0.0
    %5382 = vmatpush1.msra.mxu0 0.0
    %5383 = vmatprep.subr.mxu0 0.0
    %5384 = vmatpush1.msra.mxu0 0.0
    %5385 = vmatprep.subr.mxu0 0.0
    %5386 = vmatpush1.msra.mxu0 0.0
    %5387 = vmatprep.subr.mxu0 0.0
    %5388 = vmatpush1.msra.mxu0 0.0
    %5389 = vmatprep.subr.mxu0 0.0
    %5390 = vmatpush1.msra.mxu0 0.0
    %5391 = vmatprep.subr.mxu0 0.0
    %5392 = vmatpush1.msra.mxu0 0.0
    %5393 = vmatprep.subr.mxu0 0.0
    %5394 = vmatpush1.msra.mxu0 0.0
    %5395 = vmatprep.subr.mxu0 0.0
    %5396 = vmatpush1.msra.mxu0 0.0
    %5397 = vmatprep.subr.mxu0 0.0
    %5398 = vmatpush1.msra.mxu0 0.0
    %5399 = vmatprep.subr.mxu0 0.0
    %5400 = vmatpush1.msra.mxu0 0.0
    %5401 = vmatprep.subr.mxu0 0.0
    %5402 = vmatpush1.msra.mxu0 0.0
    %5403 = vmatprep.subr.mxu0 0.0
    %5404 = vmatpush1.msra.mxu0 0.0
    %5405 = vmatprep.subr.mxu0 0.0
    %5406 = vmatpush1.msra.mxu0 0.0
    %5407 = vmatprep.subr.mxu0 0.0
    %5408 = vmatpush1.msra.mxu0 0.0
    %5409 = vmatprep.subr.mxu0 0.0
    %5410 = vmatpush1.msra.mxu0 0.0
    %5411 = vmatprep.subr.mxu0 0.0
    %5412 = vmatpush1.msra.mxu0 0.0
    %5413 = vmatprep.subr.mxu0 0.0
    %5414 = vmatpush1.msra.mxu0 0.0
    %5415 = vmatprep.subr.mxu0 0.0
    %5416 = vmatpush1.msra.mxu0 0.0
    %5417 = vmatprep.subr.mxu0 0.0
    %5418 = vmatpush1.msra.mxu0 0.0
    %5419 = vmatprep.subr.mxu0 0.0
    %5420 = vmatpush1.msra.mxu0 0.0
    %5421 = vmatprep.subr.mxu0 0.0
    %5422 = vmatpush1.msra.mxu0 0.0
    %5423 = vmatprep.subr.mxu0 0.0
    %5424 = vmatpush1.msra.mxu0 0.0
    %5425 = vmatprep.subr.mxu0 0.0
    %5426 = vmatpush1.msra.mxu0 0.0
    %5427 = vmatprep.subr.mxu0 0.0
    %5428 = vmatpush1.msra.mxu0 0.0
    %5429 = vmatprep.subr.mxu0 0.0
    %5430 = vmatpush1.msra.mxu0 0.0
    %5431 = vmatprep.subr.mxu0 0.0
    %5432 = vmatpush1.msra.mxu0 0.0
    %5433 = vmatprep.subr.mxu0 0.0
    %5434 = vmatpush1.msra.mxu0 0.0
    %5435 = vmatprep.subr.mxu0 0.0
    %5436 = vmatpush1.msra.mxu0 0.0
    %5437 = vmatprep.subr.mxu0 0.0
    %5438 = vmatpush1.msra.mxu0 0.0
    %5439 = vmatprep.mubr.f32.mxu0 0.0
    %v5440 = vand.u32 %v4998, 4294901760
    %5441 = vmatmul.mubr.f32.gmra.mrb[0].mxu0 %v5440
    %v5442 = vpop.f32.mrb[0].mxu0
    %v5443 = vadd.f32 %v5371, %v5442
    %v5444 = vpop.f32.mrb[0].mxu0
    %5445 = vdwg.mxu0
    %5447 = vrot.lane.b32.xlu0 %v5443, 24
    %v5448 = vpop.permute.xlu0 %5447
    %vm5450 = vcmask 261312
    %5451 = vst.msk [vmem:[#allocation2] sm:$0xff] %vm5450, %v5448
    %v5453 = vsel %vm1761, %v656, 0
    %v5456 = vsel %vm1761, %v1206, 0
    %5458 = vmatprep.subr.mxu0 0.0
    %v5459 = vand.u32 %v5456, 4294901760
    %5460 = vmatpush1.xpose.msra.mxu0 %v5459
    %5461 = vmatprep.subr.mxu0 0.0
    %5462 = vmatpush1.xpose.msra.mxu0 0.0
    %5463 = vmatprep.subr.mxu0 0.0
    %5464 = vmatpush1.xpose.msra.mxu0 0.0
    %5465 = vmatprep.subr.mxu0 0.0
    %5466 = vmatpush1.xpose.msra.mxu0 0.0
    %5467 = vmatprep.subr.mxu0 0.0
    %5468 = vmatpush1.xpose.msra.mxu0 0.0
    %5469 = vmatprep.subr.mxu0 0.0
    %5470 = vmatpush1.xpose.msra.mxu0 0.0
    %5471 = vmatprep.subr.mxu0 0.0
    %5472 = vmatpush1.xpose.msra.mxu0 0.0
    %5473 = vmatprep.subr.mxu0 0.0
    %5474 = vmatpush1.xpose.msra.mxu0 0.0
    %5475 = vmatprep.subr.mxu0 0.0
    %5476 = vmatpush1.xpose.msra.mxu0 0.0
    %5477 = vmatprep.subr.mxu0 0.0
    %5478 = vmatpush1.xpose.msra.mxu0 0.0
    %5479 = vmatprep.subr.mxu0 0.0
    %5480 = vmatpush1.xpose.msra.mxu0 0.0
    %5481 = vmatprep.subr.mxu0 0.0
    %5482 = vmatpush1.xpose.msra.mxu0 0.0
    %5483 = vmatprep.subr.mxu0 0.0
    %5484 = vmatpush1.xpose.msra.mxu0 0.0
    %5485 = vmatprep.subr.mxu0 0.0
    %5486 = vmatpush1.xpose.msra.mxu0 0.0
    %5487 = vmatprep.subr.mxu0 0.0
    %5488 = vmatpush1.xpose.msra.mxu0 0.0
    %5489 = vmatprep.subr.mxu0 0.0
    %5490 = vmatpush1.xpose.msra.mxu0 0.0
    %5491 = vmatprep.subr.mxu0 0.0
    %5492 = vmatpush1.xpose.msra.mxu0 0.0
    %5493 = vmatprep.subr.mxu0 0.0
    %5494 = vmatpush1.xpose.msra.mxu0 0.0
    %5495 = vmatprep.subr.mxu0 0.0
    %5496 = vmatpush1.xpose.msra.mxu0 0.0
    %5497 = vmatprep.subr.mxu0 0.0
    %5498 = vmatpush1.xpose.msra.mxu0 0.0
    %5499 = vmatprep.subr.mxu0 0.0
    %5500 = vmatpush1.xpose.msra.mxu0 0.0
    %5501 = vmatprep.subr.mxu0 0.0
    %5502 = vmatpush1.xpose.msra.mxu0 0.0
    %5503 = vmatprep.subr.mxu0 0.0
    %5504 = vmatpush1.xpose.msra.mxu0 0.0
    %5505 = vmatprep.subr.mxu0 0.0
    %5506 = vmatpush1.xpose.msra.mxu0 0.0
    %5507 = vmatprep.subr.mxu0 0.0
    %5508 = vmatpush1.xpose.msra.mxu0 0.0
    %5509 = vmatprep.subr.mxu0 0.0
    %5510 = vmatpush1.xpose.msra.mxu0 0.0
    %5511 = vmatprep.subr.mxu0 0.0
    %5512 = vmatpush1.xpose.msra.mxu0 0.0
    %5513 = vmatprep.subr.mxu0 0.0
    %5514 = vmatpush1.xpose.msra.mxu0 0.0
    %5515 = vmatprep.subr.mxu0 0.0
    %5516 = vmatpush1.xpose.msra.mxu0 0.0
    %5517 = vmatprep.subr.mxu0 0.0
    %5518 = vmatpush1.xpose.msra.mxu0 0.0
    %5519 = vmatprep.subr.mxu0 0.0
    %5520 = vmatpush1.xpose.msra.mxu0 0.0
    %5521 = vmatprep.subr.mxu0 0.0
    %5522 = vmatpush1.xpose.msra.mxu0 0.0
    %5523 = vmatprep.mubr.f32.mxu0 0.0
    %v5524 = vand.u32 %v5453, 4294901760
    %v5525 = vsub.f32 %v5453, %v5524
    %v5526 = vand.u32 %v5525, 4294901760
    %v5527 = vsub.f32 %v5525, %v5526
    %v5528 = vand.u32 %v5527, 4294901760
    %5529 = vmatmul.mubr.f32.gmra.mrb[0].mxu0 %v5528
    %v5530 = vpop.f32.mrb[0].mxu0
    %v5531 = vadd.f32 0.0, %v5530
    %v5532 = vpop.f32.mrb[0].mxu0
    %5533 = vdwg.mxu0
    %5534 = vmatprep.subr.mxu0 0.0
    %v5535 = vand.u32 %v5456, 4294901760
    %v5536 = vsub.f32 %v5456, %v5535
    %v5537 = vand.u32 %v5536, 4294901760
    %v5538 = vsub.f32 %v5536, %v5537
    %v5539 = vand.u32 %v5538, 4294901760
    %5540 = vmatpush1.xpose.msra.mxu0 %v5539
    %5541 = vmatprep.subr.mxu0 0.0
    %5542 = vmatpush1.xpose.msra.mxu0 0.0
    %5543 = vmatprep.subr.mxu0 0.0
    %5544 = vmatpush1.xpose.msra.mxu0 0.0
    %5545 = vmatprep.subr.mxu0 0.0
    %5546 = vmatpush1.xpose.msra.mxu0 0.0
    %5547 = vmatprep.subr.mxu0 0.0
    %5548 = vmatpush1.xpose.msra.mxu0 0.0
    %5549 = vmatprep.subr.mxu0 0.0
    %5550 = vmatpush1.xpose.msra.mxu0 0.0
    %5551 = vmatprep.subr.mxu0 0.0
    %5552 = vmatpush1.xpose.msra.mxu0 0.0
    %5553 = vmatprep.subr.mxu0 0.0
    %5554 = vmatpush1.xpose.msra.mxu0 0.0
    %5555 = vmatprep.subr.mxu0 0.0
    %5556 = vmatpush1.xpose.msra.mxu0 0.0
    %5557 = vmatprep.subr.mxu0 0.0
    %5558 = vmatpush1.xpose.msra.mxu0 0.0
    %5559 = vmatprep.subr.mxu0 0.0
    %5560 = vmatpush1.xpose.msra.mxu0 0.0
    %5561 = vmatprep.subr.mxu0 0.0
    %5562 = vmatpush1.xpose.msra.mxu0 0.0
    %5563 = vmatprep.subr.mxu0 0.0
    %5564 = vmatpush1.xpose.msra.mxu0 0.0
    %5565 = vmatprep.subr.mxu0 0.0
    %5566 = vmatpush1.xpose.msra.mxu0 0.0
    %5567 = vmatprep.subr.mxu0 0.0
    %5568 = vmatpush1.xpose.msra.mxu0 0.0
    %5569 = vmatprep.subr.mxu0 0.0
    %5570 = vmatpush1.xpose.msra.mxu0 0.0
    %5571 = vmatprep.subr.mxu0 0.0
    %5572 = vmatpush1.xpose.msra.mxu0 0.0
    %5573 = vmatprep.subr.mxu0 0.0
    %5574 = vmatpush1.xpose.msra.mxu0 0.0
    %5575 = vmatprep.subr.mxu0 0.0
    %5576 = vmatpush1.xpose.msra.mxu0 0.0
    %5577 = vmatprep.subr.mxu0 0.0
    %5578 = vmatpush1.xpose.msra.mxu0 0.0
    %5579 = vmatprep.subr.mxu0 0.0
    %5580 = vmatpush1.xpose.msra.mxu0 0.0
    %5581 = vmatprep.subr.mxu0 0.0
    %5582 = vmatpush1.xpose.msra.mxu0 0.0
    %5583 = vmatprep.subr.mxu0 0.0
    %5584 = vmatpush1.xpose.msra.mxu0 0.0
    %5585 = vmatprep.subr.mxu0 0.0
    %5586 = vmatpush1.xpose.msra.mxu0 0.0
    %5587 = vmatprep.subr.mxu0 0.0
    %5588 = vmatpush1.xpose.msra.mxu0 0.0
    %5589 = vmatprep.subr.mxu0 0.0
    %5590 = vmatpush1.xpose.msra.mxu0 0.0
    %5591 = vmatprep.subr.mxu0 0.0
    %5592 = vmatpush1.xpose.msra.mxu0 0.0
    %5593 = vmatprep.subr.mxu0 0.0
    %5594 = vmatpush1.xpose.msra.mxu0 0.0
    %5595 = vmatprep.subr.mxu0 0.0
    %5596 = vmatpush1.xpose.msra.mxu0 0.0
    %5597 = vmatprep.subr.mxu0 0.0
    %5598 = vmatpush1.xpose.msra.mxu0 0.0
    %5599 = vmatprep.subr.mxu0 0.0
    %5600 = vmatpush1.xpose.msra.mxu0 0.0
    %5601 = vmatprep.subr.mxu0 0.0
    %5602 = vmatpush1.xpose.msra.mxu0 0.0
    %5603 = vmatprep.mubr.f32.mxu0 0.0
    %v5604 = vand.u32 %v5453, 4294901760
    %5605 = vmatmul.mubr.f32.gmra.mrb[0].mxu0 %v5604
    %v5606 = vpop.f32.mrb[0].mxu0
    %v5607 = vadd.f32 %v5531, %v5606
    %v5608 = vpop.f32.mrb[0].mxu0
    %5609 = vdwg.mxu0
    %5610 = vmatprep.subr.mxu0 0.0
    %v5611 = vand.u32 %v5456, 4294901760
    %v5612 = vsub.f32 %v5456, %v5611
    %5613 = vmatpush1.xpose.msra.mxu0 %v5612
    %5614 = vmatprep.subr.mxu0 0.0
    %5615 = vmatpush1.xpose.msra.mxu0 0.0
    %5616 = vmatprep.subr.mxu0 0.0
    %5617 = vmatpush1.xpose.msra.mxu0 0.0
    %5618 = vmatprep.subr.mxu0 0.0
    %5619 = vmatpush1.xpose.msra.mxu0 0.0
    %5620 = vmatprep.subr.mxu0 0.0
    %5621 = vmatpush1.xpose.msra.mxu0 0.0
    %5622 = vmatprep.subr.mxu0 0.0
    %5623 = vmatpush1.xpose.msra.mxu0 0.0
    %5624 = vmatprep.subr.mxu0 0.0
    %5625 = vmatpush1.xpose.msra.mxu0 0.0
    %5626 = vmatprep.subr.mxu0 0.0
    %5627 = vmatpush1.xpose.msra.mxu0 0.0
    %5628 = vmatprep.subr.mxu0 0.0
    %5629 = vmatpush1.xpose.msra.mxu0 0.0
    %5630 = vmatprep.subr.mxu0 0.0
    %5631 = vmatpush1.xpose.msra.mxu0 0.0
    %5632 = vmatprep.subr.mxu0 0.0
    %5633 = vmatpush1.xpose.msra.mxu0 0.0
    %5634 = vmatprep.subr.mxu0 0.0
    %5635 = vmatpush1.xpose.msra.mxu0 0.0
    %5636 = vmatprep.subr.mxu0 0.0
    %5637 = vmatpush1.xpose.msra.mxu0 0.0
    %5638 = vmatprep.subr.mxu0 0.0
    %5639 = vmatpush1.xpose.msra.mxu0 0.0
    %5640 = vmatprep.subr.mxu0 0.0
    %5641 = vmatpush1.xpose.msra.mxu0 0.0
    %5642 = vmatprep.subr.mxu0 0.0
    %5643 = vmatpush1.xpose.msra.mxu0 0.0
    %5644 = vmatprep.subr.mxu0 0.0
    %5645 = vmatpush1.xpose.msra.mxu0 0.0
    %5646 = vmatprep.subr.mxu0 0.0
    %5647 = vmatpush1.xpose.msra.mxu0 0.0
    %5648 = vmatprep.subr.mxu0 0.0
    %5649 = vmatpush1.xpose.msra.mxu0 0.0
    %5650 = vmatprep.subr.mxu0 0.0
    %5651 = vmatpush1.xpose.msra.mxu0 0.0
    %5652 = vmatprep.subr.mxu0 0.0
    %5653 = vmatpush1.xpose.msra.mxu0 0.0
    %5654 = vmatprep.subr.mxu0 0.0
    %5655 = vmatpush1.xpose.msra.mxu0 0.0
    %5656 = vmatprep.subr.mxu0 0.0
    %5657 = vmatpush1.xpose.msra.mxu0 0.0
    %5658 = vmatprep.subr.mxu0 0.0
    %5659 = vmatpush1.xpose.msra.mxu0 0.0
    %5660 = vmatprep.subr.mxu0 0.0
    %5661 = vmatpush1.xpose.msra.mxu0 0.0
    %5662 = vmatprep.subr.mxu0 0.0
    %5663 = vmatpush1.xpose.msra.mxu0 0.0
    %5664 = vmatprep.subr.mxu0 0.0
    %5665 = vmatpush1.xpose.msra.mxu0 0.0
    %5666 = vmatprep.subr.mxu0 0.0
    %5667 = vmatpush1.xpose.msra.mxu0 0.0
    %5668 = vmatprep.subr.mxu0 0.0
    %5669 = vmatpush1.xpose.msra.mxu0 0.0
    %5670 = vmatprep.subr.mxu0 0.0
    %5671 = vmatpush1.xpose.msra.mxu0 0.0
    %5672 = vmatprep.subr.mxu0 0.0
    %5673 = vmatpush1.xpose.msra.mxu0 0.0
    %5674 = vmatprep.subr.mxu0 0.0
    %5675 = vmatpush1.xpose.msra.mxu0 0.0
    %5676 = vmatprep.mubr.f32.mxu0 0.0
    %v5677 = vand.u32 %v5453, 4294901760
    %v5678 = vsub.f32 %v5453, %v5677
    %5679 = vmatmul.mubr.f32.gmra.mrb[0].mxu0 %v5678
    %v5680 = vpop.f32.mrb[0].mxu0
    %v5681 = vadd.f32 %v5607, %v5680
    %v5682 = vpop.f32.mrb[0].mxu0
    %5683 = vdwg.mxu0
    %5684 = vmatprep.subr.mxu0 0.0
    %v5685 = vand.u32 %v5456, 4294901760
    %5686 = vmatpush1.xpose.msra.mxu0 %v5685
    %5687 = vmatprep.subr.mxu0 0.0
    %5688 = vmatpush1.xpose.msra.mxu0 0.0
    %5689 = vmatprep.subr.mxu0 0.0
    %5690 = vmatpush1.xpose.msra.mxu0 0.0
    %5691 = vmatprep.subr.mxu0 0.0
    %5692 = vmatpush1.xpose.msra.mxu0 0.0
    %5693 = vmatprep.subr.mxu0 0.0
    %5694 = vmatpush1.xpose.msra.mxu0 0.0
    %5695 = vmatprep.subr.mxu0 0.0
    %5696 = vmatpush1.xpose.msra.mxu0 0.0
    %5697 = vmatprep.subr.mxu0 0.0
    %5698 = vmatpush1.xpose.msra.mxu0 0.0
    %5699 = vmatprep.subr.mxu0 0.0
    %5700 = vmatpush1.xpose.msra.mxu0 0.0
    %5701 = vmatprep.subr.mxu0 0.0
    %5702 = vmatpush1.xpose.msra.mxu0 0.0
    %5703 = vmatprep.subr.mxu0 0.0
    %5704 = vmatpush1.xpose.msra.mxu0 0.0
    %5705 = vmatprep.subr.mxu0 0.0
    %5706 = vmatpush1.xpose.msra.mxu0 0.0
    %5707 = vmatprep.subr.mxu0 0.0
    %5708 = vmatpush1.xpose.msra.mxu0 0.0
    %5709 = vmatprep.subr.mxu0 0.0
    %5710 = vmatpush1.xpose.msra.mxu0 0.0
    %5711 = vmatprep.subr.mxu0 0.0
    %5712 = vmatpush1.xpose.msra.mxu0 0.0
    %5713 = vmatprep.subr.mxu0 0.0
    %5714 = vmatpush1.xpose.msra.mxu0 0.0
    %5715 = vmatprep.subr.mxu0 0.0
    %5716 = vmatpush1.xpose.msra.mxu0 0.0
    %5717 = vmatprep.subr.mxu0 0.0
    %5718 = vmatpush1.xpose.msra.mxu0 0.0
    %5719 = vmatprep.subr.mxu0 0.0
    %5720 = vmatpush1.xpose.msra.mxu0 0.0
    %5721 = vmatprep.subr.mxu0 0.0
    %5722 = vmatpush1.xpose.msra.mxu0 0.0
    %5723 = vmatprep.subr.mxu0 0.0
    %5724 = vmatpush1.xpose.msra.mxu0 0.0
    %5725 = vmatprep.subr.mxu0 0.0
    %5726 = vmatpush1.xpose.msra.mxu0 0.0
    %5727 = vmatprep.subr.mxu0 0.0
    %5728 = vmatpush1.xpose.msra.mxu0 0.0
    %5729 = vmatprep.subr.mxu0 0.0
    %5730 = vmatpush1.xpose.msra.mxu0 0.0
    %5731 = vmatprep.subr.mxu0 0.0
    %5732 = vmatpush1.xpose.msra.mxu0 0.0
    %5733 = vmatprep.subr.mxu0 0.0
    %5734 = vmatpush1.xpose.msra.mxu0 0.0
    %5735 = vmatprep.subr.mxu0 0.0
    %5736 = vmatpush1.xpose.msra.mxu0 0.0
    %5737 = vmatprep.subr.mxu0 0.0
    %5738 = vmatpush1.xpose.msra.mxu0 0.0
    %5739 = vmatprep.subr.mxu0 0.0
    %5740 = vmatpush1.xpose.msra.mxu0 0.0
    %5741 = vmatprep.subr.mxu0 0.0
    %5742 = vmatpush1.xpose.msra.mxu0 0.0
    %5743 = vmatprep.subr.mxu0 0.0
    %5744 = vmatpush1.xpose.msra.mxu0 0.0
    %5745 = vmatprep.subr.mxu0 0.0
    %5746 = vmatpush1.xpose.msra.mxu0 0.0
    %5747 = vmatprep.subr.mxu0 0.0
    %5748 = vmatpush1.xpose.msra.mxu0 0.0
    %5749 = vmatprep.mubr.f32.mxu0 0.0
    %v5750 = vand.u32 %v5453, 4294901760
    %v5751 = vsub.f32 %v5453, %v5750
    %v5752 = vand.u32 %v5751, 4294901760
    %5753 = vmatmul.mubr.f32.gmra.mrb[0].mxu0 %v5752
    %v5754 = vpop.f32.mrb[0].mxu0
    %v5755 = vadd.f32 %v5681, %v5754
    %v5756 = vpop.f32.mrb[0].mxu0
    %5757 = vdwg.mxu0
    %5758 = vmatprep.subr.mxu0 0.0
    %v5759 = vand.u32 %v5456, 4294901760
    %v5760 = vsub.f32 %v5456, %v5759
    %v5761 = vand.u32 %v5760, 4294901760
    %5762 = vmatpush1.xpose.msra.mxu0 %v5761
    %5763 = vmatprep.subr.mxu0 0.0
    %5764 = vmatpush1.xpose.msra.mxu0 0.0
    %5765 = vmatprep.subr.mxu0 0.0
    %5766 = vmatpush1.xpose.msra.mxu0 0.0
    %5767 = vmatprep.subr.mxu0 0.0
    %5768 = vmatpush1.xpose.msra.mxu0 0.0
    %5769 = vmatprep.subr.mxu0 0.0
    %5770 = vmatpush1.xpose.msra.mxu0 0.0
    %5771 = vmatprep.subr.mxu0 0.0
    %5772 = vmatpush1.xpose.msra.mxu0 0.0
    %5773 = vmatprep.subr.mxu0 0.0
    %5774 = vmatpush1.xpose.msra.mxu0 0.0
    %5775 = vmatprep.subr.mxu0 0.0
    %5776 = vmatpush1.xpose.msra.mxu0 0.0
    %5777 = vmatprep.subr.mxu0 0.0
    %5778 = vmatpush1.xpose.msra.mxu0 0.0
    %5779 = vmatprep.subr.mxu0 0.0
    %5780 = vmatpush1.xpose.msra.mxu0 0.0
    %5781 = vmatprep.subr.mxu0 0.0
    %5782 = vmatpush1.xpose.msra.mxu0 0.0
    %5783 = vmatprep.subr.mxu0 0.0
    %5784 = vmatpush1.xpose.msra.mxu0 0.0
    %5785 = vmatprep.subr.mxu0 0.0
    %5786 = vmatpush1.xpose.msra.mxu0 0.0
    %5787 = vmatprep.subr.mxu0 0.0
    %5788 = vmatpush1.xpose.msra.mxu0 0.0
    %5789 = vmatprep.subr.mxu0 0.0
    %5790 = vmatpush1.xpose.msra.mxu0 0.0
    %5791 = vmatprep.subr.mxu0 0.0
    %5792 = vmatpush1.xpose.msra.mxu0 0.0
    %5793 = vmatprep.subr.mxu0 0.0
    %5794 = vmatpush1.xpose.msra.mxu0 0.0
    %5795 = vmatprep.subr.mxu0 0.0
    %5796 = vmatpush1.xpose.msra.mxu0 0.0
    %5797 = vmatprep.subr.mxu0 0.0
    %5798 = vmatpush1.xpose.msra.mxu0 0.0
    %5799 = vmatprep.subr.mxu0 0.0
    %5800 = vmatpush1.xpose.msra.mxu0 0.0
    %5801 = vmatprep.subr.mxu0 0.0
    %5802 = vmatpush1.xpose.msra.mxu0 0.0
    %5803 = vmatprep.subr.mxu0 0.0
    %5804 = vmatpush1.xpose.msra.mxu0 0.0
    %5805 = vmatprep.subr.mxu0 0.0
    %5806 = vmatpush1.xpose.msra.mxu0 0.0
    %5807 = vmatprep.subr.mxu0 0.0
    %5808 = vmatpush1.xpose.msra.mxu0 0.0
    %5809 = vmatprep.subr.mxu0 0.0
    %5810 = vmatpush1.xpose.msra.mxu0 0.0
    %5811 = vmatprep.subr.mxu0 0.0
    %5812 = vmatpush1.xpose.msra.mxu0 0.0
    %5813 = vmatprep.subr.mxu0 0.0
    %5814 = vmatpush1.xpose.msra.mxu0 0.0
    %5815 = vmatprep.subr.mxu0 0.0
    %5816 = vmatpush1.xpose.msra.mxu0 0.0
    %5817 = vmatprep.subr.mxu0 0.0
    %5818 = vmatpush1.xpose.msra.mxu0 0.0
    %5819 = vmatprep.subr.mxu0 0.0
    %5820 = vmatpush1.xpose.msra.mxu0 0.0
    %5821 = vmatprep.subr.mxu0 0.0
    %5822 = vmatpush1.xpose.msra.mxu0 0.0
    %5823 = vmatprep.subr.mxu0 0.0
    %5824 = vmatpush1.xpose.msra.mxu0 0.0
    %5825 = vmatprep.mubr.f32.mxu0 0.0
    %v5826 = vand.u32 %v5453, 4294901760
    %5827 = vmatmul.mubr.f32.gmra.mrb[0].mxu0 %v5826
    %v5828 = vpop.f32.mrb[0].mxu0
    %v5829 = vadd.f32 %v5755, %v5828
    %v5830 = vpop.f32.mrb[0].mxu0
    %5831 = vdwg.mxu0
    %5832 = vmatprep.subr.mxu0 0.0
    %v5833 = vand.u32 %v5456, 4294901760
    %5834 = vmatpush1.xpose.msra.mxu0 %v5833
    %5835 = vmatprep.subr.mxu0 0.0
    %5836 = vmatpush1.xpose.msra.mxu0 0.0
    %5837 = vmatprep.subr.mxu0 0.0
    %5838 = vmatpush1.xpose.msra.mxu0 0.0
    %5839 = vmatprep.subr.mxu0 0.0
    %5840 = vmatpush1.xpose.msra.mxu0 0.0
    %5841 = vmatprep.subr.mxu0 0.0
    %5842 = vmatpush1.xpose.msra.mxu0 0.0
    %5843 = vmatprep.subr.mxu0 0.0
    %5844 = vmatpush1.xpose.msra.mxu0 0.0
    %5845 = vmatprep.subr.mxu0 0.0
    %5846 = vmatpush1.xpose.msra.mxu0 0.0
    %5847 = vmatprep.subr.mxu0 0.0
    %5848 = vmatpush1.xpose.msra.mxu0 0.0
    %5849 = vmatprep.subr.mxu0 0.0
    %5850 = vmatpush1.xpose.msra.mxu0 0.0
    %5851 = vmatprep.subr.mxu0 0.0
    %5852 = vmatpush1.xpose.msra.mxu0 0.0
    %5853 = vmatprep.subr.mxu0 0.0
    %5854 = vmatpush1.xpose.msra.mxu0 0.0
    %5855 = vmatprep.subr.mxu0 0.0
    %5856 = vmatpush1.xpose.msra.mxu0 0.0
    %5857 = vmatprep.subr.mxu0 0.0
    %5858 = vmatpush1.xpose.msra.mxu0 0.0
    %5859 = vmatprep.subr.mxu0 0.0
    %5860 = vmatpush1.xpose.msra.mxu0 0.0
    %5861 = vmatprep.subr.mxu0 0.0
    %5862 = vmatpush1.xpose.msra.mxu0 0.0
    %5863 = vmatprep.subr.mxu0 0.0
    %5864 = vmatpush1.xpose.msra.mxu0 0.0
    %5865 = vmatprep.subr.mxu0 0.0
    %5866 = vmatpush1.xpose.msra.mxu0 0.0
    %5867 = vmatprep.subr.mxu0 0.0
    %5868 = vmatpush1.xpose.msra.mxu0 0.0
    %5869 = vmatprep.subr.mxu0 0.0
    %5870 = vmatpush1.xpose.msra.mxu0 0.0
    %5871 = vmatprep.subr.mxu0 0.0
    %5872 = vmatpush1.xpose.msra.mxu0 0.0
    %5873 = vmatprep.subr.mxu0 0.0
    %5874 = vmatpush1.xpose.msra.mxu0 0.0
    %5875 = vmatprep.subr.mxu0 0.0
    %5876 = vmatpush1.xpose.msra.mxu0 0.0
    %5877 = vmatprep.subr.mxu0 0.0
    %5878 = vmatpush1.xpose.msra.mxu0 0.0
    %5879 = vmatprep.subr.mxu0 0.0
    %5880 = vmatpush1.xpose.msra.mxu0 0.0
    %5881 = vmatprep.subr.mxu0 0.0
    %5882 = vmatpush1.xpose.msra.mxu0 0.0
    %5883 = vmatprep.subr.mxu0 0.0
    %5884 = vmatpush1.xpose.msra.mxu0 0.0
    %5885 = vmatprep.subr.mxu0 0.0
    %5886 = vmatpush1.xpose.msra.mxu0 0.0
    %5887 = vmatprep.subr.mxu0 0.0
    %5888 = vmatpush1.xpose.msra.mxu0 0.0
    %5889 = vmatprep.subr.mxu0 0.0
    %5890 = vmatpush1.xpose.msra.mxu0 0.0
    %5891 = vmatprep.subr.mxu0 0.0
    %5892 = vmatpush1.xpose.msra.mxu0 0.0
    %5893 = vmatprep.subr.mxu0 0.0
    %5894 = vmatpush1.xpose.msra.mxu0 0.0
    %5895 = vmatprep.subr.mxu0 0.0
    %5896 = vmatpush1.xpose.msra.mxu0 0.0
    %5897 = vmatprep.mubr.f32.mxu0 0.0
    %v5898 = vand.u32 %v5453, 4294901760
    %5899 = vmatmul.mubr.f32.gmra.mrb[0].mxu0 %v5898
    %v5900 = vpop.f32.mrb[0].mxu0
    %v5901 = vadd.f32 %v5829, %v5900
    %v5902 = vpop.f32.mrb[0].mxu0
    %5903 = vdwg.mxu0
    %v5904 = vsel %vm1761, %v5901, -inf
    %5905 = vmax.xlane.f32.xlu0 %v5904
    %v5906 = vpop.xlane.xlu0 %5905
    %v5907 = vsub.f32 %v5901, %v5906
    %v5908 = vmul.f32 %v5907, 1.442695
    %v5909 = vpow.pop %v5908
    %v5910 = vsel %vm1761, %v5909, 0.0
    %5911 = vadd.xlane.f32.xlu0 %v5910
    %v5912 = vpop.xlane.xlu0 %5911
    %v5913 = vrcp.pop %v5912
    %v5914 = vmul.f32 %v5909, %v5913
    %s5915 = scalar_lea.vmem [#allocation12], 32
    %5916 = vst.msk [vmem:[%s5915] sm:$0xff] %vm1761, %v5914
    %v5918 = vsel %vm1761, %v5914, 0
    %5920 = vmatprep.subr.mxu0 0.0
    %v5921 = vand.u32 %v1758, 4294901760
    %5922 = vmatpush1.msra.mxu0 %v5921
    %5923 = vmatprep.subr.mxu0 0.0
    %5924 = vmatpush1.msra.mxu0 0.0
    %5925 = vmatprep.subr.mxu0 0.0
    %5926 = vmatpush1.msra.mxu0 0.0
    %5927 = vmatprep.subr.mxu0 0.0
    %5928 = vmatpush1.msra.mxu0 0.0
    %5929 = vmatprep.subr.mxu0 0.0
    %5930 = vmatpush1.msra.mxu0 0.0
    %5931 = vmatprep.subr.mxu0 0.0
    %5932 = vmatpush1.msra.mxu0 0.0
    %5933 = vmatprep.subr.mxu0 0.0
    %5934 = vmatpush1.msra.mxu0 0.0
    %5935 = vmatprep.subr.mxu0 0.0
    %5936 = vmatpush1.msra.mxu0 0.0
    %5937 = vmatprep.subr.mxu0 0.0
    %5938 = vmatpush1.msra.mxu0 0.0
    %5939 = vmatprep.subr.mxu0 0.0
    %5940 = vmatpush1.msra.mxu0 0.0
    %5941 = vmatprep.subr.mxu0 0.0
    %5942 = vmatpush1.msra.mxu0 0.0
    %5943 = vmatprep.subr.mxu0 0.0
    %5944 = vmatpush1.msra.mxu0 0.0
    %5945 = vmatprep.subr.mxu0 0.0
    %5946 = vmatpush1.msra.mxu0 0.0
    %5947 = vmatprep.subr.mxu0 0.0
    %5948 = vmatpush1.msra.mxu0 0.0
    %5949 = vmatprep.subr.mxu0 0.0
    %5950 = vmatpush1.msra.mxu0 0.0
    %5951 = vmatprep.subr.mxu0 0.0
    %5952 = vmatpush1.msra.mxu0 0.0
    %5953 = vmatprep.subr.mxu0 0.0
    %5954 = vmatpush1.msra.mxu0 0.0
    %5955 = vmatprep.subr.mxu0 0.0
    %5956 = vmatpush1.msra.mxu0 0.0
    %5957 = vmatprep.subr.mxu0 0.0
    %5958 = vmatpush1.msra.mxu0 0.0
    %5959 = vmatprep.subr.mxu0 0.0
    %5960 = vmatpush1.msra.mxu0 0.0
    %5961 = vmatprep.subr.mxu0 0.0
    %5962 = vmatpush1.msra.mxu0 0.0
    %5963 = vmatprep.subr.mxu0 0.0
    %5964 = vmatpush1.msra.mxu0 0.0
    %5965 = vmatprep.subr.mxu0 0.0
    %5966 = vmatpush1.msra.mxu0 0.0
    %5967 = vmatprep.subr.mxu0 0.0
    %5968 = vmatpush1.msra.mxu0 0.0
    %5969 = vmatprep.subr.mxu0 0.0
    %5970 = vmatpush1.msra.mxu0 0.0
    %5971 = vmatprep.subr.mxu0 0.0
    %5972 = vmatpush1.msra.mxu0 0.0
    %5973 = vmatprep.subr.mxu0 0.0
    %5974 = vmatpush1.msra.mxu0 0.0
    %5975 = vmatprep.subr.mxu0 0.0
    %5976 = vmatpush1.msra.mxu0 0.0
    %5977 = vmatprep.subr.mxu0 0.0
    %5978 = vmatpush1.msra.mxu0 0.0
    %5979 = vmatprep.subr.mxu0 0.0
    %5980 = vmatpush1.msra.mxu0 0.0
    %5981 = vmatprep.subr.mxu0 0.0
    %5982 = vmatpush1.msra.mxu0 0.0
    %5983 = vmatprep.subr.mxu0 0.0
    %5984 = vmatpush1.msra.mxu0 0.0
    %5985 = vmatprep.mubr.f32.mxu0 0.0
    %v5986 = vand.u32 %v5918, 4294901760
    %v5987 = vsub.f32 %v5918, %v5986
    %v5988 = vand.u32 %v5987, 4294901760
    %v5989 = vsub.f32 %v5987, %v5988
    %v5990 = vand.u32 %v5989, 4294901760
    %5991 = vmatmul.mubr.f32.gmra.mrb[0].mxu0 %v5990
    %v5992 = vpop.f32.mrb[0].mxu0
    %v5993 = vadd.f32 0.0, %v5992
    %v5994 = vpop.f32.mrb[0].mxu0
    %5995 = vdwg.mxu0
    %5996 = vmatprep.subr.mxu0 0.0
    %v5997 = vand.u32 %v1758, 4294901760
    %v5998 = vsub.f32 %v1758, %v5997
    %v5999 = vand.u32 %v5998, 4294901760
    %v6000 = vsub.f32 %v5998, %v5999
    %v6001 = vand.u32 %v6000, 4294901760
    %6002 = vmatpush1.msra.mxu0 %v6001
    %6003 = vmatprep.subr.mxu0 0.0
    %6004 = vmatpush1.msra.mxu0 0.0
    %6005 = vmatprep.subr.mxu0 0.0
    %6006 = vmatpush1.msra.mxu0 0.0
    %6007 = vmatprep.subr.mxu0 0.0
    %6008 = vmatpush1.msra.mxu0 0.0
    %6009 = vmatprep.subr.mxu0 0.0
    %6010 = vmatpush1.msra.mxu0 0.0
    %6011 = vmatprep.subr.mxu0 0.0
    %6012 = vmatpush1.msra.mxu0 0.0
    %6013 = vmatprep.subr.mxu0 0.0
    %6014 = vmatpush1.msra.mxu0 0.0
    %6015 = vmatprep.subr.mxu0 0.0
    %6016 = vmatpush1.msra.mxu0 0.0
    %6017 = vmatprep.subr.mxu0 0.0
    %6018 = vmatpush1.msra.mxu0 0.0
    %6019 = vmatprep.subr.mxu0 0.0
    %6020 = vmatpush1.msra.mxu0 0.0
    %6021 = vmatprep.subr.mxu0 0.0
    %6022 = vmatpush1.msra.mxu0 0.0
    %6023 = vmatprep.subr.mxu0 0.0
    %6024 = vmatpush1.msra.mxu0 0.0
    %6025 = vmatprep.subr.mxu0 0.0
    %6026 = vmatpush1.msra.mxu0 0.0
    %6027 = vmatprep.subr.mxu0 0.0
    %6028 = vmatpush1.msra.mxu0 0.0
    %6029 = vmatprep.subr.mxu0 0.0
    %6030 = vmatpush1.msra.mxu0 0.0
    %6031 = vmatprep.subr.mxu0 0.0
    %6032 = vmatpush1.msra.mxu0 0.0
    %6033 = vmatprep.subr.mxu0 0.0
    %6034 = vmatpush1.msra.mxu0 0.0
    %6035 = vmatprep.subr.mxu0 0.0
    %6036 = vmatpush1.msra.mxu0 0.0
    %6037 = vmatprep.subr.mxu0 0.0
    %6038 = vmatpush1.msra.mxu0 0.0
    %6039 = vmatprep.subr.mxu0 0.0
    %6040 = vmatpush1.msra.mxu0 0.0
    %6041 = vmatprep.subr.mxu0 0.0
    %6042 = vmatpush1.msra.mxu0 0.0
    %6043 = vmatprep.subr.mxu0 0.0
    %6044 = vmatpush1.msra.mxu0 0.0
    %6045 = vmatprep.subr.mxu0 0.0
    %6046 = vmatpush1.msra.mxu0 0.0
    %6047 = vmatprep.subr.mxu0 0.0
    %6048 = vmatpush1.msra.mxu0 0.0
    %6049 = vmatprep.subr.mxu0 0.0
    %6050 = vmatpush1.msra.mxu0 0.0
    %6051 = vmatprep.subr.mxu0 0.0
    %6052 = vmatpush1.msra.mxu0 0.0
    %6053 = vmatprep.subr.mxu0 0.0
    %6054 = vmatpush1.msra.mxu0 0.0
    %6055 = vmatprep.subr.mxu0 0.0
    %6056 = vmatpush1.msra.mxu0 0.0
    %6057 = vmatprep.subr.mxu0 0.0
    %6058 = vmatpush1.msra.mxu0 0.0
    %6059 = vmatprep.subr.mxu0 0.0
    %6060 = vmatpush1.msra.mxu0 0.0
    %6061 = vmatprep.subr.mxu0 0.0
    %6062 = vmatpush1.msra.mxu0 0.0
    %6063 = vmatprep.subr.mxu0 0.0
    %6064 = vmatpush1.msra.mxu0 0.0
    %6065 = vmatprep.mubr.f32.mxu0 0.0
    %v6066 = vand.u32 %v5918, 4294901760
    %6067 = vmatmul.mubr.f32.gmra.mrb[0].mxu0 %v6066
    %v6068 = vpop.f32.mrb[0].mxu0
    %v6069 = vadd.f32 %v5993, %v6068
    %v6070 = vpop.f32.mrb[0].mxu0
    %6071 = vdwg.mxu0
    %6072 = vmatprep.subr.mxu0 0.0
    %v6073 = vand.u32 %v1758, 4294901760
    %v6074 = vsub.f32 %v1758, %v6073
    %6075 = vmatpush1.msra.mxu0 %v6074
    %6076 = vmatprep.subr.mxu0 0.0
    %6077 = vmatpush1.msra.mxu0 0.0
    %6078 = vmatprep.subr.mxu0 0.0
    %6079 = vmatpush1.msra.mxu0 0.0
    %6080 = vmatprep.subr.mxu0 0.0
    %6081 = vmatpush1.msra.mxu0 0.0
    %6082 = vmatprep.subr.mxu0 0.0
    %6083 = vmatpush1.msra.mxu0 0.0
    %6084 = vmatprep.subr.mxu0 0.0
    %6085 = vmatpush1.msra.mxu0 0.0
    %6086 = vmatprep.subr.mxu0 0.0
    %6087 = vmatpush1.msra.mxu0 0.0
    %6088 = vmatprep.subr.mxu0 0.0
    %6089 = vmatpush1.msra.mxu0 0.0
    %6090 = vmatprep.subr.mxu0 0.0
    %6091 = vmatpush1.msra.mxu0 0.0
    %6092 = vmatprep.subr.mxu0 0.0
    %6093 = vmatpush1.msra.mxu0 0.0
    %6094 = vmatprep.subr.mxu0 0.0
    %6095 = vmatpush1.msra.mxu0 0.0
    %6096 = vmatprep.subr.mxu0 0.0
    %6097 = vmatpush1.msra.mxu0 0.0
    %6098 = vmatprep.subr.mxu0 0.0
    %6099 = vmatpush1.msra.mxu0 0.0
    %6100 = vmatprep.subr.mxu0 0.0
    %6101 = vmatpush1.msra.mxu0 0.0
    %6102 = vmatprep.subr.mxu0 0.0
    %6103 = vmatpush1.msra.mxu0 0.0
    %6104 = vmatprep.subr.mxu0 0.0
    %6105 = vmatpush1.msra.mxu0 0.0
    %6106 = vmatprep.subr.mxu0 0.0
    %6107 = vmatpush1.msra.mxu0 0.0
    %6108 = vmatprep.subr.mxu0 0.0
    %6109 = vmatpush1.msra.mxu0 0.0
    %6110 = vmatprep.subr.mxu0 0.0
    %6111 = vmatpush1.msra.mxu0 0.0
    %6112 = vmatprep.subr.mxu0 0.0
    %6113 = vmatpush1.msra.mxu0 0.0
    %6114 = vmatprep.subr.mxu0 0.0
    %6115 = vmatpush1.msra.mxu0 0.0
    %6116 = vmatprep.subr.mxu0 0.0
    %6117 = vmatpush1.msra.mxu0 0.0
    %6118 = vmatprep.subr.mxu0 0.0
    %6119 = vmatpush1.msra.mxu0 0.0
    %6120 = vmatprep.subr.mxu0 0.0
    %6121 = vmatpush1.msra.mxu0 0.0
    %6122 = vmatprep.subr.mxu0 0.0
    %6123 = vmatpush1.msra.mxu0 0.0
    %6124 = vmatprep.subr.mxu0 0.0
    %6125 = vmatpush1.msra.mxu0 0.0
    %6126 = vmatprep.subr.mxu0 0.0
    %6127 = vmatpush1.msra.mxu0 0.0
    %6128 = vmatprep.subr.mxu0 0.0
    %6129 = vmatpush1.msra.mxu0 0.0
    %6130 = vmatprep.subr.mxu0 0.0
    %6131 = vmatpush1.msra.mxu0 0.0
    %6132 = vmatprep.subr.mxu0 0.0
    %6133 = vmatpush1.msra.mxu0 0.0
    %6134 = vmatprep.subr.mxu0 0.0
    %6135 = vmatpush1.msra.mxu0 0.0
    %6136 = vmatprep.subr.mxu0 0.0
    %6137 = vmatpush1.msra.mxu0 0.0
    %6138 = vmatprep.mubr.f32.mxu0 0.0
    %v6139 = vand.u32 %v5918, 4294901760
    %v6140 = vsub.f32 %v5918, %v6139
    %6141 = vmatmul.mubr.f32.gmra.mrb[0].mxu0 %v6140
    %v6142 = vpop.f32.mrb[0].mxu0
    %v6143 = vadd.f32 %v6069, %v6142
    %v6144 = vpop.f32.mrb[0].mxu0
    %6145 = vdwg.mxu0
    %6146 = vmatprep.subr.mxu0 0.0
    %v6147 = vand.u32 %v1758, 4294901760
    %6148 = vmatpush1.msra.mxu0 %v6147
    %6149 = vmatprep.subr.mxu0 0.0
    %6150 = vmatpush1.msra.mxu0 0.0
    %6151 = vmatprep.subr.mxu0 0.0
    %6152 = vmatpush1.msra.mxu0 0.0
    %6153 = vmatprep.subr.mxu0 0.0
    %6154 = vmatpush1.msra.mxu0 0.0
    %6155 = vmatprep.subr.mxu0 0.0
    %6156 = vmatpush1.msra.mxu0 0.0
    %6157 = vmatprep.subr.mxu0 0.0
    %6158 = vmatpush1.msra.mxu0 0.0
    %6159 = vmatprep.subr.mxu0 0.0
    %6160 = vmatpush1.msra.mxu0 0.0
    %6161 = vmatprep.subr.mxu0 0.0
    %6162 = vmatpush1.msra.mxu0 0.0
    %6163 = vmatprep.subr.mxu0 0.0
    %6164 = vmatpush1.msra.mxu0 0.0
    %6165 = vmatprep.subr.mxu0 0.0
    %6166 = vmatpush1.msra.mxu0 0.0
    %6167 = vmatprep.subr.mxu0 0.0
    %6168 = vmatpush1.msra.mxu0 0.0
    %6169 = vmatprep.subr.mxu0 0.0
    %6170 = vmatpush1.msra.mxu0 0.0
    %6171 = vmatprep.subr.mxu0 0.0
    %6172 = vmatpush1.msra.mxu0 0.0
    %6173 = vmatprep.subr.mxu0 0.0
    %6174 = vmatpush1.msra.mxu0 0.0
    %6175 = vmatprep.subr.mxu0 0.0
    %6176 = vmatpush1.msra.mxu0 0.0
    %6177 = vmatprep.subr.mxu0 0.0
    %6178 = vmatpush1.msra.mxu0 0.0
    %6179 = vmatprep.subr.mxu0 0.0
    %6180 = vmatpush1.msra.mxu0 0.0
    %6181 = vmatprep.subr.mxu0 0.0
    %6182 = vmatpush1.msra.mxu0 0.0
    %6183 = vmatprep.subr.mxu0 0.0
    %6184 = vmatpush1.msra.mxu0 0.0
    %6185 = vmatprep.subr.mxu0 0.0
    %6186 = vmatpush1.msra.mxu0 0.0
    %6187 = vmatprep.subr.mxu0 0.0
    %6188 = vmatpush1.msra.mxu0 0.0
    %6189 = vmatprep.subr.mxu0 0.0
    %6190 = vmatpush1.msra.mxu0 0.0
    %6191 = vmatprep.subr.mxu0 0.0
    %6192 = vmatpush1.msra.mxu0 0.0
    %6193 = vmatprep.subr.mxu0 0.0
    %6194 = vmatpush1.msra.mxu0 0.0
    %6195 = vmatprep.subr.mxu0 0.0
    %6196 = vmatpush1.msra.mxu0 0.0
    %6197 = vmatprep.subr.mxu0 0.0
    %6198 = vmatpush1.msra.mxu0 0.0
    %6199 = vmatprep.subr.mxu0 0.0
    %6200 = vmatpush1.msra.mxu0 0.0
    %6201 = vmatprep.subr.mxu0 0.0
    %6202 = vmatpush1.msra.mxu0 0.0
    %6203 = vmatprep.subr.mxu0 0.0
    %6204 = vmatpush1.msra.mxu0 0.0
    %6205 = vmatprep.subr.mxu0 0.0
    %6206 = vmatpush1.msra.mxu0 0.0
    %6207 = vmatprep.subr.mxu0 0.0
    %6208 = vmatpush1.msra.mxu0 0.0
    %6209 = vmatprep.subr.mxu0 0.0
    %6210 = vmatpush1.msra.mxu0 0.0
    %6211 = vmatprep.mubr.f32.mxu0 0.0
    %v6212 = vand.u32 %v5918, 4294901760
    %v6213 = vsub.f32 %v5918, %v6212
    %v6214 = vand.u32 %v6213, 4294901760
    %6215 = vmatmul.mubr.f32.gmra.mrb[0].mxu0 %v6214
    %v6216 = vpop.f32.mrb[0].mxu0
    %v6217 = vadd.f32 %v6143, %v6216
    %v6218 = vpop.f32.mrb[0].mxu0
    %6219 = vdwg.mxu0
    %6220 = vmatprep.subr.mxu0 0.0
    %v6221 = vand.u32 %v1758, 4294901760
    %v6222 = vsub.f32 %v1758, %v6221
    %v6223 = vand.u32 %v6222, 4294901760
    %6224 = vmatpush1.msra.mxu0 %v6223
    %6225 = vmatprep.subr.mxu0 0.0
    %6226 = vmatpush1.msra.mxu0 0.0
    %6227 = vmatprep.subr.mxu0 0.0
    %6228 = vmatpush1.msra.mxu0 0.0
    %6229 = vmatprep.subr.mxu0 0.0
    %6230 = vmatpush1.msra.mxu0 0.0
    %6231 = vmatprep.subr.mxu0 0.0
    %6232 = vmatpush1.msra.mxu0 0.0
    %6233 = vmatprep.subr.mxu0 0.0
    %6234 = vmatpush1.msra.mxu0 0.0
    %6235 = vmatprep.subr.mxu0 0.0
    %6236 = vmatpush1.msra.mxu0 0.0
    %6237 = vmatprep.subr.mxu0 0.0
    %6238 = vmatpush1.msra.mxu0 0.0
    %6239 = vmatprep.subr.mxu0 0.0
    %6240 = vmatpush1.msra.mxu0 0.0
    %6241 = vmatprep.subr.mxu0 0.0
    %6242 = vmatpush1.msra.mxu0 0.0
    %6243 = vmatprep.subr.mxu0 0.0
    %6244 = vmatpush1.msra.mxu0 0.0
    %6245 = vmatprep.subr.mxu0 0.0
    %6246 = vmatpush1.msra.mxu0 0.0
    %6247 = vmatprep.subr.mxu0 0.0
    %6248 = vmatpush1.msra.mxu0 0.0
    %6249 = vmatprep.subr.mxu0 0.0
    %6250 = vmatpush1.msra.mxu0 0.0
    %6251 = vmatprep.subr.mxu0 0.0
    %6252 = vmatpush1.msra.mxu0 0.0
    %6253 = vmatprep.subr.mxu0 0.0
    %6254 = vmatpush1.msra.mxu0 0.0
    %6255 = vmatprep.subr.mxu0 0.0
    %6256 = vmatpush1.msra.mxu0 0.0
    %6257 = vmatprep.subr.mxu0 0.0
    %6258 = vmatpush1.msra.mxu0 0.0
    %6259 = vmatprep.subr.mxu0 0.0
    %6260 = vmatpush1.msra.mxu0 0.0
    %6261 = vmatprep.subr.mxu0 0.0
    %6262 = vmatpush1.msra.mxu0 0.0
    %6263 = vmatprep.subr.mxu0 0.0
    %6264 = vmatpush1.msra.mxu0 0.0
    %6265 = vmatprep.subr.mxu0 0.0
    %6266 = vmatpush1.msra.mxu0 0.0
    %6267 = vmatprep.subr.mxu0 0.0
    %6268 = vmatpush1.msra.mxu0 0.0
    %6269 = vmatprep.subr.mxu0 0.0
    %6270 = vmatpush1.msra.mxu0 0.0
    %6271 = vmatprep.subr.mxu0 0.0
    %6272 = vmatpush1.msra.mxu0 0.0
    %6273 = vmatprep.subr.mxu0 0.0
    %6274 = vmatpush1.msra.mxu0 0.0
    %6275 = vmatprep.subr.mxu0 0.0
    %6276 = vmatpush1.msra.mxu0 0.0
    %6277 = vmatprep.subr.mxu0 0.0
    %6278 = vmatpush1.msra.mxu0 0.0
    %6279 = vmatprep.subr.mxu0 0.0
    %6280 = vmatpush1.msra.mxu0 0.0
    %6281 = vmatprep.subr.mxu0 0.0
    %6282 = vmatpush1.msra.mxu0 0.0
    %6283 = vmatprep.subr.mxu0 0.0
    %6284 = vmatpush1.msra.mxu0 0.0
    %6285 = vmatprep.subr.mxu0 0.0
    %6286 = vmatpush1.msra.mxu0 0.0
    %6287 = vmatprep.mubr.f32.mxu0 0.0
    %v6288 = vand.u32 %v5918, 4294901760
    %6289 = vmatmul.mubr.f32.gmra.mrb[0].mxu0 %v6288
    %v6290 = vpop.f32.mrb[0].mxu0
    %v6291 = vadd.f32 %v6217, %v6290
    %v6292 = vpop.f32.mrb[0].mxu0
    %6293 = vdwg.mxu0
    %6294 = vmatprep.subr.mxu0 0.0
    %v6295 = vand.u32 %v1758, 4294901760
    %6296 = vmatpush1.msra.mxu0 %v6295
    %6297 = vmatprep.subr.mxu0 0.0
    %6298 = vmatpush1.msra.mxu0 0.0
    %6299 = vmatprep.subr.mxu0 0.0
    %6300 = vmatpush1.msra.mxu0 0.0
    %6301 = vmatprep.subr.mxu0 0.0
    %6302 = vmatpush1.msra.mxu0 0.0
    %6303 = vmatprep.subr.mxu0 0.0
    %6304 = vmatpush1.msra.mxu0 0.0
    %6305 = vmatprep.subr.mxu0 0.0
    %6306 = vmatpush1.msra.mxu0 0.0
    %6307 = vmatprep.subr.mxu0 0.0
    %6308 = vmatpush1.msra.mxu0 0.0
    %6309 = vmatprep.subr.mxu0 0.0
    %6310 = vmatpush1.msra.mxu0 0.0
    %6311 = vmatprep.subr.mxu0 0.0
    %6312 = vmatpush1.msra.mxu0 0.0
    %6313 = vmatprep.subr.mxu0 0.0
    %6314 = vmatpush1.msra.mxu0 0.0
    %6315 = vmatprep.subr.mxu0 0.0
    %6316 = vmatpush1.msra.mxu0 0.0
    %6317 = vmatprep.subr.mxu0 0.0
    %6318 = vmatpush1.msra.mxu0 0.0
    %6319 = vmatprep.subr.mxu0 0.0
    %6320 = vmatpush1.msra.mxu0 0.0
    %6321 = vmatprep.subr.mxu0 0.0
    %6322 = vmatpush1.msra.mxu0 0.0
    %6323 = vmatprep.subr.mxu0 0.0
    %6324 = vmatpush1.msra.mxu0 0.0
    %6325 = vmatprep.subr.mxu0 0.0
    %6326 = vmatpush1.msra.mxu0 0.0
    %6327 = vmatprep.subr.mxu0 0.0
    %6328 = vmatpush1.msra.mxu0 0.0
    %6329 = vmatprep.subr.mxu0 0.0
    %6330 = vmatpush1.msra.mxu0 0.0
    %6331 = vmatprep.subr.mxu0 0.0
    %6332 = vmatpush1.msra.mxu0 0.0
    %6333 = vmatprep.subr.mxu0 0.0
    %6334 = vmatpush1.msra.mxu0 0.0
    %6335 = vmatprep.subr.mxu0 0.0
    %6336 = vmatpush1.msra.mxu0 0.0
    %6337 = vmatprep.subr.mxu0 0.0
    %6338 = vmatpush1.msra.mxu0 0.0
    %6339 = vmatprep.subr.mxu0 0.0
    %6340 = vmatpush1.msra.mxu0 0.0
    %6341 = vmatprep.subr.mxu0 0.0
    %6342 = vmatpush1.msra.mxu0 0.0
    %6343 = vmatprep.subr.mxu0 0.0
    %6344 = vmatpush1.msra.mxu0 0.0
    %6345 = vmatprep.subr.mxu0 0.0
    %6346 = vmatpush1.msra.mxu0 0.0
    %6347 = vmatprep.subr.mxu0 0.0
    %6348 = vmatpush1.msra.mxu0 0.0
    %6349 = vmatprep.subr.mxu0 0.0
    %6350 = vmatpush1.msra.mxu0 0.0
    %6351 = vmatprep.subr.mxu0 0.0
    %6352 = vmatpush1.msra.mxu0 0.0
    %6353 = vmatprep.subr.mxu0 0.0
    %6354 = vmatpush1.msra.mxu0 0.0
    %6355 = vmatprep.subr.mxu0 0.0
    %6356 = vmatpush1.msra.mxu0 0.0
    %6357 = vmatprep.subr.mxu0 0.0
    %6358 = vmatpush1.msra.mxu0 0.0
    %6359 = vmatprep.mubr.f32.mxu0 0.0
    %v6360 = vand.u32 %v5918, 4294901760
    %6361 = vmatmul.mubr.f32.gmra.mrb[0].mxu0 %v6360
    %v6362 = vpop.f32.mrb[0].mxu0
    %v6363 = vadd.f32 %v6291, %v6362
    %v6364 = vpop.f32.mrb[0].mxu0
    %6365 = vdwg.mxu0
    %6366 = vst.msk [vmem:[#allocation2 + $0x8] sm:$0xff] %vm1761, %v6363
    %6367 = vrot.lane.b32.xlu0 %v656, 120
    %v6368 = vpop.permute.xlu0 %6367
    %6369 = vrot.lane.b32.xlu0 %v1206, 120
    %v6370 = vpop.permute.xlu0 %6369
    %v6371 = vsel %vm1761, %v6368, 0
    %v6373 = vsel %vm1761, %v6370, 0
    %6375 = vmatprep.subr.mxu0 0.0
    %v6376 = vand.u32 %v6373, 4294901760
    %6377 = vmatpush1.xpose.msra.mxu0 %v6376
    %6378 = vmatprep.subr.mxu0 0.0
    %6379 = vmatpush1.xpose.msra.mxu0 0.0
    %6380 = vmatprep.subr.mxu0 0.0
    %6381 = vmatpush1.xpose.msra.mxu0 0.0
    %6382 = vmatprep.subr.mxu0 0.0
    %6383 = vmatpush1.xpose.msra.mxu0 0.0
    %6384 = vmatprep.subr.mxu0 0.0
    %6385 = vmatpush1.xpose.msra.mxu0 0.0
    %6386 = vmatprep.subr.mxu0 0.0
    %6387 = vmatpush1.xpose.msra.mxu0 0.0
    %6388 = vmatprep.subr.mxu0 0.0
    %6389 = vmatpush1.xpose.msra.mxu0 0.0
    %6390 = vmatprep.subr.mxu0 0.0
    %6391 = vmatpush1.xpose.msra.mxu0 0.0
    %6392 = vmatprep.subr.mxu0 0.0
    %6393 = vmatpush1.xpose.msra.mxu0 0.0
    %6394 = vmatprep.subr.mxu0 0.0
    %6395 = vmatpush1.xpose.msra.mxu0 0.0
    %6396 = vmatprep.subr.mxu0 0.0
    %6397 = vmatpush1.xpose.msra.mxu0 0.0
    %6398 = vmatprep.subr.mxu0 0.0
    %6399 = vmatpush1.xpose.msra.mxu0 0.0
    %6400 = vmatprep.subr.mxu0 0.0
    %6401 = vmatpush1.xpose.msra.mxu0 0.0
    %6402 = vmatprep.subr.mxu0 0.0
    %6403 = vmatpush1.xpose.msra.mxu0 0.0
    %6404 = vmatprep.subr.mxu0 0.0
    %6405 = vmatpush1.xpose.msra.mxu0 0.0
    %6406 = vmatprep.subr.mxu0 0.0
    %6407 = vmatpush1.xpose.msra.mxu0 0.0
    %6408 = vmatprep.subr.mxu0 0.0
    %6409 = vmatpush1.xpose.msra.mxu0 0.0
    %6410 = vmatprep.subr.mxu0 0.0
    %6411 = vmatpush1.xpose.msra.mxu0 0.0
    %6412 = vmatprep.subr.mxu0 0.0
    %6413 = vmatpush1.xpose.msra.mxu0 0.0
    %6414 = vmatprep.subr.mxu0 0.0
    %6415 = vmatpush1.xpose.msra.mxu0 0.0
    %6416 = vmatprep.subr.mxu0 0.0
    %6417 = vmatpush1.xpose.msra.mxu0 0.0
    %6418 = vmatprep.subr.mxu0 0.0
    %6419 = vmatpush1.xpose.msra.mxu0 0.0
    %6420 = vmatprep.subr.mxu0 0.0
    %6421 = vmatpush1.xpose.msra.mxu0 0.0
    %6422 = vmatprep.subr.mxu0 0.0
    %6423 = vmatpush1.xpose.msra.mxu0 0.0
    %6424 = vmatprep.subr.mxu0 0.0
    %6425 = vmatpush1.xpose.msra.mxu0 0.0
    %6426 = vmatprep.subr.mxu0 0.0
    %6427 = vmatpush1.xpose.msra.mxu0 0.0
    %6428 = vmatprep.subr.mxu0 0.0
    %6429 = vmatpush1.xpose.msra.mxu0 0.0
    %6430 = vmatprep.subr.mxu0 0.0
    %6431 = vmatpush1.xpose.msra.mxu0 0.0
    %6432 = vmatprep.subr.mxu0 0.0
    %6433 = vmatpush1.xpose.msra.mxu0 0.0
    %6434 = vmatprep.subr.mxu0 0.0
    %6435 = vmatpush1.xpose.msra.mxu0 0.0
    %6436 = vmatprep.subr.mxu0 0.0
    %6437 = vmatpush1.xpose.msra.mxu0 0.0
    %6438 = vmatprep.subr.mxu0 0.0
    %6439 = vmatpush1.xpose.msra.mxu0 0.0
    %6440 = vmatprep.mubr.f32.mxu0 0.0
    %v6441 = vand.u32 %v6371, 4294901760
    %v6442 = vsub.f32 %v6371, %v6441
    %v6443 = vand.u32 %v6442, 4294901760
    %v6444 = vsub.f32 %v6442, %v6443
    %v6445 = vand.u32 %v6444, 4294901760
    %6446 = vmatmul.mubr.f32.gmra.mrb[0].mxu0 %v6445
    %v6447 = vpop.f32.mrb[0].mxu0
    %v6448 = vadd.f32 0.0, %v6447
    %v6449 = vpop.f32.mrb[0].mxu0
    %6450 = vdwg.mxu0
    %6451 = vmatprep.subr.mxu0 0.0
    %v6452 = vand.u32 %v6373, 4294901760
    %v6453 = vsub.f32 %v6373, %v6452
    %v6454 = vand.u32 %v6453, 4294901760
    %v6455 = vsub.f32 %v6453, %v6454
    %v6456 = vand.u32 %v6455, 4294901760
    %6457 = vmatpush1.xpose.msra.mxu0 %v6456
    %6458 = vmatprep.subr.mxu0 0.0
    %6459 = vmatpush1.xpose.msra.mxu0 0.0
    %6460 = vmatprep.subr.mxu0 0.0
    %6461 = vmatpush1.xpose.msra.mxu0 0.0
    %6462 = vmatprep.subr.mxu0 0.0
    %6463 = vmatpush1.xpose.msra.mxu0 0.0
    %6464 = vmatprep.subr.mxu0 0.0
    %6465 = vmatpush1.xpose.msra.mxu0 0.0
    %6466 = vmatprep.subr.mxu0 0.0
    %6467 = vmatpush1.xpose.msra.mxu0 0.0
    %6468 = vmatprep.subr.mxu0 0.0
    %6469 = vmatpush1.xpose.msra.mxu0 0.0
    %6470 = vmatprep.subr.mxu0 0.0
    %6471 = vmatpush1.xpose.msra.mxu0 0.0
    %6472 = vmatprep.subr.mxu0 0.0
    %6473 = vmatpush1.xpose.msra.mxu0 0.0
    %6474 = vmatprep.subr.mxu0 0.0
    %6475 = vmatpush1.xpose.msra.mxu0 0.0
    %6476 = vmatprep.subr.mxu0 0.0
    %6477 = vmatpush1.xpose.msra.mxu0 0.0
    %6478 = vmatprep.subr.mxu0 0.0
    %6479 = vmatpush1.xpose.msra.mxu0 0.0
    %6480 = vmatprep.subr.mxu0 0.0
    %6481 = vmatpush1.xpose.msra.mxu0 0.0
    %6482 = vmatprep.subr.mxu0 0.0
    %6483 = vmatpush1.xpose.msra.mxu0 0.0
    %6484 = vmatprep.subr.mxu0 0.0
    %6485 = vmatpush1.xpose.msra.mxu0 0.0
    %6486 = vmatprep.subr.mxu0 0.0
    %6487 = vmatpush1.xpose.msra.mxu0 0.0
    %6488 = vmatprep.subr.mxu0 0.0
    %6489 = vmatpush1.xpose.msra.mxu0 0.0
    %6490 = vmatprep.subr.mxu0 0.0
    %6491 = vmatpush1.xpose.msra.mxu0 0.0
    %6492 = vmatprep.subr.mxu0 0.0
    %6493 = vmatpush1.xpose.msra.mxu0 0.0
    %6494 = vmatprep.subr.mxu0 0.0
    %6495 = vmatpush1.xpose.msra.mxu0 0.0
    %6496 = vmatprep.subr.mxu0 0.0
    %6497 = vmatpush1.xpose.msra.mxu0 0.0
    %6498 = vmatprep.subr.mxu0 0.0
    %6499 = vmatpush1.xpose.msra.mxu0 0.0
    %6500 = vmatprep.subr.mxu0 0.0
    %6501 = vmatpush1.xpose.msra.mxu0 0.0
    %6502 = vmatprep.subr.mxu0 0.0
    %6503 = vmatpush1.xpose.msra.mxu0 0.0
    %6504 = vmatprep.subr.mxu0 0.0
    %6505 = vmatpush1.xpose.msra.mxu0 0.0
    %6506 = vmatprep.subr.mxu0 0.0
    %6507 = vmatpush1.xpose.msra.mxu0 0.0
    %6508 = vmatprep.subr.mxu0 0.0
    %6509 = vmatpush1.xpose.msra.mxu0 0.0
    %6510 = vmatprep.subr.mxu0 0.0
    %6511 = vmatpush1.xpose.msra.mxu0 0.0
    %6512 = vmatprep.subr.mxu0 0.0
    %6513 = vmatpush1.xpose.msra.mxu0 0.0
    %6514 = vmatprep.subr.mxu0 0.0
    %6515 = vmatpush1.xpose.msra.mxu0 0.0
    %6516 = vmatprep.subr.mxu0 0.0
    %6517 = vmatpush1.xpose.msra.mxu0 0.0
    %6518 = vmatprep.subr.mxu0 0.0
    %6519 = vmatpush1.xpose.msra.mxu0 0.0
    %6520 = vmatprep.mubr.f32.mxu0 0.0
    %v6521 = vand.u32 %v6371, 4294901760
    %6522 = vmatmul.mubr.f32.gmra.mrb[0].mxu0 %v6521
    %v6523 = vpop.f32.mrb[0].mxu0
    %v6524 = vadd.f32 %v6448, %v6523
    %v6525 = vpop.f32.mrb[0].mxu0
    %6526 = vdwg.mxu0
    %6527 = vmatprep.subr.mxu0 0.0
    %v6528 = vand.u32 %v6373, 4294901760
    %v6529 = vsub.f32 %v6373, %v6528
    %6530 = vmatpush1.xpose.msra.mxu0 %v6529
    %6531 = vmatprep.subr.mxu0 0.0
    %6532 = vmatpush1.xpose.msra.mxu0 0.0
    %6533 = vmatprep.subr.mxu0 0.0
    %6534 = vmatpush1.xpose.msra.mxu0 0.0
    %6535 = vmatprep.subr.mxu0 0.0
    %6536 = vmatpush1.xpose.msra.mxu0 0.0
    %6537 = vmatprep.subr.mxu0 0.0
    %6538 = vmatpush1.xpose.msra.mxu0 0.0
    %6539 = vmatprep.subr.mxu0 0.0
    %6540 = vmatpush1.xpose.msra.mxu0 0.0
    %6541 = vmatprep.subr.mxu0 0.0
    %6542 = vmatpush1.xpose.msra.mxu0 0.0
    %6543 = vmatprep.subr.mxu0 0.0
    %6544 = vmatpush1.xpose.msra.mxu0 0.0
    %6545 = vmatprep.subr.mxu0 0.0
    %6546 = vmatpush1.xpose.msra.mxu0 0.0
    %6547 = vmatprep.subr.mxu0 0.0
    %6548 = vmatpush1.xpose.msra.mxu0 0.0
    %6549 = vmatprep.subr.mxu0 0.0
    %6550 = vmatpush1.xpose.msra.mxu0 0.0
    %6551 = vmatprep.subr.mxu0 0.0
    %6552 = vmatpush1.xpose.msra.mxu0 0.0
    %6553 = vmatprep.subr.mxu0 0.0
    %6554 = vmatpush1.xpose.msra.mxu0 0.0
    %6555 = vmatprep.subr.mxu0 0.0
    %6556 = vmatpush1.xpose.msra.mxu0 0.0
    %6557 = vmatprep.subr.mxu0 0.0
    %6558 = vmatpush1.xpose.msra.mxu0 0.0
    %6559 = vmatprep.subr.mxu0 0.0
    %6560 = vmatpush1.xpose.msra.mxu0 0.0
    %6561 = vmatprep.subr.mxu0 0.0
    %6562 = vmatpush1.xpose.msra.mxu0 0.0
    %6563 = vmatprep.subr.mxu0 0.0
    %6564 = vmatpush1.xpose.msra.mxu0 0.0
    %6565 = vmatprep.subr.mxu0 0.0
    %6566 = vmatpush1.xpose.msra.mxu0 0.0
    %6567 = vmatprep.subr.mxu0 0.0
    %6568 = vmatpush1.xpose.msra.mxu0 0.0
    %6569 = vmatprep.subr.mxu0 0.0
    %6570 = vmatpush1.xpose.msra.mxu0 0.0
    %6571 = vmatprep.subr.mxu0 0.0
    %6572 = vmatpush1.xpose.msra.mxu0 0.0
    %6573 = vmatprep.subr.mxu0 0.0
    %6574 = vmatpush1.xpose.msra.mxu0 0.0
    %6575 = vmatprep.subr.mxu0 0.0
    %6576 = vmatpush1.xpose.msra.mxu0 0.0
    %6577 = vmatprep.subr.mxu0 0.0
    %6578 = vmatpush1.xpose.msra.mxu0 0.0
    %6579 = vmatprep.subr.mxu0 0.0
    %6580 = vmatpush1.xpose.msra.mxu0 0.0
    %6581 = vmatprep.subr.mxu0 0.0
    %6582 = vmatpush1.xpose.msra.mxu0 0.0
    %6583 = vmatprep.subr.mxu0 0.0
    %6584 = vmatpush1.xpose.msra.mxu0 0.0
    %6585 = vmatprep.subr.mxu0 0.0
    %6586 = vmatpush1.xpose.msra.mxu0 0.0
    %6587 = vmatprep.subr.mxu0 0.0
    %6588 = vmatpush1.xpose.msra.mxu0 0.0
    %6589 = vmatprep.subr.mxu0 0.0
    %6590 = vmatpush1.xpose.msra.mxu0 0.0
    %6591 = vmatprep.subr.mxu0 0.0
    %6592 = vmatpush1.xpose.msra.mxu0 0.0
    %6593 = vmatprep.mubr.f32.mxu0 0.0
    %v6594 = vand.u32 %v6371, 4294901760
    %v6595 = vsub.f32 %v6371, %v6594
    %6596 = vmatmul.mubr.f32.gmra.mrb[0].mxu0 %v6595
    %v6597 = vpop.f32.mrb[0].mxu0
    %v6598 = vadd.f32 %v6524, %v6597
    %v6599 = vpop.f32.mrb[0].mxu0
    %6600 = vdwg.mxu0
    %6601 = vmatprep.subr.mxu0 0.0
    %v6602 = vand.u32 %v6373, 4294901760
    %6603 = vmatpush1.xpose.msra.mxu0 %v6602
    %6604 = vmatprep.subr.mxu0 0.0
    %6605 = vmatpush1.xpose.msra.mxu0 0.0
    %6606 = vmatprep.subr.mxu0 0.0
    %6607 = vmatpush1.xpose.msra.mxu0 0.0
    %6608 = vmatprep.subr.mxu0 0.0
    %6609 = vmatpush1.xpose.msra.mxu0 0.0
    %6610 = vmatprep.subr.mxu0 0.0
    %6611 = vmatpush1.xpose.msra.mxu0 0.0
    %6612 = vmatprep.subr.mxu0 0.0
    %6613 = vmatpush1.xpose.msra.mxu0 0.0
    %6614 = vmatprep.subr.mxu0 0.0
    %6615 = vmatpush1.xpose.msra.mxu0 0.0
    %6616 = vmatprep.subr.mxu0 0.0
    %6617 = vmatpush1.xpose.msra.mxu0 0.0
    %6618 = vmatprep.subr.mxu0 0.0
    %6619 = vmatpush1.xpose.msra.mxu0 0.0
    %6620 = vmatprep.subr.mxu0 0.0
    %6621 = vmatpush1.xpose.msra.mxu0 0.0
    %6622 = vmatprep.subr.mxu0 0.0
    %6623 = vmatpush1.xpose.msra.mxu0 0.0
    %6624 = vmatprep.subr.mxu0 0.0
    %6625 = vmatpush1.xpose.msra.mxu0 0.0
    %6626 = vmatprep.subr.mxu0 0.0
    %6627 = vmatpush1.xpose.msra.mxu0 0.0
    %6628 = vmatprep.subr.mxu0 0.0
    %6629 = vmatpush1.xpose.msra.mxu0 0.0
    %6630 = vmatprep.subr.mxu0 0.0
    %6631 = vmatpush1.xpose.msra.mxu0 0.0
    %6632 = vmatprep.subr.mxu0 0.0
    %6633 = vmatpush1.xpose.msra.mxu0 0.0
    %6634 = vmatprep.subr.mxu0 0.0
    %6635 = vmatpush1.xpose.msra.mxu0 0.0
    %6636 = vmatprep.subr.mxu0 0.0
    %6637 = vmatpush1.xpose.msra.mxu0 0.0
    %6638 = vmatprep.subr.mxu0 0.0
    %6639 = vmatpush1.xpose.msra.mxu0 0.0
    %6640 = vmatprep.subr.mxu0 0.0
    %6641 = vmatpush1.xpose.msra.mxu0 0.0
    %6642 = vmatprep.subr.mxu0 0.0
    %6643 = vmatpush1.xpose.msra.mxu0 0.0
    %6644 = vmatprep.subr.mxu0 0.0
    %6645 = vmatpush1.xpose.msra.mxu0 0.0
    %6646 = vmatprep.subr.mxu0 0.0
    %6647 = vmatpush1.xpose.msra.mxu0 0.0
    %6648 = vmatprep.subr.mxu0 0.0
    %6649 = vmatpush1.xpose.msra.mxu0 0.0
    %6650 = vmatprep.subr.mxu0 0.0
    %6651 = vmatpush1.xpose.msra.mxu0 0.0
    %6652 = vmatprep.subr.mxu0 0.0
    %6653 = vmatpush1.xpose.msra.mxu0 0.0
    %6654 = vmatprep.subr.mxu0 0.0
    %6655 = vmatpush1.xpose.msra.mxu0 0.0
    %6656 = vmatprep.subr.mxu0 0.0
    %6657 = vmatpush1.xpose.msra.mxu0 0.0
    %6658 = vmatprep.subr.mxu0 0.0
    %6659 = vmatpush1.xpose.msra.mxu0 0.0
    %6660 = vmatprep.subr.mxu0 0.0
    %6661 = vmatpush1.xpose.msra.mxu0 0.0
    %6662 = vmatprep.subr.mxu0 0.0
    %6663 = vmatpush1.xpose.msra.mxu0 0.0
    %6664 = vmatprep.subr.mxu0 0.0
    %6665 = vmatpush1.xpose.msra.mxu0 0.0
    %6666 = vmatprep.mubr.f32.mxu0 0.0
    %v6667 = vand.u32 %v6371, 4294901760
    %v6668 = vsub.f32 %v6371, %v6667
    %v6669 = vand.u32 %v6668, 4294901760
    %6670 = vmatmul.mubr.f32.gmra.mrb[0].mxu0 %v6669
    %v6671 = vpop.f32.mrb[0].mxu0
    %v6672 = vadd.f32 %v6598, %v6671
    %v6673 = vpop.f32.mrb[0].mxu0
    %6674 = vdwg.mxu0
    %6675 = vmatprep.subr.mxu0 0.0
    %v6676 = vand.u32 %v6373, 4294901760
    %v6677 = vsub.f32 %v6373, %v6676
    %v6678 = vand.u32 %v6677, 4294901760
    %6679 = vmatpush1.xpose.msra.mxu0 %v6678
    %6680 = vmatprep.subr.mxu0 0.0
    %6681 = vmatpush1.xpose.msra.mxu0 0.0
    %6682 = vmatprep.subr.mxu0 0.0
    %6683 = vmatpush1.xpose.msra.mxu0 0.0
    %6684 = vmatprep.subr.mxu0 0.0
    %6685 = vmatpush1.xpose.msra.mxu0 0.0
    %6686 = vmatprep.subr.mxu0 0.0
    %6687 = vmatpush1.xpose.msra.mxu0 0.0
    %6688 = vmatprep.subr.mxu0 0.0
    %6689 = vmatpush1.xpose.msra.mxu0 0.0
    %6690 = vmatprep.subr.mxu0 0.0
    %6691 = vmatpush1.xpose.msra.mxu0 0.0
    %6692 = vmatprep.subr.mxu0 0.0
    %6693 = vmatpush1.xpose.msra.mxu0 0.0
    %6694 = vmatprep.subr.mxu0 0.0
    %6695 = vmatpush1.xpose.msra.mxu0 0.0
    %6696 = vmatprep.subr.mxu0 0.0
    %6697 = vmatpush1.xpose.msra.mxu0 0.0
    %6698 = vmatprep.subr.mxu0 0.0
    %6699 = vmatpush1.xpose.msra.mxu0 0.0
    %6700 = vmatprep.subr.mxu0 0.0
    %6701 = vmatpush1.xpose.msra.mxu0 0.0
    %6702 = vmatprep.subr.mxu0 0.0
    %6703 = vmatpush1.xpose.msra.mxu0 0.0
    %6704 = vmatprep.subr.mxu0 0.0
    %6705 = vmatpush1.xpose.msra.mxu0 0.0
    %6706 = vmatprep.subr.mxu0 0.0
    %6707 = vmatpush1.xpose.msra.mxu0 0.0
    %6708 = vmatprep.subr.mxu0 0.0
    %6709 = vmatpush1.xpose.msra.mxu0 0.0
    %6710 = vmatprep.subr.mxu0 0.0
    %6711 = vmatpush1.xpose.msra.mxu0 0.0
    %6712 = vmatprep.subr.mxu0 0.0
    %6713 = vmatpush1.xpose.msra.mxu0 0.0
    %6714 = vmatprep.subr.mxu0 0.0
    %6715 = vmatpush1.xpose.msra.mxu0 0.0
    %6716 = vmatprep.subr.mxu0 0.0
    %6717 = vmatpush1.xpose.msra.mxu0 0.0
    %6718 = vmatprep.subr.mxu0 0.0
    %6719 = vmatpush1.xpose.msra.mxu0 0.0
    %6720 = vmatprep.subr.mxu0 0.0
    %6721 = vmatpush1.xpose.msra.mxu0 0.0
    %6722 = vmatprep.subr.mxu0 0.0
    %6723 = vmatpush1.xpose.msra.mxu0 0.0
    %6724 = vmatprep.subr.mxu0 0.0
    %6725 = vmatpush1.xpose.msra.mxu0 0.0
    %6726 = vmatprep.subr.mxu0 0.0
    %6727 = vmatpush1.xpose.msra.mxu0 0.0
    %6728 = vmatprep.subr.mxu0 0.0
    %6729 = vmatpush1.xpose.msra.mxu0 0.0
    %6730 = vmatprep.subr.mxu0 0.0
    %6731 = vmatpush1.xpose.msra.mxu0 0.0
    %6732 = vmatprep.subr.mxu0 0.0
    %6733 = vmatpush1.xpose.msra.mxu0 0.0
    %6734 = vmatprep.subr.mxu0 0.0
    %6735 = vmatpush1.xpose.msra.mxu0 0.0
    %6736 = vmatprep.subr.mxu0 0.0
    %6737 = vmatpush1.xpose.msra.mxu0 0.0
    %6738 = vmatprep.subr.mxu0 0.0
    %6739 = vmatpush1.xpose.msra.mxu0 0.0
    %6740 = vmatprep.subr.mxu0 0.0
    %6741 = vmatpush1.xpose.msra.mxu0 0.0
    %6742 = vmatprep.mubr.f32.mxu0 0.0
    %v6743 = vand.u32 %v6371, 4294901760
    %6744 = vmatmul.mubr.f32.gmra.mrb[0].mxu0 %v6743
    %v6745 = vpop.f32.mrb[0].mxu0
    %v6746 = vadd.f32 %v6672, %v6745
    %v6747 = vpop.f32.mrb[0].mxu0
    %6748 = vdwg.mxu0
    %6749 = vmatprep.subr.mxu0 0.0
    %v6750 = vand.u32 %v6373, 4294901760
    %6751 = vmatpush1.xpose.msra.mxu0 %v6750
    %6752 = vmatprep.subr.mxu0 0.0
    %6753 = vmatpush1.xpose.msra.mxu0 0.0
    %6754 = vmatprep.subr.mxu0 0.0
    %6755 = vmatpush1.xpose.msra.mxu0 0.0
    %6756 = vmatprep.subr.mxu0 0.0
    %6757 = vmatpush1.xpose.msra.mxu0 0.0
    %6758 = vmatprep.subr.mxu0 0.0
    %6759 = vmatpush1.xpose.msra.mxu0 0.0
    %6760 = vmatprep.subr.mxu0 0.0
    %6761 = vmatpush1.xpose.msra.mxu0 0.0
    %6762 = vmatprep.subr.mxu0 0.0
    %6763 = vmatpush1.xpose.msra.mxu0 0.0
    %6764 = vmatprep.subr.mxu0 0.0
    %6765 = vmatpush1.xpose.msra.mxu0 0.0
    %6766 = vmatprep.subr.mxu0 0.0
    %6767 = vmatpush1.xpose.msra.mxu0 0.0
    %6768 = vmatprep.subr.mxu0 0.0
    %6769 = vmatpush1.xpose.msra.mxu0 0.0
    %6770 = vmatprep.subr.mxu0 0.0
    %6771 = vmatpush1.xpose.msra.mxu0 0.0
    %6772 = vmatprep.subr.mxu0 0.0
    %6773 = vmatpush1.xpose.msra.mxu0 0.0
    %6774 = vmatprep.subr.mxu0 0.0
    %6775 = vmatpush1.xpose.msra.mxu0 0.0
    %6776 = vmatprep.subr.mxu0 0.0
    %6777 = vmatpush1.xpose.msra.mxu0 0.0
    %6778 = vmatprep.subr.mxu0 0.0
    %6779 = vmatpush1.xpose.msra.mxu0 0.0
    %6780 = vmatprep.subr.mxu0 0.0
    %6781 = vmatpush1.xpose.msra.mxu0 0.0
    %6782 = vmatprep.subr.mxu0 0.0
    %6783 = vmatpush1.xpose.msra.mxu0 0.0
    %6784 = vmatprep.subr.mxu0 0.0
    %6785 = vmatpush1.xpose.msra.mxu0 0.0
    %6786 = vmatprep.subr.mxu0 0.0
    %6787 = vmatpush1.xpose.msra.mxu0 0.0
    %6788 = vmatprep.subr.mxu0 0.0
    %6789 = vmatpush1.xpose.msra.mxu0 0.0
    %6790 = vmatprep.subr.mxu0 0.0
    %6791 = vmatpush1.xpose.msra.mxu0 0.0
    %6792 = vmatprep.subr.mxu0 0.0
    %6793 = vmatpush1.xpose.msra.mxu0 0.0
    %6794 = vmatprep.subr.mxu0 0.0
    %6795 = vmatpush1.xpose.msra.mxu0 0.0
    %6796 = vmatprep.subr.mxu0 0.0
    %6797 = vmatpush1.xpose.msra.mxu0 0.0
    %6798 = vmatprep.subr.mxu0 0.0
    %6799 = vmatpush1.xpose.msra.mxu0 0.0
    %6800 = vmatprep.subr.mxu0 0.0
    %6801 = vmatpush1.xpose.msra.mxu0 0.0
    %6802 = vmatprep.subr.mxu0 0.0
    %6803 = vmatpush1.xpose.msra.mxu0 0.0
    %6804 = vmatprep.subr.mxu0 0.0
    %6805 = vmatpush1.xpose.msra.mxu0 0.0
    %6806 = vmatprep.subr.mxu0 0.0
    %6807 = vmatpush1.xpose.msra.mxu0 0.0
    %6808 = vmatprep.subr.mxu0 0.0
    %6809 = vmatpush1.xpose.msra.mxu0 0.0
    %6810 = vmatprep.subr.mxu0 0.0
    %6811 = vmatpush1.xpose.msra.mxu0 0.0
    %6812 = vmatprep.subr.mxu0 0.0
    %6813 = vmatpush1.xpose.msra.mxu0 0.0
    %6814 = vmatprep.mubr.f32.mxu0 0.0
    %v6815 = vand.u32 %v6371, 4294901760
    %6816 = vmatmul.mubr.f32.gmra.mrb[0].mxu0 %v6815
    %v6817 = vpop.f32.mrb[0].mxu0
    %v6818 = vadd.f32 %v6746, %v6817
    %v6819 = vpop.f32.mrb[0].mxu0
    %6820 = vdwg.mxu0
    %v6821 = vsel %vm1761, %v6818, -inf
    %6822 = vmax.xlane.f32.xlu0 %v6821
    %v6823 = vpop.xlane.xlu0 %6822
    %v6824 = vsub.f32 %v6818, %v6823
    %v6825 = vmul.f32 %v6824, 1.442695
    %v6826 = vpow.pop %v6825
    %v6827 = vsel %vm1761, %v6826, 0.0
    %6828 = vadd.xlane.f32.xlu0 %v6827
    %v6829 = vpop.xlane.xlu0 %6828
    %v6830 = vrcp.pop %v6829
    %v6831 = vmul.f32 %v6826, %v6830
    %s6832 = scalar_lea.vmem [#allocation12], 40
    %6833 = vst.msk [vmem:[%s6832] sm:$0xff] %vm1761, %v6831
    %6835 = vrot.lane.b32.xlu0 %v1758, 120
    %v6836 = vpop.permute.xlu0 %6835
    %v6839 = vsel %vm1761, %v6831, 0
    %6841 = vmatprep.subr.mxu0 0.0
    %v6842 = vand.u32 %v6836, 4294901760
    %6843 = vmatpush1.msra.mxu0 %v6842
    %6844 = vmatprep.subr.mxu0 0.0
    %6845 = vmatpush1.msra.mxu0 0.0
    %6846 = vmatprep.subr.mxu0 0.0
    %6847 = vmatpush1.msra.mxu0 0.0
    %6848 = vmatprep.subr.mxu0 0.0
    %6849 = vmatpush1.msra.mxu0 0.0
    %6850 = vmatprep.subr.mxu0 0.0
    %6851 = vmatpush1.msra.mxu0 0.0
    %6852 = vmatprep.subr.mxu0 0.0
    %6853 = vmatpush1.msra.mxu0 0.0
    %6854 = vmatprep.subr.mxu0 0.0
    %6855 = vmatpush1.msra.mxu0 0.0
    %6856 = vmatprep.subr.mxu0 0.0
    %6857 = vmatpush1.msra.mxu0 0.0
    %6858 = vmatprep.subr.mxu0 0.0
    %6859 = vmatpush1.msra.mxu0 0.0
    %6860 = vmatprep.subr.mxu0 0.0
    %6861 = vmatpush1.msra.mxu0 0.0
    %6862 = vmatprep.subr.mxu0 0.0
    %6863 = vmatpush1.msra.mxu0 0.0
    %6864 = vmatprep.subr.mxu0 0.0
    %6865 = vmatpush1.msra.mxu0 0.0
    %6866 = vmatprep.subr.mxu0 0.0
    %6867 = vmatpush1.msra.mxu0 0.0
    %6868 = vmatprep.subr.mxu0 0.0
    %6869 = vmatpush1.msra.mxu0 0.0
    %6870 = vmatprep.subr.mxu0 0.0
    %6871 = vmatpush1.msra.mxu0 0.0
    %6872 = vmatprep.subr.mxu0 0.0
    %6873 = vmatpush1.msra.mxu0 0.0
    %6874 = vmatprep.subr.mxu0 0.0
    %6875 = vmatpush1.msra.mxu0 0.0
    %6876 = vmatprep.subr.mxu0 0.0
    %6877 = vmatpush1.msra.mxu0 0.0
    %6878 = vmatprep.subr.mxu0 0.0
    %6879 = vmatpush1.msra.mxu0 0.0
    %6880 = vmatprep.subr.mxu0 0.0
    %6881 = vmatpush1.msra.mxu0 0.0
    %6882 = vmatprep.subr.mxu0 0.0
    %6883 = vmatpush1.msra.mxu0 0.0
    %6884 = vmatprep.subr.mxu0 0.0
    %6885 = vmatpush1.msra.mxu0 0.0
    %6886 = vmatprep.subr.mxu0 0.0
    %6887 = vmatpush1.msra.mxu0 0.0
    %6888 = vmatprep.subr.mxu0 0.0
    %6889 = vmatpush1.msra.mxu0 0.0
    %6890 = vmatprep.subr.mxu0 0.0
    %6891 = vmatpush1.msra.mxu0 0.0
    %6892 = vmatprep.subr.mxu0 0.0
    %6893 = vmatpush1.msra.mxu0 0.0
    %6894 = vmatprep.subr.mxu0 0.0
    %6895 = vmatpush1.msra.mxu0 0.0
    %6896 = vmatprep.subr.mxu0 0.0
    %6897 = vmatpush1.msra.mxu0 0.0
    %6898 = vmatprep.subr.mxu0 0.0
    %6899 = vmatpush1.msra.mxu0 0.0
    %6900 = vmatprep.subr.mxu0 0.0
    %6901 = vmatpush1.msra.mxu0 0.0
    %6902 = vmatprep.subr.mxu0 0.0
    %6903 = vmatpush1.msra.mxu0 0.0
    %6904 = vmatprep.subr.mxu0 0.0
    %6905 = vmatpush1.msra.mxu0 0.0
    %6906 = vmatprep.mubr.f32.mxu0 0.0
    %v6907 = vand.u32 %v6839, 4294901760
    %v6908 = vsub.f32 %v6839, %v6907
    %v6909 = vand.u32 %v6908, 4294901760
    %v6910 = vsub.f32 %v6908, %v6909
    %v6911 = vand.u32 %v6910, 4294901760
    %6912 = vmatmul.mubr.f32.gmra.mrb[0].mxu0 %v6911
    %v6913 = vpop.f32.mrb[0].mxu0
    %v6914 = vadd.f32 0.0, %v6913
    %v6915 = vpop.f32.mrb[0].mxu0
    %6916 = vdwg.mxu0
    %6917 = vmatprep.subr.mxu0 0.0
    %v6918 = vand.u32 %v6836, 4294901760
    %v6919 = vsub.f32 %v6836, %v6918
    %v6920 = vand.u32 %v6919, 4294901760
    %v6921 = vsub.f32 %v6919, %v6920
    %v6922 = vand.u32 %v6921, 4294901760
    %6923 = vmatpush1.msra.mxu0 %v6922
    %6924 = vmatprep.subr.mxu0 0.0
    %6925 = vmatpush1.msra.mxu0 0.0
    %6926 = vmatprep.subr.mxu0 0.0
    %6927 = vmatpush1.msra.mxu0 0.0
    %6928 = vmatprep.subr.mxu0 0.0
    %6929 = vmatpush1.msra.mxu0 0.0
    %6930 = vmatprep.subr.mxu0 0.0
    %6931 = vmatpush1.msra.mxu0 0.0
    %6932 = vmatprep.subr.mxu0 0.0
    %6933 = vmatpush1.msra.mxu0 0.0
    %6934 = vmatprep.subr.mxu0 0.0
    %6935 = vmatpush1.msra.mxu0 0.0
    %6936 = vmatprep.subr.mxu0 0.0
    %6937 = vmatpush1.msra.mxu0 0.0
    %6938 = vmatprep.subr.mxu0 0.0
    %6939 = vmatpush1.msra.mxu0 0.0
    %6940 = vmatprep.subr.mxu0 0.0
    %6941 = vmatpush1.msra.mxu0 0.0
    %6942 = vmatprep.subr.mxu0 0.0
    %6943 = vmatpush1.msra.mxu0 0.0
    %6944 = vmatprep.subr.mxu0 0.0
    %6945 = vmatpush1.msra.mxu0 0.0
    %6946 = vmatprep.subr.mxu0 0.0
    %6947 = vmatpush1.msra.mxu0 0.0
    %6948 = vmatprep.subr.mxu0 0.0
    %6949 = vmatpush1.msra.mxu0 0.0
    %6950 = vmatprep.subr.mxu0 0.0
    %6951 = vmatpush1.msra.mxu0 0.0
    %6952 = vmatprep.subr.mxu0 0.0
    %6953 = vmatpush1.msra.mxu0 0.0
    %6954 = vmatprep.subr.mxu0 0.0
    %6955 = vmatpush1.msra.mxu0 0.0
    %6956 = vmatprep.subr.mxu0 0.0
    %6957 = vmatpush1.msra.mxu0 0.0
    %6958 = vmatprep.subr.mxu0 0.0
    %6959 = vmatpush1.msra.mxu0 0.0
    %6960 = vmatprep.subr.mxu0 0.0
    %6961 = vmatpush1.msra.mxu0 0.0
    %6962 = vmatprep.subr.mxu0 0.0
    %6963 = vmatpush1.msra.mxu0 0.0
    %6964 = vmatprep.subr.mxu0 0.0
    %6965 = vmatpush1.msra.mxu0 0.0
    %6966 = vmatprep.subr.mxu0 0.0
    %6967 = vmatpush1.msra.mxu0 0.0
    %6968 = vmatprep.subr.mxu0 0.0
    %6969 = vmatpush1.msra.mxu0 0.0
    %6970 = vmatprep.subr.mxu0 0.0
    %6971 = vmatpush1.msra.mxu0 0.0
    %6972 = vmatprep.subr.mxu0 0.0
    %6973 = vmatpush1.msra.mxu0 0.0
    %6974 = vmatprep.subr.mxu0 0.0
    %6975 = vmatpush1.msra.mxu0 0.0
    %6976 = vmatprep.subr.mxu0 0.0
    %6977 = vmatpush1.msra.mxu0 0.0
    %6978 = vmatprep.subr.mxu0 0.0
    %6979 = vmatpush1.msra.mxu0 0.0
    %6980 = vmatprep.subr.mxu0 0.0
    %6981 = vmatpush1.msra.mxu0 0.0
    %6982 = vmatprep.subr.mxu0 0.0
    %6983 = vmatpush1.msra.mxu0 0.0
    %6984 = vmatprep.subr.mxu0 0.0
    %6985 = vmatpush1.msra.mxu0 0.0
    %6986 = vmatprep.mubr.f32.mxu0 0.0
    %v6987 = vand.u32 %v6839, 4294901760
    %6988 = vmatmul.mubr.f32.gmra.mrb[0].mxu0 %v6987
    %v6989 = vpop.f32.mrb[0].mxu0
    %v6990 = vadd.f32 %v6914, %v6989
    %v6991 = vpop.f32.mrb[0].mxu0
    %6992 = vdwg.mxu0
    %6993 = vmatprep.subr.mxu0 0.0
    %v6994 = vand.u32 %v6836, 4294901760
    %v6995 = vsub.f32 %v6836, %v6994
    %6996 = vmatpush1.msra.mxu0 %v6995
    %6997 = vmatprep.subr.mxu0 0.0
    %6998 = vmatpush1.msra.mxu0 0.0
    %6999 = vmatprep.subr.mxu0 0.0
    %7000 = vmatpush1.msra.mxu0 0.0
    %7001 = vmatprep.subr.mxu0 0.0
    %7002 = vmatpush1.msra.mxu0 0.0
    %7003 = vmatprep.subr.mxu0 0.0
    %7004 = vmatpush1.msra.mxu0 0.0
    %7005 = vmatprep.subr.mxu0 0.0
    %7006 = vmatpush1.msra.mxu0 0.0
    %7007 = vmatprep.subr.mxu0 0.0
    %7008 = vmatpush1.msra.mxu0 0.0
    %7009 = vmatprep.subr.mxu0 0.0
    %7010 = vmatpush1.msra.mxu0 0.0
    %7011 = vmatprep.subr.mxu0 0.0
    %7012 = vmatpush1.msra.mxu0 0.0
    %7013 = vmatprep.subr.mxu0 0.0
    %7014 = vmatpush1.msra.mxu0 0.0
    %7015 = vmatprep.subr.mxu0 0.0
    %7016 = vmatpush1.msra.mxu0 0.0
    %7017 = vmatprep.subr.mxu0 0.0
    %7018 = vmatpush1.msra.mxu0 0.0
    %7019 = vmatprep.subr.mxu0 0.0
    %7020 = vmatpush1.msra.mxu0 0.0
    %7021 = vmatprep.subr.mxu0 0.0
    %7022 = vmatpush1.msra.mxu0 0.0
    %7023 = vmatprep.subr.mxu0 0.0
    %7024 = vmatpush1.msra.mxu0 0.0
    %7025 = vmatprep.subr.mxu0 0.0
    %7026 = vmatpush1.msra.mxu0 0.0
    %7027 = vmatprep.subr.mxu0 0.0
    %7028 = vmatpush1.msra.mxu0 0.0
    %7029 = vmatprep.subr.mxu0 0.0
    %7030 = vmatpush1.msra.mxu0 0.0
    %7031 = vmatprep.subr.mxu0 0.0
    %7032 = vmatpush1.msra.mxu0 0.0
    %7033 = vmatprep.subr.mxu0 0.0
    %7034 = vmatpush1.msra.mxu0 0.0
    %7035 = vmatprep.subr.mxu0 0.0
    %7036 = vmatpush1.msra.mxu0 0.0
    %7037 = vmatprep.subr.mxu0 0.0
    %7038 = vmatpush1.msra.mxu0 0.0
    %7039 = vmatprep.subr.mxu0 0.0
    %7040 = vmatpush1.msra.mxu0 0.0
    %7041 = vmatprep.subr.mxu0 0.0
    %7042 = vmatpush1.msra.mxu0 0.0
    %7043 = vmatprep.subr.mxu0 0.0
    %7044 = vmatpush1.msra.mxu0 0.0
    %7045 = vmatprep.subr.mxu0 0.0
    %7046 = vmatpush1.msra.mxu0 0.0
    %7047 = vmatprep.subr.mxu0 0.0
    %7048 = vmatpush1.msra.mxu0 0.0
    %7049 = vmatprep.subr.mxu0 0.0
    %7050 = vmatpush1.msra.mxu0 0.0
    %7051 = vmatprep.subr.mxu0 0.0
    %7052 = vmatpush1.msra.mxu0 0.0
    %7053 = vmatprep.subr.mxu0 0.0
    %7054 = vmatpush1.msra.mxu0 0.0
    %7055 = vmatprep.subr.mxu0 0.0
    %7056 = vmatpush1.msra.mxu0 0.0
    %7057 = vmatprep.subr.mxu0 0.0
    %7058 = vmatpush1.msra.mxu0 0.0
    %7059 = vmatprep.mubr.f32.mxu0 0.0
    %v7060 = vand.u32 %v6839, 4294901760
    %v7061 = vsub.f32 %v6839, %v7060
    %7062 = vmatmul.mubr.f32.gmra.mrb[0].mxu0 %v7061
    %v7063 = vpop.f32.mrb[0].mxu0
    %v7064 = vadd.f32 %v6990, %v7063
    %v7065 = vpop.f32.mrb[0].mxu0
    %7066 = vdwg.mxu0
    %7067 = vmatprep.subr.mxu0 0.0
    %v7068 = vand.u32 %v6836, 4294901760
    %7069 = vmatpush1.msra.mxu0 %v7068
    %7070 = vmatprep.subr.mxu0 0.0
    %7071 = vmatpush1.msra.mxu0 0.0
    %7072 = vmatprep.subr.mxu0 0.0
    %7073 = vmatpush1.msra.mxu0 0.0
    %7074 = vmatprep.subr.mxu0 0.0
    %7075 = vmatpush1.msra.mxu0 0.0
    %7076 = vmatprep.subr.mxu0 0.0
    %7077 = vmatpush1.msra.mxu0 0.0
    %7078 = vmatprep.subr.mxu0 0.0
    %7079 = vmatpush1.msra.mxu0 0.0
    %7080 = vmatprep.subr.mxu0 0.0
    %7081 = vmatpush1.msra.mxu0 0.0
    %7082 = vmatprep.subr.mxu0 0.0
    %7083 = vmatpush1.msra.mxu0 0.0
    %7084 = vmatprep.subr.mxu0 0.0
    %7085 = vmatpush1.msra.mxu0 0.0
    %7086 = vmatprep.subr.mxu0 0.0
    %7087 = vmatpush1.msra.mxu0 0.0
    %7088 = vmatprep.subr.mxu0 0.0
    %7089 = vmatpush1.msra.mxu0 0.0
    %7090 = vmatprep.subr.mxu0 0.0
    %7091 = vmatpush1.msra.mxu0 0.0
    %7092 = vmatprep.subr.mxu0 0.0
    %7093 = vmatpush1.msra.mxu0 0.0
    %7094 = vmatprep.subr.mxu0 0.0
    %7095 = vmatpush1.msra.mxu0 0.0
    %7096 = vmatprep.subr.mxu0 0.0
    %7097 = vmatpush1.msra.mxu0 0.0
    %7098 = vmatprep.subr.mxu0 0.0
    %7099 = vmatpush1.msra.mxu0 0.0
    %7100 = vmatprep.subr.mxu0 0.0
    %7101 = vmatpush1.msra.mxu0 0.0
    %7102 = vmatprep.subr.mxu0 0.0
    %7103 = vmatpush1.msra.mxu0 0.0
    %7104 = vmatprep.subr.mxu0 0.0
    %7105 = vmatpush1.msra.mxu0 0.0
    %7106 = vmatprep.subr.mxu0 0.0
    %7107 = vmatpush1.msra.mxu0 0.0
    %7108 = vmatprep.subr.mxu0 0.0
    %7109 = vmatpush1.msra.mxu0 0.0
    %7110 = vmatprep.subr.mxu0 0.0
    %7111 = vmatpush1.msra.mxu0 0.0
    %7112 = vmatprep.subr.mxu0 0.0
    %7113 = vmatpush1.msra.mxu0 0.0
    %7114 = vmatprep.subr.mxu0 0.0
    %7115 = vmatpush1.msra.mxu0 0.0
    %7116 = vmatprep.subr.mxu0 0.0
    %7117 = vmatpush1.msra.mxu0 0.0
    %7118 = vmatprep.subr.mxu0 0.0
    %7119 = vmatpush1.msra.mxu0 0.0
    %7120 = vmatprep.subr.mxu0 0.0
    %7121 = vmatpush1.msra.mxu0 0.0
    %7122 = vmatprep.subr.mxu0 0.0
    %7123 = vmatpush1.msra.mxu0 0.0
    %7124 = vmatprep.subr.mxu0 0.0
    %7125 = vmatpush1.msra.mxu0 0.0
    %7126 = vmatprep.subr.mxu0 0.0
    %7127 = vmatpush1.msra.mxu0 0.0
    %7128 = vmatprep.subr.mxu0 0.0
    %7129 = vmatpush1.msra.mxu0 0.0
    %7130 = vmatprep.subr.mxu0 0.0
    %7131 = vmatpush1.msra.mxu0 0.0
    %7132 = vmatprep.mubr.f32.mxu0 0.0
    %v7133 = vand.u32 %v6839, 4294901760
    %v7134 = vsub.f32 %v6839, %v7133
    %v7135 = vand.u32 %v7134, 4294901760
    %7136 = vmatmul.mubr.f32.gmra.mrb[0].mxu0 %v7135
    %v7137 = vpop.f32.mrb[0].mxu0
    %v7138 = vadd.f32 %v7064, %v7137
    %v7139 = vpop.f32.mrb[0].mxu0
    %7140 = vdwg.mxu0
    %7141 = vmatprep.subr.mxu0 0.0
    %v7142 = vand.u32 %v6836, 4294901760
    %v7143 = vsub.f32 %v6836, %v7142
    %v7144 = vand.u32 %v7143, 4294901760
    %7145 = vmatpush1.msra.mxu0 %v7144
    %7146 = vmatprep.subr.mxu0 0.0
    %7147 = vmatpush1.msra.mxu0 0.0
    %7148 = vmatprep.subr.mxu0 0.0
    %7149 = vmatpush1.msra.mxu0 0.0
    %7150 = vmatprep.subr.mxu0 0.0
    %7151 = vmatpush1.msra.mxu0 0.0
    %7152 = vmatprep.subr.mxu0 0.0
    %7153 = vmatpush1.msra.mxu0 0.0
    %7154 = vmatprep.subr.mxu0 0.0
    %7155 = vmatpush1.msra.mxu0 0.0
    %7156 = vmatprep.subr.mxu0 0.0
    %7157 = vmatpush1.msra.mxu0 0.0
    %7158 = vmatprep.subr.mxu0 0.0
    %7159 = vmatpush1.msra.mxu0 0.0
    %7160 = vmatprep.subr.mxu0 0.0
    %7161 = vmatpush1.msra.mxu0 0.0
    %7162 = vmatprep.subr.mxu0 0.0
    %7163 = vmatpush1.msra.mxu0 0.0
    %7164 = vmatprep.subr.mxu0 0.0
    %7165 = vmatpush1.msra.mxu0 0.0
    %7166 = vmatprep.subr.mxu0 0.0
    %7167 = vmatpush1.msra.mxu0 0.0
    %7168 = vmatprep.subr.mxu0 0.0
    %7169 = vmatpush1.msra.mxu0 0.0
    %7170 = vmatprep.subr.mxu0 0.0
    %7171 = vmatpush1.msra.mxu0 0.0
    %7172 = vmatprep.subr.mxu0 0.0
    %7173 = vmatpush1.msra.mxu0 0.0
    %7174 = vmatprep.subr.mxu0 0.0
    %7175 = vmatpush1.msra.mxu0 0.0
    %7176 = vmatprep.subr.mxu0 0.0
    %7177 = vmatpush1.msra.mxu0 0.0
    %7178 = vmatprep.subr.mxu0 0.0
    %7179 = vmatpush1.msra.mxu0 0.0
    %7180 = vmatprep.subr.mxu0 0.0
    %7181 = vmatpush1.msra.mxu0 0.0
    %7182 = vmatprep.subr.mxu0 0.0
    %7183 = vmatpush1.msra.mxu0 0.0
    %7184 = vmatprep.subr.mxu0 0.0
    %7185 = vmatpush1.msra.mxu0 0.0
    %7186 = vmatprep.subr.mxu0 0.0
    %7187 = vmatpush1.msra.mxu0 0.0
    %7188 = vmatprep.subr.mxu0 0.0
    %7189 = vmatpush1.msra.mxu0 0.0
    %7190 = vmatprep.subr.mxu0 0.0
    %7191 = vmatpush1.msra.mxu0 0.0
    %7192 = vmatprep.subr.mxu0 0.0
    %7193 = vmatpush1.msra.mxu0 0.0
    %7194 = vmatprep.subr.mxu0 0.0
    %7195 = vmatpush1.msra.mxu0 0.0
    %7196 = vmatprep.subr.mxu0 0.0
    %7197 = vmatpush1.msra.mxu0 0.0
    %7198 = vmatprep.subr.mxu0 0.0
    %7199 = vmatpush1.msra.mxu0 0.0
    %7200 = vmatprep.subr.mxu0 0.0
    %7201 = vmatpush1.msra.mxu0 0.0
    %7202 = vmatprep.subr.mxu0 0.0
    %7203 = vmatpush1.msra.mxu0 0.0
    %7204 = vmatprep.subr.mxu0 0.0
    %7205 = vmatpush1.msra.mxu0 0.0
    %7206 = vmatprep.subr.mxu0 0.0
    %7207 = vmatpush1.msra.mxu0 0.0
    %7208 = vmatprep.mubr.f32.mxu0 0.0
    %v7209 = vand.u32 %v6839, 4294901760
    %7210 = vmatmul.mubr.f32.gmra.mrb[0].mxu0 %v7209
    %v7211 = vpop.f32.mrb[0].mxu0
    %v7212 = vadd.f32 %v7138, %v7211
    %v7213 = vpop.f32.mrb[0].mxu0
    %7214 = vdwg.mxu0
    %7215 = vmatprep.subr.mxu0 0.0
    %v7216 = vand.u32 %v6836, 4294901760
    %7217 = vmatpush1.msra.mxu0 %v7216
    %7218 = vmatprep.subr.mxu0 0.0
    %7219 = vmatpush1.msra.mxu0 0.0
    %7220 = vmatprep.subr.mxu0 0.0
    %7221 = vmatpush1.msra.mxu0 0.0
    %7222 = vmatprep.subr.mxu0 0.0
    %7223 = vmatpush1.msra.mxu0 0.0
    %7224 = vmatprep.subr.mxu0 0.0
    %7225 = vmatpush1.msra.mxu0 0.0
    %7226 = vmatprep.subr.mxu0 0.0
    %7227 = vmatpush1.msra.mxu0 0.0
    %7228 = vmatprep.subr.mxu0 0.0
    %7229 = vmatpush1.msra.mxu0 0.0
    %7230 = vmatprep.subr.mxu0 0.0
    %7231 = vmatpush1.msra.mxu0 0.0
    %7232 = vmatprep.subr.mxu0 0.0
    %7233 = vmatpush1.msra.mxu0 0.0
    %7234 = vmatprep.subr.mxu0 0.0
    %7235 = vmatpush1.msra.mxu0 0.0
    %7236 = vmatprep.subr.mxu0 0.0
    %7237 = vmatpush1.msra.mxu0 0.0
    %7238 = vmatprep.subr.mxu0 0.0
    %7239 = vmatpush1.msra.mxu0 0.0
    %7240 = vmatprep.subr.mxu0 0.0
    %7241 = vmatpush1.msra.mxu0 0.0
    %7242 = vmatprep.subr.mxu0 0.0
    %7243 = vmatpush1.msra.mxu0 0.0
    %7244 = vmatprep.subr.mxu0 0.0
    %7245 = vmatpush1.msra.mxu0 0.0
    %7246 = vmatprep.subr.mxu0 0.0
    %7247 = vmatpush1.msra.mxu0 0.0
    %7248 = vmatprep.subr.mxu0 0.0
    %7249 = vmatpush1.msra.mxu0 0.0
    %7250 = vmatprep.subr.mxu0 0.0
    %7251 = vmatpush1.msra.mxu0 0.0
    %7252 = vmatprep.subr.mxu0 0.0
    %7253 = vmatpush1.msra.mxu0 0.0
    %7254 = vmatprep.subr.mxu0 0.0
    %7255 = vmatpush1.msra.mxu0 0.0
    %7256 = vmatprep.subr.mxu0 0.0
    %7257 = vmatpush1.msra.mxu0 0.0
    %7258 = vmatprep.subr.mxu0 0.0
    %7259 = vmatpush1.msra.mxu0 0.0
    %7260 = vmatprep.subr.mxu0 0.0
    %7261 = vmatpush1.msra.mxu0 0.0
    %7262 = vmatprep.subr.mxu0 0.0
    %7263 = vmatpush1.msra.mxu0 0.0
    %7264 = vmatprep.subr.mxu0 0.0
    %7265 = vmatpush1.msra.mxu0 0.0
    %7266 = vmatprep.subr.mxu0 0.0
    %7267 = vmatpush1.msra.mxu0 0.0
    %7268 = vmatprep.subr.mxu0 0.0
    %7269 = vmatpush1.msra.mxu0 0.0
    %7270 = vmatprep.subr.mxu0 0.0
    %7271 = vmatpush1.msra.mxu0 0.0
    %7272 = vmatprep.subr.mxu0 0.0
    %7273 = vmatpush1.msra.mxu0 0.0
    %7274 = vmatprep.subr.mxu0 0.0
    %7275 = vmatpush1.msra.mxu0 0.0
    %7276 = vmatprep.subr.mxu0 0.0
    %7277 = vmatpush1.msra.mxu0 0.0
    %7278 = vmatprep.subr.mxu0 0.0
    %7279 = vmatpush1.msra.mxu0 0.0
    %7280 = vmatprep.mubr.f32.mxu0 0.0
    %v7281 = vand.u32 %v6839, 4294901760
    %7282 = vmatmul.mubr.f32.gmra.mrb[0].mxu0 %v7281
    %v7283 = vpop.f32.mrb[0].mxu0
    %v7284 = vadd.f32 %v7212, %v7283
    %v7285 = vpop.f32.mrb[0].mxu0
    %7286 = vdwg.mxu0
    %7288 = vrot.lane.b32.xlu0 %v7284, 8
    %v7289 = vpop.permute.xlu0 %7288
    %7291 = vst.msk [vmem:[#allocation2 + $0x8] sm:$0xff] %vm3600, %v7289
    %7292 = vrot.lane.b32.xlu0 %v656, 112
    %v7293 = vpop.permute.xlu0 %7292
    %7294 = vrot.lane.b32.xlu0 %v1206, 112
    %v7295 = vpop.permute.xlu0 %7294
    %v7296 = vsel %vm1761, %v7293, 0
    %v7298 = vsel %vm1761, %v7295, 0
    %7300 = vmatprep.subr.mxu0 0.0
    %v7301 = vand.u32 %v7298, 4294901760
    %7302 = vmatpush1.xpose.msra.mxu0 %v7301
    %7303 = vmatprep.subr.mxu0 0.0
    %7304 = vmatpush1.xpose.msra.mxu0 0.0
    %7305 = vmatprep.subr.mxu0 0.0
    %7306 = vmatpush1.xpose.msra.mxu0 0.0
    %7307 = vmatprep.subr.mxu0 0.0
    %7308 = vmatpush1.xpose.msra.mxu0 0.0
    %7309 = vmatprep.subr.mxu0 0.0
    %7310 = vmatpush1.xpose.msra.mxu0 0.0
    %7311 = vmatprep.subr.mxu0 0.0
    %7312 = vmatpush1.xpose.msra.mxu0 0.0
    %7313 = vmatprep.subr.mxu0 0.0
    %7314 = vmatpush1.xpose.msra.mxu0 0.0
    %7315 = vmatprep.subr.mxu0 0.0
    %7316 = vmatpush1.xpose.msra.mxu0 0.0
    %7317 = vmatprep.subr.mxu0 0.0
    %7318 = vmatpush1.xpose.msra.mxu0 0.0
    %7319 = vmatprep.subr.mxu0 0.0
    %7320 = vmatpush1.xpose.msra.mxu0 0.0
    %7321 = vmatprep.subr.mxu0 0.0
    %7322 = vmatpush1.xpose.msra.mxu0 0.0
    %7323 = vmatprep.subr.mxu0 0.0
    %7324 = vmatpush1.xpose.msra.mxu0 0.0
    %7325 = vmatprep.subr.mxu0 0.0
    %7326 = vmatpush1.xpose.msra.mxu0 0.0
    %7327 = vmatprep.subr.mxu0 0.0
    %7328 = vmatpush1.xpose.msra.mxu0 0.0
    %7329 = vmatprep.subr.mxu0 0.0
    %7330 = vmatpush1.xpose.msra.mxu0 0.0
    %7331 = vmatprep.subr.mxu0 0.0
    %7332 = vmatpush1.xpose.msra.mxu0 0.0
    %7333 = vmatprep.subr.mxu0 0.0
    %7334 = vmatpush1.xpose.msra.mxu0 0.0
    %7335 = vmatprep.subr.mxu0 0.0
    %7336 = vmatpush1.xpose.msra.mxu0 0.0
    %7337 = vmatprep.subr.mxu0 0.0
    %7338 = vmatpush1.xpose.msra.mxu0 0.0
    %7339 = vmatprep.subr.mxu0 0.0
    %7340 = vmatpush1.xpose.msra.mxu0 0.0
    %7341 = vmatprep.subr.mxu0 0.0
    %7342 = vmatpush1.xpose.msra.mxu0 0.0
    %7343 = vmatprep.subr.mxu0 0.0
    %7344 = vmatpush1.xpose.msra.mxu0 0.0
    %7345 = vmatprep.subr.mxu0 0.0
    %7346 = vmatpush1.xpose.msra.mxu0 0.0
    %7347 = vmatprep.subr.mxu0 0.0
    %7348 = vmatpush1.xpose.msra.mxu0 0.0
    %7349 = vmatprep.subr.mxu0 0.0
    %7350 = vmatpush1.xpose.msra.mxu0 0.0
    %7351 = vmatprep.subr.mxu0 0.0
    %7352 = vmatpush1.xpose.msra.mxu0 0.0
    %7353 = vmatprep.subr.mxu0 0.0
    %7354 = vmatpush1.xpose.msra.mxu0 0.0
    %7355 = vmatprep.subr.mxu0 0.0
    %7356 = vmatpush1.xpose.msra.mxu0 0.0
    %7357 = vmatprep.subr.mxu0 0.0
    %7358 = vmatpush1.xpose.msra.mxu0 0.0
    %7359 = vmatprep.subr.mxu0 0.0
    %7360 = vmatpush1.xpose.msra.mxu0 0.0
    %7361 = vmatprep.subr.mxu0 0.0
    %7362 = vmatpush1.xpose.msra.mxu0 0.0
    %7363 = vmatprep.subr.mxu0 0.0
    %7364 = vmatpush1.xpose.msra.mxu0 0.0
    %7365 = vmatprep.mubr.f32.mxu0 0.0
    %v7366 = vand.u32 %v7296, 4294901760
    %v7367 = vsub.f32 %v7296, %v7366
    %v7368 = vand.u32 %v7367, 4294901760
    %v7369 = vsub.f32 %v7367, %v7368
    %v7370 = vand.u32 %v7369, 4294901760
    %7371 = vmatmul.mubr.f32.gmra.mrb[0].mxu0 %v7370
    %v7372 = vpop.f32.mrb[0].mxu0
    %v7373 = vadd.f32 0.0, %v7372
    %v7374 = vpop.f32.mrb[0].mxu0
    %7375 = vdwg.mxu0
    %7376 = vmatprep.subr.mxu0 0.0
    %v7377 = vand.u32 %v7298, 4294901760
    %v7378 = vsub.f32 %v7298, %v7377
    %v7379 = vand.u32 %v7378, 4294901760
    %v7380 = vsub.f32 %v7378, %v7379
    %v7381 = vand.u32 %v7380, 4294901760
    %7382 = vmatpush1.xpose.msra.mxu0 %v7381
    %7383 = vmatprep.subr.mxu0 0.0
    %7384 = vmatpush1.xpose.msra.mxu0 0.0
    %7385 = vmatprep.subr.mxu0 0.0
    %7386 = vmatpush1.xpose.msra.mxu0 0.0
    %7387 = vmatprep.subr.mxu0 0.0
    %7388 = vmatpush1.xpose.msra.mxu0 0.0
    %7389 = vmatprep.subr.mxu0 0.0
    %7390 = vmatpush1.xpose.msra.mxu0 0.0
    %7391 = vmatprep.subr.mxu0 0.0
    %7392 = vmatpush1.xpose.msra.mxu0 0.0
    %7393 = vmatprep.subr.mxu0 0.0
    %7394 = vmatpush1.xpose.msra.mxu0 0.0
    %7395 = vmatprep.subr.mxu0 0.0
    %7396 = vmatpush1.xpose.msra.mxu0 0.0
    %7397 = vmatprep.subr.mxu0 0.0
    %7398 = vmatpush1.xpose.msra.mxu0 0.0
    %7399 = vmatprep.subr.mxu0 0.0
    %7400 = vmatpush1.xpose.msra.mxu0 0.0
    %7401 = vmatprep.subr.mxu0 0.0
    %7402 = vmatpush1.xpose.msra.mxu0 0.0
    %7403 = vmatprep.subr.mxu0 0.0
    %7404 = vmatpush1.xpose.msra.mxu0 0.0
    %7405 = vmatprep.subr.mxu0 0.0
    %7406 = vmatpush1.xpose.msra.mxu0 0.0
    %7407 = vmatprep.subr.mxu0 0.0
    %7408 = vmatpush1.xpose.msra.mxu0 0.0
    %7409 = vmatprep.subr.mxu0 0.0
    %7410 = vmatpush1.xpose.msra.mxu0 0.0
    %7411 = vmatprep.subr.mxu0 0.0
    %7412 = vmatpush1.xpose.msra.mxu0 0.0
    %7413 = vmatprep.subr.mxu0 0.0
    %7414 = vmatpush1.xpose.msra.mxu0 0.0
    %7415 = vmatprep.subr.mxu0 0.0
    %7416 = vmatpush1.xpose.msra.mxu0 0.0
    %7417 = vmatprep.subr.mxu0 0.0
    %7418 = vmatpush1.xpose.msra.mxu0 0.0
    %7419 = vmatprep.subr.mxu0 0.0
    %7420 = vmatpush1.xpose.msra.mxu0 0.0
    %7421 = vmatprep.subr.mxu0 0.0
    %7422 = vmatpush1.xpose.msra.mxu0 0.0
    %7423 = vmatprep.subr.mxu0 0.0
    %7424 = vmatpush1.xpose.msra.mxu0 0.0
    %7425 = vmatprep.subr.mxu0 0.0
    %7426 = vmatpush1.xpose.msra.mxu0 0.0
    %7427 = vmatprep.subr.mxu0 0.0
    %7428 = vmatpush1.xpose.msra.mxu0 0.0
    %7429 = vmatprep.subr.mxu0 0.0
    %7430 = vmatpush1.xpose.msra.mxu0 0.0
    %7431 = vmatprep.subr.mxu0 0.0
    %7432 = vmatpush1.xpose.msra.mxu0 0.0
    %7433 = vmatprep.subr.mxu0 0.0
    %7434 = vmatpush1.xpose.msra.mxu0 0.0
    %7435 = vmatprep.subr.mxu0 0.0
    %7436 = vmatpush1.xpose.msra.mxu0 0.0
    %7437 = vmatprep.subr.mxu0 0.0
    %7438 = vmatpush1.xpose.msra.mxu0 0.0
    %7439 = vmatprep.subr.mxu0 0.0
    %7440 = vmatpush1.xpose.msra.mxu0 0.0
    %7441 = vmatprep.subr.mxu0 0.0
    %7442 = vmatpush1.xpose.msra.mxu0 0.0
    %7443 = vmatprep.subr.mxu0 0.0
    %7444 = vmatpush1.xpose.msra.mxu0 0.0
    %7445 = vmatprep.mubr.f32.mxu0 0.0
    %v7446 = vand.u32 %v7296, 4294901760
    %7447 = vmatmul.mubr.f32.gmra.mrb[0].mxu0 %v7446
    %v7448 = vpop.f32.mrb[0].mxu0
    %v7449 = vadd.f32 %v7373, %v7448
    %v7450 = vpop.f32.mrb[0].mxu0
    %7451 = vdwg.mxu0
    %7452 = vmatprep.subr.mxu0 0.0
    %v7453 = vand.u32 %v7298, 4294901760
    %v7454 = vsub.f32 %v7298, %v7453
    %7455 = vmatpush1.xpose.msra.mxu0 %v7454
    %7456 = vmatprep.subr.mxu0 0.0
    %7457 = vmatpush1.xpose.msra.mxu0 0.0
    %7458 = vmatprep.subr.mxu0 0.0
    %7459 = vmatpush1.xpose.msra.mxu0 0.0
    %7460 = vmatprep.subr.mxu0 0.0
    %7461 = vmatpush1.xpose.msra.mxu0 0.0
    %7462 = vmatprep.subr.mxu0 0.0
    %7463 = vmatpush1.xpose.msra.mxu0 0.0
    %7464 = vmatprep.subr.mxu0 0.0
    %7465 = vmatpush1.xpose.msra.mxu0 0.0
    %7466 = vmatprep.subr.mxu0 0.0
    %7467 = vmatpush1.xpose.msra.mxu0 0.0
    %7468 = vmatprep.subr.mxu0 0.0
    %7469 = vmatpush1.xpose.msra.mxu0 0.0
    %7470 = vmatprep.subr.mxu0 0.0
    %7471 = vmatpush1.xpose.msra.mxu0 0.0
    %7472 = vmatprep.subr.mxu0 0.0
    %7473 = vmatpush1.xpose.msra.mxu0 0.0
    %7474 = vmatprep.subr.mxu0 0.0
    %7475 = vmatpush1.xpose.msra.mxu0 0.0
    %7476 = vmatprep.subr.mxu0 0.0
    %7477 = vmatpush1.xpose.msra.mxu0 0.0
    %7478 = vmatprep.subr.mxu0 0.0
    %7479 = vmatpush1.xpose.msra.mxu0 0.0
    %7480 = vmatprep.subr.mxu0 0.0
    %7481 = vmatpush1.xpose.msra.mxu0 0.0
    %7482 = vmatprep.subr.mxu0 0.0
    %7483 = vmatpush1.xpose.msra.mxu0 0.0
    %7484 = vmatprep.subr.mxu0 0.0
    %7485 = vmatpush1.xpose.msra.mxu0 0.0
    %7486 = vmatprep.subr.mxu0 0.0
    %7487 = vmatpush1.xpose.msra.mxu0 0.0
    %7488 = vmatprep.subr.mxu0 0.0
    %7489 = vmatpush1.xpose.msra.mxu0 0.0
    %7490 = vmatprep.subr.mxu0 0.0
    %7491 = vmatpush1.xpose.msra.mxu0 0.0
    %7492 = vmatprep.subr.mxu0 0.0
    %7493 = vmatpush1.xpose.msra.mxu0 0.0
    %7494 = vmatprep.subr.mxu0 0.0
    %7495 = vmatpush1.xpose.msra.mxu0 0.0
    %7496 = vmatprep.subr.mxu0 0.0
    %7497 = vmatpush1.xpose.msra.mxu0 0.0
    %7498 = vmatprep.subr.mxu0 0.0
    %7499 = vmatpush1.xpose.msra.mxu0 0.0
    %7500 = vmatprep.subr.mxu0 0.0
    %7501 = vmatpush1.xpose.msra.mxu0 0.0
    %7502 = vmatprep.subr.mxu0 0.0
    %7503 = vmatpush1.xpose.msra.mxu0 0.0
    %7504 = vmatprep.subr.mxu0 0.0
    %7505 = vmatpush1.xpose.msra.mxu0 0.0
    %7506 = vmatprep.subr.mxu0 0.0
    %7507 = vmatpush1.xpose.msra.mxu0 0.0
    %7508 = vmatprep.subr.mxu0 0.0
    %7509 = vmatpush1.xpose.msra.mxu0 0.0
    %7510 = vmatprep.subr.mxu0 0.0
    %7511 = vmatpush1.xpose.msra.mxu0 0.0
    %7512 = vmatprep.subr.mxu0 0.0
    %7513 = vmatpush1.xpose.msra.mxu0 0.0
    %7514 = vmatprep.subr.mxu0 0.0
    %7515 = vmatpush1.xpose.msra.mxu0 0.0
    %7516 = vmatprep.subr.mxu0 0.0
    %7517 = vmatpush1.xpose.msra.mxu0 0.0
    %7518 = vmatprep.mubr.f32.mxu0 0.0
    %v7519 = vand.u32 %v7296, 4294901760
    %v7520 = vsub.f32 %v7296, %v7519
    %7521 = vmatmul.mubr.f32.gmra.mrb[0].mxu0 %v7520
    %v7522 = vpop.f32.mrb[0].mxu0
    %v7523 = vadd.f32 %v7449, %v7522
    %v7524 = vpop.f32.mrb[0].mxu0
    %7525 = vdwg.mxu0
    %7526 = vmatprep.subr.mxu0 0.0
    %v7527 = vand.u32 %v7298, 4294901760
    %7528 = vmatpush1.xpose.msra.mxu0 %v7527
    %7529 = vmatprep.subr.mxu0 0.0
    %7530 = vmatpush1.xpose.msra.mxu0 0.0
    %7531 = vmatprep.subr.mxu0 0.0
    %7532 = vmatpush1.xpose.msra.mxu0 0.0
    %7533 = vmatprep.subr.mxu0 0.0
    %7534 = vmatpush1.xpose.msra.mxu0 0.0
    %7535 = vmatprep.subr.mxu0 0.0
    %7536 = vmatpush1.xpose.msra.mxu0 0.0
    %7537 = vmatprep.subr.mxu0 0.0
    %7538 = vmatpush1.xpose.msra.mxu0 0.0
    %7539 = vmatprep.subr.mxu0 0.0
    %7540 = vmatpush1.xpose.msra.mxu0 0.0
    %7541 = vmatprep.subr.mxu0 0.0
    %7542 = vmatpush1.xpose.msra.mxu0 0.0
    %7543 = vmatprep.subr.mxu0 0.0
    %7544 = vmatpush1.xpose.msra.mxu0 0.0
    %7545 = vmatprep.subr.mxu0 0.0
    %7546 = vmatpush1.xpose.msra.mxu0 0.0
    %7547 = vmatprep.subr.mxu0 0.0
    %7548 = vmatpush1.xpose.msra.mxu0 0.0
    %7549 = vmatprep.subr.mxu0 0.0
    %7550 = vmatpush1.xpose.msra.mxu0 0.0
    %7551 = vmatprep.subr.mxu0 0.0
    %7552 = vmatpush1.xpose.msra.mxu0 0.0
    %7553 = vmatprep.subr.mxu0 0.0
    %7554 = vmatpush1.xpose.msra.mxu0 0.0
    %7555 = vmatprep.subr.mxu0 0.0
    %7556 = vmatpush1.xpose.msra.mxu0 0.0
    %7557 = vmatprep.subr.mxu0 0.0
    %7558 = vmatpush1.xpose.msra.mxu0 0.0
    %7559 = vmatprep.subr.mxu0 0.0
    %7560 = vmatpush1.xpose.msra.mxu0 0.0
    %7561 = vmatprep.subr.mxu0 0.0
    %7562 = vmatpush1.xpose.msra.mxu0 0.0
    %7563 = vmatprep.subr.mxu0 0.0
    %7564 = vmatpush1.xpose.msra.mxu0 0.0
    %7565 = vmatprep.subr.mxu0 0.0
    %7566 = vmatpush1.xpose.msra.mxu0 0.0
    %7567 = vmatprep.subr.mxu0 0.0
    %7568 = vmatpush1.xpose.msra.mxu0 0.0
    %7569 = vmatprep.subr.mxu0 0.0
    %7570 = vmatpush1.xpose.msra.mxu0 0.0
    %7571 = vmatprep.subr.mxu0 0.0
    %7572 = vmatpush1.xpose.msra.mxu0 0.0
    %7573 = vmatprep.subr.mxu0 0.0
    %7574 = vmatpush1.xpose.msra.mxu0 0.0
    %7575 = vmatprep.subr.mxu0 0.0
    %7576 = vmatpush1.xpose.msra.mxu0 0.0
    %7577 = vmatprep.subr.mxu0 0.0
    %7578 = vmatpush1.xpose.msra.mxu0 0.0
    %7579 = vmatprep.subr.mxu0 0.0
    %7580 = vmatpush1.xpose.msra.mxu0 0.0
    %7581 = vmatprep.subr.mxu0 0.0
    %7582 = vmatpush1.xpose.msra.mxu0 0.0
    %7583 = vmatprep.subr.mxu0 0.0
    %7584 = vmatpush1.xpose.msra.mxu0 0.0
    %7585 = vmatprep.subr.mxu0 0.0
    %7586 = vmatpush1.xpose.msra.mxu0 0.0
    %7587 = vmatprep.subr.mxu0 0.0
    %7588 = vmatpush1.xpose.msra.mxu0 0.0
    %7589 = vmatprep.subr.mxu0 0.0
    %7590 = vmatpush1.xpose.msra.mxu0 0.0
    %7591 = vmatprep.mubr.f32.mxu0 0.0
    %v7592 = vand.u32 %v7296, 4294901760
    %v7593 = vsub.f32 %v7296, %v7592
    %v7594 = vand.u32 %v7593, 4294901760
    %7595 = vmatmul.mubr.f32.gmra.mrb[0].mxu0 %v7594
    %v7596 = vpop.f32.mrb[0].mxu0
    %v7597 = vadd.f32 %v7523, %v7596
    %v7598 = vpop.f32.mrb[0].mxu0
    %7599 = vdwg.mxu0
    %7600 = vmatprep.subr.mxu0 0.0
    %v7601 = vand.u32 %v7298, 4294901760
    %v7602 = vsub.f32 %v7298, %v7601
    %v7603 = vand.u32 %v7602, 4294901760
    %7604 = vmatpush1.xpose.msra.mxu0 %v7603
    %7605 = vmatprep.subr.mxu0 0.0
    %7606 = vmatpush1.xpose.msra.mxu0 0.0
    %7607 = vmatprep.subr.mxu0 0.0
    %7608 = vmatpush1.xpose.msra.mxu0 0.0
    %7609 = vmatprep.subr.mxu0 0.0
    %7610 = vmatpush1.xpose.msra.mxu0 0.0
    %7611 = vmatprep.subr.mxu0 0.0
    %7612 = vmatpush1.xpose.msra.mxu0 0.0
    %7613 = vmatprep.subr.mxu0 0.0
    %7614 = vmatpush1.xpose.msra.mxu0 0.0
    %7615 = vmatprep.subr.mxu0 0.0
    %7616 = vmatpush1.xpose.msra.mxu0 0.0
    %7617 = vmatprep.subr.mxu0 0.0
    %7618 = vmatpush1.xpose.msra.mxu0 0.0
    %7619 = vmatprep.subr.mxu0 0.0
    %7620 = vmatpush1.xpose.msra.mxu0 0.0
    %7621 = vmatprep.subr.mxu0 0.0
    %7622 = vmatpush1.xpose.msra.mxu0 0.0
    %7623 = vmatprep.subr.mxu0 0.0
    %7624 = vmatpush1.xpose.msra.mxu0 0.0
    %7625 = vmatprep.subr.mxu0 0.0
    %7626 = vmatpush1.xpose.msra.mxu0 0.0
    %7627 = vmatprep.subr.mxu0 0.0
    %7628 = vmatpush1.xpose.msra.mxu0 0.0
    %7629 = vmatprep.subr.mxu0 0.0
    %7630 = vmatpush1.xpose.msra.mxu0 0.0
    %7631 = vmatprep.subr.mxu0 0.0
    %7632 = vmatpush1.xpose.msra.mxu0 0.0
    %7633 = vmatprep.subr.mxu0 0.0
    %7634 = vmatpush1.xpose.msra.mxu0 0.0
    %7635 = vmatprep.subr.mxu0 0.0
    %7636 = vmatpush1.xpose.msra.mxu0 0.0
    %7637 = vmatprep.subr.mxu0 0.0
    %7638 = vmatpush1.xpose.msra.mxu0 0.0
    %7639 = vmatprep.subr.mxu0 0.0
    %7640 = vmatpush1.xpose.msra.mxu0 0.0
    %7641 = vmatprep.subr.mxu0 0.0
    %7642 = vmatpush1.xpose.msra.mxu0 0.0
    %7643 = vmatprep.subr.mxu0 0.0
    %7644 = vmatpush1.xpose.msra.mxu0 0.0
    %7645 = vmatprep.subr.mxu0 0.0
    %7646 = vmatpush1.xpose.msra.mxu0 0.0
    %7647 = vmatprep.subr.mxu0 0.0
    %7648 = vmatpush1.xpose.msra.mxu0 0.0
    %7649 = vmatprep.subr.mxu0 0.0
    %7650 = vmatpush1.xpose.msra.mxu0 0.0
    %7651 = vmatprep.subr.mxu0 0.0
    %7652 = vmatpush1.xpose.msra.mxu0 0.0
    %7653 = vmatprep.subr.mxu0 0.0
    %7654 = vmatpush1.xpose.msra.mxu0 0.0
    %7655 = vmatprep.subr.mxu0 0.0
    %7656 = vmatpush1.xpose.msra.mxu0 0.0
    %7657 = vmatprep.subr.mxu0 0.0
    %7658 = vmatpush1.xpose.msra.mxu0 0.0
    %7659 = vmatprep.subr.mxu0 0.0
    %7660 = vmatpush1.xpose.msra.mxu0 0.0
    %7661 = vmatprep.subr.mxu0 0.0
    %7662 = vmatpush1.xpose.msra.mxu0 0.0
    %7663 = vmatprep.subr.mxu0 0.0
    %7664 = vmatpush1.xpose.msra.mxu0 0.0
    %7665 = vmatprep.subr.mxu0 0.0
    %7666 = vmatpush1.xpose.msra.mxu0 0.0
    %7667 = vmatprep.mubr.f32.mxu0 0.0
    %v7668 = vand.u32 %v7296, 4294901760
    %7669 = vmatmul.mubr.f32.gmra.mrb[0].mxu0 %v7668
    %v7670 = vpop.f32.mrb[0].mxu0
    %v7671 = vadd.f32 %v7597, %v7670
    %v7672 = vpop.f32.mrb[0].mxu0
    %7673 = vdwg.mxu0
    %7674 = vmatprep.subr.mxu0 0.0
    %v7675 = vand.u32 %v7298, 4294901760
    %7676 = vmatpush1.xpose.msra.mxu0 %v7675
    %7677 = vmatprep.subr.mxu0 0.0
    %7678 = vmatpush1.xpose.msra.mxu0 0.0
    %7679 = vmatprep.subr.mxu0 0.0
    %7680 = vmatpush1.xpose.msra.mxu0 0.0
    %7681 = vmatprep.subr.mxu0 0.0
    %7682 = vmatpush1.xpose.msra.mxu0 0.0
    %7683 = vmatprep.subr.mxu0 0.0
    %7684 = vmatpush1.xpose.msra.mxu0 0.0
    %7685 = vmatprep.subr.mxu0 0.0
    %7686 = vmatpush1.xpose.msra.mxu0 0.0
    %7687 = vmatprep.subr.mxu0 0.0
    %7688 = vmatpush1.xpose.msra.mxu0 0.0
    %7689 = vmatprep.subr.mxu0 0.0
    %7690 = vmatpush1.xpose.msra.mxu0 0.0
    %7691 = vmatprep.subr.mxu0 0.0
    %7692 = vmatpush1.xpose.msra.mxu0 0.0
    %7693 = vmatprep.subr.mxu0 0.0
    %7694 = vmatpush1.xpose.msra.mxu0 0.0
    %7695 = vmatprep.subr.mxu0 0.0
    %7696 = vmatpush1.xpose.msra.mxu0 0.0
    %7697 = vmatprep.subr.mxu0 0.0
    %7698 = vmatpush1.xpose.msra.mxu0 0.0
    %7699 = vmatprep.subr.mxu0 0.0
    %7700 = vmatpush1.xpose.msra.mxu0 0.0
    %7701 = vmatprep.subr.mxu0 0.0
    %7702 = vmatpush1.xpose.msra.mxu0 0.0
    %7703 = vmatprep.subr.mxu0 0.0
    %7704 = vmatpush1.xpose.msra.mxu0 0.0
    %7705 = vmatprep.subr.mxu0 0.0
    %7706 = vmatpush1.xpose.msra.mxu0 0.0
    %7707 = vmatprep.subr.mxu0 0.0
    %7708 = vmatpush1.xpose.msra.mxu0 0.0
    %7709 = vmatprep.subr.mxu0 0.0
    %7710 = vmatpush1.xpose.msra.mxu0 0.0
    %7711 = vmatprep.subr.mxu0 0.0
    %7712 = vmatpush1.xpose.msra.mxu0 0.0
    %7713 = vmatprep.subr.mxu0 0.0
    %7714 = vmatpush1.xpose.msra.mxu0 0.0
    %7715 = vmatprep.subr.mxu0 0.0
    %7716 = vmatpush1.xpose.msra.mxu0 0.0
    %7717 = vmatprep.subr.mxu0 0.0
    %7718 = vmatpush1.xpose.msra.mxu0 0.0
    %7719 = vmatprep.subr.mxu0 0.0
    %7720 = vmatpush1.xpose.msra.mxu0 0.0
    %7721 = vmatprep.subr.mxu0 0.0
    %7722 = vmatpush1.xpose.msra.mxu0 0.0
    %7723 = vmatprep.subr.mxu0 0.0
    %7724 = vmatpush1.xpose.msra.mxu0 0.0
    %7725 = vmatprep.subr.mxu0 0.0
    %7726 = vmatpush1.xpose.msra.mxu0 0.0
    %7727 = vmatprep.subr.mxu0 0.0
    %7728 = vmatpush1.xpose.msra.mxu0 0.0
    %7729 = vmatprep.subr.mxu0 0.0
    %7730 = vmatpush1.xpose.msra.mxu0 0.0
    %7731 = vmatprep.subr.mxu0 0.0
    %7732 = vmatpush1.xpose.msra.mxu0 0.0
    %7733 = vmatprep.subr.mxu0 0.0
    %7734 = vmatpush1.xpose.msra.mxu0 0.0
    %7735 = vmatprep.subr.mxu0 0.0
    %7736 = vmatpush1.xpose.msra.mxu0 0.0
    %7737 = vmatprep.subr.mxu0 0.0
    %7738 = vmatpush1.xpose.msra.mxu0 0.0
    %7739 = vmatprep.mubr.f32.mxu0 0.0
    %v7740 = vand.u32 %v7296, 4294901760
    %7741 = vmatmul.mubr.f32.gmra.mrb[0].mxu0 %v7740
    %v7742 = vpop.f32.mrb[0].mxu0
    %v7743 = vadd.f32 %v7671, %v7742
    %v7744 = vpop.f32.mrb[0].mxu0
    %7745 = vdwg.mxu0
    %v7746 = vsel %vm1761, %v7743, -inf
    %7747 = vmax.xlane.f32.xlu0 %v7746
    %v7748 = vpop.xlane.xlu0 %7747
    %v7749 = vsub.f32 %v7743, %v7748
    %v7750 = vmul.f32 %v7749, 1.442695
    %v7751 = vpow.pop %v7750
    %v7752 = vsel %vm1761, %v7751, 0.0
    %7753 = vadd.xlane.f32.xlu0 %v7752
    %v7754 = vpop.xlane.xlu0 %7753
    %v7755 = vrcp.pop %v7754
    %v7756 = vmul.f32 %v7751, %v7755
    %s7757 = scalar_lea.vmem [#allocation12], 48
    %7758 = vst.msk [vmem:[%s7757] sm:$0xff] %vm1761, %v7756
    %7759 = vrot.lane.b32.xlu0 %v1758, 112
    %v7760 = vpop.permute.xlu0 %7759
    %v7763 = vsel %vm1761, %v7756, 0
    %7765 = vmatprep.subr.mxu0 0.0
    %v7766 = vand.u32 %v7760, 4294901760
    %7767 = vmatpush1.msra.mxu0 %v7766
    %7768 = vmatprep.subr.mxu0 0.0
    %7769 = vmatpush1.msra.mxu0 0.0
    %7770 = vmatprep.subr.mxu0 0.0
    %7771 = vmatpush1.msra.mxu0 0.0
    %7772 = vmatprep.subr.mxu0 0.0
    %7773 = vmatpush1.msra.mxu0 0.0
    %7774 = vmatprep.subr.mxu0 0.0
    %7775 = vmatpush1.msra.mxu0 0.0
    %7776 = vmatprep.subr.mxu0 0.0
    %7777 = vmatpush1.msra.mxu0 0.0
    %7778 = vmatprep.subr.mxu0 0.0
    %7779 = vmatpush1.msra.mxu0 0.0
    %7780 = vmatprep.subr.mxu0 0.0
    %7781 = vmatpush1.msra.mxu0 0.0
    %7782 = vmatprep.subr.mxu0 0.0
    %7783 = vmatpush1.msra.mxu0 0.0
    %7784 = vmatprep.subr.mxu0 0.0
    %7785 = vmatpush1.msra.mxu0 0.0
    %7786 = vmatprep.subr.mxu0 0.0
    %7787 = vmatpush1.msra.mxu0 0.0
    %7788 = vmatprep.subr.mxu0 0.0
    %7789 = vmatpush1.msra.mxu0 0.0
    %7790 = vmatprep.subr.mxu0 0.0
    %7791 = vmatpush1.msra.mxu0 0.0
    %7792 = vmatprep.subr.mxu0 0.0
    %7793 = vmatpush1.msra.mxu0 0.0
    %7794 = vmatprep.subr.mxu0 0.0
    %7795 = vmatpush1.msra.mxu0 0.0
    %7796 = vmatprep.subr.mxu0 0.0
    %7797 = vmatpush1.msra.mxu0 0.0
    %7798 = vmatprep.subr.mxu0 0.0
    %7799 = vmatpush1.msra.mxu0 0.0
    %7800 = vmatprep.subr.mxu0 0.0
    %7801 = vmatpush1.msra.mxu0 0.0
    %7802 = vmatprep.subr.mxu0 0.0
    %7803 = vmatpush1.msra.mxu0 0.0
    %7804 = vmatprep.subr.mxu0 0.0
    %7805 = vmatpush1.msra.mxu0 0.0
    %7806 = vmatprep.subr.mxu0 0.0
    %7807 = vmatpush1.msra.mxu0 0.0
    %7808 = vmatprep.subr.mxu0 0.0
    %7809 = vmatpush1.msra.mxu0 0.0
    %7810 = vmatprep.subr.mxu0 0.0
    %7811 = vmatpush1.msra.mxu0 0.0
    %7812 = vmatprep.subr.mxu0 0.0
    %7813 = vmatpush1.msra.mxu0 0.0
    %7814 = vmatprep.subr.mxu0 0.0
    %7815 = vmatpush1.msra.mxu0 0.0
    %7816 = vmatprep.subr.mxu0 0.0
    %7817 = vmatpush1.msra.mxu0 0.0
    %7818 = vmatprep.subr.mxu0 0.0
    %7819 = vmatpush1.msra.mxu0 0.0
    %7820 = vmatprep.subr.mxu0 0.0
    %7821 = vmatpush1.msra.mxu0 0.0
    %7822 = vmatprep.subr.mxu0 0.0
    %7823 = vmatpush1.msra.mxu0 0.0
    %7824 = vmatprep.subr.mxu0 0.0
    %7825 = vmatpush1.msra.mxu0 0.0
    %7826 = vmatprep.subr.mxu0 0.0
    %7827 = vmatpush1.msra.mxu0 0.0
    %7828 = vmatprep.subr.mxu0 0.0
    %7829 = vmatpush1.msra.mxu0 0.0
    %7830 = vmatprep.mubr.f32.mxu0 0.0
    %v7831 = vand.u32 %v7763, 4294901760
    %v7832 = vsub.f32 %v7763, %v7831
    %v7833 = vand.u32 %v7832, 4294901760
    %v7834 = vsub.f32 %v7832, %v7833
    %v7835 = vand.u32 %v7834, 4294901760
    %7836 = vmatmul.mubr.f32.gmra.mrb[0].mxu0 %v7835
    %v7837 = vpop.f32.mrb[0].mxu0
    %v7838 = vadd.f32 0.0, %v7837
    %v7839 = vpop.f32.mrb[0].mxu0
    %7840 = vdwg.mxu0
    %7841 = vmatprep.subr.mxu0 0.0
    %v7842 = vand.u32 %v7760, 4294901760
    %v7843 = vsub.f32 %v7760, %v7842
    %v7844 = vand.u32 %v7843, 4294901760
    %v7845 = vsub.f32 %v7843, %v7844
    %v7846 = vand.u32 %v7845, 4294901760
    %7847 = vmatpush1.msra.mxu0 %v7846
    %7848 = vmatprep.subr.mxu0 0.0
    %7849 = vmatpush1.msra.mxu0 0.0
    %7850 = vmatprep.subr.mxu0 0.0
    %7851 = vmatpush1.msra.mxu0 0.0
    %7852 = vmatprep.subr.mxu0 0.0
    %7853 = vmatpush1.msra.mxu0 0.0
    %7854 = vmatprep.subr.mxu0 0.0
    %7855 = vmatpush1.msra.mxu0 0.0
    %7856 = vmatprep.subr.mxu0 0.0
    %7857 = vmatpush1.msra.mxu0 0.0
    %7858 = vmatprep.subr.mxu0 0.0
    %7859 = vmatpush1.msra.mxu0 0.0
    %7860 = vmatprep.subr.mxu0 0.0
    %7861 = vmatpush1.msra.mxu0 0.0
    %7862 = vmatprep.subr.mxu0 0.0
    %7863 = vmatpush1.msra.mxu0 0.0
    %7864 = vmatprep.subr.mxu0 0.0
    %7865 = vmatpush1.msra.mxu0 0.0
    %7866 = vmatprep.subr.mxu0 0.0
    %7867 = vmatpush1.msra.mxu0 0.0
    %7868 = vmatprep.subr.mxu0 0.0
    %7869 = vmatpush1.msra.mxu0 0.0
    %7870 = vmatprep.subr.mxu0 0.0
    %7871 = vmatpush1.msra.mxu0 0.0
    %7872 = vmatprep.subr.mxu0 0.0
    %7873 = vmatpush1.msra.mxu0 0.0
    %7874 = vmatprep.subr.mxu0 0.0
    %7875 = vmatpush1.msra.mxu0 0.0
    %7876 = vmatprep.subr.mxu0 0.0
    %7877 = vmatpush1.msra.mxu0 0.0
    %7878 = vmatprep.subr.mxu0 0.0
    %7879 = vmatpush1.msra.mxu0 0.0
    %7880 = vmatprep.subr.mxu0 0.0
    %7881 = vmatpush1.msra.mxu0 0.0
    %7882 = vmatprep.subr.mxu0 0.0
    %7883 = vmatpush1.msra.mxu0 0.0
    %7884 = vmatprep.subr.mxu0 0.0
    %7885 = vmatpush1.msra.mxu0 0.0
    %7886 = vmatprep.subr.mxu0 0.0
    %7887 = vmatpush1.msra.mxu0 0.0
    %7888 = vmatprep.subr.mxu0 0.0
    %7889 = vmatpush1.msra.mxu0 0.0
    %7890 = vmatprep.subr.mxu0 0.0
    %7891 = vmatpush1.msra.mxu0 0.0
    %7892 = vmatprep.subr.mxu0 0.0
    %7893 = vmatpush1.msra.mxu0 0.0
    %7894 = vmatprep.subr.mxu0 0.0
    %7895 = vmatpush1.msra.mxu0 0.0
    %7896 = vmatprep.subr.mxu0 0.0
    %7897 = vmatpush1.msra.mxu0 0.0
    %7898 = vmatprep.subr.mxu0 0.0
    %7899 = vmatpush1.msra.mxu0 0.0
    %7900 = vmatprep.subr.mxu0 0.0
    %7901 = vmatpush1.msra.mxu0 0.0
    %7902 = vmatprep.subr.mxu0 0.0
    %7903 = vmatpush1.msra.mxu0 0.0
    %7904 = vmatprep.subr.mxu0 0.0
    %7905 = vmatpush1.msra.mxu0 0.0
    %7906 = vmatprep.subr.mxu0 0.0
    %7907 = vmatpush1.msra.mxu0 0.0
    %7908 = vmatprep.subr.mxu0 0.0
    %7909 = vmatpush1.msra.mxu0 0.0
    %7910 = vmatprep.mubr.f32.mxu0 0.0
    %v7911 = vand.u32 %v7763, 4294901760
    %7912 = vmatmul.mubr.f32.gmra.mrb[0].mxu0 %v7911
    %v7913 = vpop.f32.mrb[0].mxu0
    %v7914 = vadd.f32 %v7838, %v7913
    %v7915 = vpop.f32.mrb[0].mxu0
    %7916 = vdwg.mxu0
    %7917 = vmatprep.subr.mxu0 0.0
    %v7918 = vand.u32 %v7760, 4294901760
    %v7919 = vsub.f32 %v7760, %v7918
    %7920 = vmatpush1.msra.mxu0 %v7919
    %7921 = vmatprep.subr.mxu0 0.0
    %7922 = vmatpush1.msra.mxu0 0.0
    %7923 = vmatprep.subr.mxu0 0.0
    %7924 = vmatpush1.msra.mxu0 0.0
    %7925 = vmatprep.subr.mxu0 0.0
    %7926 = vmatpush1.msra.mxu0 0.0
    %7927 = vmatprep.subr.mxu0 0.0
    %7928 = vmatpush1.msra.mxu0 0.0
    %7929 = vmatprep.subr.mxu0 0.0
    %7930 = vmatpush1.msra.mxu0 0.0
    %7931 = vmatprep.subr.mxu0 0.0
    %7932 = vmatpush1.msra.mxu0 0.0
    %7933 = vmatprep.subr.mxu0 0.0
    %7934 = vmatpush1.msra.mxu0 0.0
    %7935 = vmatprep.subr.mxu0 0.0
    %7936 = vmatpush1.msra.mxu0 0.0
    %7937 = vmatprep.subr.mxu0 0.0
    %7938 = vmatpush1.msra.mxu0 0.0
    %7939 = vmatprep.subr.mxu0 0.0
    %7940 = vmatpush1.msra.mxu0 0.0
    %7941 = vmatprep.subr.mxu0 0.0
    %7942 = vmatpush1.msra.mxu0 0.0
    %7943 = vmatprep.subr.mxu0 0.0
    %7944 = vmatpush1.msra.mxu0 0.0
    %7945 = vmatprep.subr.mxu0 0.0
    %7946 = vmatpush1.msra.mxu0 0.0
    %7947 = vmatprep.subr.mxu0 0.0
    %7948 = vmatpush1.msra.mxu0 0.0
    %7949 = vmatprep.subr.mxu0 0.0
    %7950 = vmatpush1.msra.mxu0 0.0
    %7951 = vmatprep.subr.mxu0 0.0
    %7952 = vmatpush1.msra.mxu0 0.0
    %7953 = vmatprep.subr.mxu0 0.0
    %7954 = vmatpush1.msra.mxu0 0.0
    %7955 = vmatprep.subr.mxu0 0.0
    %7956 = vmatpush1.msra.mxu0 0.0
    %7957 = vmatprep.subr.mxu0 0.0
    %7958 = vmatpush1.msra.mxu0 0.0
    %7959 = vmatprep.subr.mxu0 0.0
    %7960 = vmatpush1.msra.mxu0 0.0
    %7961 = vmatprep.subr.mxu0 0.0
    %7962 = vmatpush1.msra.mxu0 0.0
    %7963 = vmatprep.subr.mxu0 0.0
    %7964 = vmatpush1.msra.mxu0 0.0
    %7965 = vmatprep.subr.mxu0 0.0
    %7966 = vmatpush1.msra.mxu0 0.0
    %7967 = vmatprep.subr.mxu0 0.0
    %7968 = vmatpush1.msra.mxu0 0.0
    %7969 = vmatprep.subr.mxu0 0.0
    %7970 = vmatpush1.msra.mxu0 0.0
    %7971 = vmatprep.subr.mxu0 0.0
    %7972 = vmatpush1.msra.mxu0 0.0
    %7973 = vmatprep.subr.mxu0 0.0
    %7974 = vmatpush1.msra.mxu0 0.0
    %7975 = vmatprep.subr.mxu0 0.0
    %7976 = vmatpush1.msra.mxu0 0.0
    %7977 = vmatprep.subr.mxu0 0.0
    %7978 = vmatpush1.msra.mxu0 0.0
    %7979 = vmatprep.subr.mxu0 0.0
    %7980 = vmatpush1.msra.mxu0 0.0
    %7981 = vmatprep.subr.mxu0 0.0
    %7982 = vmatpush1.msra.mxu0 0.0
    %7983 = vmatprep.mubr.f32.mxu0 0.0
    %v7984 = vand.u32 %v7763, 4294901760
    %v7985 = vsub.f32 %v7763, %v7984
    %7986 = vmatmul.mubr.f32.gmra.mrb[0].mxu0 %v7985
    %v7987 = vpop.f32.mrb[0].mxu0
    %v7988 = vadd.f32 %v7914, %v7987
    %v7989 = vpop.f32.mrb[0].mxu0
    %7990 = vdwg.mxu0
    %7991 = vmatprep.subr.mxu0 0.0
    %v7992 = vand.u32 %v7760, 4294901760
    %7993 = vmatpush1.msra.mxu0 %v7992
    %7994 = vmatprep.subr.mxu0 0.0
    %7995 = vmatpush1.msra.mxu0 0.0
    %7996 = vmatprep.subr.mxu0 0.0
    %7997 = vmatpush1.msra.mxu0 0.0
    %7998 = vmatprep.subr.mxu0 0.0
    %7999 = vmatpush1.msra.mxu0 0.0
    %8000 = vmatprep.subr.mxu0 0.0
    %8001 = vmatpush1.msra.mxu0 0.0
    %8002 = vmatprep.subr.mxu0 0.0
    %8003 = vmatpush1.msra.mxu0 0.0
    %8004 = vmatprep.subr.mxu0 0.0
    %8005 = vmatpush1.msra.mxu0 0.0
    %8006 = vmatprep.subr.mxu0 0.0
    %8007 = vmatpush1.msra.mxu0 0.0
    %8008 = vmatprep.subr.mxu0 0.0
    %8009 = vmatpush1.msra.mxu0 0.0
    %8010 = vmatprep.subr.mxu0 0.0
    %8011 = vmatpush1.msra.mxu0 0.0
    %8012 = vmatprep.subr.mxu0 0.0
    %8013 = vmatpush1.msra.mxu0 0.0
    %8014 = vmatprep.subr.mxu0 0.0
    %8015 = vmatpush1.msra.mxu0 0.0
    %8016 = vmatprep.subr.mxu0 0.0
    %8017 = vmatpush1.msra.mxu0 0.0
    %8018 = vmatprep.subr.mxu0 0.0
    %8019 = vmatpush1.msra.mxu0 0.0
    %8020 = vmatprep.subr.mxu0 0.0
    %8021 = vmatpush1.msra.mxu0 0.0
    %8022 = vmatprep.subr.mxu0 0.0
    %8023 = vmatpush1.msra.mxu0 0.0
    %8024 = vmatprep.subr.mxu0 0.0
    %8025 = vmatpush1.msra.mxu0 0.0
    %8026 = vmatprep.subr.mxu0 0.0
    %8027 = vmatpush1.msra.mxu0 0.0
    %8028 = vmatprep.subr.mxu0 0.0
    %8029 = vmatpush1.msra.mxu0 0.0
    %8030 = vmatprep.subr.mxu0 0.0
    %8031 = vmatpush1.msra.mxu0 0.0
    %8032 = vmatprep.subr.mxu0 0.0
    %8033 = vmatpush1.msra.mxu0 0.0
    %8034 = vmatprep.subr.mxu0 0.0
    %8035 = vmatpush1.msra.mxu0 0.0
    %8036 = vmatprep.subr.mxu0 0.0
    %8037 = vmatpush1.msra.mxu0 0.0
    %8038 = vmatprep.subr.mxu0 0.0
    %8039 = vmatpush1.msra.mxu0 0.0
    %8040 = vmatprep.subr.mxu0 0.0
    %8041 = vmatpush1.msra.mxu0 0.0
    %8042 = vmatprep.subr.mxu0 0.0
    %8043 = vmatpush1.msra.mxu0 0.0
    %8044 = vmatprep.subr.mxu0 0.0
    %8045 = vmatpush1.msra.mxu0 0.0
    %8046 = vmatprep.subr.mxu0 0.0
    %8047 = vmatpush1.msra.mxu0 0.0
    %8048 = vmatprep.subr.mxu0 0.0
    %8049 = vmatpush1.msra.mxu0 0.0
    %8050 = vmatprep.subr.mxu0 0.0
    %8051 = vmatpush1.msra.mxu0 0.0
    %8052 = vmatprep.subr.mxu0 0.0
    %8053 = vmatpush1.msra.mxu0 0.0
    %8054 = vmatprep.subr.mxu0 0.0
    %8055 = vmatpush1.msra.mxu0 0.0
    %8056 = vmatprep.mubr.f32.mxu0 0.0
    %v8057 = vand.u32 %v7763, 4294901760
    %v8058 = vsub.f32 %v7763, %v8057
    %v8059 = vand.u32 %v8058, 4294901760
    %8060 = vmatmul.mubr.f32.gmra.mrb[0].mxu0 %v8059
    %v8061 = vpop.f32.mrb[0].mxu0
    %v8062 = vadd.f32 %v7988, %v8061
    %v8063 = vpop.f32.mrb[0].mxu0
    %8064 = vdwg.mxu0
    %8065 = vmatprep.subr.mxu0 0.0
    %v8066 = vand.u32 %v7760, 4294901760
    %v8067 = vsub.f32 %v7760, %v8066
    %v8068 = vand.u32 %v8067, 4294901760
    %8069 = vmatpush1.msra.mxu0 %v8068
    %8070 = vmatprep.subr.mxu0 0.0
    %8071 = vmatpush1.msra.mxu0 0.0
    %8072 = vmatprep.subr.mxu0 0.0
    %8073 = vmatpush1.msra.mxu0 0.0
    %8074 = vmatprep.subr.mxu0 0.0
    %8075 = vmatpush1.msra.mxu0 0.0
    %8076 = vmatprep.subr.mxu0 0.0
    %8077 = vmatpush1.msra.mxu0 0.0
    %8078 = vmatprep.subr.mxu0 0.0
    %8079 = vmatpush1.msra.mxu0 0.0
    %8080 = vmatprep.subr.mxu0 0.0
    %8081 = vmatpush1.msra.mxu0 0.0
    %8082 = vmatprep.subr.mxu0 0.0
    %8083 = vmatpush1.msra.mxu0 0.0
    %8084 = vmatprep.subr.mxu0 0.0
    %8085 = vmatpush1.msra.mxu0 0.0
    %8086 = vmatprep.subr.mxu0 0.0
    %8087 = vmatpush1.msra.mxu0 0.0
    %8088 = vmatprep.subr.mxu0 0.0
    %8089 = vmatpush1.msra.mxu0 0.0
    %8090 = vmatprep.subr.mxu0 0.0
    %8091 = vmatpush1.msra.mxu0 0.0
    %8092 = vmatprep.subr.mxu0 0.0
    %8093 = vmatpush1.msra.mxu0 0.0
    %8094 = vmatprep.subr.mxu0 0.0
    %8095 = vmatpush1.msra.mxu0 0.0
    %8096 = vmatprep.subr.mxu0 0.0
    %8097 = vmatpush1.msra.mxu0 0.0
    %8098 = vmatprep.subr.mxu0 0.0
    %8099 = vmatpush1.msra.mxu0 0.0
    %8100 = vmatprep.subr.mxu0 0.0
    %8101 = vmatpush1.msra.mxu0 0.0
    %8102 = vmatprep.subr.mxu0 0.0
    %8103 = vmatpush1.msra.mxu0 0.0
    %8104 = vmatprep.subr.mxu0 0.0
    %8105 = vmatpush1.msra.mxu0 0.0
    %8106 = vmatprep.subr.mxu0 0.0
    %8107 = vmatpush1.msra.mxu0 0.0
    %8108 = vmatprep.subr.mxu0 0.0
    %8109 = vmatpush1.msra.mxu0 0.0
    %8110 = vmatprep.subr.mxu0 0.0
    %8111 = vmatpush1.msra.mxu0 0.0
    %8112 = vmatprep.subr.mxu0 0.0
    %8113 = vmatpush1.msra.mxu0 0.0
    %8114 = vmatprep.subr.mxu0 0.0
    %8115 = vmatpush1.msra.mxu0 0.0
    %8116 = vmatprep.subr.mxu0 0.0
    %8117 = vmatpush1.msra.mxu0 0.0
    %8118 = vmatprep.subr.mxu0 0.0
    %8119 = vmatpush1.msra.mxu0 0.0
    %8120 = vmatprep.subr.mxu0 0.0
    %8121 = vmatpush1.msra.mxu0 0.0
    %8122 = vmatprep.subr.mxu0 0.0
    %8123 = vmatpush1.msra.mxu0 0.0
    %8124 = vmatprep.subr.mxu0 0.0
    %8125 = vmatpush1.msra.mxu0 0.0
    %8126 = vmatprep.subr.mxu0 0.0
    %8127 = vmatpush1.msra.mxu0 0.0
    %8128 = vmatprep.subr.mxu0 0.0
    %8129 = vmatpush1.msra.mxu0 0.0
    %8130 = vmatprep.subr.mxu0 0.0
    %8131 = vmatpush1.msra.mxu0 0.0
    %8132 = vmatprep.mubr.f32.mxu0 0.0
    %v8133 = vand.u32 %v7763, 4294901760
    %8134 = vmatmul.mubr.f32.gmra.mrb[0].mxu0 %v8133
    %v8135 = vpop.f32.mrb[0].mxu0
    %v8136 = vadd.f32 %v8062, %v8135
    %v8137 = vpop.f32.mrb[0].mxu0
    %8138 = vdwg.mxu0
    %8139 = vmatprep.subr.mxu0 0.0
    %v8140 = vand.u32 %v7760, 4294901760
    %8141 = vmatpush1.msra.mxu0 %v8140
    %8142 = vmatprep.subr.mxu0 0.0
    %8143 = vmatpush1.msra.mxu0 0.0
    %8144 = vmatprep.subr.mxu0 0.0
    %8145 = vmatpush1.msra.mxu0 0.0
    %8146 = vmatprep.subr.mxu0 0.0
    %8147 = vmatpush1.msra.mxu0 0.0
    %8148 = vmatprep.subr.mxu0 0.0
    %8149 = vmatpush1.msra.mxu0 0.0
    %8150 = vmatprep.subr.mxu0 0.0
    %8151 = vmatpush1.msra.mxu0 0.0
    %8152 = vmatprep.subr.mxu0 0.0
    %8153 = vmatpush1.msra.mxu0 0.0
    %8154 = vmatprep.subr.mxu0 0.0
    %8155 = vmatpush1.msra.mxu0 0.0
    %8156 = vmatprep.subr.mxu0 0.0
    %8157 = vmatpush1.msra.mxu0 0.0
    %8158 = vmatprep.subr.mxu0 0.0
    %8159 = vmatpush1.msra.mxu0 0.0
    %8160 = vmatprep.subr.mxu0 0.0
    %8161 = vmatpush1.msra.mxu0 0.0
    %8162 = vmatprep.subr.mxu0 0.0
    %8163 = vmatpush1.msra.mxu0 0.0
    %8164 = vmatprep.subr.mxu0 0.0
    %8165 = vmatpush1.msra.mxu0 0.0
    %8166 = vmatprep.subr.mxu0 0.0
    %8167 = vmatpush1.msra.mxu0 0.0
    %8168 = vmatprep.subr.mxu0 0.0
    %8169 = vmatpush1.msra.mxu0 0.0
    %8170 = vmatprep.subr.mxu0 0.0
    %8171 = vmatpush1.msra.mxu0 0.0
    %8172 = vmatprep.subr.mxu0 0.0
    %8173 = vmatpush1.msra.mxu0 0.0
    %8174 = vmatprep.subr.mxu0 0.0
    %8175 = vmatpush1.msra.mxu0 0.0
    %8176 = vmatprep.subr.mxu0 0.0
    %8177 = vmatpush1.msra.mxu0 0.0
    %8178 = vmatprep.subr.mxu0 0.0
    %8179 = vmatpush1.msra.mxu0 0.0
    %8180 = vmatprep.subr.mxu0 0.0
    %8181 = vmatpush1.msra.mxu0 0.0
    %8182 = vmatprep.subr.mxu0 0.0
    %8183 = vmatpush1.msra.mxu0 0.0
    %8184 = vmatprep.subr.mxu0 0.0
    %8185 = vmatpush1.msra.mxu0 0.0
    %8186 = vmatprep.subr.mxu0 0.0
    %8187 = vmatpush1.msra.mxu0 0.0
    %8188 = vmatprep.subr.mxu0 0.0
    %8189 = vmatpush1.msra.mxu0 0.0
    %8190 = vmatprep.subr.mxu0 0.0
    %8191 = vmatpush1.msra.mxu0 0.0
    %8192 = vmatprep.subr.mxu0 0.0
    %8193 = vmatpush1.msra.mxu0 0.0
    %8194 = vmatprep.subr.mxu0 0.0
    %8195 = vmatpush1.msra.mxu0 0.0
    %8196 = vmatprep.subr.mxu0 0.0
    %8197 = vmatpush1.msra.mxu0 0.0
    %8198 = vmatprep.subr.mxu0 0.0
    %8199 = vmatpush1.msra.mxu0 0.0
    %8200 = vmatprep.subr.mxu0 0.0
    %8201 = vmatpush1.msra.mxu0 0.0
    %8202 = vmatprep.subr.mxu0 0.0
    %8203 = vmatpush1.msra.mxu0 0.0
    %8204 = vmatprep.mubr.f32.mxu0 0.0
    %v8205 = vand.u32 %v7763, 4294901760
    %8206 = vmatmul.mubr.f32.gmra.mrb[0].mxu0 %v8205
    %v8207 = vpop.f32.mrb[0].mxu0
    %v8208 = vadd.f32 %v8136, %v8207
    %v8209 = vpop.f32.mrb[0].mxu0
    %8210 = vdwg.mxu0
    %8212 = vrot.lane.b32.xlu0 %v8208, 16
    %v8213 = vpop.permute.xlu0 %8212
    %8215 = vst.msk [vmem:[#allocation2 + $0x8] sm:$0xff] %vm4525, %v8213
    %8216 = vrot.lane.b32.xlu0 %v656, 104
    %v8217 = vpop.permute.xlu0 %8216
    %8218 = vrot.lane.b32.xlu0 %v1206, 104
    %v8219 = vpop.permute.xlu0 %8218
    %v8220 = vsel %vm1761, %v8217, 0
    %v8222 = vsel %vm1761, %v8219, 0
    %8224 = vmatprep.subr.mxu0 0.0
    %v8225 = vand.u32 %v8222, 4294901760
    %8226 = vmatpush1.xpose.msra.mxu0 %v8225
    %8227 = vmatprep.subr.mxu0 0.0
    %8228 = vmatpush1.xpose.msra.mxu0 0.0
    %8229 = vmatprep.subr.mxu0 0.0
    %8230 = vmatpush1.xpose.msra.mxu0 0.0
    %8231 = vmatprep.subr.mxu0 0.0
    %8232 = vmatpush1.xpose.msra.mxu0 0.0
    %8233 = vmatprep.subr.mxu0 0.0
    %8234 = vmatpush1.xpose.msra.mxu0 0.0
    %8235 = vmatprep.subr.mxu0 0.0
    %8236 = vmatpush1.xpose.msra.mxu0 0.0
    %8237 = vmatprep.subr.mxu0 0.0
    %8238 = vmatpush1.xpose.msra.mxu0 0.0
    %8239 = vmatprep.subr.mxu0 0.0
    %8240 = vmatpush1.xpose.msra.mxu0 0.0
    %8241 = vmatprep.subr.mxu0 0.0
    %8242 = vmatpush1.xpose.msra.mxu0 0.0
    %8243 = vmatprep.subr.mxu0 0.0
    %8244 = vmatpush1.xpose.msra.mxu0 0.0
    %8245 = vmatprep.subr.mxu0 0.0
    %8246 = vmatpush1.xpose.msra.mxu0 0.0
    %8247 = vmatprep.subr.mxu0 0.0
    %8248 = vmatpush1.xpose.msra.mxu0 0.0
    %8249 = vmatprep.subr.mxu0 0.0
    %8250 = vmatpush1.xpose.msra.mxu0 0.0
    %8251 = vmatprep.subr.mxu0 0.0
    %8252 = vmatpush1.xpose.msra.mxu0 0.0
    %8253 = vmatprep.subr.mxu0 0.0
    %8254 = vmatpush1.xpose.msra.mxu0 0.0
    %8255 = vmatprep.subr.mxu0 0.0
    %8256 = vmatpush1.xpose.msra.mxu0 0.0
    %8257 = vmatprep.subr.mxu0 0.0
    %8258 = vmatpush1.xpose.msra.mxu0 0.0
    %8259 = vmatprep.subr.mxu0 0.0
    %8260 = vmatpush1.xpose.msra.mxu0 0.0
    %8261 = vmatprep.subr.mxu0 0.0
    %8262 = vmatpush1.xpose.msra.mxu0 0.0
    %8263 = vmatprep.subr.mxu0 0.0
    %8264 = vmatpush1.xpose.msra.mxu0 0.0
    %8265 = vmatprep.subr.mxu0 0.0
    %8266 = vmatpush1.xpose.msra.mxu0 0.0
    %8267 = vmatprep.subr.mxu0 0.0
    %8268 = vmatpush1.xpose.msra.mxu0 0.0
    %8269 = vmatprep.subr.mxu0 0.0
    %8270 = vmatpush1.xpose.msra.mxu0 0.0
    %8271 = vmatprep.subr.mxu0 0.0
    %8272 = vmatpush1.xpose.msra.mxu0 0.0
    %8273 = vmatprep.subr.mxu0 0.0
    %8274 = vmatpush1.xpose.msra.mxu0 0.0
    %8275 = vmatprep.subr.mxu0 0.0
    %8276 = vmatpush1.xpose.msra.mxu0 0.0
    %8277 = vmatprep.subr.mxu0 0.0
    %8278 = vmatpush1.xpose.msra.mxu0 0.0
    %8279 = vmatprep.subr.mxu0 0.0
    %8280 = vmatpush1.xpose.msra.mxu0 0.0
    %8281 = vmatprep.subr.mxu0 0.0
    %8282 = vmatpush1.xpose.msra.mxu0 0.0
    %8283 = vmatprep.subr.mxu0 0.0
    %8284 = vmatpush1.xpose.msra.mxu0 0.0
    %8285 = vmatprep.subr.mxu0 0.0
    %8286 = vmatpush1.xpose.msra.mxu0 0.0
    %8287 = vmatprep.subr.mxu0 0.0
    %8288 = vmatpush1.xpose.msra.mxu0 0.0
    %8289 = vmatprep.mubr.f32.mxu0 0.0
    %v8290 = vand.u32 %v8220, 4294901760
    %v8291 = vsub.f32 %v8220, %v8290
    %v8292 = vand.u32 %v8291, 4294901760
    %v8293 = vsub.f32 %v8291, %v8292
    %v8294 = vand.u32 %v8293, 4294901760
    %8295 = vmatmul.mubr.f32.gmra.mrb[0].mxu0 %v8294
    %v8296 = vpop.f32.mrb[0].mxu0
    %v8297 = vadd.f32 0.0, %v8296
    %v8298 = vpop.f32.mrb[0].mxu0
    %8299 = vdwg.mxu0
    %8300 = vmatprep.subr.mxu0 0.0
    %v8301 = vand.u32 %v8222, 4294901760
    %v8302 = vsub.f32 %v8222, %v8301
    %v8303 = vand.u32 %v8302, 4294901760
    %v8304 = vsub.f32 %v8302, %v8303
    %v8305 = vand.u32 %v8304, 4294901760
    %8306 = vmatpush1.xpose.msra.mxu0 %v8305
    %8307 = vmatprep.subr.mxu0 0.0
    %8308 = vmatpush1.xpose.msra.mxu0 0.0
    %8309 = vmatprep.subr.mxu0 0.0
    %8310 = vmatpush1.xpose.msra.mxu0 0.0
    %8311 = vmatprep.subr.mxu0 0.0
    %8312 = vmatpush1.xpose.msra.mxu0 0.0
    %8313 = vmatprep.subr.mxu0 0.0
    %8314 = vmatpush1.xpose.msra.mxu0 0.0
    %8315 = vmatprep.subr.mxu0 0.0
    %8316 = vmatpush1.xpose.msra.mxu0 0.0
    %8317 = vmatprep.subr.mxu0 0.0
    %8318 = vmatpush1.xpose.msra.mxu0 0.0
    %8319 = vmatprep.subr.mxu0 0.0
    %8320 = vmatpush1.xpose.msra.mxu0 0.0
    %8321 = vmatprep.subr.mxu0 0.0
    %8322 = vmatpush1.xpose.msra.mxu0 0.0
    %8323 = vmatprep.subr.mxu0 0.0
    %8324 = vmatpush1.xpose.msra.mxu0 0.0
    %8325 = vmatprep.subr.mxu0 0.0
    %8326 = vmatpush1.xpose.msra.mxu0 0.0
    %8327 = vmatprep.subr.mxu0 0.0
    %8328 = vmatpush1.xpose.msra.mxu0 0.0
    %8329 = vmatprep.subr.mxu0 0.0
    %8330 = vmatpush1.xpose.msra.mxu0 0.0
    %8331 = vmatprep.subr.mxu0 0.0
    %8332 = vmatpush1.xpose.msra.mxu0 0.0
    %8333 = vmatprep.subr.mxu0 0.0
    %8334 = vmatpush1.xpose.msra.mxu0 0.0
    %8335 = vmatprep.subr.mxu0 0.0
    %8336 = vmatpush1.xpose.msra.mxu0 0.0
    %8337 = vmatprep.subr.mxu0 0.0
    %8338 = vmatpush1.xpose.msra.mxu0 0.0
    %8339 = vmatprep.subr.mxu0 0.0
    %8340 = vmatpush1.xpose.msra.mxu0 0.0
    %8341 = vmatprep.subr.mxu0 0.0
    %8342 = vmatpush1.xpose.msra.mxu0 0.0
    %8343 = vmatprep.subr.mxu0 0.0
    %8344 = vmatpush1.xpose.msra.mxu0 0.0
    %8345 = vmatprep.subr.mxu0 0.0
    %8346 = vmatpush1.xpose.msra.mxu0 0.0
    %8347 = vmatprep.subr.mxu0 0.0
    %8348 = vmatpush1.xpose.msra.mxu0 0.0
    %8349 = vmatprep.subr.mxu0 0.0
    %8350 = vmatpush1.xpose.msra.mxu0 0.0
    %8351 = vmatprep.subr.mxu0 0.0
    %8352 = vmatpush1.xpose.msra.mxu0 0.0
    %8353 = vmatprep.subr.mxu0 0.0
    %8354 = vmatpush1.xpose.msra.mxu0 0.0
    %8355 = vmatprep.subr.mxu0 0.0
    %8356 = vmatpush1.xpose.msra.mxu0 0.0
    %8357 = vmatprep.subr.mxu0 0.0
    %8358 = vmatpush1.xpose.msra.mxu0 0.0
    %8359 = vmatprep.subr.mxu0 0.0
    %8360 = vmatpush1.xpose.msra.mxu0 0.0
    %8361 = vmatprep.subr.mxu0 0.0
    %8362 = vmatpush1.xpose.msra.mxu0 0.0
    %8363 = vmatprep.subr.mxu0 0.0
    %8364 = vmatpush1.xpose.msra.mxu0 0.0
    %8365 = vmatprep.subr.mxu0 0.0
    %8366 = vmatpush1.xpose.msra.mxu0 0.0
    %8367 = vmatprep.subr.mxu0 0.0
    %8368 = vmatpush1.xpose.msra.mxu0 0.0
    %8369 = vmatprep.mubr.f32.mxu0 0.0
    %v8370 = vand.u32 %v8220, 4294901760
    %8371 = vmatmul.mubr.f32.gmra.mrb[0].mxu0 %v8370
    %v8372 = vpop.f32.mrb[0].mxu0
    %v8373 = vadd.f32 %v8297, %v8372
    %v8374 = vpop.f32.mrb[0].mxu0
    %8375 = vdwg.mxu0
    %8376 = vmatprep.subr.mxu0 0.0
    %v8377 = vand.u32 %v8222, 4294901760
    %v8378 = vsub.f32 %v8222, %v8377
    %8379 = vmatpush1.xpose.msra.mxu0 %v8378
    %8380 = vmatprep.subr.mxu0 0.0
    %8381 = vmatpush1.xpose.msra.mxu0 0.0
    %8382 = vmatprep.subr.mxu0 0.0
    %8383 = vmatpush1.xpose.msra.mxu0 0.0
    %8384 = vmatprep.subr.mxu0 0.0
    %8385 = vmatpush1.xpose.msra.mxu0 0.0
    %8386 = vmatprep.subr.mxu0 0.0
    %8387 = vmatpush1.xpose.msra.mxu0 0.0
    %8388 = vmatprep.subr.mxu0 0.0
    %8389 = vmatpush1.xpose.msra.mxu0 0.0
    %8390 = vmatprep.subr.mxu0 0.0
    %8391 = vmatpush1.xpose.msra.mxu0 0.0
    %8392 = vmatprep.subr.mxu0 0.0
    %8393 = vmatpush1.xpose.msra.mxu0 0.0
    %8394 = vmatprep.subr.mxu0 0.0
    %8395 = vmatpush1.xpose.msra.mxu0 0.0
    %8396 = vmatprep.subr.mxu0 0.0
    %8397 = vmatpush1.xpose.msra.mxu0 0.0
    %8398 = vmatprep.subr.mxu0 0.0
    %8399 = vmatpush1.xpose.msra.mxu0 0.0
    %8400 = vmatprep.subr.mxu0 0.0
    %8401 = vmatpush1.xpose.msra.mxu0 0.0
    %8402 = vmatprep.subr.mxu0 0.0
    %8403 = vmatpush1.xpose.msra.mxu0 0.0
    %8404 = vmatprep.subr.mxu0 0.0
    %8405 = vmatpush1.xpose.msra.mxu0 0.0
    %8406 = vmatprep.subr.mxu0 0.0
    %8407 = vmatpush1.xpose.msra.mxu0 0.0
    %8408 = vmatprep.subr.mxu0 0.0
    %8409 = vmatpush1.xpose.msra.mxu0 0.0
    %8410 = vmatprep.subr.mxu0 0.0
    %8411 = vmatpush1.xpose.msra.mxu0 0.0
    %8412 = vmatprep.subr.mxu0 0.0
    %8413 = vmatpush1.xpose.msra.mxu0 0.0
    %8414 = vmatprep.subr.mxu0 0.0
    %8415 = vmatpush1.xpose.msra.mxu0 0.0
    %8416 = vmatprep.subr.mxu0 0.0
    %8417 = vmatpush1.xpose.msra.mxu0 0.0
    %8418 = vmatprep.subr.mxu0 0.0
    %8419 = vmatpush1.xpose.msra.mxu0 0.0
    %8420 = vmatprep.subr.mxu0 0.0
    %8421 = vmatpush1.xpose.msra.mxu0 0.0
    %8422 = vmatprep.subr.mxu0 0.0
    %8423 = vmatpush1.xpose.msra.mxu0 0.0
    %8424 = vmatprep.subr.mxu0 0.0
    %8425 = vmatpush1.xpose.msra.mxu0 0.0
    %8426 = vmatprep.subr.mxu0 0.0
    %8427 = vmatpush1.xpose.msra.mxu0 0.0
    %8428 = vmatprep.subr.mxu0 0.0
    %8429 = vmatpush1.xpose.msra.mxu0 0.0
    %8430 = vmatprep.subr.mxu0 0.0
    %8431 = vmatpush1.xpose.msra.mxu0 0.0
    %8432 = vmatprep.subr.mxu0 0.0
    %8433 = vmatpush1.xpose.msra.mxu0 0.0
    %8434 = vmatprep.subr.mxu0 0.0
    %8435 = vmatpush1.xpose.msra.mxu0 0.0
    %8436 = vmatprep.subr.mxu0 0.0
    %8437 = vmatpush1.xpose.msra.mxu0 0.0
    %8438 = vmatprep.subr.mxu0 0.0
    %8439 = vmatpush1.xpose.msra.mxu0 0.0
    %8440 = vmatprep.subr.mxu0 0.0
    %8441 = vmatpush1.xpose.msra.mxu0 0.0
    %8442 = vmatprep.mubr.f32.mxu0 0.0
    %v8443 = vand.u32 %v8220, 4294901760
    %v8444 = vsub.f32 %v8220, %v8443
    %8445 = vmatmul.mubr.f32.gmra.mrb[0].mxu0 %v8444
    %v8446 = vpop.f32.mrb[0].mxu0
    %v8447 = vadd.f32 %v8373, %v8446
    %v8448 = vpop.f32.mrb[0].mxu0
    %8449 = vdwg.mxu0
    %8450 = vmatprep.subr.mxu0 0.0
    %v8451 = vand.u32 %v8222, 4294901760
    %8452 = vmatpush1.xpose.msra.mxu0 %v8451
    %8453 = vmatprep.subr.mxu0 0.0
    %8454 = vmatpush1.xpose.msra.mxu0 0.0
    %8455 = vmatprep.subr.mxu0 0.0
    %8456 = vmatpush1.xpose.msra.mxu0 0.0
    %8457 = vmatprep.subr.mxu0 0.0
    %8458 = vmatpush1.xpose.msra.mxu0 0.0
    %8459 = vmatprep.subr.mxu0 0.0
    %8460 = vmatpush1.xpose.msra.mxu0 0.0
    %8461 = vmatprep.subr.mxu0 0.0
    %8462 = vmatpush1.xpose.msra.mxu0 0.0
    %8463 = vmatprep.subr.mxu0 0.0
    %8464 = vmatpush1.xpose.msra.mxu0 0.0
    %8465 = vmatprep.subr.mxu0 0.0
    %8466 = vmatpush1.xpose.msra.mxu0 0.0
    %8467 = vmatprep.subr.mxu0 0.0
    %8468 = vmatpush1.xpose.msra.mxu0 0.0
    %8469 = vmatprep.subr.mxu0 0.0
    %8470 = vmatpush1.xpose.msra.mxu0 0.0
    %8471 = vmatprep.subr.mxu0 0.0
    %8472 = vmatpush1.xpose.msra.mxu0 0.0
    %8473 = vmatprep.subr.mxu0 0.0
    %8474 = vmatpush1.xpose.msra.mxu0 0.0
    %8475 = vmatprep.subr.mxu0 0.0
    %8476 = vmatpush1.xpose.msra.mxu0 0.0
    %8477 = vmatprep.subr.mxu0 0.0
    %8478 = vmatpush1.xpose.msra.mxu0 0.0
    %8479 = vmatprep.subr.mxu0 0.0
    %8480 = vmatpush1.xpose.msra.mxu0 0.0
    %8481 = vmatprep.subr.mxu0 0.0
    %8482 = vmatpush1.xpose.msra.mxu0 0.0
    %8483 = vmatprep.subr.mxu0 0.0
    %8484 = vmatpush1.xpose.msra.mxu0 0.0
    %8485 = vmatprep.subr.mxu0 0.0
    %8486 = vmatpush1.xpose.msra.mxu0 0.0
    %8487 = vmatprep.subr.mxu0 0.0
    %8488 = vmatpush1.xpose.msra.mxu0 0.0
    %8489 = vmatprep.subr.mxu0 0.0
    %8490 = vmatpush1.xpose.msra.mxu0 0.0
    %8491 = vmatprep.subr.mxu0 0.0
    %8492 = vmatpush1.xpose.msra.mxu0 0.0
    %8493 = vmatprep.subr.mxu0 0.0
    %8494 = vmatpush1.xpose.msra.mxu0 0.0
    %8495 = vmatprep.subr.mxu0 0.0
    %8496 = vmatpush1.xpose.msra.mxu0 0.0
    %8497 = vmatprep.subr.mxu0 0.0
    %8498 = vmatpush1.xpose.msra.mxu0 0.0
    %8499 = vmatprep.subr.mxu0 0.0
    %8500 = vmatpush1.xpose.msra.mxu0 0.0
    %8501 = vmatprep.subr.mxu0 0.0
    %8502 = vmatpush1.xpose.msra.mxu0 0.0
    %8503 = vmatprep.subr.mxu0 0.0
    %8504 = vmatpush1.xpose.msra.mxu0 0.0
    %8505 = vmatprep.subr.mxu0 0.0
    %8506 = vmatpush1.xpose.msra.mxu0 0.0
    %8507 = vmatprep.subr.mxu0 0.0
    %8508 = vmatpush1.xpose.msra.mxu0 0.0
    %8509 = vmatprep.subr.mxu0 0.0
    %8510 = vmatpush1.xpose.msra.mxu0 0.0
    %8511 = vmatprep.subr.mxu0 0.0
    %8512 = vmatpush1.xpose.msra.mxu0 0.0
    %8513 = vmatprep.subr.mxu0 0.0
    %8514 = vmatpush1.xpose.msra.mxu0 0.0
    %8515 = vmatprep.mubr.f32.mxu0 0.0
    %v8516 = vand.u32 %v8220, 4294901760
    %v8517 = vsub.f32 %v8220, %v8516
    %v8518 = vand.u32 %v8517, 4294901760
    %8519 = vmatmul.mubr.f32.gmra.mrb[0].mxu0 %v8518
    %v8520 = vpop.f32.mrb[0].mxu0
    %v8521 = vadd.f32 %v8447, %v8520
    %v8522 = vpop.f32.mrb[0].mxu0
    %8523 = vdwg.mxu0
    %8524 = vmatprep.subr.mxu0 0.0
    %v8525 = vand.u32 %v8222, 4294901760
    %v8526 = vsub.f32 %v8222, %v8525
    %v8527 = vand.u32 %v8526, 4294901760
    %8528 = vmatpush1.xpose.msra.mxu0 %v8527
    %8529 = vmatprep.subr.mxu0 0.0
    %8530 = vmatpush1.xpose.msra.mxu0 0.0
    %8531 = vmatprep.subr.mxu0 0.0
    %8532 = vmatpush1.xpose.msra.mxu0 0.0
    %8533 = vmatprep.subr.mxu0 0.0
    %8534 = vmatpush1.xpose.msra.mxu0 0.0
    %8535 = vmatprep.subr.mxu0 0.0
    %8536 = vmatpush1.xpose.msra.mxu0 0.0
    %8537 = vmatprep.subr.mxu0 0.0
    %8538 = vmatpush1.xpose.msra.mxu0 0.0
    %8539 = vmatprep.subr.mxu0 0.0
    %8540 = vmatpush1.xpose.msra.mxu0 0.0
    %8541 = vmatprep.subr.mxu0 0.0
    %8542 = vmatpush1.xpose.msra.mxu0 0.0
    %8543 = vmatprep.subr.mxu0 0.0
    %8544 = vmatpush1.xpose.msra.mxu0 0.0
    %8545 = vmatprep.subr.mxu0 0.0
    %8546 = vmatpush1.xpose.msra.mxu0 0.0
    %8547 = vmatprep.subr.mxu0 0.0
    %8548 = vmatpush1.xpose.msra.mxu0 0.0
    %8549 = vmatprep.subr.mxu0 0.0
    %8550 = vmatpush1.xpose.msra.mxu0 0.0
    %8551 = vmatprep.subr.mxu0 0.0
    %8552 = vmatpush1.xpose.msra.mxu0 0.0
    %8553 = vmatprep.subr.mxu0 0.0
    %8554 = vmatpush1.xpose.msra.mxu0 0.0
    %8555 = vmatprep.subr.mxu0 0.0
    %8556 = vmatpush1.xpose.msra.mxu0 0.0
    %8557 = vmatprep.subr.mxu0 0.0
    %8558 = vmatpush1.xpose.msra.mxu0 0.0
    %8559 = vmatprep.subr.mxu0 0.0
    %8560 = vmatpush1.xpose.msra.mxu0 0.0
    %8561 = vmatprep.subr.mxu0 0.0
    %8562 = vmatpush1.xpose.msra.mxu0 0.0
    %8563 = vmatprep.subr.mxu0 0.0
    %8564 = vmatpush1.xpose.msra.mxu0 0.0
    %8565 = vmatprep.subr.mxu0 0.0
    %8566 = vmatpush1.xpose.msra.mxu0 0.0
    %8567 = vmatprep.subr.mxu0 0.0
    %8568 = vmatpush1.xpose.msra.mxu0 0.0
    %8569 = vmatprep.subr.mxu0 0.0
    %8570 = vmatpush1.xpose.msra.mxu0 0.0
    %8571 = vmatprep.subr.mxu0 0.0
    %8572 = vmatpush1.xpose.msra.mxu0 0.0
    %8573 = vmatprep.subr.mxu0 0.0
    %8574 = vmatpush1.xpose.msra.mxu0 0.0
    %8575 = vmatprep.subr.mxu0 0.0
    %8576 = vmatpush1.xpose.msra.mxu0 0.0
    %8577 = vmatprep.subr.mxu0 0.0
    %8578 = vmatpush1.xpose.msra.mxu0 0.0
    %8579 = vmatprep.subr.mxu0 0.0
    %8580 = vmatpush1.xpose.msra.mxu0 0.0
    %8581 = vmatprep.subr.mxu0 0.0
    %8582 = vmatpush1.xpose.msra.mxu0 0.0
    %8583 = vmatprep.subr.mxu0 0.0
    %8584 = vmatpush1.xpose.msra.mxu0 0.0
    %8585 = vmatprep.subr.mxu0 0.0
    %8586 = vmatpush1.xpose.msra.mxu0 0.0
    %8587 = vmatprep.subr.mxu0 0.0
    %8588 = vmatpush1.xpose.msra.mxu0 0.0
    %8589 = vmatprep.subr.mxu0 0.0
    %8590 = vmatpush1.xpose.msra.mxu0 0.0
    %8591 = vmatprep.mubr.f32.mxu0 0.0
    %v8592 = vand.u32 %v8220, 4294901760
    %8593 = vmatmul.mubr.f32.gmra.mrb[0].mxu0 %v8592
    %v8594 = vpop.f32.mrb[0].mxu0
    %v8595 = vadd.f32 %v8521, %v8594
    %v8596 = vpop.f32.mrb[0].mxu0
    %8597 = vdwg.mxu0
    %8598 = vmatprep.subr.mxu0 0.0
    %v8599 = vand.u32 %v8222, 4294901760
    %8600 = vmatpush1.xpose.msra.mxu0 %v8599
    %8601 = vmatprep.subr.mxu0 0.0
    %8602 = vmatpush1.xpose.msra.mxu0 0.0
    %8603 = vmatprep.subr.mxu0 0.0
    %8604 = vmatpush1.xpose.msra.mxu0 0.0
    %8605 = vmatprep.subr.mxu0 0.0
    %8606 = vmatpush1.xpose.msra.mxu0 0.0
    %8607 = vmatprep.subr.mxu0 0.0
    %8608 = vmatpush1.xpose.msra.mxu0 0.0
    %8609 = vmatprep.subr.mxu0 0.0
    %8610 = vmatpush1.xpose.msra.mxu0 0.0
    %8611 = vmatprep.subr.mxu0 0.0
    %8612 = vmatpush1.xpose.msra.mxu0 0.0
    %8613 = vmatprep.subr.mxu0 0.0
    %8614 = vmatpush1.xpose.msra.mxu0 0.0
    %8615 = vmatprep.subr.mxu0 0.0
    %8616 = vmatpush1.xpose.msra.mxu0 0.0
    %8617 = vmatprep.subr.mxu0 0.0
    %8618 = vmatpush1.xpose.msra.mxu0 0.0
    %8619 = vmatprep.subr.mxu0 0.0
    %8620 = vmatpush1.xpose.msra.mxu0 0.0
    %8621 = vmatprep.subr.mxu0 0.0
    %8622 = vmatpush1.xpose.msra.mxu0 0.0
    %8623 = vmatprep.subr.mxu0 0.0
    %8624 = vmatpush1.xpose.msra.mxu0 0.0
    %8625 = vmatprep.subr.mxu0 0.0
    %8626 = vmatpush1.xpose.msra.mxu0 0.0
    %8627 = vmatprep.subr.mxu0 0.0
    %8628 = vmatpush1.xpose.msra.mxu0 0.0
    %8629 = vmatprep.subr.mxu0 0.0
    %8630 = vmatpush1.xpose.msra.mxu0 0.0
    %8631 = vmatprep.subr.mxu0 0.0
    %8632 = vmatpush1.xpose.msra.mxu0 0.0
    %8633 = vmatprep.subr.mxu0 0.0
    %8634 = vmatpush1.xpose.msra.mxu0 0.0
    %8635 = vmatprep.subr.mxu0 0.0
    %8636 = vmatpush1.xpose.msra.mxu0 0.0
    %8637 = vmatprep.subr.mxu0 0.0
    %8638 = vmatpush1.xpose.msra.mxu0 0.0
    %8639 = vmatprep.subr.mxu0 0.0
    %8640 = vmatpush1.xpose.msra.mxu0 0.0
    %8641 = vmatprep.subr.mxu0 0.0
    %8642 = vmatpush1.xpose.msra.mxu0 0.0
    %8643 = vmatprep.subr.mxu0 0.0
    %8644 = vmatpush1.xpose.msra.mxu0 0.0
    %8645 = vmatprep.subr.mxu0 0.0
    %8646 = vmatpush1.xpose.msra.mxu0 0.0
    %8647 = vmatprep.subr.mxu0 0.0
    %8648 = vmatpush1.xpose.msra.mxu0 0.0
    %8649 = vmatprep.subr.mxu0 0.0
    %8650 = vmatpush1.xpose.msra.mxu0 0.0
    %8651 = vmatprep.subr.mxu0 0.0
    %8652 = vmatpush1.xpose.msra.mxu0 0.0
    %8653 = vmatprep.subr.mxu0 0.0
    %8654 = vmatpush1.xpose.msra.mxu0 0.0
    %8655 = vmatprep.subr.mxu0 0.0
    %8656 = vmatpush1.xpose.msra.mxu0 0.0
    %8657 = vmatprep.subr.mxu0 0.0
    %8658 = vmatpush1.xpose.msra.mxu0 0.0
    %8659 = vmatprep.subr.mxu0 0.0
    %8660 = vmatpush1.xpose.msra.mxu0 0.0
    %8661 = vmatprep.subr.mxu0 0.0
    %8662 = vmatpush1.xpose.msra.mxu0 0.0
    %8663 = vmatprep.mubr.f32.mxu0 0.0
    %v8664 = vand.u32 %v8220, 4294901760
    %8665 = vmatmul.mubr.f32.gmra.mrb[0].mxu0 %v8664
    %v8666 = vpop.f32.mrb[0].mxu0
    %v8667 = vadd.f32 %v8595, %v8666
    %v8668 = vpop.f32.mrb[0].mxu0
    %8669 = vdwg.mxu0
    %v8670 = vsel %vm1761, %v8667, -inf
    %8671 = vmax.xlane.f32.xlu0 %v8670
    %v8672 = vpop.xlane.xlu0 %8671
    %v8673 = vsub.f32 %v8667, %v8672
    %v8674 = vmul.f32 %v8673, 1.442695
    %v8675 = vpow.pop %v8674
    %v8676 = vsel %vm1761, %v8675, 0.0
    %8677 = vadd.xlane.f32.xlu0 %v8676
    %v8678 = vpop.xlane.xlu0 %8677
    %v8679 = vrcp.pop %v8678
    %v8680 = vmul.f32 %v8675, %v8679
    %s8681 = scalar_lea.vmem [#allocation12], 56
    %8682 = vst.msk [vmem:[%s8681] sm:$0xff] %vm1761, %v8680
    %8683 = vrot.lane.b32.xlu0 %v1758, 104
    %v8684 = vpop.permute.xlu0 %8683
    %v8687 = vsel %vm1761, %v8680, 0
    %8689 = vmatprep.subr.mxu0 0.0
    %v8690 = vand.u32 %v8684, 4294901760
    %8691 = vmatpush1.msra.mxu0 %v8690
    %8692 = vmatprep.subr.mxu0 0.0
    %8693 = vmatpush1.msra.mxu0 0.0
    %8694 = vmatprep.subr.mxu0 0.0
    %8695 = vmatpush1.msra.mxu0 0.0
    %8696 = vmatprep.subr.mxu0 0.0
    %8697 = vmatpush1.msra.mxu0 0.0
    %8698 = vmatprep.subr.mxu0 0.0
    %8699 = vmatpush1.msra.mxu0 0.0
    %8700 = vmatprep.subr.mxu0 0.0
    %8701 = vmatpush1.msra.mxu0 0.0
    %8702 = vmatprep.subr.mxu0 0.0
    %8703 = vmatpush1.msra.mxu0 0.0
    %8704 = vmatprep.subr.mxu0 0.0
    %8705 = vmatpush1.msra.mxu0 0.0
    %8706 = vmatprep.subr.mxu0 0.0
    %8707 = vmatpush1.msra.mxu0 0.0
    %8708 = vmatprep.subr.mxu0 0.0
    %8709 = vmatpush1.msra.mxu0 0.0
    %8710 = vmatprep.subr.mxu0 0.0
    %8711 = vmatpush1.msra.mxu0 0.0
    %8712 = vmatprep.subr.mxu0 0.0
    %8713 = vmatpush1.msra.mxu0 0.0
    %8714 = vmatprep.subr.mxu0 0.0
    %8715 = vmatpush1.msra.mxu0 0.0
    %8716 = vmatprep.subr.mxu0 0.0
    %8717 = vmatpush1.msra.mxu0 0.0
    %8718 = vmatprep.subr.mxu0 0.0
    %8719 = vmatpush1.msra.mxu0 0.0
    %8720 = vmatprep.subr.mxu0 0.0
    %8721 = vmatpush1.msra.mxu0 0.0
    %8722 = vmatprep.subr.mxu0 0.0
    %8723 = vmatpush1.msra.mxu0 0.0
    %8724 = vmatprep.subr.mxu0 0.0
    %8725 = vmatpush1.msra.mxu0 0.0
    %8726 = vmatprep.subr.mxu0 0.0
    %8727 = vmatpush1.msra.mxu0 0.0
    %8728 = vmatprep.subr.mxu0 0.0
    %8729 = vmatpush1.msra.mxu0 0.0
    %8730 = vmatprep.subr.mxu0 0.0
    %8731 = vmatpush1.msra.mxu0 0.0
    %8732 = vmatprep.subr.mxu0 0.0
    %8733 = vmatpush1.msra.mxu0 0.0
    %8734 = vmatprep.subr.mxu0 0.0
    %8735 = vmatpush1.msra.mxu0 0.0
    %8736 = vmatprep.subr.mxu0 0.0
    %8737 = vmatpush1.msra.mxu0 0.0
    %8738 = vmatprep.subr.mxu0 0.0
    %8739 = vmatpush1.msra.mxu0 0.0
    %8740 = vmatprep.subr.mxu0 0.0
    %8741 = vmatpush1.msra.mxu0 0.0
    %8742 = vmatprep.subr.mxu0 0.0
    %8743 = vmatpush1.msra.mxu0 0.0
    %8744 = vmatprep.subr.mxu0 0.0
    %8745 = vmatpush1.msra.mxu0 0.0
    %8746 = vmatprep.subr.mxu0 0.0
    %8747 = vmatpush1.msra.mxu0 0.0
    %8748 = vmatprep.subr.mxu0 0.0
    %8749 = vmatpush1.msra.mxu0 0.0
    %8750 = vmatprep.subr.mxu0 0.0
    %8751 = vmatpush1.msra.mxu0 0.0
    %8752 = vmatprep.subr.mxu0 0.0
    %8753 = vmatpush1.msra.mxu0 0.0
    %8754 = vmatprep.mubr.f32.mxu0 0.0
    %v8755 = vand.u32 %v8687, 4294901760
    %v8756 = vsub.f32 %v8687, %v8755
    %v8757 = vand.u32 %v8756, 4294901760
    %v8758 = vsub.f32 %v8756, %v8757
    %v8759 = vand.u32 %v8758, 4294901760
    %8760 = vmatmul.mubr.f32.gmra.mrb[0].mxu0 %v8759
    %v8761 = vpop.f32.mrb[0].mxu0
    %v8762 = vadd.f32 0.0, %v8761
    %v8763 = vpop.f32.mrb[0].mxu0
    %8764 = vdwg.mxu0
    %8765 = vmatprep.subr.mxu0 0.0
    %v8766 = vand.u32 %v8684, 4294901760
    %v8767 = vsub.f32 %v8684, %v8766
    %v8768 = vand.u32 %v8767, 4294901760
    %v8769 = vsub.f32 %v8767, %v8768
    %v8770 = vand.u32 %v8769, 4294901760
    %8771 = vmatpush1.msra.mxu0 %v8770
    %8772 = vmatprep.subr.mxu0 0.0
    %8773 = vmatpush1.msra.mxu0 0.0
    %8774 = vmatprep.subr.mxu0 0.0
    %8775 = vmatpush1.msra.mxu0 0.0
    %8776 = vmatprep.subr.mxu0 0.0
    %8777 = vmatpush1.msra.mxu0 0.0
    %8778 = vmatprep.subr.mxu0 0.0
    %8779 = vmatpush1.msra.mxu0 0.0
    %8780 = vmatprep.subr.mxu0 0.0
    %8781 = vmatpush1.msra.mxu0 0.0
    %8782 = vmatprep.subr.mxu0 0.0
    %8783 = vmatpush1.msra.mxu0 0.0
    %8784 = vmatprep.subr.mxu0 0.0
    %8785 = vmatpush1.msra.mxu0 0.0
    %8786 = vmatprep.subr.mxu0 0.0
    %8787 = vmatpush1.msra.mxu0 0.0
    %8788 = vmatprep.subr.mxu0 0.0
    %8789 = vmatpush1.msra.mxu0 0.0
    %8790 = vmatprep.subr.mxu0 0.0
    %8791 = vmatpush1.msra.mxu0 0.0
    %8792 = vmatprep.subr.mxu0 0.0
    %8793 = vmatpush1.msra.mxu0 0.0
    %8794 = vmatprep.subr.mxu0 0.0
    %8795 = vmatpush1.msra.mxu0 0.0
    %8796 = vmatprep.subr.mxu0 0.0
    %8797 = vmatpush1.msra.mxu0 0.0
    %8798 = vmatprep.subr.mxu0 0.0
    %8799 = vmatpush1.msra.mxu0 0.0
    %8800 = vmatprep.subr.mxu0 0.0
    %8801 = vmatpush1.msra.mxu0 0.0
    %8802 = vmatprep.subr.mxu0 0.0
    %8803 = vmatpush1.msra.mxu0 0.0
    %8804 = vmatprep.subr.mxu0 0.0
    %8805 = vmatpush1.msra.mxu0 0.0
    %8806 = vmatprep.subr.mxu0 0.0
    %8807 = vmatpush1.msra.mxu0 0.0
    %8808 = vmatprep.subr.mxu0 0.0
    %8809 = vmatpush1.msra.mxu0 0.0
    %8810 = vmatprep.subr.mxu0 0.0
    %8811 = vmatpush1.msra.mxu0 0.0
    %8812 = vmatprep.subr.mxu0 0.0
    %8813 = vmatpush1.msra.mxu0 0.0
    %8814 = vmatprep.subr.mxu0 0.0
    %8815 = vmatpush1.msra.mxu0 0.0
    %8816 = vmatprep.subr.mxu0 0.0
    %8817 = vmatpush1.msra.mxu0 0.0
    %8818 = vmatprep.subr.mxu0 0.0
    %8819 = vmatpush1.msra.mxu0 0.0
    %8820 = vmatprep.subr.mxu0 0.0
    %8821 = vmatpush1.msra.mxu0 0.0
    %8822 = vmatprep.subr.mxu0 0.0
    %8823 = vmatpush1.msra.mxu0 0.0
    %8824 = vmatprep.subr.mxu0 0.0
    %8825 = vmatpush1.msra.mxu0 0.0
    %8826 = vmatprep.subr.mxu0 0.0
    %8827 = vmatpush1.msra.mxu0 0.0
    %8828 = vmatprep.subr.mxu0 0.0
    %8829 = vmatpush1.msra.mxu0 0.0
    %8830 = vmatprep.subr.mxu0 0.0
    %8831 = vmatpush1.msra.mxu0 0.0
    %8832 = vmatprep.subr.mxu0 0.0
    %8833 = vmatpush1.msra.mxu0 0.0
    %8834 = vmatprep.mubr.f32.mxu0 0.0
    %v8835 = vand.u32 %v8687, 4294901760
    %8836 = vmatmul.mubr.f32.gmra.mrb[0].mxu0 %v8835
    %v8837 = vpop.f32.mrb[0].mxu0
    %v8838 = vadd.f32 %v8762, %v8837
    %v8839 = vpop.f32.mrb[0].mxu0
    %8840 = vdwg.mxu0
    %8841 = vmatprep.subr.mxu0 0.0
    %v8842 = vand.u32 %v8684, 4294901760
    %v8843 = vsub.f32 %v8684, %v8842
    %8844 = vmatpush1.msra.mxu0 %v8843
    %8845 = vmatprep.subr.mxu0 0.0
    %8846 = vmatpush1.msra.mxu0 0.0
    %8847 = vmatprep.subr.mxu0 0.0
    %8848 = vmatpush1.msra.mxu0 0.0
    %8849 = vmatprep.subr.mxu0 0.0
    %8850 = vmatpush1.msra.mxu0 0.0
    %8851 = vmatprep.subr.mxu0 0.0
    %8852 = vmatpush1.msra.mxu0 0.0
    %8853 = vmatprep.subr.mxu0 0.0
    %8854 = vmatpush1.msra.mxu0 0.0
    %8855 = vmatprep.subr.mxu0 0.0
    %8856 = vmatpush1.msra.mxu0 0.0
    %8857 = vmatprep.subr.mxu0 0.0
    %8858 = vmatpush1.msra.mxu0 0.0
    %8859 = vmatprep.subr.mxu0 0.0
    %8860 = vmatpush1.msra.mxu0 0.0
    %8861 = vmatprep.subr.mxu0 0.0
    %8862 = vmatpush1.msra.mxu0 0.0
    %8863 = vmatprep.subr.mxu0 0.0
    %8864 = vmatpush1.msra.mxu0 0.0
    %8865 = vmatprep.subr.mxu0 0.0
    %8866 = vmatpush1.msra.mxu0 0.0
    %8867 = vmatprep.subr.mxu0 0.0
    %8868 = vmatpush1.msra.mxu0 0.0
    %8869 = vmatprep.subr.mxu0 0.0
    %8870 = vmatpush1.msra.mxu0 0.0
    %8871 = vmatprep.subr.mxu0 0.0
    %8872 = vmatpush1.msra.mxu0 0.0
    %8873 = vmatprep.subr.mxu0 0.0
    %8874 = vmatpush1.msra.mxu0 0.0
    %8875 = vmatprep.subr.mxu0 0.0
    %8876 = vmatpush1.msra.mxu0 0.0
    %8877 = vmatprep.subr.mxu0 0.0
    %8878 = vmatpush1.msra.mxu0 0.0
    %8879 = vmatprep.subr.mxu0 0.0
    %8880 = vmatpush1.msra.mxu0 0.0
    %8881 = vmatprep.subr.mxu0 0.0
    %8882 = vmatpush1.msra.mxu0 0.0
    %8883 = vmatprep.subr.mxu0 0.0
    %8884 = vmatpush1.msra.mxu0 0.0
    %8885 = vmatprep.subr.mxu0 0.0
    %8886 = vmatpush1.msra.mxu0 0.0
    %8887 = vmatprep.subr.mxu0 0.0
    %8888 = vmatpush1.msra.mxu0 0.0
    %8889 = vmatprep.subr.mxu0 0.0
    %8890 = vmatpush1.msra.mxu0 0.0
    %8891 = vmatprep.subr.mxu0 0.0
    %8892 = vmatpush1.msra.mxu0 0.0
    %8893 = vmatprep.subr.mxu0 0.0
    %8894 = vmatpush1.msra.mxu0 0.0
    %8895 = vmatprep.subr.mxu0 0.0
    %8896 = vmatpush1.msra.mxu0 0.0
    %8897 = vmatprep.subr.mxu0 0.0
    %8898 = vmatpush1.msra.mxu0 0.0
    %8899 = vmatprep.subr.mxu0 0.0
    %8900 = vmatpush1.msra.mxu0 0.0
    %8901 = vmatprep.subr.mxu0 0.0
    %8902 = vmatpush1.msra.mxu0 0.0
    %8903 = vmatprep.subr.mxu0 0.0
    %8904 = vmatpush1.msra.mxu0 0.0
    %8905 = vmatprep.subr.mxu0 0.0
    %8906 = vmatpush1.msra.mxu0 0.0
    %8907 = vmatprep.mubr.f32.mxu0 0.0
    %v8908 = vand.u32 %v8687, 4294901760
    %v8909 = vsub.f32 %v8687, %v8908
    %8910 = vmatmul.mubr.f32.gmra.mrb[0].mxu0 %v8909
    %v8911 = vpop.f32.mrb[0].mxu0
    %v8912 = vadd.f32 %v8838, %v8911
    %v8913 = vpop.f32.mrb[0].mxu0
    %8914 = vdwg.mxu0
    %8915 = vmatprep.subr.mxu0 0.0
    %v8916 = vand.u32 %v8684, 4294901760
    %8917 = vmatpush1.msra.mxu0 %v8916
    %8918 = vmatprep.subr.mxu0 0.0
    %8919 = vmatpush1.msra.mxu0 0.0
    %8920 = vmatprep.subr.mxu0 0.0
    %8921 = vmatpush1.msra.mxu0 0.0
    %8922 = vmatprep.subr.mxu0 0.0
    %8923 = vmatpush1.msra.mxu0 0.0
    %8924 = vmatprep.subr.mxu0 0.0
    %8925 = vmatpush1.msra.mxu0 0.0
    %8926 = vmatprep.subr.mxu0 0.0
    %8927 = vmatpush1.msra.mxu0 0.0
    %8928 = vmatprep.subr.mxu0 0.0
    %8929 = vmatpush1.msra.mxu0 0.0
    %8930 = vmatprep.subr.mxu0 0.0
    %8931 = vmatpush1.msra.mxu0 0.0
    %8932 = vmatprep.subr.mxu0 0.0
    %8933 = vmatpush1.msra.mxu0 0.0
    %8934 = vmatprep.subr.mxu0 0.0
    %8935 = vmatpush1.msra.mxu0 0.0
    %8936 = vmatprep.subr.mxu0 0.0
    %8937 = vmatpush1.msra.mxu0 0.0
    %8938 = vmatprep.subr.mxu0 0.0
    %8939 = vmatpush1.msra.mxu0 0.0
    %8940 = vmatprep.subr.mxu0 0.0
    %8941 = vmatpush1.msra.mxu0 0.0
    %8942 = vmatprep.subr.mxu0 0.0
    %8943 = vmatpush1.msra.mxu0 0.0
    %8944 = vmatprep.subr.mxu0 0.0
    %8945 = vmatpush1.msra.mxu0 0.0
    %8946 = vmatprep.subr.mxu0 0.0
    %8947 = vmatpush1.msra.mxu0 0.0
    %8948 = vmatprep.subr.mxu0 0.0
    %8949 = vmatpush1.msra.mxu0 0.0
    %8950 = vmatprep.subr.mxu0 0.0
    %8951 = vmatpush1.msra.mxu0 0.0
    %8952 = vmatprep.subr.mxu0 0.0
    %8953 = vmatpush1.msra.mxu0 0.0
    %8954 = vmatprep.subr.mxu0 0.0
    %8955 = vmatpush1.msra.mxu0 0.0
    %8956 = vmatprep.subr.mxu0 0.0
    %8957 = vmatpush1.msra.mxu0 0.0
    %8958 = vmatprep.subr.mxu0 0.0
    %8959 = vmatpush1.msra.mxu0 0.0
    %8960 = vmatprep.subr.mxu0 0.0
    %8961 = vmatpush1.msra.mxu0 0.0
    %8962 = vmatprep.subr.mxu0 0.0
    %8963 = vmatpush1.msra.mxu0 0.0
    %8964 = vmatprep.subr.mxu0 0.0
    %8965 = vmatpush1.msra.mxu0 0.0
    %8966 = vmatprep.subr.mxu0 0.0
    %8967 = vmatpush1.msra.mxu0 0.0
    %8968 = vmatprep.subr.mxu0 0.0
    %8969 = vmatpush1.msra.mxu0 0.0
    %8970 = vmatprep.subr.mxu0 0.0
    %8971 = vmatpush1.msra.mxu0 0.0
    %8972 = vmatprep.subr.mxu0 0.0
    %8973 = vmatpush1.msra.mxu0 0.0
    %8974 = vmatprep.subr.mxu0 0.0
    %8975 = vmatpush1.msra.mxu0 0.0
    %8976 = vmatprep.subr.mxu0 0.0
    %8977 = vmatpush1.msra.mxu0 0.0
    %8978 = vmatprep.subr.mxu0 0.0
    %8979 = vmatpush1.msra.mxu0 0.0
    %8980 = vmatprep.mubr.f32.mxu0 0.0
    %v8981 = vand.u32 %v8687, 4294901760
    %v8982 = vsub.f32 %v8687, %v8981
    %v8983 = vand.u32 %v8982, 4294901760
    %8984 = vmatmul.mubr.f32.gmra.mrb[0].mxu0 %v8983
    %v8985 = vpop.f32.mrb[0].mxu0
    %v8986 = vadd.f32 %v8912, %v8985
    %v8987 = vpop.f32.mrb[0].mxu0
    %8988 = vdwg.mxu0
    %8989 = vmatprep.subr.mxu0 0.0
    %v8990 = vand.u32 %v8684, 4294901760
    %v8991 = vsub.f32 %v8684, %v8990
    %v8992 = vand.u32 %v8991, 4294901760
    %8993 = vmatpush1.msra.mxu0 %v8992
    %8994 = vmatprep.subr.mxu0 0.0
    %8995 = vmatpush1.msra.mxu0 0.0
    %8996 = vmatprep.subr.mxu0 0.0
    %8997 = vmatpush1.msra.mxu0 0.0
    %8998 = vmatprep.subr.mxu0 0.0
    %8999 = vmatpush1.msra.mxu0 0.0
    %9000 = vmatprep.subr.mxu0 0.0
    %9001 = vmatpush1.msra.mxu0 0.0
    %9002 = vmatprep.subr.mxu0 0.0
    %9003 = vmatpush1.msra.mxu0 0.0
    %9004 = vmatprep.subr.mxu0 0.0
    %9005 = vmatpush1.msra.mxu0 0.0
    %9006 = vmatprep.subr.mxu0 0.0
    %9007 = vmatpush1.msra.mxu0 0.0
    %9008 = vmatprep.subr.mxu0 0.0
    %9009 = vmatpush1.msra.mxu0 0.0
    %9010 = vmatprep.subr.mxu0 0.0
    %9011 = vmatpush1.msra.mxu0 0.0
    %9012 = vmatprep.subr.mxu0 0.0
    %9013 = vmatpush1.msra.mxu0 0.0
    %9014 = vmatprep.subr.mxu0 0.0
    %9015 = vmatpush1.msra.mxu0 0.0
    %9016 = vmatprep.subr.mxu0 0.0
    %9017 = vmatpush1.msra.mxu0 0.0
    %9018 = vmatprep.subr.mxu0 0.0
    %9019 = vmatpush1.msra.mxu0 0.0
    %9020 = vmatprep.subr.mxu0 0.0
    %9021 = vmatpush1.msra.mxu0 0.0
    %9022 = vmatprep.subr.mxu0 0.0
    %9023 = vmatpush1.msra.mxu0 0.0
    %9024 = vmatprep.subr.mxu0 0.0
    %9025 = vmatpush1.msra.mxu0 0.0
    %9026 = vmatprep.subr.mxu0 0.0
    %9027 = vmatpush1.msra.mxu0 0.0
    %9028 = vmatprep.subr.mxu0 0.0
    %9029 = vmatpush1.msra.mxu0 0.0
    %9030 = vmatprep.subr.mxu0 0.0
    %9031 = vmatpush1.msra.mxu0 0.0
    %9032 = vmatprep.subr.mxu0 0.0
    %9033 = vmatpush1.msra.mxu0 0.0
    %9034 = vmatprep.subr.mxu0 0.0
    %9035 = vmatpush1.msra.mxu0 0.0
    %9036 = vmatprep.subr.mxu0 0.0
    %9037 = vmatpush1.msra.mxu0 0.0
    %9038 = vmatprep.subr.mxu0 0.0
    %9039 = vmatpush1.msra.mxu0 0.0
    %9040 = vmatprep.subr.mxu0 0.0
    %9041 = vmatpush1.msra.mxu0 0.0
    %9042 = vmatprep.subr.mxu0 0.0
    %9043 = vmatpush1.msra.mxu0 0.0
    %9044 = vmatprep.subr.mxu0 0.0
    %9045 = vmatpush1.msra.mxu0 0.0
    %9046 = vmatprep.subr.mxu0 0.0
    %9047 = vmatpush1.msra.mxu0 0.0
    %9048 = vmatprep.subr.mxu0 0.0
    %9049 = vmatpush1.msra.mxu0 0.0
    %9050 = vmatprep.subr.mxu0 0.0
    %9051 = vmatpush1.msra.mxu0 0.0
    %9052 = vmatprep.subr.mxu0 0.0
    %9053 = vmatpush1.msra.mxu0 0.0
    %9054 = vmatprep.subr.mxu0 0.0
    %9055 = vmatpush1.msra.mxu0 0.0
    %9056 = vmatprep.mubr.f32.mxu0 0.0
    %v9057 = vand.u32 %v8687, 4294901760
    %9058 = vmatmul.mubr.f32.gmra.mrb[0].mxu0 %v9057
    %v9059 = vpop.f32.mrb[0].mxu0
    %v9060 = vadd.f32 %v8986, %v9059
    %v9061 = vpop.f32.mrb[0].mxu0
    %9062 = vdwg.mxu0
    %9063 = vmatprep.subr.mxu0 0.0
    %v9064 = vand.u32 %v8684, 4294901760
    %9065 = vmatpush1.msra.mxu0 %v9064
    %9066 = vmatprep.subr.mxu0 0.0
    %9067 = vmatpush1.msra.mxu0 0.0
    %9068 = vmatprep.subr.mxu0 0.0
    %9069 = vmatpush1.msra.mxu0 0.0
    %9070 = vmatprep.subr.mxu0 0.0
    %9071 = vmatpush1.msra.mxu0 0.0
    %9072 = vmatprep.subr.mxu0 0.0
    %9073 = vmatpush1.msra.mxu0 0.0
    %9074 = vmatprep.subr.mxu0 0.0
    %9075 = vmatpush1.msra.mxu0 0.0
    %9076 = vmatprep.subr.mxu0 0.0
    %9077 = vmatpush1.msra.mxu0 0.0
    %9078 = vmatprep.subr.mxu0 0.0
    %9079 = vmatpush1.msra.mxu0 0.0
    %9080 = vmatprep.subr.mxu0 0.0
    %9081 = vmatpush1.msra.mxu0 0.0
    %9082 = vmatprep.subr.mxu0 0.0
    %9083 = vmatpush1.msra.mxu0 0.0
    %9084 = vmatprep.subr.mxu0 0.0
    %9085 = vmatpush1.msra.mxu0 0.0
    %9086 = vmatprep.subr.mxu0 0.0
    %9087 = vmatpush1.msra.mxu0 0.0
    %9088 = vmatprep.subr.mxu0 0.0
    %9089 = vmatpush1.msra.mxu0 0.0
    %9090 = vmatprep.subr.mxu0 0.0
    %9091 = vmatpush1.msra.mxu0 0.0
    %9092 = vmatprep.subr.mxu0 0.0
    %9093 = vmatpush1.msra.mxu0 0.0
    %9094 = vmatprep.subr.mxu0 0.0
    %9095 = vmatpush1.msra.mxu0 0.0
    %9096 = vmatprep.subr.mxu0 0.0
    %9097 = vmatpush1.msra.mxu0 0.0
    %9098 = vmatprep.subr.mxu0 0.0
    %9099 = vmatpush1.msra.mxu0 0.0
    %9100 = vmatprep.subr.mxu0 0.0
    %9101 = vmatpush1.msra.mxu0 0.0
    %9102 = vmatprep.subr.mxu0 0.0
    %9103 = vmatpush1.msra.mxu0 0.0
    %9104 = vmatprep.subr.mxu0 0.0
    %9105 = vmatpush1.msra.mxu0 0.0
    %9106 = vmatprep.subr.mxu0 0.0
    %9107 = vmatpush1.msra.mxu0 0.0
    %9108 = vmatprep.subr.mxu0 0.0
    %9109 = vmatpush1.msra.mxu0 0.0
    %9110 = vmatprep.subr.mxu0 0.0
    %9111 = vmatpush1.msra.mxu0 0.0
    %9112 = vmatprep.subr.mxu0 0.0
    %9113 = vmatpush1.msra.mxu0 0.0
    %9114 = vmatprep.subr.mxu0 0.0
    %9115 = vmatpush1.msra.mxu0 0.0
    %9116 = vmatprep.subr.mxu0 0.0
    %9117 = vmatpush1.msra.mxu0 0.0
    %9118 = vmatprep.subr.mxu0 0.0
    %9119 = vmatpush1.msra.mxu0 0.0
    %9120 = vmatprep.subr.mxu0 0.0
    %9121 = vmatpush1.msra.mxu0 0.0
    %9122 = vmatprep.subr.mxu0 0.0
    %9123 = vmatpush1.msra.mxu0 0.0
    %9124 = vmatprep.subr.mxu0 0.0
    %9125 = vmatpush1.msra.mxu0 0.0
    %9126 = vmatprep.subr.mxu0 0.0
    %9127 = vmatpush1.msra.mxu0 0.0
    %9128 = vmatprep.mubr.f32.mxu0 0.0
    %v9129 = vand.u32 %v8687, 4294901760
    %9130 = vmatmul.mubr.f32.gmra.mrb[0].mxu0 %v9129
    %v9131 = vpop.f32.mrb[0].mxu0
    %v9132 = vadd.f32 %v9060, %v9131
    %v9133 = vpop.f32.mrb[0].mxu0
    %9134 = vdwg.mxu0
    %9136 = vrot.lane.b32.xlu0 %v9132, 24
    %v9137 = vpop.permute.xlu0 %9136
    %9139 = vst.msk [vmem:[#allocation2 + $0x8] sm:$0xff] %vm5450, %v9137
    %v9140 = vld [vmem:[#allocation2] sm:$0xff]
    %v9141 = vld [vmem:[#allocation2 + $0x8] sm:$0xff]
    %v9142 = vlaneseq
    %v9143 = vshrl.u32 %v9142, 7
    %v9144 = vsub.s32 0, %v9143
    %v9145 = vrot.slane %v101, %v9144
    %v9147 = vsel %vm108, %v9140, 0
    %v9150 = vsel %vm108, %v9141, 0
    %v9153 = vsel %vm108, %v94, 0
    %v9156 = vsel %vm108, %v95, 0
    %v9159 = vsel %vm108, %v96, 0
    %v9162 = vsel %vm108, %v97, 0
    %9164 = vmatprep.subr.mxu0 0.0
    %v9165 = vand.u32 %v9153, 4294901760
    %9166 = vmatpush1.xpose.msra.mxu0 %v9165
    %9167 = vmatprep.subr.mxu0 0.0
    %v9168 = vand.u32 %v9156, 4294901760
    %9169 = vmatpush1.xpose.msra.mxu0 %v9168
    %9170 = vmatprep.subr.mxu0 0.0
    %v9171 = vand.u32 %v9159, 4294901760
    %9172 = vmatpush1.xpose.msra.mxu0 %v9171
    %9173 = vmatprep.subr.mxu0 0.0
    %v9174 = vand.u32 %v9162, 4294901760
    %9175 = vmatpush1.xpose.msra.mxu0 %v9174
    %9176 = vmatprep.subr.mxu0 0.0
    %9177 = vmatpush1.xpose.msra.mxu0 0.0
    %9178 = vmatprep.subr.mxu0 0.0
    %9179 = vmatpush1.xpose.msra.mxu0 0.0
    %9180 = vmatprep.subr.mxu0 0.0
    %9181 = vmatpush1.xpose.msra.mxu0 0.0
    %9182 = vmatprep.subr.mxu0 0.0
    %9183 = vmatpush1.xpose.msra.mxu0 0.0
    %9184 = vmatprep.subr.mxu0 0.0
    %9185 = vmatpush1.xpose.msra.mxu0 0.0
    %9186 = vmatprep.subr.mxu0 0.0
    %9187 = vmatpush1.xpose.msra.mxu0 0.0
    %9188 = vmatprep.subr.mxu0 0.0
    %9189 = vmatpush1.xpose.msra.mxu0 0.0
    %9190 = vmatprep.subr.mxu0 0.0
    %9191 = vmatpush1.xpose.msra.mxu0 0.0
    %9192 = vmatprep.subr.mxu0 0.0
    %9193 = vmatpush1.xpose.msra.mxu0 0.0
    %9194 = vmatprep.subr.mxu0 0.0
    %9195 = vmatpush1.xpose.msra.mxu0 0.0
    %9196 = vmatprep.subr.mxu0 0.0
    %9197 = vmatpush1.xpose.msra.mxu0 0.0
    %9198 = vmatprep.subr.mxu0 0.0
    %9199 = vmatpush1.xpose.msra.mxu0 0.0
    %9200 = vmatprep.subr.mxu0 0.0
    %9201 = vmatpush1.xpose.msra.mxu0 0.0
    %9202 = vmatprep.subr.mxu0 0.0
    %9203 = vmatpush1.xpose.msra.mxu0 0.0
    %9204 = vmatprep.subr.mxu0 0.0
    %9205 = vmatpush1.xpose.msra.mxu0 0.0
    %9206 = vmatprep.subr.mxu0 0.0
    %9207 = vmatpush1.xpose.msra.mxu0 0.0
    %9208 = vmatprep.subr.mxu0 0.0
    %9209 = vmatpush1.xpose.msra.mxu0 0.0
    %9210 = vmatprep.subr.mxu0 0.0
    %9211 = vmatpush1.xpose.msra.mxu0 0.0
    %9212 = vmatprep.subr.mxu0 0.0
    %9213 = vmatpush1.xpose.msra.mxu0 0.0
    %9214 = vmatprep.subr.mxu0 0.0
    %9215 = vmatpush1.xpose.msra.mxu0 0.0
    %9216 = vmatprep.subr.mxu0 0.0
    %9217 = vmatpush1.xpose.msra.mxu0 0.0
    %9218 = vmatprep.subr.mxu0 0.0
    %9219 = vmatpush1.xpose.msra.mxu0 0.0
    %9220 = vmatprep.subr.mxu0 0.0
    %9221 = vmatpush1.xpose.msra.mxu0 0.0
    %9222 = vmatprep.subr.mxu0 0.0
    %9223 = vmatpush1.xpose.msra.mxu0 0.0
    %9224 = vmatprep.subr.mxu0 0.0
    %9225 = vmatpush1.xpose.msra.mxu0 0.0
    %9226 = vmatprep.subr.mxu0 0.0
    %9227 = vmatpush1.xpose.msra.mxu0 0.0
    %9228 = vmatprep.subr.mxu0 0.0
    %9229 = vmatpush1.xpose.msra.mxu0 0.0
    %9230 = vmatprep.subr.mxu0 0.0
    %9231 = vmatpush1.xpose.msra.mxu0 0.0
    %9232 = vmatprep.mubr.f32.mxu0 0.0
    %v9233 = vand.u32 %v9147, 4294901760
    %v9234 = vsub.f32 %v9147, %v9233
    %v9235 = vand.u32 %v9234, 4294901760
    %v9236 = vsub.f32 %v9234, %v9235
    %v9237 = vand.u32 %v9236, 4294901760
    %9238 = vmatmul.mubr.f32.gmra.mrb[0].mxu0 %v9237
    %v9239 = vpop.f32.mrb[0].mxu0
    %v9240 = vadd.f32 %v9145, %v9239
    %v9241 = vpop.f32.mrb[0].mxu0
    %9242 = vmatprep.mubr.f32.mxu0 0.0
    %v9243 = vand.u32 %v9150, 4294901760
    %v9244 = vsub.f32 %v9150, %v9243
    %v9245 = vand.u32 %v9244, 4294901760
    %v9246 = vsub.f32 %v9244, %v9245
    %v9247 = vand.u32 %v9246, 4294901760
    %9248 = vmatmul.mubr.f32.gmra.mrb[0].mxu0 %v9247
    %v9249 = vpop.f32.mrb[0].mxu0
    %v9250 = vadd.f32 %v9145, %v9249
    %v9251 = vpop.f32.mrb[0].mxu0
    %9252 = vdwg.mxu0
    %9253 = vmatprep.subr.mxu0 0.0
    %v9254 = vand.u32 %v9153, 4294901760
    %v9255 = vsub.f32 %v9153, %v9254
    %v9256 = vand.u32 %v9255, 4294901760
    %v9257 = vsub.f32 %v9255, %v9256
    %v9258 = vand.u32 %v9257, 4294901760
    %9259 = vmatpush1.xpose.msra.mxu0 %v9258
    %9260 = vmatprep.subr.mxu0 0.0
    %v9261 = vand.u32 %v9156, 4294901760
    %v9262 = vsub.f32 %v9156, %v9261
    %v9263 = vand.u32 %v9262, 4294901760
    %v9264 = vsub.f32 %v9262, %v9263
    %v9265 = vand.u32 %v9264, 4294901760
    %9266 = vmatpush1.xpose.msra.mxu0 %v9265
    %9267 = vmatprep.subr.mxu0 0.0
    %v9268 = vand.u32 %v9159, 4294901760
    %v9269 = vsub.f32 %v9159, %v9268
    %v9270 = vand.u32 %v9269, 4294901760
    %v9271 = vsub.f32 %v9269, %v9270
    %v9272 = vand.u32 %v9271, 4294901760
    %9273 = vmatpush1.xpose.msra.mxu0 %v9272
    %9274 = vmatprep.subr.mxu0 0.0
    %v9275 = vand.u32 %v9162, 4294901760
    %v9276 = vsub.f32 %v9162, %v9275
    %v9277 = vand.u32 %v9276, 4294901760
    %v9278 = vsub.f32 %v9276, %v9277
    %v9279 = vand.u32 %v9278, 4294901760
    %9280 = vmatpush1.xpose.msra.mxu0 %v9279
    %9281 = vmatprep.subr.mxu0 0.0
    %9282 = vmatpush1.xpose.msra.mxu0 0.0
    %9283 = vmatprep.subr.mxu0 0.0
    %9284 = vmatpush1.xpose.msra.mxu0 0.0
    %9285 = vmatprep.subr.mxu0 0.0
    %9286 = vmatpush1.xpose.msra.mxu0 0.0
    %9287 = vmatprep.subr.mxu0 0.0
    %9288 = vmatpush1.xpose.msra.mxu0 0.0
    %9289 = vmatprep.subr.mxu0 0.0
    %9290 = vmatpush1.xpose.msra.mxu0 0.0
    %9291 = vmatprep.subr.mxu0 0.0
    %9292 = vmatpush1.xpose.msra.mxu0 0.0
    %9293 = vmatprep.subr.mxu0 0.0
    %9294 = vmatpush1.xpose.msra.mxu0 0.0
    %9295 = vmatprep.subr.mxu0 0.0
    %9296 = vmatpush1.xpose.msra.mxu0 0.0
    %9297 = vmatprep.subr.mxu0 0.0
    %9298 = vmatpush1.xpose.msra.mxu0 0.0
    %9299 = vmatprep.subr.mxu0 0.0
    %9300 = vmatpush1.xpose.msra.mxu0 0.0
    %9301 = vmatprep.subr.mxu0 0.0
    %9302 = vmatpush1.xpose.msra.mxu0 0.0
    %9303 = vmatprep.subr.mxu0 0.0
    %9304 = vmatpush1.xpose.msra.mxu0 0.0
    %9305 = vmatprep.subr.mxu0 0.0
    %9306 = vmatpush1.xpose.msra.mxu0 0.0
    %9307 = vmatprep.subr.mxu0 0.0
    %9308 = vmatpush1.xpose.msra.mxu0 0.0
    %9309 = vmatprep.subr.mxu0 0.0
    %9310 = vmatpush1.xpose.msra.mxu0 0.0
    %9311 = vmatprep.subr.mxu0 0.0
    %9312 = vmatpush1.xpose.msra.mxu0 0.0
    %9313 = vmatprep.subr.mxu0 0.0
    %9314 = vmatpush1.xpose.msra.mxu0 0.0
    %9315 = vmatprep.subr.mxu0 0.0
    %9316 = vmatpush1.xpose.msra.mxu0 0.0
    %9317 = vmatprep.subr.mxu0 0.0
    %9318 = vmatpush1.xpose.msra.mxu0 0.0
    %9319 = vmatprep.subr.mxu0 0.0
    %9320 = vmatpush1.xpose.msra.mxu0 0.0
    %9321 = vmatprep.subr.mxu0 0.0
    %9322 = vmatpush1.xpose.msra.mxu0 0.0
    %9323 = vmatprep.subr.mxu0 0.0
    %9324 = vmatpush1.xpose.msra.mxu0 0.0
    %9325 = vmatprep.subr.mxu0 0.0
    %9326 = vmatpush1.xpose.msra.mxu0 0.0
    %9327 = vmatprep.subr.mxu0 0.0
    %9328 = vmatpush1.xpose.msra.mxu0 0.0
    %9329 = vmatprep.subr.mxu0 0.0
    %9330 = vmatpush1.xpose.msra.mxu0 0.0
    %9331 = vmatprep.subr.mxu0 0.0
    %9332 = vmatpush1.xpose.msra.mxu0 0.0
    %9333 = vmatprep.subr.mxu0 0.0
    %9334 = vmatpush1.xpose.msra.mxu0 0.0
    %9335 = vmatprep.subr.mxu0 0.0
    %9336 = vmatpush1.xpose.msra.mxu0 0.0
    %9337 = vmatprep.mubr.f32.mxu0 0.0
    %v9338 = vand.u32 %v9147, 4294901760
    %9339 = vmatmul.mubr.f32.gmra.mrb[0].mxu0 %v9338
    %v9340 = vpop.f32.mrb[0].mxu0
    %v9341 = vadd.f32 %v9240, %v9340
    %v9342 = vpop.f32.mrb[0].mxu0
    %9343 = vmatprep.mubr.f32.mxu0 0.0
    %v9344 = vand.u32 %v9150, 4294901760
    %9345 = vmatmul.mubr.f32.gmra.mrb[0].mxu0 %v9344
    %v9346 = vpop.f32.mrb[0].mxu0
    %v9347 = vadd.f32 %v9250, %v9346
    %v9348 = vpop.f32.mrb[0].mxu0
    %9349 = vdwg.mxu0
    %9350 = vmatprep.subr.mxu0 0.0
    %v9351 = vand.u32 %v9153, 4294901760
    %v9352 = vsub.f32 %v9153, %v9351
    %9353 = vmatpush1.xpose.msra.mxu0 %v9352
    %9354 = vmatprep.subr.mxu0 0.0
    %v9355 = vand.u32 %v9156, 4294901760
    %v9356 = vsub.f32 %v9156, %v9355
    %9357 = vmatpush1.xpose.msra.mxu0 %v9356
    %9358 = vmatprep.subr.mxu0 0.0
    %v9359 = vand.u32 %v9159, 4294901760
    %v9360 = vsub.f32 %v9159, %v9359
    %9361 = vmatpush1.xpose.msra.mxu0 %v9360
    %9362 = vmatprep.subr.mxu0 0.0
    %v9363 = vand.u32 %v9162, 4294901760
    %v9364 = vsub.f32 %v9162, %v9363
    %9365 = vmatpush1.xpose.msra.mxu0 %v9364
    %9366 = vmatprep.subr.mxu0 0.0
    %9367 = vmatpush1.xpose.msra.mxu0 0.0
    %9368 = vmatprep.subr.mxu0 0.0
    %9369 = vmatpush1.xpose.msra.mxu0 0.0
    %9370 = vmatprep.subr.mxu0 0.0
    %9371 = vmatpush1.xpose.msra.mxu0 0.0
    %9372 = vmatprep.subr.mxu0 0.0
    %9373 = vmatpush1.xpose.msra.mxu0 0.0
    %9374 = vmatprep.subr.mxu0 0.0
    %9375 = vmatpush1.xpose.msra.mxu0 0.0
    %9376 = vmatprep.subr.mxu0 0.0
    %9377 = vmatpush1.xpose.msra.mxu0 0.0
    %9378 = vmatprep.subr.mxu0 0.0
    %9379 = vmatpush1.xpose.msra.mxu0 0.0
    %9380 = vmatprep.subr.mxu0 0.0
    %9381 = vmatpush1.xpose.msra.mxu0 0.0
    %9382 = vmatprep.subr.mxu0 0.0
    %9383 = vmatpush1.xpose.msra.mxu0 0.0
    %9384 = vmatprep.subr.mxu0 0.0
    %9385 = vmatpush1.xpose.msra.mxu0 0.0
    %9386 = vmatprep.subr.mxu0 0.0
    %9387 = vmatpush1.xpose.msra.mxu0 0.0
    %9388 = vmatprep.subr.mxu0 0.0
    %9389 = vmatpush1.xpose.msra.mxu0 0.0
    %9390 = vmatprep.subr.mxu0 0.0
    %9391 = vmatpush1.xpose.msra.mxu0 0.0
    %9392 = vmatprep.subr.mxu0 0.0
    %9393 = vmatpush1.xpose.msra.mxu0 0.0
    %9394 = vmatprep.subr.mxu0 0.0
    %9395 = vmatpush1.xpose.msra.mxu0 0.0
    %9396 = vmatprep.subr.mxu0 0.0
    %9397 = vmatpush1.xpose.msra.mxu0 0.0
    %9398 = vmatprep.subr.mxu0 0.0
    %9399 = vmatpush1.xpose.msra.mxu0 0.0
    %9400 = vmatprep.subr.mxu0 0.0
    %9401 = vmatpush1.xpose.msra.mxu0 0.0
    %9402 = vmatprep.subr.mxu0 0.0
    %9403 = vmatpush1.xpose.msra.mxu0 0.0
    %9404 = vmatprep.subr.mxu0 0.0
    %9405 = vmatpush1.xpose.msra.mxu0 0.0
    %9406 = vmatprep.subr.mxu0 0.0
    %9407 = vmatpush1.xpose.msra.mxu0 0.0
    %9408 = vmatprep.subr.mxu0 0.0
    %9409 = vmatpush1.xpose.msra.mxu0 0.0
    %9410 = vmatprep.subr.mxu0 0.0
    %9411 = vmatpush1.xpose.msra.mxu0 0.0
    %9412 = vmatprep.subr.mxu0 0.0
    %9413 = vmatpush1.xpose.msra.mxu0 0.0
    %9414 = vmatprep.subr.mxu0 0.0
    %9415 = vmatpush1.xpose.msra.mxu0 0.0
    %9416 = vmatprep.subr.mxu0 0.0
    %9417 = vmatpush1.xpose.msra.mxu0 0.0
    %9418 = vmatprep.subr.mxu0 0.0
    %9419 = vmatpush1.xpose.msra.mxu0 0.0
    %9420 = vmatprep.subr.mxu0 0.0
    %9421 = vmatpush1.xpose.msra.mxu0 0.0
    %9422 = vmatprep.mubr.f32.mxu0 0.0
    %v9423 = vand.u32 %v9147, 4294901760
    %v9424 = vsub.f32 %v9147, %v9423
    %9425 = vmatmul.mubr.f32.gmra.mrb[0].mxu0 %v9424
    %v9426 = vpop.f32.mrb[0].mxu0
    %v9427 = vadd.f32 %v9341, %v9426
    %v9428 = vpop.f32.mrb[0].mxu0
    %9429 = vmatprep.mubr.f32.mxu0 0.0
    %v9430 = vand.u32 %v9150, 4294901760
    %v9431 = vsub.f32 %v9150, %v9430
    %9432 = vmatmul.mubr.f32.gmra.mrb[0].mxu0 %v9431
    %v9433 = vpop.f32.mrb[0].mxu0
    %v9434 = vadd.f32 %v9347, %v9433
    %v9435 = vpop.f32.mrb[0].mxu0
    %9436 = vdwg.mxu0
    %9437 = vmatprep.subr.mxu0 0.0
    %v9438 = vand.u32 %v9153, 4294901760
    %9439 = vmatpush1.xpose.msra.mxu0 %v9438
    %9440 = vmatprep.subr.mxu0 0.0
    %v9441 = vand.u32 %v9156, 4294901760
    %9442 = vmatpush1.xpose.msra.mxu0 %v9441
    %9443 = vmatprep.subr.mxu0 0.0
    %v9444 = vand.u32 %v9159, 4294901760
    %9445 = vmatpush1.xpose.msra.mxu0 %v9444
    %9446 = vmatprep.subr.mxu0 0.0
    %v9447 = vand.u32 %v9162, 4294901760
    %9448 = vmatpush1.xpose.msra.mxu0 %v9447
    %9449 = vmatprep.subr.mxu0 0.0
    %9450 = vmatpush1.xpose.msra.mxu0 0.0
    %9451 = vmatprep.subr.mxu0 0.0
    %9452 = vmatpush1.xpose.msra.mxu0 0.0
    %9453 = vmatprep.subr.mxu0 0.0
    %9454 = vmatpush1.xpose.msra.mxu0 0.0
    %9455 = vmatprep.subr.mxu0 0.0
    %9456 = vmatpush1.xpose.msra.mxu0 0.0
    %9457 = vmatprep.subr.mxu0 0.0
    %9458 = vmatpush1.xpose.msra.mxu0 0.0
    %9459 = vmatprep.subr.mxu0 0.0
    %9460 = vmatpush1.xpose.msra.mxu0 0.0
    %9461 = vmatprep.subr.mxu0 0.0
    %9462 = vmatpush1.xpose.msra.mxu0 0.0
    %9463 = vmatprep.subr.mxu0 0.0
    %9464 = vmatpush1.xpose.msra.mxu0 0.0
    %9465 = vmatprep.subr.mxu0 0.0
    %9466 = vmatpush1.xpose.msra.mxu0 0.0
    %9467 = vmatprep.subr.mxu0 0.0
    %9468 = vmatpush1.xpose.msra.mxu0 0.0
    %9469 = vmatprep.subr.mxu0 0.0
    %9470 = vmatpush1.xpose.msra.mxu0 0.0
    %9471 = vmatprep.subr.mxu0 0.0
    %9472 = vmatpush1.xpose.msra.mxu0 0.0
    %9473 = vmatprep.subr.mxu0 0.0
    %9474 = vmatpush1.xpose.msra.mxu0 0.0
    %9475 = vmatprep.subr.mxu0 0.0
    %9476 = vmatpush1.xpose.msra.mxu0 0.0
    %9477 = vmatprep.subr.mxu0 0.0
    %9478 = vmatpush1.xpose.msra.mxu0 0.0
    %9479 = vmatprep.subr.mxu0 0.0
    %9480 = vmatpush1.xpose.msra.mxu0 0.0
    %9481 = vmatprep.subr.mxu0 0.0
    %9482 = vmatpush1.xpose.msra.mxu0 0.0
    %9483 = vmatprep.subr.mxu0 0.0
    %9484 = vmatpush1.xpose.msra.mxu0 0.0
    %9485 = vmatprep.subr.mxu0 0.0
    %9486 = vmatpush1.xpose.msra.mxu0 0.0
    %9487 = vmatprep.subr.mxu0 0.0
    %9488 = vmatpush1.xpose.msra.mxu0 0.0
    %9489 = vmatprep.subr.mxu0 0.0
    %9490 = vmatpush1.xpose.msra.mxu0 0.0
    %9491 = vmatprep.subr.mxu0 0.0
    %9492 = vmatpush1.xpose.msra.mxu0 0.0
    %9493 = vmatprep.subr.mxu0 0.0
    %9494 = vmatpush1.xpose.msra.mxu0 0.0
    %9495 = vmatprep.subr.mxu0 0.0
    %9496 = vmatpush1.xpose.msra.mxu0 0.0
    %9497 = vmatprep.subr.mxu0 0.0
    %9498 = vmatpush1.xpose.msra.mxu0 0.0
    %9499 = vmatprep.subr.mxu0 0.0
    %9500 = vmatpush1.xpose.msra.mxu0 0.0
    %9501 = vmatprep.subr.mxu0 0.0
    %9502 = vmatpush1.xpose.msra.mxu0 0.0
    %9503 = vmatprep.subr.mxu0 0.0
    %9504 = vmatpush1.xpose.msra.mxu0 0.0
    %9505 = vmatprep.mubr.f32.mxu0 0.0
    %v9506 = vand.u32 %v9147, 4294901760
    %v9507 = vsub.f32 %v9147, %v9506
    %v9508 = vand.u32 %v9507, 4294901760
    %9509 = vmatmul.mubr.f32.gmra.mrb[0].mxu0 %v9508
    %v9510 = vpop.f32.mrb[0].mxu0
    %v9511 = vadd.f32 %v9427, %v9510
    %v9512 = vpop.f32.mrb[0].mxu0
    %9513 = vmatprep.mubr.f32.mxu0 0.0
    %v9514 = vand.u32 %v9150, 4294901760
    %v9515 = vsub.f32 %v9150, %v9514
    %v9516 = vand.u32 %v9515, 4294901760
    %9517 = vmatmul.mubr.f32.gmra.mrb[0].mxu0 %v9516
    %v9518 = vpop.f32.mrb[0].mxu0
    %v9519 = vadd.f32 %v9434, %v9518
    %v9520 = vpop.f32.mrb[0].mxu0
    %9521 = vdwg.mxu0
    %9522 = vmatprep.subr.mxu0 0.0
    %v9523 = vand.u32 %v9153, 4294901760
    %v9524 = vsub.f32 %v9153, %v9523
    %v9525 = vand.u32 %v9524, 4294901760
    %9526 = vmatpush1.xpose.msra.mxu0 %v9525
    %9527 = vmatprep.subr.mxu0 0.0
    %v9528 = vand.u32 %v9156, 4294901760
    %v9529 = vsub.f32 %v9156, %v9528
    %v9530 = vand.u32 %v9529, 4294901760
    %9531 = vmatpush1.xpose.msra.mxu0 %v9530
    %9532 = vmatprep.subr.mxu0 0.0
    %v9533 = vand.u32 %v9159, 4294901760
    %v9534 = vsub.f32 %v9159, %v9533
    %v9535 = vand.u32 %v9534, 4294901760
    %9536 = vmatpush1.xpose.msra.mxu0 %v9535
    %9537 = vmatprep.subr.mxu0 0.0
    %v9538 = vand.u32 %v9162, 4294901760
    %v9539 = vsub.f32 %v9162, %v9538
    %v9540 = vand.u32 %v9539, 4294901760
    %9541 = vmatpush1.xpose.msra.mxu0 %v9540
    %9542 = vmatprep.subr.mxu0 0.0
    %9543 = vmatpush1.xpose.msra.mxu0 0.0
    %9544 = vmatprep.subr.mxu0 0.0
    %9545 = vmatpush1.xpose.msra.mxu0 0.0
    %9546 = vmatprep.subr.mxu0 0.0
    %9547 = vmatpush1.xpose.msra.mxu0 0.0
    %9548 = vmatprep.subr.mxu0 0.0
    %9549 = vmatpush1.xpose.msra.mxu0 0.0
    %9550 = vmatprep.subr.mxu0 0.0
    %9551 = vmatpush1.xpose.msra.mxu0 0.0
    %9552 = vmatprep.subr.mxu0 0.0
    %9553 = vmatpush1.xpose.msra.mxu0 0.0
    %9554 = vmatprep.subr.mxu0 0.0
    %9555 = vmatpush1.xpose.msra.mxu0 0.0
    %9556 = vmatprep.subr.mxu0 0.0
    %9557 = vmatpush1.xpose.msra.mxu0 0.0
    %9558 = vmatprep.subr.mxu0 0.0
    %9559 = vmatpush1.xpose.msra.mxu0 0.0
    %9560 = vmatprep.subr.mxu0 0.0
    %9561 = vmatpush1.xpose.msra.mxu0 0.0
    %9562 = vmatprep.subr.mxu0 0.0
    %9563 = vmatpush1.xpose.msra.mxu0 0.0
    %9564 = vmatprep.subr.mxu0 0.0
    %9565 = vmatpush1.xpose.msra.mxu0 0.0
    %9566 = vmatprep.subr.mxu0 0.0
    %9567 = vmatpush1.xpose.msra.mxu0 0.0
    %9568 = vmatprep.subr.mxu0 0.0
    %9569 = vmatpush1.xpose.msra.mxu0 0.0
    %9570 = vmatprep.subr.mxu0 0.0
    %9571 = vmatpush1.xpose.msra.mxu0 0.0
    %9572 = vmatprep.subr.mxu0 0.0
    %9573 = vmatpush1.xpose.msra.mxu0 0.0
    %9574 = vmatprep.subr.mxu0 0.0
    %9575 = vmatpush1.xpose.msra.mxu0 0.0
    %9576 = vmatprep.subr.mxu0 0.0
    %9577 = vmatpush1.xpose.msra.mxu0 0.0
    %9578 = vmatprep.subr.mxu0 0.0
    %9579 = vmatpush1.xpose.msra.mxu0 0.0
    %9580 = vmatprep.subr.mxu0 0.0
    %9581 = vmatpush1.xpose.msra.mxu0 0.0
    %9582 = vmatprep.subr.mxu0 0.0
    %9583 = vmatpush1.xpose.msra.mxu0 0.0
    %9584 = vmatprep.subr.mxu0 0.0
    %9585 = vmatpush1.xpose.msra.mxu0 0.0
    %9586 = vmatprep.subr.mxu0 0.0
    %9587 = vmatpush1.xpose.msra.mxu0 0.0
    %9588 = vmatprep.subr.mxu0 0.0
    %9589 = vmatpush1.xpose.msra.mxu0 0.0
    %9590 = vmatprep.subr.mxu0 0.0
    %9591 = vmatpush1.xpose.msra.mxu0 0.0
    %9592 = vmatprep.subr.mxu0 0.0
    %9593 = vmatpush1.xpose.msra.mxu0 0.0
    %9594 = vmatprep.subr.mxu0 0.0
    %9595 = vmatpush1.xpose.msra.mxu0 0.0
    %9596 = vmatprep.subr.mxu0 0.0
    %9597 = vmatpush1.xpose.msra.mxu0 0.0
    %9598 = vmatprep.mubr.f32.mxu0 0.0
    %v9599 = vand.u32 %v9147, 4294901760
    %9600 = vmatmul.mubr.f32.gmra.mrb[0].mxu0 %v9599
    %v9601 = vpop.f32.mrb[0].mxu0
    %v9602 = vadd.f32 %v9511, %v9601
    %v9603 = vpop.f32.mrb[0].mxu0
    %9604 = vmatprep.mubr.f32.mxu0 0.0
    %v9605 = vand.u32 %v9150, 4294901760
    %9606 = vmatmul.mubr.f32.gmra.mrb[0].mxu0 %v9605
    %v9607 = vpop.f32.mrb[0].mxu0
    %v9608 = vadd.f32 %v9519, %v9607
    %v9609 = vpop.f32.mrb[0].mxu0
    %9610 = vdwg.mxu0
    %9611 = vmatprep.subr.mxu0 0.0
    %v9612 = vand.u32 %v9153, 4294901760
    %9613 = vmatpush1.xpose.msra.mxu0 %v9612
    %9614 = vmatprep.subr.mxu0 0.0
    %v9615 = vand.u32 %v9156, 4294901760
    %9616 = vmatpush1.xpose.msra.mxu0 %v9615
    %9617 = vmatprep.subr.mxu0 0.0
    %v9618 = vand.u32 %v9159, 4294901760
    %9619 = vmatpush1.xpose.msra.mxu0 %v9618
    %9620 = vmatprep.subr.mxu0 0.0
    %v9621 = vand.u32 %v9162, 4294901760
    %9622 = vmatpush1.xpose.msra.mxu0 %v9621
    %9623 = vmatprep.subr.mxu0 0.0
    %9624 = vmatpush1.xpose.msra.mxu0 0.0
    %9625 = vmatprep.subr.mxu0 0.0
    %9626 = vmatpush1.xpose.msra.mxu0 0.0
    %9627 = vmatprep.subr.mxu0 0.0
    %9628 = vmatpush1.xpose.msra.mxu0 0.0
    %9629 = vmatprep.subr.mxu0 0.0
    %9630 = vmatpush1.xpose.msra.mxu0 0.0
    %9631 = vmatprep.subr.mxu0 0.0
    %9632 = vmatpush1.xpose.msra.mxu0 0.0
    %9633 = vmatprep.subr.mxu0 0.0
    %9634 = vmatpush1.xpose.msra.mxu0 0.0
    %9635 = vmatprep.subr.mxu0 0.0
    %9636 = vmatpush1.xpose.msra.mxu0 0.0
    %9637 = vmatprep.subr.mxu0 0.0
    %9638 = vmatpush1.xpose.msra.mxu0 0.0
    %9639 = vmatprep.subr.mxu0 0.0
    %9640 = vmatpush1.xpose.msra.mxu0 0.0
    %9641 = vmatprep.subr.mxu0 0.0
    %9642 = vmatpush1.xpose.msra.mxu0 0.0
    %9643 = vmatprep.subr.mxu0 0.0
    %9644 = vmatpush1.xpose.msra.mxu0 0.0
    %9645 = vmatprep.subr.mxu0 0.0
    %9646 = vmatpush1.xpose.msra.mxu0 0.0
    %9647 = vmatprep.subr.mxu0 0.0
    %9648 = vmatpush1.xpose.msra.mxu0 0.0
    %9649 = vmatprep.subr.mxu0 0.0
    %9650 = vmatpush1.xpose.msra.mxu0 0.0
    %9651 = vmatprep.subr.mxu0 0.0
    %9652 = vmatpush1.xpose.msra.mxu0 0.0
    %9653 = vmatprep.subr.mxu0 0.0
    %9654 = vmatpush1.xpose.msra.mxu0 0.0
    %9655 = vmatprep.subr.mxu0 0.0
    %9656 = vmatpush1.xpose.msra.mxu0 0.0
    %9657 = vmatprep.subr.mxu0 0.0
    %9658 = vmatpush1.xpose.msra.mxu0 0.0
    %9659 = vmatprep.subr.mxu0 0.0
    %9660 = vmatpush1.xpose.msra.mxu0 0.0
    %9661 = vmatprep.subr.mxu0 0.0
    %9662 = vmatpush1.xpose.msra.mxu0 0.0
    %9663 = vmatprep.subr.mxu0 0.0
    %9664 = vmatpush1.xpose.msra.mxu0 0.0
    %9665 = vmatprep.subr.mxu0 0.0
    %9666 = vmatpush1.xpose.msra.mxu0 0.0
    %9667 = vmatprep.subr.mxu0 0.0
    %9668 = vmatpush1.xpose.msra.mxu0 0.0
    %9669 = vmatprep.subr.mxu0 0.0
    %9670 = vmatpush1.xpose.msra.mxu0 0.0
    %9671 = vmatprep.subr.mxu0 0.0
    %9672 = vmatpush1.xpose.msra.mxu0 0.0
    %9673 = vmatprep.subr.mxu0 0.0
    %9674 = vmatpush1.xpose.msra.mxu0 0.0
    %9675 = vmatprep.subr.mxu0 0.0
    %9676 = vmatpush1.xpose.msra.mxu0 0.0
    %9677 = vmatprep.subr.mxu0 0.0
    %9678 = vmatpush1.xpose.msra.mxu0 0.0
    %9679 = vmatprep.mubr.f32.mxu0 0.0
    %v9680 = vand.u32 %v9147, 4294901760
    %9681 = vmatmul.mubr.f32.gmra.mrb[0].mxu0 %v9680
    %v9682 = vpop.f32.mrb[0].mxu0
    %v9683 = vadd.f32 %v9602, %v9682
    %v9684 = vpop.f32.mrb[0].mxu0
    %9685 = vmatprep.mubr.f32.mxu0 0.0
    %v9686 = vand.u32 %v9150, 4294901760
    %9687 = vmatmul.mubr.f32.gmra.mrb[0].mxu0 %v9686
    %v9688 = vpop.f32.mrb[0].mxu0
    %v9689 = vadd.f32 %v9608, %v9688
    %v9690 = vpop.f32.mrb[0].mxu0
    %9691 = vdwg.mxu0
    %9692 = vst.msk [vmem:[#allocation11] sm:$0xff] %vm108, %v9683
    %9693 = vst.msk [vmem:[#allocation11 + $0x8] sm:$0xff] %vm108, %v9689
    // Predicated region
    $region38: #{tpu_custom_call.1} parent=1 // pred_check
      _
    $region39: #{tpu_custom_call.1} parent=1 // pred_check_branch
      %9695 = sbr.rel (0) target = $region41
    $region40: #{tpu_custom_call.1} parent=1 // pred_region
      %s9697 = ssub.s32 256, 256
      %9698 = vsyncadd [#allocation5], %s9697
      %s9699 = sshll.u32 [#allocation11], 4
      %s9700 = int_to_ptr.vmem [resolvable:$true] %s9699
      %9705 = dma.vmem_to_hbm [thread:$0]  %s9700, 256, %s5, [#allocation5], 128, 128, 8
    $region41: #{tpu_custom_call.1} parent=1 // pred_fallthru
      _
    // Predicated region
    $region42: #{tpu_custom_call.1} parent=1 // pred_check
      _
    $region43: #{tpu_custom_call.1} parent=1 // pred_check_branch
      %9707 = sbr.rel (0) target = $region45
    $region44: #{tpu_custom_call.1} parent=1 // pred_region
      %s9709 = ssub.s32 1024, 1024
      %9710 = vsyncadd [#allocation13], %s9709
      %s9711 = sshll.u32 [#allocation12], 4
      %s9712 = int_to_ptr.vmem [resolvable:$true] %s9711
      %9717 = dma.vmem_to_hbm [thread:$0]  %s9712, 1024, %s6, [#allocation13], 128, 128, 8
    $region45: #{tpu_custom_call.1} parent=1 // pred_fallthru
      _
    // Predicated region
    $region46: #{tpu_custom_call.1} parent=1 // pred_check
      _
    $region47: #{tpu_custom_call.1} parent=1 // pred_check_branch
      %9719 = sbr.rel (0) target = $region49
    $region48: #{tpu_custom_call.1} parent=1 // pred_region
      %9720 = dma.done [#allocation5], 256
    $region49: #{tpu_custom_call.1} parent=1 // pred_fallthru
      _
    // Predicated region
    $region50: #{tpu_custom_call.1} parent=1 // pred_check
      _
    $region51: #{tpu_custom_call.1} parent=1 // pred_check_branch
      %9722 = sbr.rel (0) target = $region53
    $region52: #{tpu_custom_call.1} parent=1 // pred_region
      %9723 = dma.done [#allocation13], 1024
    $region53: #{tpu_custom_call.1} parent=1 // pred_fallthru
      _
    %9724 = vsyncpa [#allocation4], 1
    %9725 = vsyncpa [#allocation7], 1
    %9726 = vsyncpa [#allocation10], 1
    %9727 = vsyncpa [#allocation5], 1
    %9728 = vsyncpa [#allocation13], 1

</llo_original>
